<compile_context>
chip_gen: v5e
topology: v5e:2x2
jax: 0.10.0
libtpu: 0.0.40
codegen_flags: <defaults>
</compile_context>

<pallas_src>
import jax
import jax.numpy as jnp
import numpy as np
from jax import lax
from jax.experimental import pallas as pl
from jax.experimental.pallas import tpu as pltpu


# ---------------------------------------------------------------------------
# Pass 1: 1x1 -> polyphase ConvTranspose -> depthwise 3x3 -> pointwise 1x1
#         + per-tile BatchNorm partial statistics.
# ---------------------------------------------------------------------------
def _make_stage1_kernel(TH, W, Wp, Cin1, C, H):
    f32 = jnp.float32

    def kernel(x_ref, w1_ref, wup_ref, bup_ref, wdw_ref, bdw_ref,
               wpw_ref, bpw_ref, z_ref, stats_ref):
        t = pl.program_id(1)
        h0 = t * TH

        # ---- 1x1 channel reduction (bias folded through the ones channel,
        #      so the zero-padded ring stays exactly zero). ------------------
        xv = x_ref[...]                                        # (TH+2, Wp, Cin1)
        y1 = jnp.dot(xv.reshape((TH + 2) * Wp, Cin1), w1_ref[...],
                     preferred_element_type=f32)
        y1p = y1.reshape(TH + 2, Wp, C)                        # padded, zero ring

        # ---- shifted windows reused by the polyphase taps ------------------
        # win[eps][dc][k*W + j, :] = y1p[k + eps, j + dc, :]
        win = [[None] * 3 for _ in range(2)]
        for dc in range(3):
            colflat = y1p[:, dc:dc + W, :].reshape((TH + 2) * W, C)
            for eps in range(2):
                win[eps][dc] = colflat[eps * W:(eps + TH + 1) * W, :]

        bup = bup_ref[...]                                     # (1, C)

        # rows outside the ConvTranspose output [0, 2H) must be zero for the
        # depthwise padding (only the first / last tile is affected).
        kk = lax.broadcasted_iota(jnp.int32, (TH + 1, 1, 1), 0)
        g_even = 2 * (h0 + kk)                                 # rows held by r=0
        mask0 = (g_even < 2 * H).astype(f32)
        mask1 = (g_even - 1 >= 0).astype(f32)                  # rows held by r=1
        masks = (mask0, mask1)

        # ---- polyphase ConvTranspose2d(4,2,1): 4 accumulated dots per output
        #      parity (r, s); no materialised im2col, no 75%-zero dilation. ---
        zcol = jnp.zeros((TH + 1, 1, C), f32)
        upP = [[None, None], [None, None]]
        for r in range(2):
            for s in range(2):
                acc = jnp.zeros(((TH + 1) * W, C), f32)
                for eps in range(2):
                    for delta in range(2):
                        acc = acc + jnp.dot(win[eps][s + delta],
                                            wup_ref[r, s, eps, delta],
                                            preferred_element_type=f32)
                up = (acc + bup).reshape(TH + 1, W, C) * masks[r]
                # zero columns -1 / 2W (horizontal depthwise padding)
                upP[r][s] = jnp.concatenate([zcol, up, zcol], axis=1)

        # ---- depthwise 3x3 (pad 1) in the parity domain (VPU) --------------
        wdw = wdw_ref[...]                                     # (3, 3, C)
        taps = [[wdw[a, b] for b in range(3)] for a in range(3)]   # hoisted
        bdw = bdw_ref[...]                                     # (1, C)
        dws = {}
        for rp in range(2):
            for sp in range(2):
                acc = jnp.zeros((TH, W, C), f32)
                for dh in (-1, 0, 1):
                    rsrc = (rp + dh) % 2
                    rstart = (rp + dh) // 2 + (1 if rsrc == 1 else 0)
                    for dv in (-1, 0, 1):
                        ssrc = (sp + dv) % 2
                        cstart = 1 + (sp + dv) // 2
                        blk = upP[rsrc][ssrc][rstart:rstart + TH,
                                              cstart:cstart + W, :]
                        acc = acc + blk * taps[dh + 1][dv + 1]
                dws[(rp, sp)] = acc + bdw

        # ---- pointwise 1x1 as a dense (C, C) dot + BN partial stats --------
        wpw = wpw_ref[...]
        bpw = bpw_ref[...]
        zs = {}
        tsum = jnp.zeros((1, C), f32)
        for rp in range(2):
            for sp in range(2):
                flat = dws[(rp, sp)].reshape(TH * W, C)
                zv = jnp.dot(flat, wpw, preferred_element_type=f32) + bpw
                zs[(rp, sp)] = zv
                tsum = tsum + jnp.sum(zv, axis=0, keepdims=True)
        tmean = tsum * (1.0 / (4 * TH * W))
        tss = jnp.zeros((1, C), f32)
        for rp in range(2):
            for sp in range(2):
                d = zs[(rp, sp)] - tmean
                tss = tss + jnp.sum(d * d, axis=0, keepdims=True)
                z_ref[rp, sp] = zs[(rp, sp)].reshape(TH, W, C)
        stats_ref[...] = jnp.concatenate([tsum, tss], axis=0)  # (2, C)

    return kernel


# ---------------------------------------------------------------------------
# Pass 2: BatchNorm affine (precomputed scale/shift) + LeakyReLU, elementwise.
# ---------------------------------------------------------------------------
def _bn_lrelu_kernel(z_ref, scale_ref, shift_ref, o_ref):
    y = z_ref[...] * scale_ref[...] + shift_ref[...]
    o_ref[...] = jnp.where(y >= 0, y, jnp.float32(0.01) * y)


# ---------------------------------------------------------------------------
# Wrapper
# ---------------------------------------------------------------------------
@jax.jit
def upscale_block_pallas(x_nchw, params):
    f32 = jnp.float32
    N, Cin, H, W = x_nchw.shape
    C = params["w1"].shape[-1]
    Cin1 = Cin + 1
    Wp = W + 2

    TH = 8 if (H % 8 == 0 and H >= 8) else H        # row-tile size (divides H)
    nH = H // TH

    # NCHW -> NHWC, append a ones channel (folds the 1x1 bias; makes the
    # zero-padded ring produce exactly zero after the 1x1), pad spatially and
    # cut overlapping row tiles (1-row halo each side) on the host.
    x = jnp.transpose(x_nchw, (0, 2, 3, 1)).astype(f32)
    x_aug = jnp.concatenate([x, jnp.ones((N, H, W, 1), f32)], axis=-1)
    x_pad = jnp.pad(x_aug, ((0, 0), (1, 1), (1, 1), (0, 0)))
    xh = jnp.stack([x_pad[:, t * TH: t * TH + TH + 2] for t in range(nH)],
                   axis=1)                                  # (N,nH,TH+2,Wp,Cin1)

    # ---- weight plumbing (all broadcasts / folds hoisted to the host) ------
    w1aug = jnp.concatenate([params["w1"][0, 0],
                             params["b1"].reshape(1, C)], axis=0)     # (Cin1, C)
    # polyphase weights: wpoly[r, s, eps, delta] = w_up[r + 2*eps, s + 2*delta]
    wpoly = jnp.transpose(params["w_up"].reshape(2, 2, 2, 2, C, C),
                          (1, 3, 0, 2, 4, 5))
    bup = params["b_up"].reshape(1, C)
    wdw = params["w_dw"]                                                # (3,3,C)
    bdw = params["b_dw"].reshape(1, C)
    wpw = params["w_pw"][0, 0]                                          # (C, C)
    bpw = params["b_pw"].reshape(1, C)

    def const_spec(shape):
        nd = len(shape)
        return pl.BlockSpec(shape, lambda n, t, nd=nd: (0,) * nd)

    grid = (N, nH)
    cparams = pltpu.CompilerParams(
        dimension_semantics=("parallel", "parallel"),
        vmem_limit_bytes=32 * 1024 * 1024)

    z_shape = (N, nH, 2, 2, TH, W, C)         # (n, row-tile, r, s, k, j, c)
    stats_shape = (N, nH, 2, C)

    kernel1 = _make_stage1_kernel(TH, W, Wp, Cin1, C, H)
    z, stats = pl.pallas_call(
        kernel1,
        grid=grid,
        in_specs=[
            pl.BlockSpec((None, None, TH + 2, Wp, Cin1),
                         lambda n, t: (n, t, 0, 0, 0)),
            const_spec((Cin1, C)),
            const_spec((2, 2, 2, 2, C, C)),
            const_spec((1, C)),
            const_spec((3, 3, C)),
            const_spec((1, C)),
            const_spec((C, C)),
            const_spec((1, C)),
        ],
        out_specs=[
            pl.BlockSpec((None, None, 2, 2, TH, W, C),
                         lambda n, t: (n, t, 0, 0, 0, 0, 0)),
            pl.BlockSpec((None, None, 2, C), lambda n, t: (n, t, 0, 0)),
        ],
        out_shape=[
            jax.ShapeDtypeStruct(z_shape, f32),
            jax.ShapeDtypeStruct(stats_shape, f32),
        ],
        compiler_params=cparams,
    )(xh, w1aug, wpoly, bup, wdw, bdw, wpw, bpw)

    # ---- combine per-tile BN partials (parallel-variance formula) ----------
    npix_tile = 4 * TH * W
    count = N * (2 * H) * (2 * W)
    tsum = stats[:, :, 0, :]                                 # (N, nH, C)
    tss = stats[:, :, 1, :]
    gmean = jnp.sum(tsum, axis=(0, 1)) / count
    tmean = tsum / npix_tile
    gss = jnp.sum(tss, axis=(0, 1)) + jnp.sum(
        npix_tile * (tmean - gmean) ** 2, axis=(0, 1))
    var = jnp.maximum(gss / count, 0.0)
    scale_c = params["gamma"] * lax.rsqrt(var + 1e-5)
    shift_c = params["beta"] - gmean * scale_c

    # ---- pass 2: normalize + LeakyReLU (tiny elementwise kernel) ------------
    y = pl.pallas_call(
        _bn_lrelu_kernel,
        grid=grid,
        in_specs=[
            pl.BlockSpec((None, None, 2, 2, TH, W, C),
                         lambda n, t: (n, t, 0, 0, 0, 0, 0)),
            const_spec((1, C)),
            const_spec((1, C)),
        ],
        out_specs=pl.BlockSpec((None, None, 2, 2, TH, W, C),
                               lambda n, t: (n, t, 0, 0, 0, 0, 0)),
        out_shape=jax.ShapeDtypeStruct(z_shape, f32),
        compiler_params=cparams,
    )(z, scale_c.reshape(1, C), shift_c.reshape(1, C))

    # (n, t, r, s, k, j, c) -> (n, c, t, k, r, j, s) -> NCHW.
    # TODO(synk): the parity un-shuffle + NHWC->NCHW is a single XLA transpose;
    # emitting NCHW from the kernel would need narrow (2W-lane) masked stores.
    out = jnp.transpose(y, (0, 6, 1, 4, 2, 5, 3)).reshape(N, C, 2 * H, 2 * W)
    return out


# ---------------------------------------------------------------------------
# Pure-JAX reference (correctness check)
# ---------------------------------------------------------------------------
@jax.jit
def upscale_block_ref(x_nchw, params):
    dn = ("NHWC", "HWIO", "NHWC")
    x = jnp.transpose(x_nchw, (0, 2, 3, 1))
    C = params["w1"].shape[-1]

    y = lax.conv_general_dilated(x, params["w1"], (1, 1), "VALID",
                                 dimension_numbers=dn) + params["b1"]
    y = lax.conv_general_dilated(y, params["w_up"], (1, 1),
                                 ((2, 2), (2, 2)), lhs_dilation=(2, 2),
                                 dimension_numbers=dn) + params["b_up"]
    y = lax.conv_general_dilated(y, params["w_dw"].reshape(3, 3, 1, C), (1, 1),
                                 ((1, 1), (1, 1)), dimension_numbers=dn,
                                 feature_group_count=C) + params["b_dw"]
    y = lax.conv_general_dilated(y, params["w_pw"], (1, 1), "VALID",
                                 dimension_numbers=dn) + params["b_pw"]
    mean = jnp.mean(y, axis=(0, 1, 2), keepdims=True)
    var = jnp.mean((y - mean) ** 2, axis=(0, 1, 2), keepdims=True)
    y = (y - mean) / jnp.sqrt(var + 1e-5) * params["gamma"] + params["beta"]
    y = jnp.where(y >= 0, y, 0.01 * y)
    return jnp.transpose(y, (0, 3, 1, 2))


# ---------------------------------------------------------------------------
# Parameter construction (deterministic, synthetic; matches PyTorch layouts)
# ---------------------------------------------------------------------------
def make_params(key, in_channels, out_channels):
    ks = jax.random.split(key, 8)
    C_in, C = in_channels, out_channels

    # channel_reduction: Conv2d(C_in, C, 1) -> HWIO (1,1,C_in,C)
    w1 = jax.random.normal(ks[0], (1, 1, C_in, C), jnp.float32) * 0.1
    b1 = jax.random.normal(ks[1], (C,), jnp.float32) * 0.1

    # upscale: ConvTranspose2d(C, C, 4, 2, 1); PyTorch weight (C_in, C_out, 4, 4)
    w_t = jax.random.normal(ks[2], (C, C, 4, 4), jnp.float32) * 0.1
    # equivalent regular-conv weight (HWIO) = spatially flipped transposed weight
    w_up = jnp.transpose(w_t[:, :, ::-1, ::-1], (2, 3, 0, 1))   # (4,4,C_in,C_out)
    b_up = jax.random.normal(ks[3], (C,), jnp.float32) * 0.1

    # depthwise: Conv2d(C, C, 3, groups=C); PyTorch weight (C,1,3,3) -> (3,3,C)
    w_dw_t = jax.random.normal(ks[4], (C, 1, 3, 3), jnp.float32) * 0.1
    w_dw = jnp.transpose(w_dw_t[:, 0], (1, 2, 0))                # (3,3,C)
    b_dw = jax.random.normal(ks[5], (C,), jnp.float32) * 0.1

    # pointwise: Conv2d(C, C, 1) -> HWIO (1,1,C,C)
    w_pw = jax.random.normal(ks[6], (1, 1, C, C), jnp.float32) * 0.1
    b_pw = jax.random.normal(ks[7], (C,), jnp.float32) * 0.1

    # BatchNorm2d init: gamma=1, beta=0 (training mode -> batch statistics)
    gamma = jnp.ones((C,), jnp.float32)
    beta = jnp.zeros((C,), jnp.float32)

    return dict(w1=w1, b1=b1, w_up=w_up, b_up=b_up, w_dw=w_dw, b_dw=b_dw,
                w_pw=w_pw, b_pw=b_pw, gamma=gamma, beta=beta)


# ---------------------------------------------------------------------------
if __name__ == "__main__":
    key = jax.random.PRNGKey(0)
    k_x, k_p = jax.random.split(key)

    N, C_in, C_out, H, W = 2, 8, 4, 16, 16
    x = jax.random.normal(k_x, (N, C_in, H, W), jnp.float32)    # NCHW like PyTorch
    params = make_params(k_p, C_in, C_out)

    out = jax.block_until_ready(upscale_block_pallas(x, params))
    assert out.shape == (N, C_out, 2 * H, 2 * W), out.shape

    ref = jax.block_until_ready(upscale_block_ref(x, params))
    # f32 end-to-end; BN's 1/sqrt(var) amplifies matmul rounding, so use a
    # slightly looser (still tight) tolerance than pure elementwise f32.
    np.testing.assert_allclose(np.asarray(out), np.asarray(ref),
                               atol=2e-4, rtol=2e-4)

    print("KERNEL_OK")
</pallas_src>

<mosaic_0001>
module attributes {stable_mosaic.version = 11 : i64} {
  func.func @_bn_lrelu_kernel(%arg0: i32, %arg1: i32, %arg2: memref<1x1x2x2x8x16x4xf32, #tpu.memory_space<vmem>>, %arg3: memref<1x4xf32, #tpu.memory_space<vmem>>, %arg4: memref<1x4xf32, #tpu.memory_space<vmem>>, %arg5: memref<1x1x2x2x8x16x4xf32, #tpu.memory_space<vmem>>) attributes {dimension_semantics = [#tpu.dimension_semantics<parallel>, #tpu.dimension_semantics<parallel>], iteration_bounds = array<i64: 2, 2>, scalar_prefetch = 0 : i64, scratch_operands = 0 : i64, tpu.core_type = #tpu.core_type<tc>, window_params = [{transform_indices = @transform_0, window_bounds = array<i64: 1, 1, 2, 2, 8, 16, 4>}, {pipeline_mode = #tpu.pipeline_mode<synchronous>, transform_indices = @transform_1, window_bounds = array<i64: 1, 4>}, {pipeline_mode = #tpu.pipeline_mode<synchronous>, transform_indices = @transform_2, window_bounds = array<i64: 1, 4>}, {transform_indices = @transform_3, window_bounds = array<i64: 1, 1, 2, 2, 8, 16, 4>}]} {
    %c0 = arith.constant 0 : index
    %c0_0 = arith.constant 0 : index
    %c0_1 = arith.constant 0 : index
    %c0_2 = arith.constant 0 : index
    %c0_3 = arith.constant 0 : index
    %c0_4 = arith.constant 0 : index
    %c0_5 = arith.constant 0 : index
    %0 = vector.load %arg2[%c0, %c0_0, %c0_1, %c0_2, %c0_3, %c0_4, %c0_5] : memref<1x1x2x2x8x16x4xf32, #tpu.memory_space<vmem>>, vector<1x1x2x2x8x16x4xf32>
    %1 = vector.shape_cast %0 : vector<1x1x2x2x8x16x4xf32> to vector<2x2x8x16x4xf32>
    %c0_6 = arith.constant 0 : index
    %c0_7 = arith.constant 0 : index
    %2 = vector.load %arg3[%c0_6, %c0_7] : memref<1x4xf32, #tpu.memory_space<vmem>>, vector<1x4xf32>
    %3 = vector.shape_cast %2 : vector<1x4xf32> to vector<1x1x1x1x4xf32>
    %4 = vector.broadcast %3 : vector<1x1x1x1x4xf32> to vector<2x2x8x16x4xf32>
    %5 = arith.mulf %1, %4 : vector<2x2x8x16x4xf32>
    %c0_8 = arith.constant 0 : index
    %c0_9 = arith.constant 0 : index
    %6 = vector.load %arg4[%c0_8, %c0_9] : memref<1x4xf32, #tpu.memory_space<vmem>>, vector<1x4xf32>
    %7 = vector.shape_cast %6 : vector<1x4xf32> to vector<1x1x1x1x4xf32>
    %8 = vector.broadcast %7 : vector<1x1x1x1x4xf32> to vector<2x2x8x16x4xf32>
    %9 = arith.addf %5, %8 : vector<2x2x8x16x4xf32>
    %cst = arith.constant 0.000000e+00 : f32
    %10 = vector.broadcast %cst : f32 to vector<2x2x8x16x4xf32>
    %11 = arith.cmpf oge, %9, %10 : vector<2x2x8x16x4xf32>
    %cst_10 = arith.constant 0.00999999977 : f32
    %12 = vector.broadcast %cst_10 : f32 to vector<2x2x8x16x4xf32>
    %13 = arith.mulf %12, %9 : vector<2x2x8x16x4xf32>
    %14 = arith.select %11, %9, %13 : vector<2x2x8x16x4xi1>, vector<2x2x8x16x4xf32>
    %c0_11 = arith.constant 0 : index
    %c0_12 = arith.constant 0 : index
    %c0_13 = arith.constant 0 : index
    %c0_14 = arith.constant 0 : index
    %c0_15 = arith.constant 0 : index
    %c0_16 = arith.constant 0 : index
    %c0_17 = arith.constant 0 : index
    %15 = vector.load %arg5[%c0_11, %c0_12, %c0_13, %c0_14, %c0_15, %c0_16, %c0_17] : memref<1x1x2x2x8x16x4xf32, #tpu.memory_space<vmem>>, vector<1x1x2x2x8x16x4xf32>
    %16 = vector.shape_cast %15 : vector<1x1x2x2x8x16x4xf32> to vector<2x2x8x16x4xf32>
    %17 = vector.shape_cast %14 : vector<2x2x8x16x4xf32> to vector<1x1x2x2x8x16x4xf32>
    tpu.vector_store %arg5[%c0_11, %c0_12, %c0_13, %c0_14, %c0_15, %c0_16, %c0_17], %17 {strides = array<i32>} : memref<1x1x2x2x8x16x4xf32, #tpu.memory_space<vmem>>, vector<1x1x2x2x8x16x4xf32>,
    return
  }
  func.func @transform_0(%arg0: i32, %arg1: i32) -> (i32, i32, i32, i32, i32, i32, i32) {
    %c0_i32 = arith.constant 0 : i32
    %c0_i32_0 = arith.constant 0 : i32
    %c0_i32_1 = arith.constant 0 : i32
    %c0_i32_2 = arith.constant 0 : i32
    %c0_i32_3 = arith.constant 0 : i32
    %c0_i32_4 = arith.constant 0 : i32
    return %arg0, %arg1, %c0_i32, %c0_i32_0, %c0_i32_1, %c0_i32_2, %c0_i32_3 : i32, i32, i32, i32, i32, i32, i32
  }
  func.func @transform_1(%arg0: i32, %arg1: i32) -> (i32, i32) {
    %c0_i32 = arith.constant 0 : i32
    %c0_i32_0 = arith.constant 0 : i32
    %c0_i32_1 = arith.constant 0 : i32
    return %c0_i32, %c0_i32_0 : i32, i32
  }
  func.func @transform_2(%arg0: i32, %arg1: i32) -> (i32, i32) {
    %c0_i32 = arith.constant 0 : i32
    %c0_i32_0 = arith.constant 0 : i32
    %c0_i32_1 = arith.constant 0 : i32
    return %c0_i32, %c0_i32_0 : i32, i32
  }
  func.func @transform_3(%arg0: i32, %arg1: i32) -> (i32, i32, i32, i32, i32, i32, i32) {
    %c0_i32 = arith.constant 0 : i32
    %c0_i32_0 = arith.constant 0 : i32
    %c0_i32_1 = arith.constant 0 : i32
    %c0_i32_2 = arith.constant 0 : i32
    %c0_i32_3 = arith.constant 0 : i32
    %c0_i32_4 = arith.constant 0 : i32
    return %arg0, %arg1, %c0_i32, %c0_i32_0, %c0_i32_1, %c0_i32_2, %c0_i32_3 : i32, i32, i32, i32, i32, i32, i32
  }
}

module attributes {stable_mosaic.version = 11 : i64} {
  func.func @kernel(%arg0: i32, %arg1: i32, %arg2: memref<1x1x10x18x9xf32, #tpu.memory_space<vmem>>, %arg3: memref<9x4xf32, #tpu.memory_space<vmem>>, %arg4: memref<2x2x2x2x4x4xf32, #tpu.memory_space<vmem>>, %arg5: memref<1x4xf32, #tpu.memory_space<vmem>>, %arg6: memref<3x3x4xf32, #tpu.memory_space<vmem>>, %arg7: memref<1x4xf32, #tpu.memory_space<vmem>>, %arg8: memref<4x4xf32, #tpu.memory_space<vmem>>, %arg9: memref<1x4xf32, #tpu.memory_space<vmem>>, %arg10: memref<1x1x2x2x8x16x4xf32, #tpu.memory_space<vmem>>, %arg11: memref<1x1x2x4xf32, #tpu.memory_space<vmem>>) attributes {dimension_semantics = [#tpu.dimension_semantics<parallel>, #tpu.dimension_semantics<parallel>], iteration_bounds = array<i64: 2, 2>, scalar_prefetch = 0 : i64, scratch_operands = 0 : i64, tpu.core_type = #tpu.core_type<tc>, window_params = [{transform_indices = @transform_0, window_bounds = array<i64: 1, 1, 10, 18, 9>}, {pipeline_mode = #tpu.pipeline_mode<synchronous>, transform_indices = @transform_1, window_bounds = array<i64: 9, 4>}, {pipeline_mode = #tpu.pipeline_mode<synchronous>, transform_indices = @transform_2, window_bounds = array<i64: 2, 2, 2, 2, 4, 4>}, {pipeline_mode = #tpu.pipeline_mode<synchronous>, transform_indices = @transform_3, window_bounds = array<i64: 1, 4>}, {pipeline_mode = #tpu.pipeline_mode<synchronous>, transform_indices = @transform_4, window_bounds = array<i64: 3, 3, 4>}, {pipeline_mode = #tpu.pipeline_mode<synchronous>, transform_indices = @transform_5, window_bounds = array<i64: 1, 4>}, {pipeline_mode = #tpu.pipeline_mode<synchronous>, transform_indices = @transform_6, window_bounds = array<i64: 4, 4>}, {pipeline_mode = #tpu.pipeline_mode<synchronous>, transform_indices = @transform_7, window_bounds = array<i64: 1, 4>}, {transform_indices = @transform_8, window_bounds = array<i64: 1, 1, 2, 2, 8, 16, 4>}, {transform_indices = @transform_9, window_bounds = array<i64: 1, 1, 2, 4>}]} {
    %c8_i32 = arith.constant 8 : i32
    %0 = arith.muli %arg1, %c8_i32 : i32
    %c0 = arith.constant 0 : index
    %c0_0 = arith.constant 0 : index
    %c0_1 = arith.constant 0 : index
    %c0_2 = arith.constant 0 : index
    %c0_3 = arith.constant 0 : index
    %1 = vector.load %arg2[%c0, %c0_0, %c0_1, %c0_2, %c0_3] : memref<1x1x10x18x9xf32, #tpu.memory_space<vmem>>, vector<1x1x10x18x9xf32>
    %2 = vector.shape_cast %1 : vector<1x1x10x18x9xf32> to vector<10x18x9xf32>
    %3 = vector.shape_cast %2 : vector<10x18x9xf32> to vector<180x9xf32>
    %c0_4 = arith.constant 0 : index
    %c0_5 = arith.constant 0 : index
    %4 = vector.load %arg3[%c0_4, %c0_5] : memref<9x4xf32, #tpu.memory_space<vmem>>, vector<9x4xf32>
    %cst = arith.constant dense<0.000000e+00> : vector<180x4xf32>
    %5 = tpu.matmul %3, %4, %cst {dimension_numbers = #tpu.dot_dimension_numbers<[1], [0], [0], [1], [0, 0, 1, 1], [], []>} : vector<180x9xf32>, vector<9x4xf32>, vector<180x4xf32> -> vector<180x4xf32>
    %6 = vector.shape_cast %5 : vector<180x4xf32> to vector<10x18x4xf32>
    %7 = vector.extract_strided_slice %6 {offsets = [0, 0, 0], sizes = [10, 16, 4], strides = [1, 1, 1]} : vector<10x18x4xf32> to vector<10x16x4xf32>
    %8 = vector.shape_cast %7 : vector<10x16x4xf32> to vector<160x4xf32>
    %9 = vector.extract_strided_slice %8 {offsets = [0, 0], sizes = [144, 4], strides = [1, 1]} : vector<160x4xf32> to vector<144x4xf32>
    %10 = vector.extract_strided_slice %8 {offsets = [16, 0], sizes = [144, 4], strides = [1, 1]} : vector<160x4xf32> to vector<144x4xf32>
    %11 = vector.extract_strided_slice %6 {offsets = [0, 1, 0], sizes = [10, 16, 4], strides = [1, 1, 1]} : vector<10x18x4xf32> to vector<10x16x4xf32>
    %12 = vector.shape_cast %11 : vector<10x16x4xf32> to vector<160x4xf32>
    %13 = vector.extract_strided_slice %12 {offsets = [0, 0], sizes = [144, 4], strides = [1, 1]} : vector<160x4xf32> to vector<144x4xf32>
    %14 = vector.extract_strided_slice %12 {offsets = [16, 0], sizes = [144, 4], strides = [1, 1]} : vector<160x4xf32> to vector<144x4xf32>
    %15 = vector.extract_strided_slice %6 {offsets = [0, 2, 0], sizes = [10, 16, 4], strides = [1, 1, 1]} : vector<10x18x4xf32> to vector<10x16x4xf32>
    %16 = vector.shape_cast %15 : vector<10x16x4xf32> to vector<160x4xf32>
    %17 = vector.extract_strided_slice %16 {offsets = [0, 0], sizes = [144, 4], strides = [1, 1]} : vector<160x4xf32> to vector<144x4xf32>
    %18 = vector.extract_strided_slice %16 {offsets = [16, 0], sizes = [144, 4], strides = [1, 1]} : vector<160x4xf32> to vector<144x4xf32>
    %c0_6 = arith.constant 0 : index
    %c0_7 = arith.constant 0 : index
    %19 = vector.load %arg5[%c0_6, %c0_7] : memref<1x4xf32, #tpu.memory_space<vmem>>, vector<1x4xf32>
    %20 = tpu.iota {dimensions = array<i32: 0>} : vector<9x1x1xi32>
    %21 = vector.broadcast %0 : i32 to vector<9x1x1xi32>
    %22 = arith.addi %21, %20 : vector<9x1x1xi32>
    %c2_i32 = arith.constant 2 : i32
    %23 = vector.broadcast %c2_i32 : i32 to vector<9x1x1xi32>
    %24 = arith.muli %23, %22 : vector<9x1x1xi32>
    %c32_i32 = arith.constant 32 : i32
    %25 = vector.broadcast %c32_i32 : i32 to vector<9x1x1xi32>
    %26 = arith.cmpi slt, %24, %25 : vector<9x1x1xi32>
    %27 = arith.extui %26 : vector<9x1x1xi1> to vector<9x1x1xi32>
    %28 = arith.sitofp %27 : vector<9x1x1xi32> to vector<9x1x1xf32>
    %c1_i32 = arith.constant 1 : i32
    %29 = vector.broadcast %c1_i32 : i32 to vector<9x1x1xi32>
    %30 = arith.subi %24, %29 : vector<9x1x1xi32>
    %c0_i32 = arith.constant 0 : i32
    %31 = vector.broadcast %c0_i32 : i32 to vector<9x1x1xi32>
    %32 = arith.cmpi sge, %30, %31 : vector<9x1x1xi32>
    %33 = arith.extui %32 : vector<9x1x1xi1> to vector<9x1x1xi32>
    %34 = arith.sitofp %33 : vector<9x1x1xi32> to vector<9x1x1xf32>
    %cst_8 = arith.constant 0.000000e+00 : f32
    %35 = vector.broadcast %cst_8 : f32 to vector<9x1x4xf32>
    %cst_9 = arith.constant 0.000000e+00 : f32
    %36 = vector.broadcast %cst_9 : f32 to vector<144x4xf32>
    %c0_10 = arith.constant 0 : index
    %c0_11 = arith.constant 0 : index
    %c0_12 = arith.constant 0 : index
    %c0_13 = arith.constant 0 : index
    %c0_14 = arith.constant 0 : index
    %c0_15 = arith.constant 0 : index
    %37 = vector.load %arg4[%c0_10, %c0_11, %c0_12, %c0_13, %c0_14, %c0_15] : memref<2x2x2x2x4x4xf32, #tpu.memory_space<vmem>>, vector<1x1x1x1x4x4xf32>
    %38 = vector.shape_cast %37 : vector<1x1x1x1x4x4xf32> to vector<4x4xf32>
    %cst_16 = arith.constant dense<0.000000e+00> : vector<144x4xf32>
    %39 = tpu.matmul %9, %38, %cst_16 {dimension_numbers = #tpu.dot_dimension_numbers<[1], [0], [0], [1], [0, 0, 1, 1], [], []>} : vector<144x4xf32>, vector<4x4xf32>, vector<144x4xf32> -> vector<144x4xf32>
    %40 = arith.addf %36, %39 : vector<144x4xf32>
    %c0_17 = arith.constant 0 : index
    %c0_18 = arith.constant 0 : index
    %c0_19 = arith.constant 0 : index
    %c1 = arith.constant 1 : index
    %c0_20 = arith.constant 0 : index
    %c0_21 = arith.constant 0 : index
    %41 = vector.load %arg4[%c0_17, %c0_18, %c0_19, %c1, %c0_20, %c0_21] : memref<2x2x2x2x4x4xf32, #tpu.memory_space<vmem>>, vector<1x1x1x1x4x4xf32>
    %42 = vector.shape_cast %41 : vector<1x1x1x1x4x4xf32> to vector<4x4xf32>
    %cst_22 = arith.constant dense<0.000000e+00> : vector<144x4xf32>
    %43 = tpu.matmul %13, %42, %cst_22 {dimension_numbers = #tpu.dot_dimension_numbers<[1], [0], [0], [1], [0, 0, 1, 1], [], []>} : vector<144x4xf32>, vector<4x4xf32>, vector<144x4xf32> -> vector<144x4xf32>
    %44 = arith.addf %40, %43 : vector<144x4xf32>
    %c0_23 = arith.constant 0 : index
    %c0_24 = arith.constant 0 : index
    %c1_25 = arith.constant 1 : index
    %c0_26 = arith.constant 0 : index
    %c0_27 = arith.constant 0 : index
    %c0_28 = arith.constant 0 : index
    %45 = vector.load %arg4[%c0_23, %c0_24, %c1_25, %c0_26, %c0_27, %c0_28] : memref<2x2x2x2x4x4xf32, #tpu.memory_space<vmem>>, vector<1x1x1x1x4x4xf32>
    %46 = vector.shape_cast %45 : vector<1x1x1x1x4x4xf32> to vector<4x4xf32>
    %cst_29 = arith.constant dense<0.000000e+00> : vector<144x4xf32>
    %47 = tpu.matmul %10, %46, %cst_29 {dimension_numbers = #tpu.dot_dimension_numbers<[1], [0], [0], [1], [0, 0, 1, 1], [], []>} : vector<144x4xf32>, vector<4x4xf32>, vector<144x4xf32> -> vector<144x4xf32>
    %48 = arith.addf %44, %47 : vector<144x4xf32>
    %c0_30 = arith.constant 0 : index
    %c0_31 = arith.constant 0 : index
    %c1_32 = arith.constant 1 : index
    %c1_33 = arith.constant 1 : index
    %c0_34 = arith.constant 0 : index
    %c0_35 = arith.constant 0 : index
    %49 = vector.load %arg4[%c0_30, %c0_31, %c1_32, %c1_33, %c0_34, %c0_35] : memref<2x2x2x2x4x4xf32, #tpu.memory_space<vmem>>, vector<1x1x1x1x4x4xf32>
    %50 = vector.shape_cast %49 : vector<1x1x1x1x4x4xf32> to vector<4x4xf32>
    %cst_36 = arith.constant dense<0.000000e+00> : vector<144x4xf32>
    %51 = tpu.matmul %14, %50, %cst_36 {dimension_numbers = #tpu.dot_dimension_numbers<[1], [0], [0], [1], [0, 0, 1, 1], [], []>} : vector<144x4xf32>, vector<4x4xf32>, vector<144x4xf32> -> vector<144x4xf32>
    %52 = arith.addf %48, %51 : vector<144x4xf32>
    %53 = vector.broadcast %19 : vector<1x4xf32> to vector<144x4xf32>
    %54 = arith.addf %52, %53 : vector<144x4xf32>
    %55 = vector.shape_cast %54 : vector<144x4xf32> to vector<9x16x4xf32>
    %56 = vector.broadcast %28 : vector<9x1x1xf32> to vector<9x16x4xf32>
    %57 = arith.mulf %55, %56 : vector<9x16x4xf32>
    %58 = tpu.concatenate %35, %57, %35 in 1 : vector<9x1x4xf32>, vector<9x16x4xf32>, vector<9x1x4xf32> -> vector<9x18x4xf32>
    %cst_37 = arith.constant 0.000000e+00 : f32
    %59 = vector.broadcast %cst_37 : f32 to vector<144x4xf32>
    %c0_38 = arith.constant 0 : index
    %c1_39 = arith.constant 1 : index
    %c0_40 = arith.constant 0 : index
    %c0_41 = arith.constant 0 : index
    %c0_42 = arith.constant 0 : index
    %c0_43 = arith.constant 0 : index
    %60 = vector.load %arg4[%c0_38, %c1_39, %c0_40, %c0_41, %c0_42, %c0_43] : memref<2x2x2x2x4x4xf32, #tpu.memory_space<vmem>>, vector<1x1x1x1x4x4xf32>
    %61 = vector.shape_cast %60 : vector<1x1x1x1x4x4xf32> to vector<4x4xf32>
    %cst_44 = arith.constant dense<0.000000e+00> : vector<144x4xf32>
    %62 = tpu.matmul %13, %61, %cst_44 {dimension_numbers = #tpu.dot_dimension_numbers<[1], [0], [0], [1], [0, 0, 1, 1], [], []>} : vector<144x4xf32>, vector<4x4xf32>, vector<144x4xf32> -> vector<144x4xf32>
    %63 = arith.addf %59, %62 : vector<144x4xf32>
    %c0_45 = arith.constant 0 : index
    %c1_46 = arith.constant 1 : index
    %c0_47 = arith.constant 0 : index
    %c1_48 = arith.constant 1 : index
    %c0_49 = arith.constant 0 : index
    %c0_50 = arith.constant 0 : index
    %64 = vector.load %arg4[%c0_45, %c1_46, %c0_47, %c1_48, %c0_49, %c0_50] : memref<2x2x2x2x4x4xf32, #tpu.memory_space<vmem>>, vector<1x1x1x1x4x4xf32>
    %65 = vector.shape_cast %64 : vector<1x1x1x1x4x4xf32> to vector<4x4xf32>
    %cst_51 = arith.constant dense<0.000000e+00> : vector<144x4xf32>
    %66 = tpu.matmul %17, %65, %cst_51 {dimension_numbers = #tpu.dot_dimension_numbers<[1], [0], [0], [1], [0, 0, 1, 1], [], []>} : vector<144x4xf32>, vector<4x4xf32>, vector<144x4xf32> -> vector<144x4xf32>
    %67 = arith.addf %63, %66 : vector<144x4xf32>
    %c0_52 = arith.constant 0 : index
    %c1_53 = arith.constant 1 : index
    %c1_54 = arith.constant 1 : index
    %c0_55 = arith.constant 0 : index
    %c0_56 = arith.constant 0 : index
    %c0_57 = arith.constant 0 : index
    %68 = vector.load %arg4[%c0_52, %c1_53, %c1_54, %c0_55, %c0_56, %c0_57] : memref<2x2x2x2x4x4xf32, #tpu.memory_space<vmem>>, vector<1x1x1x1x4x4xf32>
    %69 = vector.shape_cast %68 : vector<1x1x1x1x4x4xf32> to vector<4x4xf32>
    %cst_58 = arith.constant dense<0.000000e+00> : vector<144x4xf32>
    %70 = tpu.matmul %14, %69, %cst_58 {dimension_numbers = #tpu.dot_dimension_numbers<[1], [0], [0], [1], [0, 0, 1, 1], [], []>} : vector<144x4xf32>, vector<4x4xf32>, vector<144x4xf32> -> vector<144x4xf32>
    %71 = arith.addf %67, %70 : vector<144x4xf32>
    %c0_59 = arith.constant 0 : index
    %c1_60 = arith.constant 1 : index
    %c1_61 = arith.constant 1 : index
    %c1_62 = arith.constant 1 : index
    %c0_63 = arith.constant 0 : index
    %c0_64 = arith.constant 0 : index
    %72 = vector.load %arg4[%c0_59, %c1_60, %c1_61, %c1_62, %c0_63, %c0_64] : memref<2x2x2x2x4x4xf32, #tpu.memory_space<vmem>>, vector<1x1x1x1x4x4xf32>
    %73 = vector.shape_cast %72 : vector<1x1x1x1x4x4xf32> to vector<4x4xf32>
    %cst_65 = arith.constant dense<0.000000e+00> : vector<144x4xf32>
    %74 = tpu.matmul %18, %73, %cst_65 {dimension_numbers = #tpu.dot_dimension_numbers<[1], [0], [0], [1], [0, 0, 1, 1], [], []>} : vector<144x4xf32>, vector<4x4xf32>, vector<144x4xf32> -> vector<144x4xf32>
    %75 = arith.addf %71, %74 : vector<144x4xf32>
    %76 = vector.broadcast %19 : vector<1x4xf32> to vector<144x4xf32>
    %77 = arith.addf %75, %76 : vector<144x4xf32>
    %78 = vector.shape_cast %77 : vector<144x4xf32> to vector<9x16x4xf32>
    %79 = vector.broadcast %28 : vector<9x1x1xf32> to vector<9x16x4xf32>
    %80 = arith.mulf %78, %79 : vector<9x16x4xf32>
    %81 = tpu.concatenate %35, %80, %35 in 1 : vector<9x1x4xf32>, vector<9x16x4xf32>, vector<9x1x4xf32> -> vector<9x18x4xf32>
    %cst_66 = arith.constant 0.000000e+00 : f32
    %82 = vector.broadcast %cst_66 : f32 to vector<144x4xf32>
    %c1_67 = arith.constant 1 : index
    %c0_68 = arith.constant 0 : index
    %c0_69 = arith.constant 0 : index
    %c0_70 = arith.constant 0 : index
    %c0_71 = arith.constant 0 : index
    %c0_72 = arith.constant 0 : index
    %83 = vector.load %arg4[%c1_67, %c0_68, %c0_69, %c0_70, %c0_71, %c0_72] : memref<2x2x2x2x4x4xf32, #tpu.memory_space<vmem>>, vector<1x1x1x1x4x4xf32>
    %84 = vector.shape_cast %83 : vector<1x1x1x1x4x4xf32> to vector<4x4xf32>
    %cst_73 = arith.constant dense<0.000000e+00> : vector<144x4xf32>
    %85 = tpu.matmul %9, %84, %cst_73 {dimension_numbers = #tpu.dot_dimension_numbers<[1], [0], [0], [1], [0, 0, 1, 1], [], []>} : vector<144x4xf32>, vector<4x4xf32>, vector<144x4xf32> -> vector<144x4xf32>
    %86 = arith.addf %82, %85 : vector<144x4xf32>
    %c1_74 = arith.constant 1 : index
    %c0_75 = arith.constant 0 : index
    %c0_76 = arith.constant 0 : index
    %c1_77 = arith.constant 1 : index
    %c0_78 = arith.constant 0 : index
    %c0_79 = arith.constant 0 : index
    %87 = vector.load %arg4[%c1_74, %c0_75, %c0_76, %c1_77, %c0_78, %c0_79] : memref<2x2x2x2x4x4xf32, #tpu.memory_space<vmem>>, vector<1x1x1x1x4x4xf32>
    %88 = vector.shape_cast %87 : vector<1x1x1x1x4x4xf32> to vector<4x4xf32>
    %cst_80 = arith.constant dense<0.000000e+00> : vector<144x4xf32>
    %89 = tpu.matmul %13, %88, %cst_80 {dimension_numbers = #tpu.dot_dimension_numbers<[1], [0], [0], [1], [0, 0, 1, 1], [], []>} : vector<144x4xf32>, vector<4x4xf32>, vector<144x4xf32> -> vector<144x4xf32>
    %90 = arith.addf %86, %89 : vector<144x4xf32>
    %c1_81 = arith.constant 1 : index
    %c0_82 = arith.constant 0 : index
    %c1_83 = arith.constant 1 : index
    %c0_84 = arith.constant 0 : index
    %c0_85 = arith.constant 0 : index
    %c0_86 = arith.constant 0 : index
    %91 = vector.load %arg4[%c1_81, %c0_82, %c1_83, %c0_84, %c0_85, %c0_86] : memref<2x2x2x2x4x4xf32, #tpu.memory_space<vmem>>, vector<1x1x1x1x4x4xf32>
    %92 = vector.shape_cast %91 : vector<1x1x1x1x4x4xf32> to vector<4x4xf32>
    %cst_87 = arith.constant dense<0.000000e+00> : vector<144x4xf32>
    %93 = tpu.matmul %10, %92, %cst_87 {dimension_numbers = #tpu.dot_dimension_numbers<[1], [0], [0], [1], [0, 0, 1, 1], [], []>} : vector<144x4xf32>, vector<4x4xf32>, vector<144x4xf32> -> vector<144x4xf32>
    %94 = arith.addf %90, %93 : vector<144x4xf32>
    %c1_88 = arith.constant 1 : index
    %c0_89 = arith.constant 0 : index
    %c1_90 = arith.constant 1 : index
    %c1_91 = arith.constant 1 : index
    %c0_92 = arith.constant 0 : index
    %c0_93 = arith.constant 0 : index
    %95 = vector.load %arg4[%c1_88, %c0_89, %c1_90, %c1_91, %c0_92, %c0_93] : memref<2x2x2x2x4x4xf32, #tpu.memory_space<vmem>>, vector<1x1x1x1x4x4xf32>
    %96 = vector.shape_cast %95 : vector<1x1x1x1x4x4xf32> to vector<4x4xf32>
    %cst_94 = arith.constant dense<0.000000e+00> : vector<144x4xf32>
    %97 = tpu.matmul %14, %96, %cst_94 {dimension_numbers = #tpu.dot_dimension_numbers<[1], [0], [0], [1], [0, 0, 1, 1], [], []>} : vector<144x4xf32>, vector<4x4xf32>, vector<144x4xf32> -> vector<144x4xf32>
    %98 = arith.addf %94, %97 : vector<144x4xf32>
    %99 = vector.broadcast %19 : vector<1x4xf32> to vector<144x4xf32>
    %100 = arith.addf %98, %99 : vector<144x4xf32>
    %101 = vector.shape_cast %100 : vector<144x4xf32> to vector<9x16x4xf32>
    %102 = vector.broadcast %34 : vector<9x1x1xf32> to vector<9x16x4xf32>
    %103 = arith.mulf %101, %102 : vector<9x16x4xf32>
    %104 = tpu.concatenate %35, %103, %35 in 1 : vector<9x1x4xf32>, vector<9x16x4xf32>, vector<9x1x4xf32> -> vector<9x18x4xf32>
    %cst_95 = arith.constant 0.000000e+00 : f32
    %105 = vector.broadcast %cst_95 : f32 to vector<144x4xf32>
    %c1_96 = arith.constant 1 : index
    %c1_97 = arith.constant 1 : index
    %c0_98 = arith.constant 0 : index
    %c0_99 = arith.constant 0 : index
    %c0_100 = arith.constant 0 : index
    %c0_101 = arith.constant 0 : index
    %106 = vector.load %arg4[%c1_96, %c1_97, %c0_98, %c0_99, %c0_100, %c0_101] : memref<2x2x2x2x4x4xf32, #tpu.memory_space<vmem>>, vector<1x1x1x1x4x4xf32>
    %107 = vector.shape_cast %106 : vector<1x1x1x1x4x4xf32> to vector<4x4xf32>
    %cst_102 = arith.constant dense<0.000000e+00> : vector<144x4xf32>
    %108 = tpu.matmul %13, %107, %cst_102 {dimension_numbers = #tpu.dot_dimension_numbers<[1], [0], [0], [1], [0, 0, 1, 1], [], []>} : vector<144x4xf32>, vector<4x4xf32>, vector<144x4xf32> -> vector<144x4xf32>
    %109 = arith.addf %105, %108 : vector<144x4xf32>
    %c1_103 = arith.constant 1 : index
    %c1_104 = arith.constant 1 : index
    %c0_105 = arith.constant 0 : index
    %c1_106 = arith.constant 1 : index
    %c0_107 = arith.constant 0 : index
    %c0_108 = arith.constant 0 : index
    %110 = vector.load %arg4[%c1_103, %c1_104, %c0_105, %c1_106, %c0_107, %c0_108] : memref<2x2x2x2x4x4xf32, #tpu.memory_space<vmem>>, vector<1x1x1x1x4x4xf32>
    %111 = vector.shape_cast %110 : vector<1x1x1x1x4x4xf32> to vector<4x4xf32>
    %cst_109 = arith.constant dense<0.000000e+00> : vector<144x4xf32>
    %112 = tpu.matmul %17, %111, %cst_109 {dimension_numbers = #tpu.dot_dimension_numbers<[1], [0], [0], [1], [0, 0, 1, 1], [], []>} : vector<144x4xf32>, vector<4x4xf32>, vector<144x4xf32> -> vector<144x4xf32>
    %113 = arith.addf %109, %112 : vector<144x4xf32>
    %c1_110 = arith.constant 1 : index
    %c1_111 = arith.constant 1 : index
    %c1_112 = arith.constant 1 : index
    %c0_113 = arith.constant 0 : index
    %c0_114 = arith.constant 0 : index
    %c0_115 = arith.constant 0 : index
    %114 = vector.load %arg4[%c1_110, %c1_111, %c1_112, %c0_113, %c0_114, %c0_115] : memref<2x2x2x2x4x4xf32, #tpu.memory_space<vmem>>, vector<1x1x1x1x4x4xf32>
    %115 = vector.shape_cast %114 : vector<1x1x1x1x4x4xf32> to vector<4x4xf32>
    %cst_116 = arith.constant dense<0.000000e+00> : vector<144x4xf32>
    %116 = tpu.matmul %14, %115, %cst_116 {dimension_numbers = #tpu.dot_dimension_numbers<[1], [0], [0], [1], [0, 0, 1, 1], [], []>} : vector<144x4xf32>, vector<4x4xf32>, vector<144x4xf32> -> vector<144x4xf32>
    %117 = arith.addf %113, %116 : vector<144x4xf32>
    %c1_117 = arith.constant 1 : index
    %c1_118 = arith.constant 1 : index
    %c1_119 = arith.constant 1 : index
    %c1_120 = arith.constant 1 : index
    %c0_121 = arith.constant 0 : index
    %c0_122 = arith.constant 0 : index
    %118 = vector.load %arg4[%c1_117, %c1_118, %c1_119, %c1_120, %c0_121, %c0_122] : memref<2x2x2x2x4x4xf32, #tpu.memory_space<vmem>>, vector<1x1x1x1x4x4xf32>
    %119 = vector.shape_cast %118 : vector<1x1x1x1x4x4xf32> to vector<4x4xf32>
    %cst_123 = arith.constant dense<0.000000e+00> : vector<144x4xf32>
    %120 = tpu.matmul %18, %119, %cst_123 {dimension_numbers = #tpu.dot_dimension_numbers<[1], [0], [0], [1], [0, 0, 1, 1], [], []>} : vector<144x4xf32>, vector<4x4xf32>, vector<144x4xf32> -> vector<144x4xf32>
    %121 = arith.addf %117, %120 : vector<144x4xf32>
    %122 = vector.broadcast %19 : vector<1x4xf32> to vector<144x4xf32>
    %123 = arith.addf %121, %122 : vector<144x4xf32>
    %124 = vector.shape_cast %123 : vector<144x4xf32> to vector<9x16x4xf32>
    %125 = vector.broadcast %34 : vector<9x1x1xf32> to vector<9x16x4xf32>
    %126 = arith.mulf %124, %125 : vector<9x16x4xf32>
    %127 = tpu.concatenate %35, %126, %35 in 1 : vector<9x1x4xf32>, vector<9x16x4xf32>, vector<9x1x4xf32> -> vector<9x18x4xf32>
    %c0_124 = arith.constant 0 : index
    %c0_125 = arith.constant 0 : index
    %c0_126 = arith.constant 0 : index
    %128 = vector.load %arg6[%c0_124, %c0_125, %c0_126] : memref<3x3x4xf32, #tpu.memory_space<vmem>>, vector<3x3x4xf32>
    %129 = vector.extract_strided_slice %128 {offsets = [0, 0, 0], sizes = [1, 1, 4], strides = [1, 1, 1]} : vector<3x3x4xf32> to vector<1x1x4xf32>
    %130 = vector.shape_cast %129 : vector<1x1x4xf32> to vector<4xf32>
    %131 = vector.extract_strided_slice %128 {offsets = [0, 1, 0], sizes = [1, 1, 4], strides = [1, 1, 1]} : vector<3x3x4xf32> to vector<1x1x4xf32>
    %132 = vector.shape_cast %131 : vector<1x1x4xf32> to vector<4xf32>
    %133 = vector.extract_strided_slice %128 {offsets = [0, 2, 0], sizes = [1, 1, 4], strides = [1, 1, 1]} : vector<3x3x4xf32> to vector<1x1x4xf32>
    %134 = vector.shape_cast %133 : vector<1x1x4xf32> to vector<4xf32>
    %135 = vector.extract_strided_slice %128 {offsets = [1, 0, 0], sizes = [1, 1, 4], strides = [1, 1, 1]} : vector<3x3x4xf32> to vector<1x1x4xf32>
    %136 = vector.shape_cast %135 : vector<1x1x4xf32> to vector<4xf32>
    %137 = vector.extract_strided_slice %128 {offsets = [1, 1, 0], sizes = [1, 1, 4], strides = [1, 1, 1]} : vector<3x3x4xf32> to vector<1x1x4xf32>
    %138 = vector.shape_cast %137 : vector<1x1x4xf32> to vector<4xf32>
    %139 = vector.extract_strided_slice %128 {offsets = [1, 2, 0], sizes = [1, 1, 4], strides = [1, 1, 1]} : vector<3x3x4xf32> to vector<1x1x4xf32>
    %140 = vector.shape_cast %139 : vector<1x1x4xf32> to vector<4xf32>
    %141 = vector.extract_strided_slice %128 {offsets = [2, 0, 0], sizes = [1, 1, 4], strides = [1, 1, 1]} : vector<3x3x4xf32> to vector<1x1x4xf32>
    %142 = vector.shape_cast %141 : vector<1x1x4xf32> to vector<4xf32>
    %143 = vector.extract_strided_slice %128 {offsets = [2, 1, 0], sizes = [1, 1, 4], strides = [1, 1, 1]} : vector<3x3x4xf32> to vector<1x1x4xf32>
    %144 = vector.shape_cast %143 : vector<1x1x4xf32> to vector<4xf32>
    %145 = vector.extract_strided_slice %128 {offsets = [2, 2, 0], sizes = [1, 1, 4], strides = [1, 1, 1]} : vector<3x3x4xf32> to vector<1x1x4xf32>
    %146 = vector.shape_cast %145 : vector<1x1x4xf32> to vector<4xf32>
    %c0_127 = arith.constant 0 : index
    %c0_128 = arith.constant 0 : index
    %147 = vector.load %arg7[%c0_127, %c0_128] : memref<1x4xf32, #tpu.memory_space<vmem>>, vector<1x4xf32>
    %cst_129 = arith.constant 0.000000e+00 : f32
    %148 = vector.broadcast %cst_129 : f32 to vector<8x16x4xf32>
    %149 = vector.extract_strided_slice %127 {offsets = [0, 0, 0], sizes = [8, 16, 4], strides = [1, 1, 1]} : vector<9x18x4xf32> to vector<8x16x4xf32>
    %150 = vector.shape_cast %130 : vector<4xf32> to vector<1x1x4xf32>
    %151 = vector.broadcast %150 : vector<1x1x4xf32> to vector<8x16x4xf32>
    %152 = arith.mulf %149, %151 : vector<8x16x4xf32>
    %153 = arith.addf %148, %152 : vector<8x16x4xf32>
    %154 = vector.extract_strided_slice %104 {offsets = [0, 1, 0], sizes = [8, 16, 4], strides = [1, 1, 1]} : vector<9x18x4xf32> to vector<8x16x4xf32>
    %155 = vector.shape_cast %132 : vector<4xf32> to vector<1x1x4xf32>
    %156 = vector.broadcast %155 : vector<1x1x4xf32> to vector<8x16x4xf32>
    %157 = arith.mulf %154, %156 : vector<8x16x4xf32>
    %158 = arith.addf %153, %157 : vector<8x16x4xf32>
    %159 = vector.extract_strided_slice %127 {offsets = [0, 1, 0], sizes = [8, 16, 4], strides = [1, 1, 1]} : vector<9x18x4xf32> to vector<8x16x4xf32>
    %160 = vector.shape_cast %134 : vector<4xf32> to vector<1x1x4xf32>
    %161 = vector.broadcast %160 : vector<1x1x4xf32> to vector<8x16x4xf32>
    %162 = arith.mulf %159, %161 : vector<8x16x4xf32>
    %163 = arith.addf %158, %162 : vector<8x16x4xf32>
    %164 = vector.extract_strided_slice %81 {offsets = [0, 0, 0], sizes = [8, 16, 4], strides = [1, 1, 1]} : vector<9x18x4xf32> to vector<8x16x4xf32>
    %165 = vector.shape_cast %136 : vector<4xf32> to vector<1x1x4xf32>
    %166 = vector.broadcast %165 : vector<1x1x4xf32> to vector<8x16x4xf32>
    %167 = arith.mulf %164, %166 : vector<8x16x4xf32>
    %168 = arith.addf %163, %167 : vector<8x16x4xf32>
    %169 = vector.extract_strided_slice %58 {offsets = [0, 1, 0], sizes = [8, 16, 4], strides = [1, 1, 1]} : vector<9x18x4xf32> to vector<8x16x4xf32>
    %170 = vector.shape_cast %138 : vector<4xf32> to vector<1x1x4xf32>
    %171 = vector.broadcast %170 : vector<1x1x4xf32> to vector<8x16x4xf32>
    %172 = arith.mulf %169, %171 : vector<8x16x4xf32>
    %173 = arith.addf %168, %172 : vector<8x16x4xf32>
    %174 = vector.extract_strided_slice %81 {offsets = [0, 1, 0], sizes = [8, 16, 4], strides = [1, 1, 1]} : vector<9x18x4xf32> to vector<8x16x4xf32>
    %175 = vector.shape_cast %140 : vector<4xf32> to vector<1x1x4xf32>
    %176 = vector.broadcast %175 : vector<1x1x4xf32> to vector<8x16x4xf32>
    %177 = arith.mulf %174, %176 : vector<8x16x4xf32>
    %178 = arith.addf %173, %177 : vector<8x16x4xf32>
    %179 = vector.extract_strided_slice %127 {offsets = [1, 0, 0], sizes = [8, 16, 4], strides = [1, 1, 1]} : vector<9x18x4xf32> to vector<8x16x4xf32>
    %180 = vector.shape_cast %142 : vector<4xf32> to vector<1x1x4xf32>
    %181 = vector.broadcast %180 : vector<1x1x4xf32> to vector<8x16x4xf32>
    %182 = arith.mulf %179, %181 : vector<8x16x4xf32>
    %183 = arith.addf %178, %182 : vector<8x16x4xf32>
    %184 = vector.extract_strided_slice %104 {offsets = [1, 1, 0], sizes = [8, 16, 4], strides = [1, 1, 1]} : vector<9x18x4xf32> to vector<8x16x4xf32>
    %185 = vector.shape_cast %144 : vector<4xf32> to vector<1x1x4xf32>
    %186 = vector.broadcast %185 : vector<1x1x4xf32> to vector<8x16x4xf32>
    %187 = arith.mulf %184, %186 : vector<8x16x4xf32>
    %188 = arith.addf %183, %187 : vector<8x16x4xf32>
    %189 = vector.extract_strided_slice %127 {offsets = [1, 1, 0], sizes = [8, 16, 4], strides = [1, 1, 1]} : vector<9x18x4xf32> to vector<8x16x4xf32>
    %190 = vector.shape_cast %146 : vector<4xf32> to vector<1x1x4xf32>
    %191 = vector.broadcast %190 : vector<1x1x4xf32> to vector<8x16x4xf32>
    %192 = arith.mulf %189, %191 : vector<8x16x4xf32>
    %193 = arith.addf %188, %192 : vector<8x16x4xf32>
    %194 = vector.shape_cast %147 : vector<1x4xf32> to vector<1x1x4xf32>
    %195 = vector.broadcast %194 : vector<1x1x4xf32> to vector<8x16x4xf32>
    %196 = arith.addf %193, %195 : vector<8x16x4xf32>
    %cst_130 = arith.constant 0.000000e+00 : f32
    %197 = vector.broadcast %cst_130 : f32 to vector<8x16x4xf32>
    %198 = vector.extract_strided_slice %104 {offsets = [0, 1, 0], sizes = [8, 16, 4], strides = [1, 1, 1]} : vector<9x18x4xf32> to vector<8x16x4xf32>
    %199 = vector.shape_cast %130 : vector<4xf32> to vector<1x1x4xf32>
    %200 = vector.broadcast %199 : vector<1x1x4xf32> to vector<8x16x4xf32>
    %201 = arith.mulf %198, %200 : vector<8x16x4xf32>
    %202 = arith.addf %197, %201 : vector<8x16x4xf32>
    %203 = vector.extract_strided_slice %127 {offsets = [0, 1, 0], sizes = [8, 16, 4], strides = [1, 1, 1]} : vector<9x18x4xf32> to vector<8x16x4xf32>
    %204 = vector.shape_cast %132 : vector<4xf32> to vector<1x1x4xf32>
    %205 = vector.broadcast %204 : vector<1x1x4xf32> to vector<8x16x4xf32>
    %206 = arith.mulf %203, %205 : vector<8x16x4xf32>
    %207 = arith.addf %202, %206 : vector<8x16x4xf32>
    %208 = vector.extract_strided_slice %104 {offsets = [0, 2, 0], sizes = [8, 16, 4], strides = [1, 1, 1]} : vector<9x18x4xf32> to vector<8x16x4xf32>
    %209 = vector.shape_cast %134 : vector<4xf32> to vector<1x1x4xf32>
    %210 = vector.broadcast %209 : vector<1x1x4xf32> to vector<8x16x4xf32>
    %211 = arith.mulf %208, %210 : vector<8x16x4xf32>
    %212 = arith.addf %207, %211 : vector<8x16x4xf32>
    %213 = vector.extract_strided_slice %58 {offsets = [0, 1, 0], sizes = [8, 16, 4], strides = [1, 1, 1]} : vector<9x18x4xf32> to vector<8x16x4xf32>
    %214 = vector.shape_cast %136 : vector<4xf32> to vector<1x1x4xf32>
    %215 = vector.broadcast %214 : vector<1x1x4xf32> to vector<8x16x4xf32>
    %216 = arith.mulf %213, %215 : vector<8x16x4xf32>
    %217 = arith.addf %212, %216 : vector<8x16x4xf32>
    %218 = vector.extract_strided_slice %81 {offsets = [0, 1, 0], sizes = [8, 16, 4], strides = [1, 1, 1]} : vector<9x18x4xf32> to vector<8x16x4xf32>
    %219 = vector.shape_cast %138 : vector<4xf32> to vector<1x1x4xf32>
    %220 = vector.broadcast %219 : vector<1x1x4xf32> to vector<8x16x4xf32>
    %221 = arith.mulf %218, %220 : vector<8x16x4xf32>
    %222 = arith.addf %217, %221 : vector<8x16x4xf32>
    %223 = vector.extract_strided_slice %58 {offsets = [0, 2, 0], sizes = [8, 16, 4], strides = [1, 1, 1]} : vector<9x18x4xf32> to vector<8x16x4xf32>
    %224 = vector.shape_cast %140 : vector<4xf32> to vector<1x1x4xf32>
    %225 = vector.broadcast %224 : vector<1x1x4xf32> to vector<8x16x4xf32>
    %226 = arith.mulf %223, %225 : vector<8x16x4xf32>
    %227 = arith.addf %222, %226 : vector<8x16x4xf32>
    %228 = vector.extract_strided_slice %104 {offsets = [1, 1, 0], sizes = [8, 16, 4], strides = [1, 1, 1]} : vector<9x18x4xf32> to vector<8x16x4xf32>
    %229 = vector.shape_cast %142 : vector<4xf32> to vector<1x1x4xf32>
    %230 = vector.broadcast %229 : vector<1x1x4xf32> to vector<8x16x4xf32>
    %231 = arith.mulf %228, %230 : vector<8x16x4xf32>
    %232 = arith.addf %227, %231 : vector<8x16x4xf32>
    %233 = vector.extract_strided_slice %127 {offsets = [1, 1, 0], sizes = [8, 16, 4], strides = [1, 1, 1]} : vector<9x18x4xf32> to vector<8x16x4xf32>
    %234 = vector.shape_cast %144 : vector<4xf32> to vector<1x1x4xf32>
    %235 = vector.broadcast %234 : vector<1x1x4xf32> to vector<8x16x4xf32>
    %236 = arith.mulf %233, %235 : vector<8x16x4xf32>
    %237 = arith.addf %232, %236 : vector<8x16x4xf32>
    %238 = vector.extract_strided_slice %104 {offsets = [1, 2, 0], sizes = [8, 16, 4], strides = [1, 1, 1]} : vector<9x18x4xf32> to vector<8x16x4xf32>
    %239 = vector.shape_cast %146 : vector<4xf32> to vector<1x1x4xf32>
    %240 = vector.broadcast %239 : vector<1x1x4xf32> to vector<8x16x4xf32>
    %241 = arith.mulf %238, %240 : vector<8x16x4xf32>
    %242 = arith.addf %237, %241 : vector<8x16x4xf32>
    %243 = vector.shape_cast %147 : vector<1x4xf32> to vector<1x1x4xf32>
    %244 = vector.broadcast %243 : vector<1x1x4xf32> to vector<8x16x4xf32>
    %245 = arith.addf %242, %244 : vector<8x16x4xf32>
    %cst_131 = arith.constant 0.000000e+00 : f32
    %246 = vector.broadcast %cst_131 : f32 to vector<8x16x4xf32>
    %247 = vector.extract_strided_slice %81 {offsets = [0, 0, 0], sizes = [8, 16, 4], strides = [1, 1, 1]} : vector<9x18x4xf32> to vector<8x16x4xf32>
    %248 = vector.shape_cast %130 : vector<4xf32> to vector<1x1x4xf32>
    %249 = vector.broadcast %248 : vector<1x1x4xf32> to vector<8x16x4xf32>
    %250 = arith.mulf %247, %249 : vector<8x16x4xf32>
    %251 = arith.addf %246, %250 : vector<8x16x4xf32>
    %252 = vector.extract_strided_slice %58 {offsets = [0, 1, 0], sizes = [8, 16, 4], strides = [1, 1, 1]} : vector<9x18x4xf32> to vector<8x16x4xf32>
    %253 = vector.shape_cast %132 : vector<4xf32> to vector<1x1x4xf32>
    %254 = vector.broadcast %253 : vector<1x1x4xf32> to vector<8x16x4xf32>
    %255 = arith.mulf %252, %254 : vector<8x16x4xf32>
    %256 = arith.addf %251, %255 : vector<8x16x4xf32>
    %257 = vector.extract_strided_slice %81 {offsets = [0, 1, 0], sizes = [8, 16, 4], strides = [1, 1, 1]} : vector<9x18x4xf32> to vector<8x16x4xf32>
    %258 = vector.shape_cast %134 : vector<4xf32> to vector<1x1x4xf32>
    %259 = vector.broadcast %258 : vector<1x1x4xf32> to vector<8x16x4xf32>
    %260 = arith.mulf %257, %259 : vector<8x16x4xf32>
    %261 = arith.addf %256, %260 : vector<8x16x4xf32>
    %262 = vector.extract_strided_slice %127 {offsets = [1, 0, 0], sizes = [8, 16, 4], strides = [1, 1, 1]} : vector<9x18x4xf32> to vector<8x16x4xf32>
    %263 = vector.shape_cast %136 : vector<4xf32> to vector<1x1x4xf32>
    %264 = vector.broadcast %263 : vector<1x1x4xf32> to vector<8x16x4xf32>
    %265 = arith.mulf %262, %264 : vector<8x16x4xf32>
    %266 = arith.addf %261, %265 : vector<8x16x4xf32>
    %267 = vector.extract_strided_slice %104 {offsets = [1, 1, 0], sizes = [8, 16, 4], strides = [1, 1, 1]} : vector<9x18x4xf32> to vector<8x16x4xf32>
    %268 = vector.shape_cast %138 : vector<4xf32> to vector<1x1x4xf32>
    %269 = vector.broadcast %268 : vector<1x1x4xf32> to vector<8x16x4xf32>
    %270 = arith.mulf %267, %269 : vector<8x16x4xf32>
    %271 = arith.addf %266, %270 : vector<8x16x4xf32>
    %272 = vector.extract_strided_slice %127 {offsets = [1, 1, 0], sizes = [8, 16, 4], strides = [1, 1, 1]} : vector<9x18x4xf32> to vector<8x16x4xf32>
    %273 = vector.shape_cast %140 : vector<4xf32> to vector<1x1x4xf32>
    %274 = vector.broadcast %273 : vector<1x1x4xf32> to vector<8x16x4xf32>
    %275 = arith.mulf %272, %274 : vector<8x16x4xf32>
    %276 = arith.addf %271, %275 : vector<8x16x4xf32>
    %277 = vector.extract_strided_slice %81 {offsets = [1, 0, 0], sizes = [8, 16, 4], strides = [1, 1, 1]} : vector<9x18x4xf32> to vector<8x16x4xf32>
    %278 = vector.shape_cast %142 : vector<4xf32> to vector<1x1x4xf32>
    %279 = vector.broadcast %278 : vector<1x1x4xf32> to vector<8x16x4xf32>
    %280 = arith.mulf %277, %279 : vector<8x16x4xf32>
    %281 = arith.addf %276, %280 : vector<8x16x4xf32>
    %282 = vector.extract_strided_slice %58 {offsets = [1, 1, 0], sizes = [8, 16, 4], strides = [1, 1, 1]} : vector<9x18x4xf32> to vector<8x16x4xf32>
    %283 = vector.shape_cast %144 : vector<4xf32> to vector<1x1x4xf32>
    %284 = vector.broadcast %283 : vector<1x1x4xf32> to vector<8x16x4xf32>
    %285 = arith.mulf %282, %284 : vector<8x16x4xf32>
    %286 = arith.addf %281, %285 : vector<8x16x4xf32>
    %287 = vector.extract_strided_slice %81 {offsets = [1, 1, 0], sizes = [8, 16, 4], strides = [1, 1, 1]} : vector<9x18x4xf32> to vector<8x16x4xf32>
    %288 = vector.shape_cast %146 : vector<4xf32> to vector<1x1x4xf32>
    %289 = vector.broadcast %288 : vector<1x1x4xf32> to vector<8x16x4xf32>
    %290 = arith.mulf %287, %289 : vector<8x16x4xf32>
    %291 = arith.addf %286, %290 : vector<8x16x4xf32>
    %292 = vector.shape_cast %147 : vector<1x4xf32> to vector<1x1x4xf32>
    %293 = vector.broadcast %292 : vector<1x1x4xf32> to vector<8x16x4xf32>
    %294 = arith.addf %291, %293 : vector<8x16x4xf32>
    %cst_132 = arith.constant 0.000000e+00 : f32
    %295 = vector.broadcast %cst_132 : f32 to vector<8x16x4xf32>
    %296 = vector.extract_strided_slice %58 {offsets = [0, 1, 0], sizes = [8, 16, 4], strides = [1, 1, 1]} : vector<9x18x4xf32> to vector<8x16x4xf32>
    %297 = vector.shape_cast %130 : vector<4xf32> to vector<1x1x4xf32>
    %298 = vector.broadcast %297 : vector<1x1x4xf32> to vector<8x16x4xf32>
    %299 = arith.mulf %296, %298 : vector<8x16x4xf32>
    %300 = arith.addf %295, %299 : vector<8x16x4xf32>
    %301 = vector.extract_strided_slice %81 {offsets = [0, 1, 0], sizes = [8, 16, 4], strides = [1, 1, 1]} : vector<9x18x4xf32> to vector<8x16x4xf32>
    %302 = vector.shape_cast %132 : vector<4xf32> to vector<1x1x4xf32>
    %303 = vector.broadcast %302 : vector<1x1x4xf32> to vector<8x16x4xf32>
    %304 = arith.mulf %301, %303 : vector<8x16x4xf32>
    %305 = arith.addf %300, %304 : vector<8x16x4xf32>
    %306 = vector.extract_strided_slice %58 {offsets = [0, 2, 0], sizes = [8, 16, 4], strides = [1, 1, 1]} : vector<9x18x4xf32> to vector<8x16x4xf32>
    %307 = vector.shape_cast %134 : vector<4xf32> to vector<1x1x4xf32>
    %308 = vector.broadcast %307 : vector<1x1x4xf32> to vector<8x16x4xf32>
    %309 = arith.mulf %306, %308 : vector<8x16x4xf32>
    %310 = arith.addf %305, %309 : vector<8x16x4xf32>
    %311 = vector.extract_strided_slice %104 {offsets = [1, 1, 0], sizes = [8, 16, 4], strides = [1, 1, 1]} : vector<9x18x4xf32> to vector<8x16x4xf32>
    %312 = vector.shape_cast %136 : vector<4xf32> to vector<1x1x4xf32>
    %313 = vector.broadcast %312 : vector<1x1x4xf32> to vector<8x16x4xf32>
    %314 = arith.mulf %311, %313 : vector<8x16x4xf32>
    %315 = arith.addf %310, %314 : vector<8x16x4xf32>
    %316 = vector.extract_strided_slice %127 {offsets = [1, 1, 0], sizes = [8, 16, 4], strides = [1, 1, 1]} : vector<9x18x4xf32> to vector<8x16x4xf32>
    %317 = vector.shape_cast %138 : vector<4xf32> to vector<1x1x4xf32>
    %318 = vector.broadcast %317 : vector<1x1x4xf32> to vector<8x16x4xf32>
    %319 = arith.mulf %316, %318 : vector<8x16x4xf32>
    %320 = arith.addf %315, %319 : vector<8x16x4xf32>
    %321 = vector.extract_strided_slice %104 {offsets = [1, 2, 0], sizes = [8, 16, 4], strides = [1, 1, 1]} : vector<9x18x4xf32> to vector<8x16x4xf32>
    %322 = vector.shape_cast %140 : vector<4xf32> to vector<1x1x4xf32>
    %323 = vector.broadcast %322 : vector<1x1x4xf32> to vector<8x16x4xf32>
    %324 = arith.mulf %321, %323 : vector<8x16x4xf32>
    %325 = arith.addf %320, %324 : vector<8x16x4xf32>
    %326 = vector.extract_strided_slice %58 {offsets = [1, 1, 0], sizes = [8, 16, 4], strides = [1, 1, 1]} : vector<9x18x4xf32> to vector<8x16x4xf32>
    %327 = vector.shape_cast %142 : vector<4xf32> to vector<1x1x4xf32>
    %328 = vector.broadcast %327 : vector<1x1x4xf32> to vector<8x16x4xf32>
    %329 = arith.mulf %326, %328 : vector<8x16x4xf32>
    %330 = arith.addf %325, %329 : vector<8x16x4xf32>
    %331 = vector.extract_strided_slice %81 {offsets = [1, 1, 0], sizes = [8, 16, 4], strides = [1, 1, 1]} : vector<9x18x4xf32> to vector<8x16x4xf32>
    %332 = vector.shape_cast %144 : vector<4xf32> to vector<1x1x4xf32>
    %333 = vector.broadcast %332 : vector<1x1x4xf32> to vector<8x16x4xf32>
    %334 = arith.mulf %331, %333 : vector<8x16x4xf32>
    %335 = arith.addf %330, %334 : vector<8x16x4xf32>
    %336 = vector.extract_strided_slice %58 {offsets = [1, 2, 0], sizes = [8, 16, 4], strides = [1, 1, 1]} : vector<9x18x4xf32> to vector<8x16x4xf32>
    %337 = vector.shape_cast %146 : vector<4xf32> to vector<1x1x4xf32>
    %338 = vector.broadcast %337 : vector<1x1x4xf32> to vector<8x16x4xf32>
    %339 = arith.mulf %336, %338 : vector<8x16x4xf32>
    %340 = arith.addf %335, %339 : vector<8x16x4xf32>
    %341 = vector.shape_cast %147 : vector<1x4xf32> to vector<1x1x4xf32>
    %342 = vector.broadcast %341 : vector<1x1x4xf32> to vector<8x16x4xf32>
    %343 = arith.addf %340, %342 : vector<8x16x4xf32>
    %c0_133 = arith.constant 0 : index
    %c0_134 = arith.constant 0 : index
    %344 = vector.load %arg8[%c0_133, %c0_134] : memref<4x4xf32, #tpu.memory_space<vmem>>, vector<4x4xf32>
    %c0_135 = arith.constant 0 : index
    %c0_136 = arith.constant 0 : index
    %345 = vector.load %arg9[%c0_135, %c0_136] : memref<1x4xf32, #tpu.memory_space<vmem>>, vector<1x4xf32>
    %cst_137 = arith.constant 0.000000e+00 : f32
    %346 = vector.broadcast %cst_137 : f32 to vector<1x4xf32>
    %347 = vector.shape_cast %196 : vector<8x16x4xf32> to vector<128x4xf32>
    %cst_138 = arith.constant dense<0.000000e+00> : vector<128x4xf32>
    %348 = tpu.matmul %347, %344, %cst_138 {dimension_numbers = #tpu.dot_dimension_numbers<[1], [0], [0], [1], [0, 0, 1, 1], [], []>} : vector<128x4xf32>, vector<4x4xf32>, vector<128x4xf32> -> vector<128x4xf32>
    %349 = vector.broadcast %345 : vector<1x4xf32> to vector<128x4xf32>
    %350 = arith.addf %348, %349 : vector<128x4xf32>
    %cst_139 = arith.constant dense<0.000000e+00> : vector<4xf32>
    %351 = vector.multi_reduction <add>, %350, %cst_139 [0] : vector<128x4xf32> to vector<4xf32>
    %352 = vector.shape_cast %351 : vector<4xf32> to vector<1x4xf32>
    %353 = arith.addf %346, %352 : vector<1x4xf32>
    %354 = vector.shape_cast %245 : vector<8x16x4xf32> to vector<128x4xf32>
    %cst_140 = arith.constant dense<0.000000e+00> : vector<128x4xf32>
    %355 = tpu.matmul %354, %344, %cst_140 {dimension_numbers = #tpu.dot_dimension_numbers<[1], [0], [0], [1], [0, 0, 1, 1], [], []>} : vector<128x4xf32>, vector<4x4xf32>, vector<128x4xf32> -> vector<128x4xf32>
    %356 = vector.broadcast %345 : vector<1x4xf32> to vector<128x4xf32>
    %357 = arith.addf %355, %356 : vector<128x4xf32>
    %cst_141 = arith.constant dense<0.000000e+00> : vector<4xf32>
    %358 = vector.multi_reduction <add>, %357, %cst_141 [0] : vector<128x4xf32> to vector<4xf32>
    %359 = vector.shape_cast %358 : vector<4xf32> to vector<1x4xf32>
    %360 = arith.addf %353, %359 : vector<1x4xf32>
    %361 = vector.shape_cast %294 : vector<8x16x4xf32> to vector<128x4xf32>
    %cst_142 = arith.constant dense<0.000000e+00> : vector<128x4xf32>
    %362 = tpu.matmul %361, %344, %cst_142 {dimension_numbers = #tpu.dot_dimension_numbers<[1], [0], [0], [1], [0, 0, 1, 1], [], []>} : vector<128x4xf32>, vector<4x4xf32>, vector<128x4xf32> -> vector<128x4xf32>
    %363 = vector.broadcast %345 : vector<1x4xf32> to vector<128x4xf32>
    %364 = arith.addf %362, %363 : vector<128x4xf32>
    %cst_143 = arith.constant dense<0.000000e+00> : vector<4xf32>
    %365 = vector.multi_reduction <add>, %364, %cst_143 [0] : vector<128x4xf32> to vector<4xf32>
    %366 = vector.shape_cast %365 : vector<4xf32> to vector<1x4xf32>
    %367 = arith.addf %360, %366 : vector<1x4xf32>
    %368 = vector.shape_cast %343 : vector<8x16x4xf32> to vector<128x4xf32>
    %cst_144 = arith.constant dense<0.000000e+00> : vector<128x4xf32>
    %369 = tpu.matmul %368, %344, %cst_144 {dimension_numbers = #tpu.dot_dimension_numbers<[1], [0], [0], [1], [0, 0, 1, 1], [], []>} : vector<128x4xf32>, vector<4x4xf32>, vector<128x4xf32> -> vector<128x4xf32>
    %370 = vector.broadcast %345 : vector<1x4xf32> to vector<128x4xf32>
    %371 = arith.addf %369, %370 : vector<128x4xf32>
    %cst_145 = arith.constant dense<0.000000e+00> : vector<4xf32>
    %372 = vector.multi_reduction <add>, %371, %cst_145 [0] : vector<128x4xf32> to vector<4xf32>
    %373 = vector.shape_cast %372 : vector<4xf32> to vector<1x4xf32>
    %374 = arith.addf %367, %373 : vector<1x4xf32>
    %cst_146 = arith.constant 0.001953125 : f32
    %375 = vector.broadcast %cst_146 : f32 to vector<1x4xf32>
    %376 = arith.mulf %374, %375 : vector<1x4xf32>
    %cst_147 = arith.constant 0.000000e+00 : f32
    %377 = vector.broadcast %cst_147 : f32 to vector<1x4xf32>
    %378 = vector.broadcast %376 : vector<1x4xf32> to vector<128x4xf32>
    %379 = arith.subf %350, %378 : vector<128x4xf32>
    %380 = arith.mulf %379, %379 : vector<128x4xf32>
    %cst_148 = arith.constant dense<0.000000e+00> : vector<4xf32>
    %381 = vector.multi_reduction <add>, %380, %cst_148 [0] : vector<128x4xf32> to vector<4xf32>
    %382 = vector.shape_cast %381 : vector<4xf32> to vector<1x4xf32>
    %383 = arith.addf %377, %382 : vector<1x4xf32>
    %384 = vector.shape_cast %350 : vector<128x4xf32> to vector<8x16x4xf32>
    %c0_149 = arith.constant 0 : index
    %c0_150 = arith.constant 0 : index
    %c0_151 = arith.constant 0 : index
    %c0_152 = arith.constant 0 : index
    %c0_153 = arith.constant 0 : index
    %c0_154 = arith.constant 0 : index
    %c0_155 = arith.constant 0 : index
    %385 = vector.load %arg10[%c0_149, %c0_150, %c0_151, %c0_152, %c0_153, %c0_154, %c0_155] : memref<1x1x2x2x8x16x4xf32, #tpu.memory_space<vmem>>, vector<1x1x1x1x8x16x4xf32>
    %386 = vector.shape_cast %385 : vector<1x1x1x1x8x16x4xf32> to vector<8x16x4xf32>
    %387 = vector.shape_cast %384 : vector<8x16x4xf32> to vector<1x1x1x1x8x16x4xf32>
    tpu.vector_store %arg10[%c0_149, %c0_150, %c0_151, %c0_152, %c0_153, %c0_154, %c0_155], %387 {strides = array<i32>} : memref<1x1x2x2x8x16x4xf32, #tpu.memory_space<vmem>>, vector<1x1x1x1x8x16x4xf32>,
    %388 = vector.broadcast %376 : vector<1x4xf32> to vector<128x4xf32>
    %389 = arith.subf %357, %388 : vector<128x4xf32>
    %390 = arith.mulf %389, %389 : vector<128x4xf32>
    %cst_156 = arith.constant dense<0.000000e+00> : vector<4xf32>
    %391 = vector.multi_reduction <add>, %390, %cst_156 [0] : vector<128x4xf32> to vector<4xf32>
    %392 = vector.shape_cast %391 : vector<4xf32> to vector<1x4xf32>
    %393 = arith.addf %383, %392 : vector<1x4xf32>
    %394 = vector.shape_cast %357 : vector<128x4xf32> to vector<8x16x4xf32>
    %c0_157 = arith.constant 0 : index
    %c0_158 = arith.constant 0 : index
    %c0_159 = arith.constant 0 : index
    %c1_160 = arith.constant 1 : index
    %c0_161 = arith.constant 0 : index
    %c0_162 = arith.constant 0 : index
    %c0_163 = arith.constant 0 : index
    %395 = vector.load %arg10[%c0_157, %c0_158, %c0_159, %c1_160, %c0_161, %c0_162, %c0_163] : memref<1x1x2x2x8x16x4xf32, #tpu.memory_space<vmem>>, vector<1x1x1x1x8x16x4xf32>
    %396 = vector.shape_cast %395 : vector<1x1x1x1x8x16x4xf32> to vector<8x16x4xf32>
    %397 = vector.shape_cast %394 : vector<8x16x4xf32> to vector<1x1x1x1x8x16x4xf32>
    tpu.vector_store %arg10[%c0_157, %c0_158, %c0_159, %c1_160, %c0_161, %c0_162, %c0_163], %397 {strides = array<i32>} : memref<1x1x2x2x8x16x4xf32, #tpu.memory_space<vmem>>, vector<1x1x1x1x8x16x4xf32>,
    %398 = vector.broadcast %376 : vector<1x4xf32> to vector<128x4xf32>
    %399 = arith.subf %364, %398 : vector<128x4xf32>
    %400 = arith.mulf %399, %399 : vector<128x4xf32>
    %cst_164 = arith.constant dense<0.000000e+00> : vector<4xf32>
    %401 = vector.multi_reduction <add>, %400, %cst_164 [0] : vector<128x4xf32> to vector<4xf32>
    %402 = vector.shape_cast %401 : vector<4xf32> to vector<1x4xf32>
    %403 = arith.addf %393, %402 : vector<1x4xf32>
    %404 = vector.shape_cast %364 : vector<128x4xf32> to vector<8x16x4xf32>
    %c0_165 = arith.constant 0 : index
    %c0_166 = arith.constant 0 : index
    %c1_167 = arith.constant 1 : index
    %c0_168 = arith.constant 0 : index
    %c0_169 = arith.constant 0 : index
    %c0_170 = arith.constant 0 : index
    %c0_171 = arith.constant 0 : index
    %405 = vector.load %arg10[%c0_165, %c0_166, %c1_167, %c0_168, %c0_169, %c0_170, %c0_171] : memref<1x1x2x2x8x16x4xf32, #tpu.memory_space<vmem>>, vector<1x1x1x1x8x16x4xf32>
    %406 = vector.shape_cast %405 : vector<1x1x1x1x8x16x4xf32> to vector<8x16x4xf32>
    %407 = vector.shape_cast %404 : vector<8x16x4xf32> to vector<1x1x1x1x8x16x4xf32>
    tpu.vector_store %arg10[%c0_165, %c0_166, %c1_167, %c0_168, %c0_169, %c0_170, %c0_171], %407 {strides = array<i32>} : memref<1x1x2x2x8x16x4xf32, #tpu.memory_space<vmem>>, vector<1x1x1x1x8x16x4xf32>,
    %408 = vector.broadcast %376 : vector<1x4xf32> to vector<128x4xf32>
    %409 = arith.subf %371, %408 : vector<128x4xf32>
    %410 = arith.mulf %409, %409 : vector<128x4xf32>
    %cst_172 = arith.constant dense<0.000000e+00> : vector<4xf32>
    %411 = vector.multi_reduction <add>, %410, %cst_172 [0] : vector<128x4xf32> to vector<4xf32>
    %412 = vector.shape_cast %411 : vector<4xf32> to vector<1x4xf32>
    %413 = arith.addf %403, %412 : vector<1x4xf32>
    %414 = vector.shape_cast %371 : vector<128x4xf32> to vector<8x16x4xf32>
    %c0_173 = arith.constant 0 : index
    %c0_174 = arith.constant 0 : index
    %c1_175 = arith.constant 1 : index
    %c1_176 = arith.constant 1 : index
    %c0_177 = arith.constant 0 : index
    %c0_178 = arith.constant 0 : index
    %c0_179 = arith.constant 0 : index
    %415 = vector.load %arg10[%c0_173, %c0_174, %c1_175, %c1_176, %c0_177, %c0_178, %c0_179] : memref<1x1x2x2x8x16x4xf32, #tpu.memory_space<vmem>>, vector<1x1x1x1x8x16x4xf32>
    %416 = vector.shape_cast %415 : vector<1x1x1x1x8x16x4xf32> to vector<8x16x4xf32>
    %417 = vector.shape_cast %414 : vector<8x16x4xf32> to vector<1x1x1x1x8x16x4xf32>
    tpu.vector_store %arg10[%c0_173, %c0_174, %c1_175, %c1_176, %c0_177, %c0_178, %c0_179], %417 {strides = array<i32>} : memref<1x1x2x2x8x16x4xf32, #tpu.memory_space<vmem>>, vector<1x1x1x1x8x16x4xf32>,
    %418 = tpu.concatenate %374, %413 in 0 : vector<1x4xf32>, vector<1x4xf32> -> vector<2x4xf32>
    %c0_180 = arith.constant 0 : index
    %c0_181 = arith.constant 0 : index
    %c0_182 = arith.constant 0 : index
    %c0_183 = arith.constant 0 : index
    %419 = vector.load %arg11[%c0_180, %c0_181, %c0_182, %c0_183] : memref<1x1x2x4xf32, #tpu.memory_space<vmem>>, vector<1x1x2x4xf32>
    %420 = vector.shape_cast %419 : vector<1x1x2x4xf32> to vector<2x4xf32>
    %421 = vector.shape_cast %418 : vector<2x4xf32> to vector<1x1x2x4xf32>
    tpu.vector_store %arg11[%c0_180, %c0_181, %c0_182, %c0_183], %421 {strides = array<i32>} : memref<1x1x2x4xf32, #tpu.memory_space<vmem>>, vector<1x1x2x4xf32>,
    return
  }
  func.func @transform_0(%arg0: i32, %arg1: i32) -> (i32, i32, i32, i32, i32) {
    %c0_i32 = arith.constant 0 : i32
    %c0_i32_0 = arith.constant 0 : i32
    %c0_i32_1 = arith.constant 0 : i32
    %c0_i32_2 = arith.constant 0 : i32
    return %arg0, %arg1, %c0_i32, %c0_i32_0, %c0_i32_1 : i32, i32, i32, i32, i32
  }
  func.func @transform_1(%arg0: i32, %arg1: i32) -> (i32, i32) {
    %c0_i32 = arith.constant 0 : i32
    %c0_i32_0 = arith.constant 0 : i32
    %c0_i32_1 = arith.constant 0 : i32
    return %c0_i32, %c0_i32_0 : i32, i32
  }
  func.func @transform_2(%arg0: i32, %arg1: i32) -> (i32, i32, i32, i32, i32, i32) {
    %c0_i32 = arith.constant 0 : i32
    %c0_i32_0 = arith.constant 0 : i32
    %c0_i32_1 = arith.constant 0 : i32
    %c0_i32_2 = arith.constant 0 : i32
    %c0_i32_3 = arith.constant 0 : i32
    %c0_i32_4 = arith.constant 0 : i32
    %c0_i32_5 = arith.constant 0 : i32
    return %c0_i32, %c0_i32_0, %c0_i32_1, %c0_i32_2, %c0_i32_3, %c0_i32_4 : i32, i32, i32, i32, i32, i32
  }
  func.func @transform_3(%arg0: i32, %arg1: i32) -> (i32, i32) {
    %c0_i32 = arith.constant 0 : i32
    %c0_i32_0 = arith.constant 0 : i32
    %c0_i32_1 = arith.constant 0 : i32
    return %c0_i32, %c0_i32_0 : i32, i32
  }
  func.func @transform_4(%arg0: i32, %arg1: i32) -> (i32, i32, i32) {
    %c0_i32 = arith.constant 0 : i32
    %c0_i32_0 = arith.constant 0 : i32
    %c0_i32_1 = arith.constant 0 : i32
    %c0_i32_2 = arith.constant 0 : i32
    return %c0_i32, %c0_i32_0, %c0_i32_1 : i32, i32, i32
  }
  func.func @transform_5(%arg0: i32, %arg1: i32) -> (i32, i32) {
    %c0_i32 = arith.constant 0 : i32
    %c0_i32_0 = arith.constant 0 : i32
    %c0_i32_1 = arith.constant 0 : i32
    return %c0_i32, %c0_i32_0 : i32, i32
  }
  func.func @transform_6(%arg0: i32, %arg1: i32) -> (i32, i32) {
    %c0_i32 = arith.constant 0 : i32
    %c0_i32_0 = arith.constant 0 : i32
    %c0_i32_1 = arith.constant 0 : i32
    return %c0_i32, %c0_i32_0 : i32, i32
  }
  func.func @transform_7(%arg0: i32, %arg1: i32) -> (i32, i32) {
    %c0_i32 = arith.constant 0 : i32
    %c0_i32_0 = arith.constant 0 : i32
    %c0_i32_1 = arith.constant 0 : i32
    return %c0_i32, %c0_i32_0 : i32, i32
  }
  func.func @transform_8(%arg0: i32, %arg1: i32) -> (i32, i32, i32, i32, i32, i32, i32) {
    %c0_i32 = arith.constant 0 : i32
    %c0_i32_0 = arith.constant 0 : i32
    %c0_i32_1 = arith.constant 0 : i32
    %c0_i32_2 = arith.constant 0 : i32
    %c0_i32_3 = arith.constant 0 : i32
    %c0_i32_4 = arith.constant 0 : i32
    return %arg0, %arg1, %c0_i32, %c0_i32_0, %c0_i32_1, %c0_i32_2, %c0_i32_3 : i32, i32, i32, i32, i32, i32, i32
  }
  func.func @transform_9(%arg0: i32, %arg1: i32) -> (i32, i32, i32, i32) {
    %c0_i32 = arith.constant 0 : i32
    %c0_i32_0 = arith.constant 0 : i32
    %c0_i32_1 = arith.constant 0 : i32
    return %arg0, %arg1, %c0_i32, %c0_i32_0 : i32, i32, i32, i32
  }
}

</mosaic_0001>

<llo_original>
// kernel: upscale_block_pallas.3
$region0: #{upscale_block_pallas.3}
  #allocation0 [shape = 'u32[]', space=smem, size = 0x4, offset = 0x4, fixed_abs, tag = 'smem constant byte address 0x4 - core index']
  #allocation1 [shape = 'u32[72,128]{1,0:T(1,128)}', space=vmem, size = 0x9000, scoped, tag = 'internal scratch']
  %s0 = inlined_call_operand.vmem [shape: f32[2,2,2,2,8,16,4], index: 0, kind: input, shape index: {}]
  %s1 = inlined_call_operand.vmem [shape: f32[1,4], index: 1, kind: input, shape index: {}]
  %s2 = inlined_call_operand.vmem [shape: f32[1,4], index: 2, kind: input, shape index: {}]
  %s3 = inlined_call_operand.vmem [shape: f32[2,2,2,2,8,16,4], index: 3, kind: output, shape index: {}]
  %s4 = sld [smem:[#allocation0]]
  $region45: #{upscale_block_pallas.3} parent=0
    _
  %s6 = ssub.s32 1, %s4
  %s7 = scalar_select 0, %s6, %s4
  loop: start=0, step=1, limit=6
  $region2: #{upscale_block_pallas.3} parent=0 // loop_pre_header
    _
  $region3: #{upscale_block_pallas.3} parent=0 // loop_header
    %s9 = sphi 0, %s13
    %p10 = scmp.ge.s32.totalorder %s9, 6
    %s16 = sphi 0, %s28
    %s17 = sphi 0, %s24
    %s18 = sphi 0, %s16
    %s19 = sphi 0, %s17
    %s20 = sphi 0, %s18
    %s21 = sphi 0, %s19
    %s33 = sphi 0, %s35
    %s36 = sphi 0, %s33
    %s37 = sphi 0, %s36
    %s53 = sphi 0, %s37
    %s57 = sphi 0, %s57
    %s59 = sphi 0, %s57
    %s60 = sphi 0, %s59
    %s74 = sphi 0, %s60
    %s78 = sphi 0, %s78
    %s80 = sphi 0, %s78
    %s81 = sphi 0, %s80
    %s95 = sphi 0, %s81
    %s103 = sphi 0, %s105
    %s106 = sphi 0, %s103
    %s107 = sphi 0, %s106
    %s123 = sphi 0, %s107
  $region4: #{upscale_block_pallas.3} parent=0 // loop_header_branch
    %12 = sbr.rel (%p10) target = $region8
  $region5: #{upscale_block_pallas.3} parent=0 // loop_body
    %s14 = ssub.s32 %s9, 1
    %s15 = ssub.s32 %s9, 2
    %s22 = sadd.s32 1, %s17
    %p23 = scmp.ge.s32.totalorder %s22, 2
    %s24 = scalar_select %p23, 0, %s22
    %s25 = sadd.s32 1, %s16
    %s26 = scalar_select %p23, %s25, %s16
    %p27 = scmp.ge.s32.totalorder %s26, 2
    %s28 = scalar_select %p27, 0, %s26
    %s29 = ssub.s32 %s16, %s28
    %s30 = ssub.s32 %s17, %s24
    %s31 = sor.u32 %s29, %s30
    %p32 = scmp.eq.s32.totalorder %s31, 0
    %s34 = sadd.s32 %s33, 1
    %s35 = scalar_select %p32, %s33, %s34
    %p38 = pneg %p32
    %p39 = scmp.eq.s32.totalorder %s9, 3
    %p40 = por %p38, %p39
    %p41 = scmp.ne.s32.totalorder %s33, %s36
    %p42 = scmp.eq.s32.totalorder %s9, 0
    %p43 = por %p41, %p42
    %p44 = scmp.ne.s32.totalorder %s33, %s36
    %p45 = scmp.eq.s32.totalorder %s14, 3
    %p46 = por %p44, %p45
    %p47 = scmp.ne.s32.totalorder %s36, %s37
    %p48 = scmp.eq.s32.totalorder %s14, 0
    %p49 = por %p47, %p48
    %p50 = scmp.ne.s32.totalorder %s36, %s37
    %p51 = scmp.eq.s32.totalorder %s15, 3
    %p52 = por %p50, %p51
    %p54 = scmp.ne.s32.totalorder %s37, %s53
    %p55 = scmp.eq.s32.totalorder %s15, 0
    %p56 = por %p54, %p55
    %s58 = sadd.s32 %s57, 1
    %p61 = scmp.eq.s32.totalorder %s9, 3
    %p62 = scmp.ne.s32.totalorder %s57, %s59
    %p63 = scmp.eq.s32.totalorder %s9, 0
    %p64 = por %p62, %p63
    %p65 = scmp.ne.s32.totalorder %s57, %s59
    %p66 = scmp.eq.s32.totalorder %s14, 3
    %p67 = por %p65, %p66
    %p68 = scmp.ne.s32.totalorder %s59, %s60
    %p69 = scmp.eq.s32.totalorder %s14, 0
    %p70 = por %p68, %p69
    %p71 = scmp.ne.s32.totalorder %s59, %s60
    %p72 = scmp.eq.s32.totalorder %s15, 3
    %p73 = por %p71, %p72
    %p75 = scmp.ne.s32.totalorder %s60, %s74
    %p76 = scmp.eq.s32.totalorder %s15, 0
    %p77 = por %p75, %p76
    %s79 = sadd.s32 %s78, 1
    %p82 = scmp.eq.s32.totalorder %s9, 3
    %p83 = scmp.ne.s32.totalorder %s78, %s80
    %p84 = scmp.eq.s32.totalorder %s9, 0
    %p85 = por %p83, %p84
    %p86 = scmp.ne.s32.totalorder %s78, %s80
    %p87 = scmp.eq.s32.totalorder %s14, 3
    %p88 = por %p86, %p87
    %p89 = scmp.ne.s32.totalorder %s80, %s81
    %p90 = scmp.eq.s32.totalorder %s14, 0
    %p91 = por %p89, %p90
    %p92 = scmp.ne.s32.totalorder %s80, %s81
    %p93 = scmp.eq.s32.totalorder %s15, 3
    %p94 = por %p92, %p93
    %p96 = scmp.ne.s32.totalorder %s81, %s95
    %p97 = scmp.eq.s32.totalorder %s15, 0
    %p98 = por %p96, %p97
    %s99 = ssub.s32 %s16, %s28
    %s100 = ssub.s32 %s17, %s24
    %s101 = sor.u32 %s99, %s100
    %p102 = scmp.eq.s32.totalorder %s101, 0
    %s104 = sadd.s32 %s103, 1
    %s105 = scalar_select %p102, %s103, %s104
    %p108 = pneg %p102
    %p109 = scmp.eq.s32.totalorder %s9, 3
    %p110 = por %p108, %p109
    %p111 = scmp.ne.s32.totalorder %s103, %s106
    %p112 = scmp.eq.s32.totalorder %s9, 0
    %p113 = por %p111, %p112
    %p114 = scmp.ne.s32.totalorder %s103, %s106
    %p115 = scmp.eq.s32.totalorder %s14, 3
    %p116 = por %p114, %p115
    %p117 = scmp.ne.s32.totalorder %s106, %s107
    %p118 = scmp.eq.s32.totalorder %s14, 0
    %p119 = por %p117, %p118
    %p120 = scmp.ne.s32.totalorder %s106, %s107
    %p121 = scmp.eq.s32.totalorder %s15, 3
    %p122 = por %p120, %p121
    %p124 = scmp.ne.s32.totalorder %s107, %s123
    %p125 = scmp.eq.s32.totalorder %s15, 0
    %p126 = por %p124, %p125
    %p127 = scmp.le.s32.totalorder 1, %s9
    %p128 = scmp.lt.s32.totalorder %s9, 5
    %p129 = pnand %p127, %p128
    %p130 = pneg %p129
    // Predicated region
    $region9: #{upscale_block_pallas.3} parent=5 // pred_check
      _
    $region10: #{upscale_block_pallas.3} parent=5 // pred_check_branch
      %132 = sbr.rel (%p129) target = $region12
    $region11: #{upscale_block_pallas.3} parent=5 // pred_region
      %s133 = ssub.s32 %s9, 1
      // Predicated region
      $region13: #{upscale_block_pallas.3} parent=11 // pred_check
        %p134 = pneg %p70
      $region14: #{upscale_block_pallas.3} parent=11 // pred_check_branch
        %136 = sbr.rel (%p134) target = $region16
      $region15: #{upscale_block_pallas.3} parent=11 // pred_region
        _
      $region16: #{upscale_block_pallas.3} parent=11 // pred_fallthru
        _
      // Predicated region
      $region17: #{upscale_block_pallas.3} parent=11 // pred_check
        %p137 = pneg %p91
      $region18: #{upscale_block_pallas.3} parent=11 // pred_check_branch
        %139 = sbr.rel (%p137) target = $region20
      $region19: #{upscale_block_pallas.3} parent=11 // pred_region
        _
      $region20: #{upscale_block_pallas.3} parent=11 // pred_fallthru
        _
    $region12: #{upscale_block_pallas.3} parent=5 // pred_fallthru
      _
    %p140 = scmp.lt.s32.totalorder %s9, 4
    // Predicated region
    $region21: #{upscale_block_pallas.3} parent=5 // pred_check
      %p141 = pneg %p140
    $region22: #{upscale_block_pallas.3} parent=5 // pred_check_branch
      %143 = sbr.rel (%p141) target = $region24
    $region23: #{upscale_block_pallas.3} parent=5 // pred_region
      // Predicated region
      $region25: #{upscale_block_pallas.3} parent=23 // pred_check
        %p144 = pneg %p43
      $region26: #{upscale_block_pallas.3} parent=23 // pred_check_branch
        %146 = sbr.rel (%p144) target = $region28
      $region27: #{upscale_block_pallas.3} parent=23 // pred_region
        %p147 = scmp.lt.s32.totalorder %s16, 1
        %s148 = scalar_select %p147, %s16, 1
        %p149 = scmp.lt.s32.totalorder %s17, 1
        %s150 = scalar_select %p149, %s17, 1
        %s151 = smul.addr %s150, 64
        %s152 = smul.addr %s148, 128
        %s153 = sadd.s32 %s151, %s152
        %s154 = smul.addr %s153, 8
        %s155 = scalar_lea.vmem %s0, %s154
      $region28: #{upscale_block_pallas.3} parent=23 // pred_fallthru
        _
    $region24: #{upscale_block_pallas.3} parent=5 // pred_fallthru
      _
    %p156 = scmp.le.s32.totalorder 1, %s9
    %p157 = scmp.lt.s32.totalorder %s9, 5
    %p158 = pnand %p156, %p157
    %p159 = pneg %p158
    // Predicated region
    $region29: #{upscale_block_pallas.3} parent=5 // pred_check
      _
    $region30: #{upscale_block_pallas.3} parent=5 // pred_check_branch
      %161 = sbr.rel (%p158) target = $region32
    $region31: #{upscale_block_pallas.3} parent=5 // pred_region
      %s162 = ssub.s32 %s9, 1
      %p163 = scmp.lt.s32.totalorder %s18, 1
      %s164 = scalar_select %p163, %s18, 1
      %p165 = scmp.lt.s32.totalorder %s19, 1
      %s166 = scalar_select %p165, %s19, 1
      %s167 = smul.addr %s166, 64
      %s168 = smul.addr %s164, 128
      %s169 = sadd.s32 %s167, %s168
      %s170 = smul.addr %s169, 8
      %s171 = scalar_lea.vmem %s0, %s170
      %p172 = pneg %p49
      %p173 = pneg %p46
      %p174 = pneg %p70
      %p175 = pneg %p67
      %p176 = pneg %p91
      %p177 = pneg %p88
      %p178 = pneg %p119
      %p179 = pneg %p116
      %p180 = scmp.lt.s32.totalorder %s18, 1
      %s181 = scalar_select %p180, %s18, 1
      %p182 = scmp.lt.s32.totalorder %s19, 1
      %s183 = scalar_select %p182, %s19, 1
      %s184 = smul.addr %s183, 64
      %s185 = smul.addr %s181, 128
      %s186 = sadd.s32 %s184, %s185
      %s187 = smul.addr %s186, 8
      %s188 = scalar_lea.vmem %s3, %s187
      %p189 = scmp.lt.s32.totalorder %s18, 1
      %s190 = scalar_select %p189, %s18, 1
      %p191 = scmp.lt.s32.totalorder %s19, 1
      %s192 = scalar_select %p191, %s19, 1
      %s193 = smul.addr %s192, 64
      %s194 = smul.addr %s190, 128
      %s195 = sadd.s32 %s193, %s194
      %s196 = smul.addr %s195, 8
      %s197 = scalar_lea.vmem %s0, %s196
      %p198 = scmp.lt.s32.totalorder %s18, 1
      %s199 = scalar_select %p198, %s18, 1
      %p200 = scmp.lt.s32.totalorder %s19, 1
      %s201 = scalar_select %p200, %s19, 1
      %s202 = smul.addr %s201, 64
      %s203 = smul.addr %s199, 128
      %s204 = sadd.s32 %s202, %s203
      %s205 = smul.addr %s204, 8
      %s206 = scalar_lea.vmem %s3, %s205
      %v207 = vld [vmem:[%s197] sm:$0xff]
      %v208 = vld [vmem:[%s197 + $0x8] sm:$0xff]
      %v209 = vld [vmem:[%s197 + $0x10] sm:$0xff]
      %v210 = vld [vmem:[%s197 + $0x18] sm:$0xff]
      %v211 = vld [vmem:[%s197 + $0x20] sm:$0xff]
      %v212 = vld [vmem:[%s197 + $0x28] sm:$0xff]
      %v213 = vld [vmem:[%s197 + $0x30] sm:$0xff]
      %v214 = vld [vmem:[%s197 + $0x38] sm:$0xff]
      %v215 = vld [vmem:[%s197 + $0x40] sm:$0xff]
      %v216 = vld [vmem:[%s197 + $0x48] sm:$0xff]
      %v217 = vld [vmem:[%s197 + $0x50] sm:$0xff]
      %v218 = vld [vmem:[%s197 + $0x58] sm:$0xff]
      %v219 = vld [vmem:[%s197 + $0x60] sm:$0xff]
      %v220 = vld [vmem:[%s197 + $0x68] sm:$0xff]
      %v221 = vld [vmem:[%s197 + $0x70] sm:$0xff]
      %v222 = vld [vmem:[%s197 + $0x78] sm:$0xff]
      %v223 = vld [vmem:[%s197 + $0x80] sm:$0xff]
      %v224 = vld [vmem:[%s197 + $0x88] sm:$0xff]
      %v225 = vld [vmem:[%s197 + $0x90] sm:$0xff]
      %v226 = vld [vmem:[%s197 + $0x98] sm:$0xff]
      %v227 = vld [vmem:[%s197 + $0xa0] sm:$0xff]
      %v228 = vld [vmem:[%s197 + $0xa8] sm:$0xff]
      %v229 = vld [vmem:[%s197 + $0xb0] sm:$0xff]
      %v230 = vld [vmem:[%s197 + $0xb8] sm:$0xff]
      %v231 = vld [vmem:[%s197 + $0xc0] sm:$0xff]
      %v232 = vld [vmem:[%s197 + $0xc8] sm:$0xff]
      %v233 = vld [vmem:[%s197 + $0xd0] sm:$0xff]
      %v234 = vld [vmem:[%s197 + $0xd8] sm:$0xff]
      %v235 = vld [vmem:[%s197 + $0xe0] sm:$0xff]
      %v236 = vld [vmem:[%s197 + $0xe8] sm:$0xff]
      %v237 = vld [vmem:[%s197 + $0xf0] sm:$0xff]
      %v238 = vld [vmem:[%s197 + $0xf8] sm:$0xff]
      %v239 = vld [vmem:[%s197 + $0x100] sm:$0xff]
      %v240 = vld [vmem:[%s197 + $0x108] sm:$0xff]
      %v241 = vld [vmem:[%s197 + $0x110] sm:$0xff]
      %v242 = vld [vmem:[%s197 + $0x118] sm:$0xff]
      %v243 = vld [vmem:[%s197 + $0x120] sm:$0xff]
      %v244 = vld [vmem:[%s197 + $0x128] sm:$0xff]
      %v245 = vld [vmem:[%s197 + $0x130] sm:$0xff]
      %v246 = vld [vmem:[%s197 + $0x138] sm:$0xff]
      %v247 = vld [vmem:[%s197 + $0x140] sm:$0xff]
      %v248 = vld [vmem:[%s197 + $0x148] sm:$0xff]
      %v249 = vld [vmem:[%s197 + $0x150] sm:$0xff]
      %v250 = vld [vmem:[%s197 + $0x158] sm:$0xff]
      %v251 = vld [vmem:[%s197 + $0x160] sm:$0xff]
      %v252 = vld [vmem:[%s197 + $0x168] sm:$0xff]
      %v253 = vld [vmem:[%s197 + $0x170] sm:$0xff]
      %v254 = vld [vmem:[%s197 + $0x178] sm:$0xff]
      %v255 = vld [vmem:[%s197 + $0x180] sm:$0xff]
      %v256 = vld [vmem:[%s197 + $0x188] sm:$0xff]
      %v257 = vld [vmem:[%s197 + $0x190] sm:$0xff]
      %v258 = vld [vmem:[%s197 + $0x198] sm:$0xff]
      %v259 = vld [vmem:[%s197 + $0x1a0] sm:$0xff]
      %v260 = vld [vmem:[%s197 + $0x1a8] sm:$0xff]
      %v261 = vld [vmem:[%s197 + $0x1b0] sm:$0xff]
      %v262 = vld [vmem:[%s197 + $0x1b8] sm:$0xff]
      %v263 = vld [vmem:[%s197 + $0x1c0] sm:$0xff]
      %v264 = vld [vmem:[%s197 + $0x1c8] sm:$0xff]
      %v265 = vld [vmem:[%s197 + $0x1d0] sm:$0xff]
      %v266 = vld [vmem:[%s197 + $0x1d8] sm:$0xff]
      %v267 = vld [vmem:[%s197 + $0x1e0] sm:$0xff]
      %v268 = vld [vmem:[%s197 + $0x1e8] sm:$0xff]
      %v269 = vld [vmem:[%s197 + $0x1f0] sm:$0xff]
      %v270 = vld [vmem:[%s197 + $0x1f8] sm:$0xff]
      %v271 = vld [vmem:[%s1] sm:$0x1]
      %v273 = vperm.slane %v271, 0
      %v275 = vmul.f32 %v207, %v273
      %v276 = vmul.f32 %v208, %v273
      %v277 = vmul.f32 %v209, %v273
      %v278 = vmul.f32 %v210, %v273
      %v279 = vmul.f32 %v211, %v273
      %v280 = vmul.f32 %v212, %v273
      %v281 = vmul.f32 %v213, %v273
      %v282 = vmul.f32 %v214, %v273
      %v283 = vmul.f32 %v215, %v273
      %v284 = vmul.f32 %v216, %v273
      %v285 = vmul.f32 %v217, %v273
      %v286 = vmul.f32 %v218, %v273
      %v287 = vmul.f32 %v219, %v273
      %v288 = vmul.f32 %v220, %v273
      %v289 = vmul.f32 %v221, %v273
      %v290 = vmul.f32 %v222, %v273
      %v291 = vmul.f32 %v223, %v273
      %v292 = vmul.f32 %v224, %v273
      %v293 = vmul.f32 %v225, %v273
      %v294 = vmul.f32 %v226, %v273
      %v295 = vmul.f32 %v227, %v273
      %v296 = vmul.f32 %v228, %v273
      %v297 = vmul.f32 %v229, %v273
      %v298 = vmul.f32 %v230, %v273
      %v299 = vmul.f32 %v231, %v273
      %v300 = vmul.f32 %v232, %v273
      %v301 = vmul.f32 %v233, %v273
      %v302 = vmul.f32 %v234, %v273
      %v303 = vmul.f32 %v235, %v273
      %v304 = vmul.f32 %v236, %v273
      %v305 = vmul.f32 %v237, %v273
      %v306 = vmul.f32 %v238, %v273
      %v307 = vmul.f32 %v239, %v273
      %v308 = vmul.f32 %v240, %v273
      %v309 = vmul.f32 %v241, %v273
      %v310 = vmul.f32 %v242, %v273
      %v311 = vmul.f32 %v243, %v273
      %v312 = vmul.f32 %v244, %v273
      %v313 = vmul.f32 %v245, %v273
      %v314 = vmul.f32 %v246, %v273
      %v315 = vmul.f32 %v247, %v273
      %v316 = vmul.f32 %v248, %v273
      %v317 = vmul.f32 %v249, %v273
      %v318 = vmul.f32 %v250, %v273
      %v319 = vmul.f32 %v251, %v273
      %v320 = vmul.f32 %v252, %v273
      %v321 = vmul.f32 %v253, %v273
      %v322 = vmul.f32 %v254, %v273
      %v323 = vmul.f32 %v255, %v273
      %v324 = vmul.f32 %v256, %v273
      %v325 = vmul.f32 %v257, %v273
      %v326 = vmul.f32 %v258, %v273
      %v327 = vmul.f32 %v259, %v273
      %v328 = vmul.f32 %v260, %v273
      %v329 = vmul.f32 %v261, %v273
      %v330 = vmul.f32 %v262, %v273
      %v331 = vmul.f32 %v263, %v273
      %v332 = vmul.f32 %v264, %v273
      %v333 = vmul.f32 %v265, %v273
      %v334 = vmul.f32 %v266, %v273
      %v335 = vmul.f32 %v267, %v273
      %v336 = vmul.f32 %v268, %v273
      %v337 = vmul.f32 %v269, %v273
      %v338 = vmul.f32 %v270, %v273
      %v339 = vld [vmem:[%s2] sm:$0x1]
      %v341 = vperm.slane %v339, 0
      %v343 = vadd.f32 %v275, %v341
      %v344 = vadd.f32 %v276, %v341
      %v345 = vadd.f32 %v277, %v341
      %v346 = vadd.f32 %v278, %v341
      %v347 = vadd.f32 %v279, %v341
      %v348 = vadd.f32 %v280, %v341
      %v349 = vadd.f32 %v281, %v341
      %v350 = vadd.f32 %v282, %v341
      %v351 = vadd.f32 %v283, %v341
      %v352 = vadd.f32 %v284, %v341
      %v353 = vadd.f32 %v285, %v341
      %v354 = vadd.f32 %v286, %v341
      %v355 = vadd.f32 %v287, %v341
      %v356 = vadd.f32 %v288, %v341
      %v357 = vadd.f32 %v289, %v341
      %v358 = vadd.f32 %v290, %v341
      %v359 = vadd.f32 %v291, %v341
      %v360 = vadd.f32 %v292, %v341
      %v361 = vadd.f32 %v293, %v341
      %v362 = vadd.f32 %v294, %v341
      %v363 = vadd.f32 %v295, %v341
      %v364 = vadd.f32 %v296, %v341
      %v365 = vadd.f32 %v297, %v341
      %v366 = vadd.f32 %v298, %v341
      %v367 = vadd.f32 %v299, %v341
      %v368 = vadd.f32 %v300, %v341
      %v369 = vadd.f32 %v301, %v341
      %v370 = vadd.f32 %v302, %v341
      %v371 = vadd.f32 %v303, %v341
      %v372 = vadd.f32 %v304, %v341
      %v373 = vadd.f32 %v305, %v341
      %v374 = vadd.f32 %v306, %v341
      %v375 = vadd.f32 %v307, %v341
      %v376 = vadd.f32 %v308, %v341
      %v377 = vadd.f32 %v309, %v341
      %v378 = vadd.f32 %v310, %v341
      %v379 = vadd.f32 %v311, %v341
      %v380 = vadd.f32 %v312, %v341
      %v381 = vadd.f32 %v313, %v341
      %v382 = vadd.f32 %v314, %v341
      %v383 = vadd.f32 %v315, %v341
      %v384 = vadd.f32 %v316, %v341
      %v385 = vadd.f32 %v317, %v341
      %v386 = vadd.f32 %v318, %v341
      %v387 = vadd.f32 %v319, %v341
      %v388 = vadd.f32 %v320, %v341
      %v389 = vadd.f32 %v321, %v341
      %v390 = vadd.f32 %v322, %v341
      %v391 = vadd.f32 %v323, %v341
      %v392 = vadd.f32 %v324, %v341
      %v393 = vadd.f32 %v325, %v341
      %v394 = vadd.f32 %v326, %v341
      %v395 = vadd.f32 %v327, %v341
      %v396 = vadd.f32 %v328, %v341
      %v397 = vadd.f32 %v329, %v341
      %v398 = vadd.f32 %v330, %v341
      %v399 = vadd.f32 %v331, %v341
      %v400 = vadd.f32 %v332, %v341
      %v401 = vadd.f32 %v333, %v341
      %v402 = vadd.f32 %v334, %v341
      %v403 = vadd.f32 %v335, %v341
      %v404 = vadd.f32 %v336, %v341
      %v405 = vadd.f32 %v337, %v341
      %v406 = vadd.f32 %v338, %v341
      %vm407 = vcmp.ge.f32.partialorder %v343, 0.0
      %vm408 = vcmp.ge.f32.partialorder %v344, 0.0
      %vm409 = vcmp.ge.f32.partialorder %v345, 0.0
      %vm410 = vcmp.ge.f32.partialorder %v346, 0.0
      %vm411 = vcmp.ge.f32.partialorder %v347, 0.0
      %vm412 = vcmp.ge.f32.partialorder %v348, 0.0
      %vm413 = vcmp.ge.f32.partialorder %v349, 0.0
      %vm414 = vcmp.ge.f32.partialorder %v350, 0.0
      %vm415 = vcmp.ge.f32.partialorder %v351, 0.0
      %vm416 = vcmp.ge.f32.partialorder %v352, 0.0
      %vm417 = vcmp.ge.f32.partialorder %v353, 0.0
      %vm418 = vcmp.ge.f32.partialorder %v354, 0.0
      %vm419 = vcmp.ge.f32.partialorder %v355, 0.0
      %vm420 = vcmp.ge.f32.partialorder %v356, 0.0
      %vm421 = vcmp.ge.f32.partialorder %v357, 0.0
      %vm422 = vcmp.ge.f32.partialorder %v358, 0.0
      %vm423 = vcmp.ge.f32.partialorder %v359, 0.0
      %vm424 = vcmp.ge.f32.partialorder %v360, 0.0
      %vm425 = vcmp.ge.f32.partialorder %v361, 0.0
      %vm426 = vcmp.ge.f32.partialorder %v362, 0.0
      %vm427 = vcmp.ge.f32.partialorder %v363, 0.0
      %vm428 = vcmp.ge.f32.partialorder %v364, 0.0
      %vm429 = vcmp.ge.f32.partialorder %v365, 0.0
      %vm430 = vcmp.ge.f32.partialorder %v366, 0.0
      %vm431 = vcmp.ge.f32.partialorder %v367, 0.0
      %vm432 = vcmp.ge.f32.partialorder %v368, 0.0
      %vm433 = vcmp.ge.f32.partialorder %v369, 0.0
      %vm434 = vcmp.ge.f32.partialorder %v370, 0.0
      %vm435 = vcmp.ge.f32.partialorder %v371, 0.0
      %vm436 = vcmp.ge.f32.partialorder %v372, 0.0
      %vm437 = vcmp.ge.f32.partialorder %v373, 0.0
      %vm438 = vcmp.ge.f32.partialorder %v374, 0.0
      %vm439 = vcmp.ge.f32.partialorder %v375, 0.0
      %vm440 = vcmp.ge.f32.partialorder %v376, 0.0
      %vm441 = vcmp.ge.f32.partialorder %v377, 0.0
      %vm442 = vcmp.ge.f32.partialorder %v378, 0.0
      %vm443 = vcmp.ge.f32.partialorder %v379, 0.0
      %vm444 = vcmp.ge.f32.partialorder %v380, 0.0
      %vm445 = vcmp.ge.f32.partialorder %v381, 0.0
      %vm446 = vcmp.ge.f32.partialorder %v382, 0.0
      %vm447 = vcmp.ge.f32.partialorder %v383, 0.0
      %vm448 = vcmp.ge.f32.partialorder %v384, 0.0
      %vm449 = vcmp.ge.f32.partialorder %v385, 0.0
      %vm450 = vcmp.ge.f32.partialorder %v386, 0.0
      %vm451 = vcmp.ge.f32.partialorder %v387, 0.0
      %vm452 = vcmp.ge.f32.partialorder %v388, 0.0
      %vm453 = vcmp.ge.f32.partialorder %v389, 0.0
      %vm454 = vcmp.ge.f32.partialorder %v390, 0.0
      %vm455 = vcmp.ge.f32.partialorder %v391, 0.0
      %vm456 = vcmp.ge.f32.partialorder %v392, 0.0
      %vm457 = vcmp.ge.f32.partialorder %v393, 0.0
      %vm458 = vcmp.ge.f32.partialorder %v394, 0.0
      %vm459 = vcmp.ge.f32.partialorder %v395, 0.0
      %vm460 = vcmp.ge.f32.partialorder %v396, 0.0
      %vm461 = vcmp.ge.f32.partialorder %v397, 0.0
      %vm462 = vcmp.ge.f32.partialorder %v398, 0.0
      %vm463 = vcmp.ge.f32.partialorder %v399, 0.0
      %vm464 = vcmp.ge.f32.partialorder %v400, 0.0
      %vm465 = vcmp.ge.f32.partialorder %v401, 0.0
      %vm466 = vcmp.ge.f32.partialorder %v402, 0.0
      %vm467 = vcmp.ge.f32.partialorder %v403, 0.0
      %vm468 = vcmp.ge.f32.partialorder %v404, 0.0
      %vm469 = vcmp.ge.f32.partialorder %v405, 0.0
      %vm470 = vcmp.ge.f32.partialorder %v406, 0.0
      %v471 = vmul.f32 %v343, 0.01
      %v472 = vmul.f32 %v344, 0.01
      %v473 = vmul.f32 %v345, 0.01
      %v474 = vmul.f32 %v346, 0.01
      %v475 = vmul.f32 %v347, 0.01
      %v476 = vmul.f32 %v348, 0.01
      %v477 = vmul.f32 %v349, 0.01
      %v478 = vmul.f32 %v350, 0.01
      %v479 = vmul.f32 %v351, 0.01
      %v480 = vmul.f32 %v352, 0.01
      %v481 = vmul.f32 %v353, 0.01
      %v482 = vmul.f32 %v354, 0.01
      %v483 = vmul.f32 %v355, 0.01
      %v484 = vmul.f32 %v356, 0.01
      %v485 = vmul.f32 %v357, 0.01
      %v486 = vmul.f32 %v358, 0.01
      %v487 = vmul.f32 %v359, 0.01
      %v488 = vmul.f32 %v360, 0.01
      %v489 = vmul.f32 %v361, 0.01
      %v490 = vmul.f32 %v362, 0.01
      %v491 = vmul.f32 %v363, 0.01
      %v492 = vmul.f32 %v364, 0.01
      %v493 = vmul.f32 %v365, 0.01
      %v494 = vmul.f32 %v366, 0.01
      %v495 = vmul.f32 %v367, 0.01
      %v496 = vmul.f32 %v368, 0.01
      %v497 = vmul.f32 %v369, 0.01
      %v498 = vmul.f32 %v370, 0.01
      %v499 = vmul.f32 %v371, 0.01
      %v500 = vmul.f32 %v372, 0.01
      %v501 = vmul.f32 %v373, 0.01
      %v502 = vmul.f32 %v374, 0.01
      %v503 = vmul.f32 %v375, 0.01
      %v504 = vmul.f32 %v376, 0.01
      %v505 = vmul.f32 %v377, 0.01
      %v506 = vmul.f32 %v378, 0.01
      %v507 = vmul.f32 %v379, 0.01
      %v508 = vmul.f32 %v380, 0.01
      %v509 = vmul.f32 %v381, 0.01
      %v510 = vmul.f32 %v382, 0.01
      %v511 = vmul.f32 %v383, 0.01
      %v512 = vmul.f32 %v384, 0.01
      %v513 = vmul.f32 %v385, 0.01
      %v514 = vmul.f32 %v386, 0.01
      %v515 = vmul.f32 %v387, 0.01
      %v516 = vmul.f32 %v388, 0.01
      %v517 = vmul.f32 %v389, 0.01
      %v518 = vmul.f32 %v390, 0.01
      %v519 = vmul.f32 %v391, 0.01
      %v520 = vmul.f32 %v392, 0.01
      %v521 = vmul.f32 %v393, 0.01
      %v522 = vmul.f32 %v394, 0.01
      %v523 = vmul.f32 %v395, 0.01
      %v524 = vmul.f32 %v396, 0.01
      %v525 = vmul.f32 %v397, 0.01
      %v526 = vmul.f32 %v398, 0.01
      %v527 = vmul.f32 %v399, 0.01
      %v528 = vmul.f32 %v400, 0.01
      %v529 = vmul.f32 %v401, 0.01
      %v530 = vmul.f32 %v402, 0.01
      %v531 = vmul.f32 %v403, 0.01
      %v532 = vmul.f32 %v404, 0.01
      %v533 = vmul.f32 %v405, 0.01
      %v534 = vmul.f32 %v406, 0.01
      %v535 = vsel %vm407, %v343, %v471
      %v536 = vsel %vm408, %v344, %v472
      %v537 = vsel %vm409, %v345, %v473
      %v538 = vsel %vm410, %v346, %v474
      %v539 = vsel %vm411, %v347, %v475
      %v540 = vsel %vm412, %v348, %v476
      %v541 = vsel %vm413, %v349, %v477
      %v542 = vsel %vm414, %v350, %v478
      %v543 = vsel %vm415, %v351, %v479
      %v544 = vsel %vm416, %v352, %v480
      %v545 = vsel %vm417, %v353, %v481
      %v546 = vsel %vm418, %v354, %v482
      %v547 = vsel %vm419, %v355, %v483
      %v548 = vsel %vm420, %v356, %v484
      %v549 = vsel %vm421, %v357, %v485
      %v550 = vsel %vm422, %v358, %v486
      %v551 = vsel %vm423, %v359, %v487
      %v552 = vsel %vm424, %v360, %v488
      %v553 = vsel %vm425, %v361, %v489
      %v554 = vsel %vm426, %v362, %v490
      %v555 = vsel %vm427, %v363, %v491
      %v556 = vsel %vm428, %v364, %v492
      %v557 = vsel %vm429, %v365, %v493
      %v558 = vsel %vm430, %v366, %v494
      %v559 = vsel %vm431, %v367, %v495
      %v560 = vsel %vm432, %v368, %v496
      %v561 = vsel %vm433, %v369, %v497
      %v562 = vsel %vm434, %v370, %v498
      %v563 = vsel %vm435, %v371, %v499
      %v564 = vsel %vm436, %v372, %v500
      %v565 = vsel %vm437, %v373, %v501
      %v566 = vsel %vm438, %v374, %v502
      %v567 = vsel %vm439, %v375, %v503
      %v568 = vsel %vm440, %v376, %v504
      %v569 = vsel %vm441, %v377, %v505
      %v570 = vsel %vm442, %v378, %v506
      %v571 = vsel %vm443, %v379, %v507
      %v572 = vsel %vm444, %v380, %v508
      %v573 = vsel %vm445, %v381, %v509
      %v574 = vsel %vm446, %v382, %v510
      %v575 = vsel %vm447, %v383, %v511
      %v576 = vsel %vm448, %v384, %v512
      %v577 = vsel %vm449, %v385, %v513
      %v578 = vsel %vm450, %v386, %v514
      %v579 = vsel %vm451, %v387, %v515
      %v580 = vsel %vm452, %v388, %v516
      %v581 = vsel %vm453, %v389, %v517
      %v582 = vsel %vm454, %v390, %v518
      %v583 = vsel %vm455, %v391, %v519
      %v584 = vsel %vm456, %v392, %v520
      %v585 = vsel %vm457, %v393, %v521
      %v586 = vsel %vm458, %v394, %v522
      %v587 = vsel %vm459, %v395, %v523
      %v588 = vsel %vm460, %v396, %v524
      %v589 = vsel %vm461, %v397, %v525
      %v590 = vsel %vm462, %v398, %v526
      %v591 = vsel %vm463, %v399, %v527
      %v592 = vsel %vm464, %v400, %v528
      %v593 = vsel %vm465, %v401, %v529
      %v594 = vsel %vm466, %v402, %v530
      %v595 = vsel %vm467, %v403, %v531
      %v596 = vsel %vm468, %v404, %v532
      %v597 = vsel %vm469, %v405, %v533
      %v598 = vsel %vm470, %v406, %v534
      %vm599 = vcmask 31744
      %600 = vst.msk [vmem:[%s206] sm:$0xff] %vm599, %v535
      %601 = vst.msk [vmem:[%s206 + $0x8] sm:$0xff] %vm599, %v536
      %602 = vst.msk [vmem:[%s206 + $0x10] sm:$0xff] %vm599, %v537
      %603 = vst.msk [vmem:[%s206 + $0x18] sm:$0xff] %vm599, %v538
      %604 = vst.msk [vmem:[%s206 + $0x20] sm:$0xff] %vm599, %v539
      %605 = vst.msk [vmem:[%s206 + $0x28] sm:$0xff] %vm599, %v540
      %606 = vst.msk [vmem:[%s206 + $0x30] sm:$0xff] %vm599, %v541
      %607 = vst.msk [vmem:[%s206 + $0x38] sm:$0xff] %vm599, %v542
      %608 = vst.msk [vmem:[%s206 + $0x40] sm:$0xff] %vm599, %v543
      %609 = vst.msk [vmem:[%s206 + $0x48] sm:$0xff] %vm599, %v544
      %610 = vst.msk [vmem:[%s206 + $0x50] sm:$0xff] %vm599, %v545
      %611 = vst.msk [vmem:[%s206 + $0x58] sm:$0xff] %vm599, %v546
      %612 = vst.msk [vmem:[%s206 + $0x60] sm:$0xff] %vm599, %v547
      %613 = vst.msk [vmem:[%s206 + $0x68] sm:$0xff] %vm599, %v548
      %614 = vst.msk [vmem:[%s206 + $0x70] sm:$0xff] %vm599, %v549
      %615 = vst.msk [vmem:[%s206 + $0x78] sm:$0xff] %vm599, %v550
      %616 = vst.msk [vmem:[%s206 + $0x80] sm:$0xff] %vm599, %v551
      %617 = vst.msk [vmem:[%s206 + $0x88] sm:$0xff] %vm599, %v552
      %618 = vst.msk [vmem:[%s206 + $0x90] sm:$0xff] %vm599, %v553
      %619 = vst.msk [vmem:[%s206 + $0x98] sm:$0xff] %vm599, %v554
      %620 = vst.msk [vmem:[%s206 + $0xa0] sm:$0xff] %vm599, %v555
      %621 = vst.msk [vmem:[%s206 + $0xa8] sm:$0xff] %vm599, %v556
      %622 = vst.msk [vmem:[%s206 + $0xb0] sm:$0xff] %vm599, %v557
      %623 = vst.msk [vmem:[%s206 + $0xb8] sm:$0xff] %vm599, %v558
      %624 = vst.msk [vmem:[%s206 + $0xc0] sm:$0xff] %vm599, %v559
      %625 = vst.msk [vmem:[%s206 + $0xc8] sm:$0xff] %vm599, %v560
      %626 = vst.msk [vmem:[%s206 + $0xd0] sm:$0xff] %vm599, %v561
      %627 = vst.msk [vmem:[%s206 + $0xd8] sm:$0xff] %vm599, %v562
      %628 = vst.msk [vmem:[%s206 + $0xe0] sm:$0xff] %vm599, %v563
      %629 = vst.msk [vmem:[%s206 + $0xe8] sm:$0xff] %vm599, %v564
      %630 = vst.msk [vmem:[%s206 + $0xf0] sm:$0xff] %vm599, %v565
      %631 = vst.msk [vmem:[%s206 + $0xf8] sm:$0xff] %vm599, %v566
      %632 = vst.msk [vmem:[%s206 + $0x100] sm:$0xff] %vm599, %v567
      %633 = vst.msk [vmem:[%s206 + $0x108] sm:$0xff] %vm599, %v568
      %634 = vst.msk [vmem:[%s206 + $0x110] sm:$0xff] %vm599, %v569
      %635 = vst.msk [vmem:[%s206 + $0x118] sm:$0xff] %vm599, %v570
      %636 = vst.msk [vmem:[%s206 + $0x120] sm:$0xff] %vm599, %v571
      %637 = vst.msk [vmem:[%s206 + $0x128] sm:$0xff] %vm599, %v572
      %638 = vst.msk [vmem:[%s206 + $0x130] sm:$0xff] %vm599, %v573
      %639 = vst.msk [vmem:[%s206 + $0x138] sm:$0xff] %vm599, %v574
      %640 = vst.msk [vmem:[%s206 + $0x140] sm:$0xff] %vm599, %v575
      %641 = vst.msk [vmem:[%s206 + $0x148] sm:$0xff] %vm599, %v576
      %642 = vst.msk [vmem:[%s206 + $0x150] sm:$0xff] %vm599, %v577
      %643 = vst.msk [vmem:[%s206 + $0x158] sm:$0xff] %vm599, %v578
      %644 = vst.msk [vmem:[%s206 + $0x160] sm:$0xff] %vm599, %v579
      %645 = vst.msk [vmem:[%s206 + $0x168] sm:$0xff] %vm599, %v580
      %646 = vst.msk [vmem:[%s206 + $0x170] sm:$0xff] %vm599, %v581
      %647 = vst.msk [vmem:[%s206 + $0x178] sm:$0xff] %vm599, %v582
      %648 = vst.msk [vmem:[%s206 + $0x180] sm:$0xff] %vm599, %v583
      %649 = vst.msk [vmem:[%s206 + $0x188] sm:$0xff] %vm599, %v584
      %650 = vst.msk [vmem:[%s206 + $0x190] sm:$0xff] %vm599, %v585
      %651 = vst.msk [vmem:[%s206 + $0x198] sm:$0xff] %vm599, %v586
      %652 = vst.msk [vmem:[%s206 + $0x1a0] sm:$0xff] %vm599, %v587
      %653 = vst.msk [vmem:[%s206 + $0x1a8] sm:$0xff] %vm599, %v588
      %654 = vst.msk [vmem:[%s206 + $0x1b0] sm:$0xff] %vm599, %v589
      %655 = vst.msk [vmem:[%s206 + $0x1b8] sm:$0xff] %vm599, %v590
      %656 = vst.msk [vmem:[%s206 + $0x1c0] sm:$0xff] %vm599, %v591
      %657 = vst.msk [vmem:[%s206 + $0x1c8] sm:$0xff] %vm599, %v592
      %658 = vst.msk [vmem:[%s206 + $0x1d0] sm:$0xff] %vm599, %v593
      %659 = vst.msk [vmem:[%s206 + $0x1d8] sm:$0xff] %vm599, %v594
      %660 = vst.msk [vmem:[%s206 + $0x1e0] sm:$0xff] %vm599, %v595
      %661 = vst.msk [vmem:[%s206 + $0x1e8] sm:$0xff] %vm599, %v596
      %662 = vst.msk [vmem:[%s206 + $0x1f0] sm:$0xff] %vm599, %v597
      %663 = vst.msk [vmem:[%s206 + $0x1f8] sm:$0xff] %vm599, %v598
      %p664 = scmp.lt.s32.totalorder %s18, 1
      %s665 = scalar_select %p664, %s18, 1
      %p666 = scmp.lt.s32.totalorder %s19, 1
      %s667 = scalar_select %p666, %s19, 1
      %s668 = smul.addr %s667, 64
      %s669 = smul.addr %s665, 128
      %s670 = sadd.s32 %s668, %s669
      %s671 = smul.addr %s670, 8
      %s672 = scalar_lea.vmem %s3, %s671
      // Predicated region
      $region33: #{upscale_block_pallas.3} parent=31 // pred_check
        %p673 = pneg %p116
      $region34: #{upscale_block_pallas.3} parent=31 // pred_check_branch
        %675 = sbr.rel (%p673) target = $region36
      $region35: #{upscale_block_pallas.3} parent=31 // pred_region
        _
      $region36: #{upscale_block_pallas.3} parent=31 // pred_fallthru
        _
    $region32: #{upscale_block_pallas.3} parent=5 // pred_fallthru
      _
    %p676 = scmp.le.s32.totalorder 2, %s9
    // Predicated region
    $region37: #{upscale_block_pallas.3} parent=5 // pred_check
      %p677 = pneg %p676
    $region38: #{upscale_block_pallas.3} parent=5 // pred_check_branch
      %679 = sbr.rel (%p677) target = $region40
    $region39: #{upscale_block_pallas.3} parent=5 // pred_region
      %s680 = ssub.s32 %s9, 2
      // Predicated region
      $region41: #{upscale_block_pallas.3} parent=39 // pred_check
        %p681 = pneg %p122
      $region42: #{upscale_block_pallas.3} parent=39 // pred_check_branch
        %683 = sbr.rel (%p681) target = $region44
      $region43: #{upscale_block_pallas.3} parent=39 // pred_region
        %p684 = scmp.lt.s32.totalorder %s20, 1
        %s685 = scalar_select %p684, %s20, 1
        %p686 = scmp.lt.s32.totalorder %s21, 1
        %s687 = scalar_select %p686, %s21, 1
        %s688 = smul.addr %s687, 64
        %s689 = smul.addr %s685, 128
        %s690 = sadd.s32 %s688, %s689
        %s691 = smul.addr %s690, 8
        %s692 = scalar_lea.vmem %s3, %s691
      $region44: #{upscale_block_pallas.3} parent=39 // pred_fallthru
        _
    $region40: #{upscale_block_pallas.3} parent=5 // pred_fallthru
      _
  $region6: #{upscale_block_pallas.3} parent=0 // loop_footer
    %s13 = sadd.s32 1, %s9
  $region7: #{upscale_block_pallas.3} parent=0 // loop_footer_branch
    %8 = sbr.rel target = $region3
  $region8: #{upscale_block_pallas.3} parent=0 // loop_exit
    _

// kernel: upscale_block_pallas.2
$region0: #{upscale_block_pallas.2}
  #allocation0 [shape = 'u32[]', space=smem, size = 0x4, offset = 0x4, fixed_abs, tag = 'smem constant byte address 0x4 - core index']
  #allocation1 [shape = 'u32[72,128]{1,0:T(1,128)}', space=vmem, size = 0x9000, scoped, tag = 'internal scratch']
  %s0 = inlined_call_operand.vmem [shape: f32[2,2,10,18,9], index: 0, kind: input, shape index: {}]
  %s1 = inlined_call_operand.vmem [shape: f32[9,4], index: 1, kind: input, shape index: {}]
  %s2 = inlined_call_operand.vmem [shape: f32[2,2,2,2,4,4], index: 2, kind: input, shape index: {}]
  %s3 = inlined_call_operand.vmem [shape: f32[1,4], index: 3, kind: input, shape index: {}]
  %s4 = inlined_call_operand.vmem [shape: f32[3,3,4], index: 4, kind: input, shape index: {}]
  %s5 = inlined_call_operand.vmem [shape: f32[1,4], index: 5, kind: input, shape index: {}]
  %s6 = inlined_call_operand.vmem [shape: f32[4,4], index: 6, kind: input, shape index: {}]
  %s7 = inlined_call_operand.vmem [shape: f32[1,4], index: 7, kind: input, shape index: {}]
  %s8 = inlined_call_operand.vmem [shape: f32[2,2,2,2,8,16,4], index: 8, kind: output, shape index: {0}]
  %s9 = inlined_call_operand.vmem [shape: f32[2,2,2,4], index: 9, kind: output, shape index: {1}]
  %10 = xla_tuple %s8, %s9
  %s11 = sld [smem:[#allocation0]]
  $region73: #{upscale_block_pallas.2} parent=0
    _
  %s13 = ssub.s32 1, %s11
  %s14 = scalar_select 0, %s13, %s11
  loop: start=0, step=1, limit=6
  $region2: #{upscale_block_pallas.2} parent=0 // loop_pre_header
    _
  $region3: #{upscale_block_pallas.2} parent=0 // loop_header
    %s16 = sphi 0, %s20
    %p17 = scmp.ge.s32.totalorder %s16, 6
    %s23 = sphi 0, %s35
    %s24 = sphi 0, %s31
    %s25 = sphi 0, %s23
    %s26 = sphi 0, %s24
    %s27 = sphi 0, %s25
    %s28 = sphi 0, %s26
    %s40 = sphi 0, %s42
    %s43 = sphi 0, %s40
    %s44 = sphi 0, %s43
    %s60 = sphi 0, %s44
    %s64 = sphi 0, %s64
    %s66 = sphi 0, %s64
    %s67 = sphi 0, %s66
    %s81 = sphi 0, %s67
    %s85 = sphi 0, %s85
    %s87 = sphi 0, %s85
    %s88 = sphi 0, %s87
    %s102 = sphi 0, %s88
    %s106 = sphi 0, %s106
    %s108 = sphi 0, %s106
    %s109 = sphi 0, %s108
    %s123 = sphi 0, %s109
    %s127 = sphi 0, %s127
    %s129 = sphi 0, %s127
    %s130 = sphi 0, %s129
    %s144 = sphi 0, %s130
    %s148 = sphi 0, %s148
    %s150 = sphi 0, %s148
    %s151 = sphi 0, %s150
    %s165 = sphi 0, %s151
    %s169 = sphi 0, %s169
    %s171 = sphi 0, %s169
    %s172 = sphi 0, %s171
    %s186 = sphi 0, %s172
    %s190 = sphi 0, %s190
    %s192 = sphi 0, %s190
    %s193 = sphi 0, %s192
    %s207 = sphi 0, %s193
    %s215 = sphi 0, %s217
    %s218 = sphi 0, %s215
    %s219 = sphi 0, %s218
    %s235 = sphi 0, %s219
    %s243 = sphi 0, %s245
    %s246 = sphi 0, %s243
    %s247 = sphi 0, %s246
    %s263 = sphi 0, %s247
  $region4: #{upscale_block_pallas.2} parent=0 // loop_header_branch
    %19 = sbr.rel (%p17) target = $region8
  $region5: #{upscale_block_pallas.2} parent=0 // loop_body
    %s21 = ssub.s32 %s16, 1
    %s22 = ssub.s32 %s16, 2
    %s29 = sadd.s32 1, %s24
    %p30 = scmp.ge.s32.totalorder %s29, 2
    %s31 = scalar_select %p30, 0, %s29
    %s32 = sadd.s32 1, %s23
    %s33 = scalar_select %p30, %s32, %s23
    %p34 = scmp.ge.s32.totalorder %s33, 2
    %s35 = scalar_select %p34, 0, %s33
    %s36 = ssub.s32 %s23, %s35
    %s37 = ssub.s32 %s24, %s31
    %s38 = sor.u32 %s36, %s37
    %p39 = scmp.eq.s32.totalorder %s38, 0
    %s41 = sadd.s32 %s40, 1
    %s42 = scalar_select %p39, %s40, %s41
    %p45 = pneg %p39
    %p46 = scmp.eq.s32.totalorder %s16, 3
    %p47 = por %p45, %p46
    %p48 = scmp.ne.s32.totalorder %s40, %s43
    %p49 = scmp.eq.s32.totalorder %s16, 0
    %p50 = por %p48, %p49
    %p51 = scmp.ne.s32.totalorder %s40, %s43
    %p52 = scmp.eq.s32.totalorder %s21, 3
    %p53 = por %p51, %p52
    %p54 = scmp.ne.s32.totalorder %s43, %s44
    %p55 = scmp.eq.s32.totalorder %s21, 0
    %p56 = por %p54, %p55
    %p57 = scmp.ne.s32.totalorder %s43, %s44
    %p58 = scmp.eq.s32.totalorder %s22, 3
    %p59 = por %p57, %p58
    %p61 = scmp.ne.s32.totalorder %s44, %s60
    %p62 = scmp.eq.s32.totalorder %s22, 0
    %p63 = por %p61, %p62
    %s65 = sadd.s32 %s64, 1
    %p68 = scmp.eq.s32.totalorder %s16, 3
    %p69 = scmp.ne.s32.totalorder %s64, %s66
    %p70 = scmp.eq.s32.totalorder %s16, 0
    %p71 = por %p69, %p70
    %p72 = scmp.ne.s32.totalorder %s64, %s66
    %p73 = scmp.eq.s32.totalorder %s21, 3
    %p74 = por %p72, %p73
    %p75 = scmp.ne.s32.totalorder %s66, %s67
    %p76 = scmp.eq.s32.totalorder %s21, 0
    %p77 = por %p75, %p76
    %p78 = scmp.ne.s32.totalorder %s66, %s67
    %p79 = scmp.eq.s32.totalorder %s22, 3
    %p80 = por %p78, %p79
    %p82 = scmp.ne.s32.totalorder %s67, %s81
    %p83 = scmp.eq.s32.totalorder %s22, 0
    %p84 = por %p82, %p83
    %s86 = sadd.s32 %s85, 1
    %p89 = scmp.eq.s32.totalorder %s16, 3
    %p90 = scmp.ne.s32.totalorder %s85, %s87
    %p91 = scmp.eq.s32.totalorder %s16, 0
    %p92 = por %p90, %p91
    %p93 = scmp.ne.s32.totalorder %s85, %s87
    %p94 = scmp.eq.s32.totalorder %s21, 3
    %p95 = por %p93, %p94
    %p96 = scmp.ne.s32.totalorder %s87, %s88
    %p97 = scmp.eq.s32.totalorder %s21, 0
    %p98 = por %p96, %p97
    %p99 = scmp.ne.s32.totalorder %s87, %s88
    %p100 = scmp.eq.s32.totalorder %s22, 3
    %p101 = por %p99, %p100
    %p103 = scmp.ne.s32.totalorder %s88, %s102
    %p104 = scmp.eq.s32.totalorder %s22, 0
    %p105 = por %p103, %p104
    %s107 = sadd.s32 %s106, 1
    %p110 = scmp.eq.s32.totalorder %s16, 3
    %p111 = scmp.ne.s32.totalorder %s106, %s108
    %p112 = scmp.eq.s32.totalorder %s16, 0
    %p113 = por %p111, %p112
    %p114 = scmp.ne.s32.totalorder %s106, %s108
    %p115 = scmp.eq.s32.totalorder %s21, 3
    %p116 = por %p114, %p115
    %p117 = scmp.ne.s32.totalorder %s108, %s109
    %p118 = scmp.eq.s32.totalorder %s21, 0
    %p119 = por %p117, %p118
    %p120 = scmp.ne.s32.totalorder %s108, %s109
    %p121 = scmp.eq.s32.totalorder %s22, 3
    %p122 = por %p120, %p121
    %p124 = scmp.ne.s32.totalorder %s109, %s123
    %p125 = scmp.eq.s32.totalorder %s22, 0
    %p126 = por %p124, %p125
    %s128 = sadd.s32 %s127, 1
    %p131 = scmp.eq.s32.totalorder %s16, 3
    %p132 = scmp.ne.s32.totalorder %s127, %s129
    %p133 = scmp.eq.s32.totalorder %s16, 0
    %p134 = por %p132, %p133
    %p135 = scmp.ne.s32.totalorder %s127, %s129
    %p136 = scmp.eq.s32.totalorder %s21, 3
    %p137 = por %p135, %p136
    %p138 = scmp.ne.s32.totalorder %s129, %s130
    %p139 = scmp.eq.s32.totalorder %s21, 0
    %p140 = por %p138, %p139
    %p141 = scmp.ne.s32.totalorder %s129, %s130
    %p142 = scmp.eq.s32.totalorder %s22, 3
    %p143 = por %p141, %p142
    %p145 = scmp.ne.s32.totalorder %s130, %s144
    %p146 = scmp.eq.s32.totalorder %s22, 0
    %p147 = por %p145, %p146
    %s149 = sadd.s32 %s148, 1
    %p152 = scmp.eq.s32.totalorder %s16, 3
    %p153 = scmp.ne.s32.totalorder %s148, %s150
    %p154 = scmp.eq.s32.totalorder %s16, 0
    %p155 = por %p153, %p154
    %p156 = scmp.ne.s32.totalorder %s148, %s150
    %p157 = scmp.eq.s32.totalorder %s21, 3
    %p158 = por %p156, %p157
    %p159 = scmp.ne.s32.totalorder %s150, %s151
    %p160 = scmp.eq.s32.totalorder %s21, 0
    %p161 = por %p159, %p160
    %p162 = scmp.ne.s32.totalorder %s150, %s151
    %p163 = scmp.eq.s32.totalorder %s22, 3
    %p164 = por %p162, %p163
    %p166 = scmp.ne.s32.totalorder %s151, %s165
    %p167 = scmp.eq.s32.totalorder %s22, 0
    %p168 = por %p166, %p167
    %s170 = sadd.s32 %s169, 1
    %p173 = scmp.eq.s32.totalorder %s16, 3
    %p174 = scmp.ne.s32.totalorder %s169, %s171
    %p175 = scmp.eq.s32.totalorder %s16, 0
    %p176 = por %p174, %p175
    %p177 = scmp.ne.s32.totalorder %s169, %s171
    %p178 = scmp.eq.s32.totalorder %s21, 3
    %p179 = por %p177, %p178
    %p180 = scmp.ne.s32.totalorder %s171, %s172
    %p181 = scmp.eq.s32.totalorder %s21, 0
    %p182 = por %p180, %p181
    %p183 = scmp.ne.s32.totalorder %s171, %s172
    %p184 = scmp.eq.s32.totalorder %s22, 3
    %p185 = por %p183, %p184
    %p187 = scmp.ne.s32.totalorder %s172, %s186
    %p188 = scmp.eq.s32.totalorder %s22, 0
    %p189 = por %p187, %p188
    %s191 = sadd.s32 %s190, 1
    %p194 = scmp.eq.s32.totalorder %s16, 3
    %p195 = scmp.ne.s32.totalorder %s190, %s192
    %p196 = scmp.eq.s32.totalorder %s16, 0
    %p197 = por %p195, %p196
    %p198 = scmp.ne.s32.totalorder %s190, %s192
    %p199 = scmp.eq.s32.totalorder %s21, 3
    %p200 = por %p198, %p199
    %p201 = scmp.ne.s32.totalorder %s192, %s193
    %p202 = scmp.eq.s32.totalorder %s21, 0
    %p203 = por %p201, %p202
    %p204 = scmp.ne.s32.totalorder %s192, %s193
    %p205 = scmp.eq.s32.totalorder %s22, 3
    %p206 = por %p204, %p205
    %p208 = scmp.ne.s32.totalorder %s193, %s207
    %p209 = scmp.eq.s32.totalorder %s22, 0
    %p210 = por %p208, %p209
    %s211 = ssub.s32 %s23, %s35
    %s212 = ssub.s32 %s24, %s31
    %s213 = sor.u32 %s211, %s212
    %p214 = scmp.eq.s32.totalorder %s213, 0
    %s216 = sadd.s32 %s215, 1
    %s217 = scalar_select %p214, %s215, %s216
    %p220 = pneg %p214
    %p221 = scmp.eq.s32.totalorder %s16, 3
    %p222 = por %p220, %p221
    %p223 = scmp.ne.s32.totalorder %s215, %s218
    %p224 = scmp.eq.s32.totalorder %s16, 0
    %p225 = por %p223, %p224
    %p226 = scmp.ne.s32.totalorder %s215, %s218
    %p227 = scmp.eq.s32.totalorder %s21, 3
    %p228 = por %p226, %p227
    %p229 = scmp.ne.s32.totalorder %s218, %s219
    %p230 = scmp.eq.s32.totalorder %s21, 0
    %p231 = por %p229, %p230
    %p232 = scmp.ne.s32.totalorder %s218, %s219
    %p233 = scmp.eq.s32.totalorder %s22, 3
    %p234 = por %p232, %p233
    %p236 = scmp.ne.s32.totalorder %s219, %s235
    %p237 = scmp.eq.s32.totalorder %s22, 0
    %p238 = por %p236, %p237
    %s239 = ssub.s32 %s23, %s35
    %s240 = ssub.s32 %s24, %s31
    %s241 = sor.u32 %s239, %s240
    %p242 = scmp.eq.s32.totalorder %s241, 0
    %s244 = sadd.s32 %s243, 1
    %s245 = scalar_select %p242, %s243, %s244
    %p248 = pneg %p242
    %p249 = scmp.eq.s32.totalorder %s16, 3
    %p250 = por %p248, %p249
    %p251 = scmp.ne.s32.totalorder %s243, %s246
    %p252 = scmp.eq.s32.totalorder %s16, 0
    %p253 = por %p251, %p252
    %p254 = scmp.ne.s32.totalorder %s243, %s246
    %p255 = scmp.eq.s32.totalorder %s21, 3
    %p256 = por %p254, %p255
    %p257 = scmp.ne.s32.totalorder %s246, %s247
    %p258 = scmp.eq.s32.totalorder %s21, 0
    %p259 = por %p257, %p258
    %p260 = scmp.ne.s32.totalorder %s246, %s247
    %p261 = scmp.eq.s32.totalorder %s22, 3
    %p262 = por %p260, %p261
    %p264 = scmp.ne.s32.totalorder %s247, %s263
    %p265 = scmp.eq.s32.totalorder %s22, 0
    %p266 = por %p264, %p265
    %p267 = scmp.le.s32.totalorder 1, %s16
    %p268 = scmp.lt.s32.totalorder %s16, 5
    %p269 = pnand %p267, %p268
    %p270 = pneg %p269
    // Predicated region
    $region9: #{upscale_block_pallas.2} parent=5 // pred_check
      _
    $region10: #{upscale_block_pallas.2} parent=5 // pred_check_branch
      %272 = sbr.rel (%p269) target = $region12
    $region11: #{upscale_block_pallas.2} parent=5 // pred_region
      %s273 = ssub.s32 %s16, 1
      // Predicated region
      $region13: #{upscale_block_pallas.2} parent=11 // pred_check
        %p274 = pneg %p77
      $region14: #{upscale_block_pallas.2} parent=11 // pred_check_branch
        %276 = sbr.rel (%p274) target = $region16
      $region15: #{upscale_block_pallas.2} parent=11 // pred_region
        _
      $region16: #{upscale_block_pallas.2} parent=11 // pred_fallthru
        _
      // Predicated region
      $region17: #{upscale_block_pallas.2} parent=11 // pred_check
        %p277 = pneg %p98
      $region18: #{upscale_block_pallas.2} parent=11 // pred_check_branch
        %279 = sbr.rel (%p277) target = $region20
      $region19: #{upscale_block_pallas.2} parent=11 // pred_region
        _
      $region20: #{upscale_block_pallas.2} parent=11 // pred_fallthru
        _
      // Predicated region
      $region21: #{upscale_block_pallas.2} parent=11 // pred_check
        %p280 = pneg %p119
      $region22: #{upscale_block_pallas.2} parent=11 // pred_check_branch
        %282 = sbr.rel (%p280) target = $region24
      $region23: #{upscale_block_pallas.2} parent=11 // pred_region
        _
      $region24: #{upscale_block_pallas.2} parent=11 // pred_fallthru
        _
      // Predicated region
      $region25: #{upscale_block_pallas.2} parent=11 // pred_check
        %p283 = pneg %p140
      $region26: #{upscale_block_pallas.2} parent=11 // pred_check_branch
        %285 = sbr.rel (%p283) target = $region28
      $region27: #{upscale_block_pallas.2} parent=11 // pred_region
        _
      $region28: #{upscale_block_pallas.2} parent=11 // pred_fallthru
        _
      // Predicated region
      $region29: #{upscale_block_pallas.2} parent=11 // pred_check
        %p286 = pneg %p161
      $region30: #{upscale_block_pallas.2} parent=11 // pred_check_branch
        %288 = sbr.rel (%p286) target = $region32
      $region31: #{upscale_block_pallas.2} parent=11 // pred_region
        _
      $region32: #{upscale_block_pallas.2} parent=11 // pred_fallthru
        _
      // Predicated region
      $region33: #{upscale_block_pallas.2} parent=11 // pred_check
        %p289 = pneg %p182
      $region34: #{upscale_block_pallas.2} parent=11 // pred_check_branch
        %291 = sbr.rel (%p289) target = $region36
      $region35: #{upscale_block_pallas.2} parent=11 // pred_region
        _
      $region36: #{upscale_block_pallas.2} parent=11 // pred_fallthru
        _
      // Predicated region
      $region37: #{upscale_block_pallas.2} parent=11 // pred_check
        %p292 = pneg %p203
      $region38: #{upscale_block_pallas.2} parent=11 // pred_check_branch
        %294 = sbr.rel (%p292) target = $region40
      $region39: #{upscale_block_pallas.2} parent=11 // pred_region
        _
      $region40: #{upscale_block_pallas.2} parent=11 // pred_fallthru
        _
    $region12: #{upscale_block_pallas.2} parent=5 // pred_fallthru
      _
    %p295 = scmp.lt.s32.totalorder %s16, 4
    // Predicated region
    $region41: #{upscale_block_pallas.2} parent=5 // pred_check
      %p296 = pneg %p295
    $region42: #{upscale_block_pallas.2} parent=5 // pred_check_branch
      %298 = sbr.rel (%p296) target = $region44
    $region43: #{upscale_block_pallas.2} parent=5 // pred_region
      // Predicated region
      $region45: #{upscale_block_pallas.2} parent=43 // pred_check
        %p299 = pneg %p50
      $region46: #{upscale_block_pallas.2} parent=43 // pred_check_branch
        %301 = sbr.rel (%p299) target = $region48
      $region47: #{upscale_block_pallas.2} parent=43 // pred_region
        %p302 = scmp.lt.s32.totalorder %s23, 1
        %s303 = scalar_select %p302, %s23, 1
        %p304 = scmp.lt.s32.totalorder %s24, 1
        %s305 = scalar_select %p304, %s24, 1
        %s306 = smul.addr %s305, 30
        %s307 = smul.addr %s303, 60
        %s308 = sadd.s32 %s306, %s307
        %s309 = smul.addr %s308, 8
        %s310 = scalar_lea.vmem %s0, %s309
      $region48: #{upscale_block_pallas.2} parent=43 // pred_fallthru
        _
    $region44: #{upscale_block_pallas.2} parent=5 // pred_fallthru
      _
    %p311 = scmp.le.s32.totalorder 1, %s16
    %p312 = scmp.lt.s32.totalorder %s16, 5
    %p313 = pnand %p311, %p312
    %p314 = pneg %p313
    // Predicated region
    $region49: #{upscale_block_pallas.2} parent=5 // pred_check
      _
    $region50: #{upscale_block_pallas.2} parent=5 // pred_check_branch
      %316 = sbr.rel (%p313) target = $region52
    $region51: #{upscale_block_pallas.2} parent=5 // pred_region
      %s317 = ssub.s32 %s16, 1
      %p318 = scmp.lt.s32.totalorder %s25, 1
      %s319 = scalar_select %p318, %s25, 1
      %p320 = scmp.lt.s32.totalorder %s26, 1
      %s321 = scalar_select %p320, %s26, 1
      %s322 = smul.addr %s321, 30
      %s323 = smul.addr %s319, 60
      %s324 = sadd.s32 %s322, %s323
      %s325 = smul.addr %s324, 8
      %s326 = scalar_lea.vmem %s0, %s325
      %p327 = pneg %p56
      %p328 = pneg %p53
      %p329 = pneg %p77
      %p330 = pneg %p74
      %p331 = pneg %p98
      %p332 = pneg %p95
      %p333 = pneg %p119
      %p334 = pneg %p116
      %p335 = pneg %p140
      %p336 = pneg %p137
      %p337 = pneg %p161
      %p338 = pneg %p158
      %p339 = pneg %p182
      %p340 = pneg %p179
      %p341 = pneg %p203
      %p342 = pneg %p200
      %p343 = pneg %p231
      %p344 = pneg %p228
      %p345 = scmp.lt.s32.totalorder %s25, 1
      %s346 = scalar_select %p345, %s25, 1
      %p347 = scmp.lt.s32.totalorder %s26, 1
      %s348 = scalar_select %p347, %s26, 1
      %s349 = smul.addr %s348, 64
      %s350 = smul.addr %s346, 128
      %s351 = sadd.s32 %s349, %s350
      %s352 = smul.addr %s351, 8
      %s353 = scalar_lea.vmem %s8, %s352
      %p354 = pneg %p259
      %p355 = pneg %p256
      %p356 = scmp.lt.s32.totalorder %s25, 1
      %s357 = scalar_select %p356, %s25, 1
      %p358 = scmp.lt.s32.totalorder %s26, 1
      %s359 = scalar_select %p358, %s26, 1
      %s360 = smul.addr %s357, 2
      %s361 = sadd.s32 %s359, %s360
      %s362 = smul.addr %s361, 2
      %s363 = scalar_lea.vmem %s9, %s362
      %p364 = scmp.lt.s32.totalorder %s25, 1
      %s365 = scalar_select %p364, %s25, 1
      %p366 = scmp.lt.s32.totalorder %s26, 1
      %s367 = scalar_select %p366, %s26, 1
      %s368 = smul.addr %s367, 30
      %s369 = smul.addr %s365, 60
      %s370 = sadd.s32 %s368, %s369
      %s371 = smul.addr %s370, 8
      %s372 = scalar_lea.vmem %s0, %s371
      %p373 = scmp.lt.s32.totalorder %s25, 1
      %s374 = scalar_select %p373, %s25, 1
      %p375 = scmp.lt.s32.totalorder %s26, 1
      %s376 = scalar_select %p375, %s26, 1
      %s377 = smul.addr %s376, 64
      %s378 = smul.addr %s374, 128
      %s379 = sadd.s32 %s377, %s378
      %s380 = smul.addr %s379, 8
      %s381 = scalar_lea.vmem %s8, %s380
      %p382 = scmp.lt.s32.totalorder %s25, 1
      %s383 = scalar_select %p382, %s25, 1
      %p384 = scmp.lt.s32.totalorder %s26, 1
      %s385 = scalar_select %p384, %s26, 1
      %s386 = smul.addr %s383, 2
      %s387 = sadd.s32 %s385, %s386
      %s388 = smul.addr %s387, 2
      %s389 = scalar_lea.vmem %s9, %s388
      %s390 = smul.u32 %s26, 8
      %v391 = vld [vmem:[%s372] sm:$0xff]
      %v392 = vld [vmem:[%s372 + $0x8] sm:$0xff]
      %v393 = vld [vmem:[%s372 + $0x10] sm:$0x3]
      %v394 = vld [vmem:[%s372 + $0x18] sm:$0xff]
      %v395 = vld [vmem:[%s372 + $0x20] sm:$0xff]
      %v396 = vld [vmem:[%s372 + $0x28] sm:$0x3]
      %v397 = vld [vmem:[%s372 + $0x30] sm:$0xff]
      %v398 = vld [vmem:[%s372 + $0x38] sm:$0xff]
      %v399 = vld [vmem:[%s372 + $0x40] sm:$0x3]
      %v400 = vld [vmem:[%s372 + $0x48] sm:$0xff]
      %v401 = vld [vmem:[%s372 + $0x50] sm:$0xff]
      %v402 = vld [vmem:[%s372 + $0x58] sm:$0x3]
      %v403 = vld [vmem:[%s372 + $0x60] sm:$0xff]
      %v404 = vld [vmem:[%s372 + $0x68] sm:$0xff]
      %v405 = vld [vmem:[%s372 + $0x70] sm:$0x3]
      %v406 = vld [vmem:[%s372 + $0x78] sm:$0xff]
      %v407 = vld [vmem:[%s372 + $0x80] sm:$0xff]
      %v408 = vld [vmem:[%s372 + $0x88] sm:$0x3]
      %v409 = vld [vmem:[%s372 + $0x90] sm:$0xff]
      %v410 = vld [vmem:[%s372 + $0x98] sm:$0xff]
      %v411 = vld [vmem:[%s372 + $0xa0] sm:$0x3]
      %v412 = vld [vmem:[%s372 + $0xa8] sm:$0xff]
      %v413 = vld [vmem:[%s372 + $0xb0] sm:$0xff]
      %v414 = vld [vmem:[%s372 + $0xb8] sm:$0x3]
      %v415 = vld [vmem:[%s372 + $0xc0] sm:$0xff]
      %v416 = vld [vmem:[%s372 + $0xc8] sm:$0xff]
      %v417 = vld [vmem:[%s372 + $0xd0] sm:$0x3]
      %v418 = vld [vmem:[%s372 + $0xd8] sm:$0xff]
      %v419 = vld [vmem:[%s372 + $0xe0] sm:$0xff]
      %v420 = vld [vmem:[%s372 + $0xe8] sm:$0x3]
      %v451 = vrot.slane %v391, 2
      %v452 = vrot.slane %v391, 4
      %v453 = vrot.slane %v391, 6
      %v454 = vrot.slane %v392, 2
      %v455 = vrot.slane %v392, 4
      %v456 = vrot.slane %v392, 6
      %v457 = vrot.slane %v394, 2
      %v458 = vrot.slane %v394, 4
      %v459 = vrot.slane %v394, 6
      %v460 = vrot.slane %v395, 2
      %v461 = vrot.slane %v395, 4
      %v462 = vrot.slane %v395, 6
      %v463 = vrot.slane %v397, 2
      %v464 = vrot.slane %v397, 4
      %v465 = vrot.slane %v397, 6
      %v466 = vrot.slane %v398, 2
      %v467 = vrot.slane %v398, 4
      %v468 = vrot.slane %v398, 6
      %v469 = vrot.slane %v400, 2
      %v470 = vrot.slane %v400, 4
      %v471 = vrot.slane %v400, 6
      %v472 = vrot.slane %v401, 2
      %v473 = vrot.slane %v401, 4
      %v474 = vrot.slane %v401, 6
      %v475 = vrot.slane %v403, 2
      %v476 = vrot.slane %v403, 4
      %v477 = vrot.slane %v403, 6
      %v478 = vrot.slane %v404, 2
      %v479 = vrot.slane %v404, 4
      %v480 = vrot.slane %v404, 6
      %v481 = vrot.slane %v406, 2
      %v482 = vrot.slane %v406, 4
      %v483 = vrot.slane %v406, 6
      %v484 = vrot.slane %v407, 2
      %v485 = vrot.slane %v407, 4
      %v486 = vrot.slane %v407, 6
      %v487 = vrot.slane %v409, 2
      %v488 = vrot.slane %v409, 4
      %v489 = vrot.slane %v409, 6
      %v490 = vrot.slane %v410, 2
      %v491 = vrot.slane %v410, 4
      %v492 = vrot.slane %v410, 6
      %v493 = vrot.slane %v412, 2
      %v494 = vrot.slane %v412, 4
      %v495 = vrot.slane %v412, 6
      %v496 = vrot.slane %v413, 2
      %v497 = vrot.slane %v413, 4
      %v498 = vrot.slane %v413, 6
      %v499 = vrot.slane %v415, 2
      %v500 = vrot.slane %v415, 4
      %v501 = vrot.slane %v415, 6
      %v502 = vrot.slane %v416, 2
      %v503 = vrot.slane %v416, 4
      %v504 = vrot.slane %v416, 6
      %v505 = vrot.slane %v418, 2
      %v506 = vrot.slane %v418, 4
      %v507 = vrot.slane %v418, 6
      %v508 = vrot.slane %v419, 2
      %v509 = vrot.slane %v419, 4
      %v510 = vrot.slane %v419, 6
      %v511 = vld [vmem:[%s1] sm:$0xff]
      %v512 = vld [vmem:[%s1 + $0x8] sm:$0x1]
      %513 = vst [vmem:[#allocation1] ss:$4 sm:$0xff] %v391
      %s514 = scalar_lea.vmem [#allocation1], 1
      %515 = vst [vmem:[%s514] ss:$4 sm:$0xff] %v451
      %s516 = scalar_lea.vmem [#allocation1], 2
      %517 = vst [vmem:[%s516] ss:$4 sm:$0xff] %v452
      %s518 = scalar_lea.vmem [#allocation1], 3
      %519 = vst [vmem:[%s518] ss:$4 sm:$0xff] %v453
      %s520 = scalar_lea.vmem [#allocation1], 32
      %521 = vst [vmem:[%s520] ss:$4 sm:$0xff] %v392
      %s522 = scalar_lea.vmem [#allocation1], 33
      %523 = vst [vmem:[%s522] ss:$4 sm:$0xff] %v454
      %s524 = scalar_lea.vmem [#allocation1], 34
      %525 = vst [vmem:[%s524] ss:$4 sm:$0xff] %v455
      %s526 = scalar_lea.vmem [#allocation1], 35
      %527 = vst [vmem:[%s526] ss:$4 sm:$0xff] %v456
      %v528 = vld.sshfl [vmem:[#allocation1] sm:$0xff pattern:$0x73625140]
      %v529 = vld.sshfl [vmem:[#allocation1 + $0x20] sm:$0xff pattern:$0x73625140]
      %530 = vst [vmem:[#allocation1] ss:$4 sm:$0xff] %v393
      %531 = vst [vmem:[%s514] ss:$4 sm:$0xff] %v394
      %532 = vst [vmem:[%s516] ss:$4 sm:$0xff] %v457
      %533 = vst [vmem:[%s518] ss:$4 sm:$0xff] %v458
      %534 = vst [vmem:[%s520] ss:$4 sm:$0xff] %v459
      %535 = vst [vmem:[%s522] ss:$4 sm:$0xff] %v395
      %536 = vst [vmem:[%s524] ss:$4 sm:$0xff] %v460
      %537 = vst [vmem:[%s526] ss:$4 sm:$0xff] %v461
      %v538 = vld.sshfl [vmem:[#allocation1] sm:$0xff pattern:$0x73625140]
      %v539 = vld.sshfl [vmem:[#allocation1 + $0x20] sm:$0xff pattern:$0x73625140]
      %540 = vst [vmem:[#allocation1] ss:$4 sm:$0xff] %v462
      %541 = vst [vmem:[%s514] ss:$4 sm:$0xff] %v396
      %542 = vst [vmem:[%s516] ss:$4 sm:$0xff] %v397
      %543 = vst [vmem:[%s518] ss:$4 sm:$0xff] %v463
      %544 = vst [vmem:[%s520] ss:$4 sm:$0xff] %v464
      %545 = vst [vmem:[%s522] ss:$4 sm:$0xff] %v465
      %546 = vst [vmem:[%s524] ss:$4 sm:$0xff] %v398
      %547 = vst [vmem:[%s526] ss:$4 sm:$0xff] %v466
      %v548 = vld.sshfl [vmem:[#allocation1] sm:$0xff pattern:$0x73625140]
      %v549 = vld.sshfl [vmem:[#allocation1 + $0x20] sm:$0xff pattern:$0x73625140]
      %550 = vst [vmem:[#allocation1] ss:$4 sm:$0xff] %v467
      %551 = vst [vmem:[%s514] ss:$4 sm:$0xff] %v468
      %552 = vst [vmem:[%s516] ss:$4 sm:$0xff] %v399
      %553 = vst [vmem:[%s518] ss:$4 sm:$0xff] %v400
      %554 = vst [vmem:[%s520] ss:$4 sm:$0xff] %v469
      %555 = vst [vmem:[%s522] ss:$4 sm:$0xff] %v470
      %556 = vst [vmem:[%s524] ss:$4 sm:$0xff] %v471
      %557 = vst [vmem:[%s526] ss:$4 sm:$0xff] %v401
      %v558 = vld.sshfl [vmem:[#allocation1] sm:$0xff pattern:$0x73625140]
      %v559 = vld.sshfl [vmem:[#allocation1 + $0x20] sm:$0xff pattern:$0x73625140]
      %560 = vst [vmem:[#allocation1] ss:$4 sm:$0xff] %v472
      %561 = vst [vmem:[%s514] ss:$4 sm:$0xff] %v473
      %562 = vst [vmem:[%s516] ss:$4 sm:$0xff] %v474
      %563 = vst [vmem:[%s518] ss:$4 sm:$0xff] %v402
      %564 = vst [vmem:[%s520] ss:$4 sm:$0xff] %v403
      %565 = vst [vmem:[%s522] ss:$4 sm:$0xff] %v475
      %566 = vst [vmem:[%s524] ss:$4 sm:$0xff] %v476
      %567 = vst [vmem:[%s526] ss:$4 sm:$0xff] %v477
      %v568 = vld.sshfl [vmem:[#allocation1] sm:$0xff pattern:$0x73625140]
      %v569 = vld.sshfl [vmem:[#allocation1 + $0x20] sm:$0xff pattern:$0x73625140]
      %570 = vst [vmem:[#allocation1] ss:$4 sm:$0xff] %v404
      %571 = vst [vmem:[%s514] ss:$4 sm:$0xff] %v478
      %572 = vst [vmem:[%s516] ss:$4 sm:$0xff] %v479
      %573 = vst [vmem:[%s518] ss:$4 sm:$0xff] %v480
      %574 = vst [vmem:[%s520] ss:$4 sm:$0xff] %v405
      %575 = vst [vmem:[%s522] ss:$4 sm:$0xff] %v406
      %576 = vst [vmem:[%s524] ss:$4 sm:$0xff] %v481
      %577 = vst [vmem:[%s526] ss:$4 sm:$0xff] %v482
      %v578 = vld.sshfl [vmem:[#allocation1] sm:$0xff pattern:$0x73625140]
      %v579 = vld.sshfl [vmem:[#allocation1 + $0x20] sm:$0xff pattern:$0x73625140]
      %580 = vst [vmem:[#allocation1] ss:$4 sm:$0xff] %v483
      %581 = vst [vmem:[%s514] ss:$4 sm:$0xff] %v407
      %582 = vst [vmem:[%s516] ss:$4 sm:$0xff] %v484
      %583 = vst [vmem:[%s518] ss:$4 sm:$0xff] %v485
      %584 = vst [vmem:[%s520] ss:$4 sm:$0xff] %v486
      %585 = vst [vmem:[%s522] ss:$4 sm:$0xff] %v408
      %586 = vst [vmem:[%s524] ss:$4 sm:$0xff] %v409
      %587 = vst [vmem:[%s526] ss:$4 sm:$0xff] %v487
      %v588 = vld.sshfl [vmem:[#allocation1] sm:$0xff pattern:$0x73625140]
      %v589 = vld.sshfl [vmem:[#allocation1 + $0x20] sm:$0xff pattern:$0x73625140]
      %590 = vst [vmem:[#allocation1] ss:$4 sm:$0xff] %v488
      %591 = vst [vmem:[%s514] ss:$4 sm:$0xff] %v489
      %592 = vst [vmem:[%s516] ss:$4 sm:$0xff] %v410
      %593 = vst [vmem:[%s518] ss:$4 sm:$0xff] %v490
      %594 = vst [vmem:[%s520] ss:$4 sm:$0xff] %v491
      %595 = vst [vmem:[%s522] ss:$4 sm:$0xff] %v492
      %596 = vst [vmem:[%s524] ss:$4 sm:$0xff] %v411
      %597 = vst [vmem:[%s526] ss:$4 sm:$0xff] %v412
      %v598 = vld.sshfl [vmem:[#allocation1] sm:$0xff pattern:$0x73625140]
      %v599 = vld.sshfl [vmem:[#allocation1 + $0x20] sm:$0xff pattern:$0x73625140]
      %600 = vst [vmem:[#allocation1] ss:$4 sm:$0xff] %v493
      %601 = vst [vmem:[%s514] ss:$4 sm:$0xff] %v494
      %602 = vst [vmem:[%s516] ss:$4 sm:$0xff] %v495
      %603 = vst [vmem:[%s518] ss:$4 sm:$0xff] %v413
      %604 = vst [vmem:[%s520] ss:$4 sm:$0xff] %v496
      %605 = vst [vmem:[%s522] ss:$4 sm:$0xff] %v497
      %606 = vst [vmem:[%s524] ss:$4 sm:$0xff] %v498
      %607 = vst [vmem:[%s526] ss:$4 sm:$0xff] %v414
      %v608 = vld.sshfl [vmem:[#allocation1] sm:$0xff pattern:$0x73625140]
      %v609 = vld.sshfl [vmem:[#allocation1 + $0x20] sm:$0xff pattern:$0x73625140]
      %610 = vst [vmem:[#allocation1] ss:$4 sm:$0xff] %v415
      %611 = vst [vmem:[%s514] ss:$4 sm:$0xff] %v499
      %612 = vst [vmem:[%s516] ss:$4 sm:$0xff] %v500
      %613 = vst [vmem:[%s518] ss:$4 sm:$0xff] %v501
      %614 = vst [vmem:[%s520] ss:$4 sm:$0xff] %v416
      %615 = vst [vmem:[%s522] ss:$4 sm:$0xff] %v502
      %616 = vst [vmem:[%s524] ss:$4 sm:$0xff] %v503
      %617 = vst [vmem:[%s526] ss:$4 sm:$0xff] %v504
      %v618 = vld.sshfl [vmem:[#allocation1] sm:$0xff pattern:$0x73625140]
      %v619 = vld.sshfl [vmem:[#allocation1 + $0x20] sm:$0xff pattern:$0x73625140]
      %620 = vst [vmem:[#allocation1] ss:$4 sm:$0xff] %v417
      %621 = vst [vmem:[%s514] ss:$4 sm:$0xff] %v418
      %622 = vst [vmem:[%s516] ss:$4 sm:$0xff] %v505
      %623 = vst [vmem:[%s518] ss:$4 sm:$0xff] %v506
      %624 = vst [vmem:[%s520] ss:$4 sm:$0xff] %v507
      %625 = vst [vmem:[%s522] ss:$4 sm:$0xff] %v419
      %626 = vst [vmem:[%s524] ss:$4 sm:$0xff] %v508
      %627 = vst [vmem:[%s526] ss:$4 sm:$0xff] %v509
      %v628 = vld.sshfl [vmem:[#allocation1] sm:$0xff pattern:$0x73625140]
      %v629 = vld.sshfl [vmem:[#allocation1 + $0x20] sm:$0xff pattern:$0x73625140]
      %630 = vst [vmem:[#allocation1] ss:$4 sm:$0xff] %v510
      %631 = vst [vmem:[%s514] ss:$4 sm:$0xff] %v420
      %v632 = vld.sshfl [vmem:[#allocation1] sm:$0xff pattern:$0x73625140]
      %vm633 = vcmask 72704
      %v634 = vsel %vm633, %v528, 0
      %v636 = vsel %vm633, %v529, 0
      %v638 = vsel %vm633, %v538, 0
      %v640 = vsel %vm633, %v539, 0
      %v642 = vsel %vm633, %v548, 0
      %v644 = vsel %vm633, %v549, 0
      %v646 = vsel %vm633, %v558, 0
      %v648 = vsel %vm633, %v559, 0
      %v650 = vsel %vm633, %v568, 0
      %v652 = vsel %vm633, %v569, 0
      %v654 = vsel %vm633, %v578, 0
      %v656 = vsel %vm633, %v579, 0
      %v658 = vsel %vm633, %v588, 0
      %v660 = vsel %vm633, %v589, 0
      %v662 = vsel %vm633, %v598, 0
      %v664 = vsel %vm633, %v599, 0
      %v666 = vsel %vm633, %v608, 0
      %v668 = vsel %vm633, %v609, 0
      %v670 = vsel %vm633, %v618, 0
      %v672 = vsel %vm633, %v619, 0
      %v674 = vsel %vm633, %v628, 0
      %v676 = vsel %vm633, %v629, 0
      %v678 = vsel %vm633, %v632, 0
      %vm680 = vcmask 1040384
      %v682 = vsel %vm680, %v512, 0
      %684 = vmatpush.msra.mxu0 0.0
      %685 = vmatpush.msra.mxu0 0.0
      %686 = vmatpush.msra.mxu0 0.0
      %687 = vmatpush.msra.mxu0 0.0
      %688 = vmatpush.msra.mxu0 0.0
      %689 = vmatpush.msra.mxu0 0.0
      %690 = vmatpush.msra.mxu0 0.0
      %691 = vmatpush.msra.mxu0 0.0
      %692 = vmatpush.msra.mxu0 0.0
      %693 = vmatpush.msra.mxu0 0.0
      %694 = vmatpush.msra.mxu0 0.0
      %695 = vmatpush.msra.mxu0 0.0
      %696 = vmatpush.msra.mxu0 0.0
      %697 = vmatpush.msra.mxu0 0.0
      %698 = vmatpush.msra.mxu0 %v682
      %699 = vmatpush.msra.mxu0 %v511
      %700 = vmatmul.f32.gmra.mxu0 %v634
      %v701 = vpop.f32.mrf.mxu0
      %v702 = vadd.f32 0.0, %v701
      %703 = vmatmul.f32.gmra.mxu0 %v636
      %v704 = vpop.f32.mrf.mxu0
      %v705 = vadd.f32 0.0, %v704
      %706 = vmatmul.f32.gmra.mxu0 %v638
      %v707 = vpop.f32.mrf.mxu0
      %v708 = vadd.f32 0.0, %v707
      %709 = vmatmul.f32.gmra.mxu0 %v640
      %v710 = vpop.f32.mrf.mxu0
      %v711 = vadd.f32 0.0, %v710
      %712 = vmatmul.f32.gmra.mxu0 %v642
      %v713 = vpop.f32.mrf.mxu0
      %v714 = vadd.f32 0.0, %v713
      %715 = vmatmul.f32.gmra.mxu0 %v644
      %v716 = vpop.f32.mrf.mxu0
      %v717 = vadd.f32 0.0, %v716
      %718 = vmatmul.f32.gmra.mxu0 %v646
      %v719 = vpop.f32.mrf.mxu0
      %v720 = vadd.f32 0.0, %v719
      %721 = vmatmul.f32.gmra.mxu0 %v648
      %v722 = vpop.f32.mrf.mxu0
      %v723 = vadd.f32 0.0, %v722
      %724 = vmatmul.f32.gmra.mxu0 %v650
      %v725 = vpop.f32.mrf.mxu0
      %v726 = vadd.f32 0.0, %v725
      %727 = vmatmul.f32.gmra.mxu0 %v652
      %v728 = vpop.f32.mrf.mxu0
      %v729 = vadd.f32 0.0, %v728
      %730 = vmatmul.f32.gmra.mxu0 %v654
      %v731 = vpop.f32.mrf.mxu0
      %v732 = vadd.f32 0.0, %v731
      %733 = vmatmul.f32.gmra.mxu0 %v656
      %v734 = vpop.f32.mrf.mxu0
      %v735 = vadd.f32 0.0, %v734
      %736 = vmatmul.f32.gmra.mxu0 %v658
      %v737 = vpop.f32.mrf.mxu0
      %v738 = vadd.f32 0.0, %v737
      %739 = vmatmul.f32.gmra.mxu0 %v660
      %v740 = vpop.f32.mrf.mxu0
      %v741 = vadd.f32 0.0, %v740
      %742 = vmatmul.f32.gmra.mxu0 %v662
      %v743 = vpop.f32.mrf.mxu0
      %v744 = vadd.f32 0.0, %v743
      %745 = vmatmul.f32.gmra.mxu0 %v664
      %v746 = vpop.f32.mrf.mxu0
      %v747 = vadd.f32 0.0, %v746
      %748 = vmatmul.f32.gmra.mxu0 %v666
      %v749 = vpop.f32.mrf.mxu0
      %v750 = vadd.f32 0.0, %v749
      %751 = vmatmul.f32.gmra.mxu0 %v668
      %v752 = vpop.f32.mrf.mxu0
      %v753 = vadd.f32 0.0, %v752
      %754 = vmatmul.f32.gmra.mxu0 %v670
      %v755 = vpop.f32.mrf.mxu0
      %v756 = vadd.f32 0.0, %v755
      %757 = vmatmul.f32.gmra.mxu0 %v672
      %v758 = vpop.f32.mrf.mxu0
      %v759 = vadd.f32 0.0, %v758
      %760 = vmatmul.f32.gmra.mxu0 %v674
      %v761 = vpop.f32.mrf.mxu0
      %v762 = vadd.f32 0.0, %v761
      %763 = vmatmul.f32.gmra.mxu0 %v676
      %v764 = vpop.f32.mrf.mxu0
      %v765 = vadd.f32 0.0, %v764
      %766 = vmatmul.f32.gmra.mxu0 %v678
      %v767 = vpop.f32.mrf.mxu0
      %v768 = vadd.f32 0.0, %v767
      %769 = vdwg.mxu0
      %v793 = vrot.slane %v702, 2
      %v794 = vrot.slane %v702, 4
      %v795 = vrot.slane %v702, 6
      %v796 = vrot.slane %v705, 2
      %v797 = vrot.slane %v705, 4
      %v798 = vrot.slane %v705, 6
      %v799 = vrot.slane %v708, 2
      %v800 = vrot.slane %v708, 4
      %v801 = vrot.slane %v708, 6
      %v802 = vrot.slane %v711, 2
      %v803 = vrot.slane %v711, 4
      %v804 = vrot.slane %v711, 6
      %v805 = vrot.slane %v714, 2
      %v806 = vrot.slane %v714, 4
      %v807 = vrot.slane %v714, 6
      %v808 = vrot.slane %v717, 2
      %v809 = vrot.slane %v717, 4
      %v810 = vrot.slane %v717, 6
      %v811 = vrot.slane %v720, 2
      %v812 = vrot.slane %v720, 4
      %v813 = vrot.slane %v720, 6
      %v814 = vrot.slane %v723, 2
      %v815 = vrot.slane %v723, 4
      %v816 = vrot.slane %v723, 6
      %v817 = vrot.slane %v726, 2
      %v818 = vrot.slane %v726, 4
      %v819 = vrot.slane %v726, 6
      %v820 = vrot.slane %v729, 2
      %v821 = vrot.slane %v729, 4
      %v822 = vrot.slane %v729, 6
      %v823 = vrot.slane %v732, 2
      %v824 = vrot.slane %v732, 4
      %v825 = vrot.slane %v732, 6
      %v826 = vrot.slane %v735, 2
      %v827 = vrot.slane %v735, 4
      %v828 = vrot.slane %v735, 6
      %v829 = vrot.slane %v738, 2
      %v830 = vrot.slane %v738, 4
      %v831 = vrot.slane %v738, 6
      %v832 = vrot.slane %v741, 2
      %v833 = vrot.slane %v741, 4
      %v834 = vrot.slane %v741, 6
      %v835 = vrot.slane %v744, 2
      %v836 = vrot.slane %v744, 4
      %v837 = vrot.slane %v744, 6
      %v838 = vrot.slane %v747, 2
      %v839 = vrot.slane %v747, 4
      %v840 = vrot.slane %v747, 6
      %v841 = vrot.slane %v750, 2
      %v842 = vrot.slane %v750, 4
      %v843 = vrot.slane %v750, 6
      %v844 = vrot.slane %v753, 2
      %v845 = vrot.slane %v753, 4
      %v846 = vrot.slane %v753, 6
      %v847 = vrot.slane %v756, 2
      %v848 = vrot.slane %v756, 4
      %v849 = vrot.slane %v756, 6
      %v850 = vrot.slane %v759, 2
      %v851 = vrot.slane %v759, 4
      %v852 = vrot.slane %v759, 6
      %v853 = vrot.slane %v762, 2
      %v854 = vrot.slane %v762, 4
      %v855 = vrot.slane %v762, 6
      %v856 = vrot.slane %v765, 2
      %v857 = vrot.slane %v765, 4
      %v858 = vrot.slane %v765, 6
      %v859 = vrot.slane %v768, 2
      %vm860 = vcmask 1042434
      %vm861 = vmor %vm680, %vm860
      %vm862 = vcmask 1044484
      %vm863 = vmor %vm861, %vm862
      %vm864 = vcmask 1046534
      %vm865 = vmor %vm863, %vm864
      %v866 = vrot.slane %v702, 7
      %v867 = vrot.slane %v866, 2
      %v868 = vrot.slane %v793, 7
      %v869 = vsel %vm865, %v867, %v868
      %v870 = vrot.slane %v868, 2
      %v871 = vrot.slane %v794, 7
      %v872 = vsel %vm865, %v870, %v871
      %v873 = vrot.slane %v871, 2
      %v874 = vrot.slane %v795, 7
      %v875 = vsel %vm865, %v873, %v874
      %v876 = vrot.slane %v874, 2
      %v877 = vrot.slane %v705, 7
      %v878 = vsel %vm865, %v876, %v877
      %v879 = vrot.slane %v877, 2
      %v880 = vrot.slane %v796, 7
      %v881 = vsel %vm865, %v879, %v880
      %v882 = vrot.slane %v880, 2
      %v883 = vrot.slane %v797, 7
      %v884 = vsel %vm865, %v882, %v883
      %v885 = vrot.slane %v883, 2
      %v886 = vrot.slane %v798, 7
      %v887 = vsel %vm865, %v885, %v886
      %v888 = vrot.slane %v886, 2
      %v889 = vrot.slane %v708, 7
      %v890 = vsel %vm865, %v888, %v889
      %v891 = vrot.slane %v799, 7
      %v892 = vrot.slane %v891, 2
      %v893 = vrot.slane %v800, 7
      %v894 = vsel %vm865, %v892, %v893
      %v895 = vrot.slane %v893, 2
      %v896 = vrot.slane %v801, 7
      %v897 = vsel %vm865, %v895, %v896
      %v898 = vrot.slane %v896, 2
      %v899 = vrot.slane %v711, 7
      %v900 = vsel %vm865, %v898, %v899
      %v901 = vrot.slane %v899, 2
      %v902 = vrot.slane %v802, 7
      %v903 = vsel %vm865, %v901, %v902
      %v904 = vrot.slane %v902, 2
      %v905 = vrot.slane %v803, 7
      %v906 = vsel %vm865, %v904, %v905
      %v907 = vrot.slane %v905, 2
      %v908 = vrot.slane %v804, 7
      %v909 = vsel %vm865, %v907, %v908
      %v910 = vrot.slane %v908, 2
      %v911 = vrot.slane %v714, 7
      %v912 = vsel %vm865, %v910, %v911
      %v913 = vrot.slane %v911, 2
      %v914 = vrot.slane %v805, 7
      %v915 = vsel %vm865, %v913, %v914
      %v916 = vrot.slane %v806, 7
      %v917 = vrot.slane %v916, 2
      %v918 = vrot.slane %v807, 7
      %v919 = vsel %vm865, %v917, %v918
      %v920 = vrot.slane %v918, 2
      %v921 = vrot.slane %v717, 7
      %v922 = vsel %vm865, %v920, %v921
      %v923 = vrot.slane %v921, 2
      %v924 = vrot.slane %v808, 7
      %v925 = vsel %vm865, %v923, %v924
      %v926 = vrot.slane %v924, 2
      %v927 = vrot.slane %v809, 7
      %v928 = vsel %vm865, %v926, %v927
      %v929 = vrot.slane %v927, 2
      %v930 = vrot.slane %v810, 7
      %v931 = vsel %vm865, %v929, %v930
      %v932 = vrot.slane %v930, 2
      %v933 = vrot.slane %v720, 7
      %v934 = vsel %vm865, %v932, %v933
      %v935 = vrot.slane %v933, 2
      %v936 = vrot.slane %v811, 7
      %v937 = vsel %vm865, %v935, %v936
      %v938 = vrot.slane %v936, 2
      %v939 = vrot.slane %v812, 7
      %v940 = vsel %vm865, %v938, %v939
      %v941 = vrot.slane %v813, 7
      %v942 = vrot.slane %v941, 2
      %v943 = vrot.slane %v723, 7
      %v944 = vsel %vm865, %v942, %v943
      %v945 = vrot.slane %v943, 2
      %v946 = vrot.slane %v814, 7
      %v947 = vsel %vm865, %v945, %v946
      %v948 = vrot.slane %v946, 2
      %v949 = vrot.slane %v815, 7
      %v950 = vsel %vm865, %v948, %v949
      %v951 = vrot.slane %v949, 2
      %v952 = vrot.slane %v816, 7
      %v953 = vsel %vm865, %v951, %v952
      %v954 = vrot.slane %v952, 2
      %v955 = vrot.slane %v726, 7
      %v956 = vsel %vm865, %v954, %v955
      %v957 = vrot.slane %v955, 2
      %v958 = vrot.slane %v817, 7
      %v959 = vsel %vm865, %v957, %v958
      %v960 = vrot.slane %v958, 2
      %v961 = vrot.slane %v818, 7
      %v962 = vsel %vm865, %v960, %v961
      %v963 = vrot.slane %v961, 2
      %v964 = vrot.slane %v819, 7
      %v965 = vsel %vm865, %v963, %v964
      %v966 = vrot.slane %v729, 7
      %v967 = vrot.slane %v966, 2
      %v968 = vrot.slane %v820, 7
      %v969 = vsel %vm865, %v967, %v968
      %v970 = vrot.slane %v968, 2
      %v971 = vrot.slane %v821, 7
      %v972 = vsel %vm865, %v970, %v971
      %v973 = vrot.slane %v971, 2
      %v974 = vrot.slane %v822, 7
      %v975 = vsel %vm865, %v973, %v974
      %v976 = vrot.slane %v974, 2
      %v977 = vrot.slane %v732, 7
      %v978 = vsel %vm865, %v976, %v977
      %v979 = vrot.slane %v977, 2
      %v980 = vrot.slane %v823, 7
      %v981 = vsel %vm865, %v979, %v980
      %v982 = vrot.slane %v980, 2
      %v983 = vrot.slane %v824, 7
      %v984 = vsel %vm865, %v982, %v983
      %v985 = vrot.slane %v983, 2
      %v986 = vrot.slane %v825, 7
      %v987 = vsel %vm865, %v985, %v986
      %v988 = vrot.slane %v986, 2
      %v989 = vrot.slane %v735, 7
      %v990 = vsel %vm865, %v988, %v989
      %v991 = vrot.slane %v826, 7
      %v992 = vrot.slane %v991, 2
      %v993 = vrot.slane %v827, 7
      %v994 = vsel %vm865, %v992, %v993
      %v995 = vrot.slane %v993, 2
      %v996 = vrot.slane %v828, 7
      %v997 = vsel %vm865, %v995, %v996
      %v998 = vrot.slane %v996, 2
      %v999 = vrot.slane %v738, 7
      %v1000 = vsel %vm865, %v998, %v999
      %v1001 = vrot.slane %v999, 2
      %v1002 = vrot.slane %v829, 7
      %v1003 = vsel %vm865, %v1001, %v1002
      %v1004 = vrot.slane %v1002, 2
      %v1005 = vrot.slane %v830, 7
      %v1006 = vsel %vm865, %v1004, %v1005
      %v1007 = vrot.slane %v1005, 2
      %v1008 = vrot.slane %v831, 7
      %v1009 = vsel %vm865, %v1007, %v1008
      %v1010 = vrot.slane %v1008, 2
      %v1011 = vrot.slane %v741, 7
      %v1012 = vsel %vm865, %v1010, %v1011
      %v1013 = vrot.slane %v1011, 2
      %v1014 = vrot.slane %v832, 7
      %v1015 = vsel %vm865, %v1013, %v1014
      %v1016 = vrot.slane %v833, 7
      %v1017 = vrot.slane %v1016, 2
      %v1018 = vrot.slane %v834, 7
      %v1019 = vsel %vm865, %v1017, %v1018
      %v1020 = vrot.slane %v1018, 2
      %v1021 = vrot.slane %v744, 7
      %v1022 = vsel %vm865, %v1020, %v1021
      %v1023 = vrot.slane %v1021, 2
      %v1024 = vrot.slane %v835, 7
      %v1025 = vsel %vm865, %v1023, %v1024
      %v1026 = vrot.slane %v1024, 2
      %v1027 = vrot.slane %v836, 7
      %v1028 = vsel %vm865, %v1026, %v1027
      %v1029 = vrot.slane %v1027, 2
      %v1030 = vrot.slane %v837, 7
      %v1031 = vsel %vm865, %v1029, %v1030
      %v1032 = vrot.slane %v1030, 2
      %v1033 = vrot.slane %v747, 7
      %v1034 = vsel %vm865, %v1032, %v1033
      %v1035 = vrot.slane %v1033, 2
      %v1036 = vrot.slane %v838, 7
      %v1037 = vsel %vm865, %v1035, %v1036
      %v1038 = vrot.slane %v1036, 2
      %v1039 = vrot.slane %v839, 7
      %v1040 = vsel %vm865, %v1038, %v1039
      %v1041 = vrot.slane %v840, 7
      %v1042 = vrot.slane %v1041, 2
      %v1043 = vrot.slane %v750, 7
      %v1044 = vsel %vm865, %v1042, %v1043
      %v1045 = vrot.slane %v1043, 2
      %v1046 = vrot.slane %v841, 7
      %v1047 = vsel %vm865, %v1045, %v1046
      %v1048 = vrot.slane %v1046, 2
      %v1049 = vrot.slane %v842, 7
      %v1050 = vsel %vm865, %v1048, %v1049
      %v1051 = vrot.slane %v1049, 2
      %v1052 = vrot.slane %v843, 7
      %v1053 = vsel %vm865, %v1051, %v1052
      %v1054 = vrot.slane %v1052, 2
      %v1055 = vrot.slane %v753, 7
      %v1056 = vsel %vm865, %v1054, %v1055
      %v1057 = vrot.slane %v1055, 2
      %v1058 = vrot.slane %v844, 7
      %v1059 = vsel %vm865, %v1057, %v1058
      %v1060 = vrot.slane %v1058, 2
      %v1061 = vrot.slane %v845, 7
      %v1062 = vsel %vm865, %v1060, %v1061
      %v1063 = vrot.slane %v1061, 2
      %v1064 = vrot.slane %v846, 7
      %v1065 = vsel %vm865, %v1063, %v1064
      %v1066 = vrot.slane %v756, 7
      %v1067 = vrot.slane %v1066, 2
      %v1068 = vrot.slane %v847, 7
      %v1069 = vsel %vm865, %v1067, %v1068
      %v1070 = vrot.slane %v1068, 2
      %v1071 = vrot.slane %v848, 7
      %v1072 = vsel %vm865, %v1070, %v1071
      %v1073 = vrot.slane %v1071, 2
      %v1074 = vrot.slane %v849, 7
      %v1075 = vsel %vm865, %v1073, %v1074
      %v1076 = vrot.slane %v1074, 2
      %v1077 = vrot.slane %v759, 7
      %v1078 = vsel %vm865, %v1076, %v1077
      %v1079 = vrot.slane %v1077, 2
      %v1080 = vrot.slane %v850, 7
      %v1081 = vsel %vm865, %v1079, %v1080
      %v1082 = vrot.slane %v1080, 2
      %v1083 = vrot.slane %v851, 7
      %v1084 = vsel %vm865, %v1082, %v1083
      %v1085 = vrot.slane %v1083, 2
      %v1086 = vrot.slane %v852, 7
      %v1087 = vsel %vm865, %v1085, %v1086
      %v1088 = vrot.slane %v1086, 2
      %v1089 = vrot.slane %v762, 7
      %v1090 = vsel %vm865, %v1088, %v1089
      %v1091 = vrot.slane %v853, 7
      %v1092 = vrot.slane %v1091, 2
      %v1093 = vrot.slane %v854, 7
      %v1094 = vsel %vm865, %v1092, %v1093
      %v1095 = vrot.slane %v1093, 2
      %v1096 = vrot.slane %v855, 7
      %v1097 = vsel %vm865, %v1095, %v1096
      %v1098 = vrot.slane %v1096, 2
      %v1099 = vrot.slane %v765, 7
      %v1100 = vsel %vm865, %v1098, %v1099
      %v1101 = vrot.slane %v1099, 2
      %v1102 = vrot.slane %v856, 7
      %v1103 = vsel %vm865, %v1101, %v1102
      %v1104 = vrot.slane %v1102, 2
      %v1105 = vrot.slane %v857, 7
      %v1106 = vsel %vm865, %v1104, %v1105
      %v1107 = vrot.slane %v1105, 2
      %v1108 = vrot.slane %v858, 7
      %v1109 = vsel %vm865, %v1107, %v1108
      %v1110 = vrot.slane %v1108, 2
      %v1111 = vrot.slane %v768, 7
      %v1112 = vsel %vm865, %v1110, %v1111
      %v1113 = vrot.slane %v1111, 2
      %v1114 = vrot.slane %v859, 7
      %v1115 = vsel %vm865, %v1113, %v1114
      %v1116 = vld [vmem:[%s3] sm:$0x1]
      %v1117 = vstv %s390
      %v1118 = vadd.s32 %v1117, 1
      %v1119 = vadd.s32 %v1117, 2
      %v1120 = vadd.s32 %v1117, 3
      %v1121 = vadd.s32 %v1117, 4
      %v1122 = vadd.s32 %v1117, 5
      %v1123 = vadd.s32 %v1117, 6
      %v1124 = vadd.s32 %v1117, 7
      %v1125 = vadd.s32 %v1117, 8
      %v1126 = vmul.u32 %v1117, 2
      %v1127 = vmul.u32 %v1118, 2
      %v1128 = vmul.u32 %v1119, 2
      %v1129 = vmul.u32 %v1120, 2
      %v1130 = vmul.u32 %v1121, 2
      %v1131 = vmul.u32 %v1122, 2
      %v1132 = vmul.u32 %v1123, 2
      %v1133 = vmul.u32 %v1124, 2
      %v1134 = vmul.u32 %v1125, 2
      %vm1135 = vcmp.lt.s32.totalorder %v1126, 32
      %vm1136 = vcmp.lt.s32.totalorder %v1127, 32
      %vm1137 = vcmp.lt.s32.totalorder %v1128, 32
      %vm1138 = vcmp.lt.s32.totalorder %v1129, 32
      %vm1139 = vcmp.lt.s32.totalorder %v1130, 32
      %vm1140 = vcmp.lt.s32.totalorder %v1131, 32
      %vm1141 = vcmp.lt.s32.totalorder %v1132, 32
      %vm1142 = vcmp.lt.s32.totalorder %v1133, 32
      %vm1143 = vcmp.lt.s32.totalorder %v1134, 32
      %v1144 = vsel %vm1135, 1, 0
      %v1145 = vsel %vm1136, 1, 0
      %v1146 = vsel %vm1137, 1, 0
      %v1147 = vsel %vm1138, 1, 0
      %v1148 = vsel %vm1139, 1, 0
      %v1149 = vsel %vm1140, 1, 0
      %v1150 = vsel %vm1141, 1, 0
      %v1151 = vsel %vm1142, 1, 0
      %v1152 = vsel %vm1143, 1, 0
      %v1153 = vcvt.s32.f32 %v1144
      %v1154 = vcvt.s32.f32 %v1145
      %v1155 = vcvt.s32.f32 %v1146
      %v1156 = vcvt.s32.f32 %v1147
      %v1157 = vcvt.s32.f32 %v1148
      %v1158 = vcvt.s32.f32 %v1149
      %v1159 = vcvt.s32.f32 %v1150
      %v1160 = vcvt.s32.f32 %v1151
      %v1161 = vcvt.s32.f32 %v1152
      %v1162 = vsub.s32 %v1126, 1
      %v1163 = vsub.s32 %v1127, 1
      %v1164 = vsub.s32 %v1128, 1
      %v1165 = vsub.s32 %v1129, 1
      %v1166 = vsub.s32 %v1130, 1
      %v1167 = vsub.s32 %v1131, 1
      %v1168 = vsub.s32 %v1132, 1
      %v1169 = vsub.s32 %v1133, 1
      %v1170 = vsub.s32 %v1134, 1
      %vm1171 = vcmp.ge.s32.totalorder %v1162, 0
      %vm1172 = vcmp.ge.s32.totalorder %v1163, 0
      %vm1173 = vcmp.ge.s32.totalorder %v1164, 0
      %vm1174 = vcmp.ge.s32.totalorder %v1165, 0
      %vm1175 = vcmp.ge.s32.totalorder %v1166, 0
      %vm1176 = vcmp.ge.s32.totalorder %v1167, 0
      %vm1177 = vcmp.ge.s32.totalorder %v1168, 0
      %vm1178 = vcmp.ge.s32.totalorder %v1169, 0
      %vm1179 = vcmp.ge.s32.totalorder %v1170, 0
      %v1180 = vsel %vm1171, 1, 0
      %v1181 = vsel %vm1172, 1, 0
      %v1182 = vsel %vm1173, 1, 0
      %v1183 = vsel %vm1174, 1, 0
      %v1184 = vsel %vm1175, 1, 0
      %v1185 = vsel %vm1176, 1, 0
      %v1186 = vsel %vm1177, 1, 0
      %v1187 = vsel %vm1178, 1, 0
      %v1188 = vsel %vm1179, 1, 0
      %v1189 = vcvt.s32.f32 %v1180
      %v1190 = vcvt.s32.f32 %v1181
      %v1191 = vcvt.s32.f32 %v1182
      %v1192 = vcvt.s32.f32 %v1183
      %v1193 = vcvt.s32.f32 %v1184
      %v1194 = vcvt.s32.f32 %v1185
      %v1195 = vcvt.s32.f32 %v1186
      %v1196 = vcvt.s32.f32 %v1187
      %v1197 = vcvt.s32.f32 %v1188
      %v1198 = vld [vmem:[%s2] sm:$0xf]
      %s1199 = scalar_lea.vmem %s2, 4
      %v1200 = vld [vmem:[%s1199] sm:$0xf]
      %1201 = vst [vmem:[#allocation1] ss:$4 sm:$0xff] %v869
      %s1202 = scalar_lea.vmem [#allocation1], 1
      %1203 = vst [vmem:[%s1202] ss:$4 sm:$0xff] %v872
      %s1204 = scalar_lea.vmem [#allocation1], 2
      %1205 = vst [vmem:[%s1204] ss:$4 sm:$0xff] %v875
      %s1206 = scalar_lea.vmem [#allocation1], 3
      %1207 = vst [vmem:[%s1206] ss:$4 sm:$0xff] %v878
      %s1208 = scalar_lea.vmem [#allocation1], 32
      %1209 = vst [vmem:[%s1208] ss:$4 sm:$0xff] %v881
      %s1210 = scalar_lea.vmem [#allocation1], 33
      %1211 = vst [vmem:[%s1210] ss:$4 sm:$0xff] %v884
      %s1212 = scalar_lea.vmem [#allocation1], 34
      %1213 = vst [vmem:[%s1212] ss:$4 sm:$0xff] %v887
      %s1214 = scalar_lea.vmem [#allocation1], 35
      %1215 = vst [vmem:[%s1214] ss:$4 sm:$0xff] %v890
      %v1216 = vld.sshfl [vmem:[#allocation1] sm:$0xff pattern:$0x73625140]
      %v1217 = vld.sshfl [vmem:[#allocation1 + $0x20] sm:$0xff pattern:$0x73625140]
      %1218 = vst [vmem:[#allocation1] ss:$4 sm:$0xff] %v894
      %1219 = vst [vmem:[%s1202] ss:$4 sm:$0xff] %v897
      %1220 = vst [vmem:[%s1204] ss:$4 sm:$0xff] %v900
      %1221 = vst [vmem:[%s1206] ss:$4 sm:$0xff] %v903
      %1222 = vst [vmem:[%s1208] ss:$4 sm:$0xff] %v906
      %1223 = vst [vmem:[%s1210] ss:$4 sm:$0xff] %v909
      %1224 = vst [vmem:[%s1212] ss:$4 sm:$0xff] %v912
      %1225 = vst [vmem:[%s1214] ss:$4 sm:$0xff] %v915
      %v1226 = vld.sshfl [vmem:[#allocation1] sm:$0xff pattern:$0x73625140]
      %v1227 = vld.sshfl [vmem:[#allocation1 + $0x20] sm:$0xff pattern:$0x73625140]
      %1228 = vst [vmem:[#allocation1] ss:$4 sm:$0xff] %v919
      %1229 = vst [vmem:[%s1202] ss:$4 sm:$0xff] %v922
      %1230 = vst [vmem:[%s1204] ss:$4 sm:$0xff] %v925
      %1231 = vst [vmem:[%s1206] ss:$4 sm:$0xff] %v928
      %1232 = vst [vmem:[%s1208] ss:$4 sm:$0xff] %v931
      %1233 = vst [vmem:[%s1210] ss:$4 sm:$0xff] %v934
      %1234 = vst [vmem:[%s1212] ss:$4 sm:$0xff] %v937
      %1235 = vst [vmem:[%s1214] ss:$4 sm:$0xff] %v940
      %v1236 = vld.sshfl [vmem:[#allocation1] sm:$0xff pattern:$0x73625140]
      %v1237 = vld.sshfl [vmem:[#allocation1 + $0x20] sm:$0xff pattern:$0x73625140]
      %1238 = vst [vmem:[#allocation1] ss:$4 sm:$0xff] %v944
      %1239 = vst [vmem:[%s1202] ss:$4 sm:$0xff] %v947
      %1240 = vst [vmem:[%s1204] ss:$4 sm:$0xff] %v950
      %1241 = vst [vmem:[%s1206] ss:$4 sm:$0xff] %v953
      %1242 = vst [vmem:[%s1208] ss:$4 sm:$0xff] %v956
      %1243 = vst [vmem:[%s1210] ss:$4 sm:$0xff] %v959
      %1244 = vst [vmem:[%s1212] ss:$4 sm:$0xff] %v962
      %1245 = vst [vmem:[%s1214] ss:$4 sm:$0xff] %v965
      %v1246 = vld.sshfl [vmem:[#allocation1] sm:$0xff pattern:$0x73625140]
      %v1247 = vld.sshfl [vmem:[#allocation1 + $0x20] sm:$0xff pattern:$0x73625140]
      %1248 = vst [vmem:[#allocation1] ss:$4 sm:$0xff] %v969
      %1249 = vst [vmem:[%s1202] ss:$4 sm:$0xff] %v972
      %1250 = vst [vmem:[%s1204] ss:$4 sm:$0xff] %v975
      %1251 = vst [vmem:[%s1206] ss:$4 sm:$0xff] %v978
      %1252 = vst [vmem:[%s1208] ss:$4 sm:$0xff] %v981
      %1253 = vst [vmem:[%s1210] ss:$4 sm:$0xff] %v984
      %1254 = vst [vmem:[%s1212] ss:$4 sm:$0xff] %v987
      %1255 = vst [vmem:[%s1214] ss:$4 sm:$0xff] %v990
      %v1256 = vld.sshfl [vmem:[#allocation1] sm:$0xff pattern:$0x73625140]
      %v1257 = vld.sshfl [vmem:[#allocation1 + $0x20] sm:$0xff pattern:$0x73625140]
      %1258 = vst [vmem:[#allocation1] ss:$4 sm:$0xff] %v994
      %1259 = vst [vmem:[%s1202] ss:$4 sm:$0xff] %v997
      %1260 = vst [vmem:[%s1204] ss:$4 sm:$0xff] %v1000
      %1261 = vst [vmem:[%s1206] ss:$4 sm:$0xff] %v1003
      %1262 = vst [vmem:[%s1208] ss:$4 sm:$0xff] %v1006
      %1263 = vst [vmem:[%s1210] ss:$4 sm:$0xff] %v1009
      %1264 = vst [vmem:[%s1212] ss:$4 sm:$0xff] %v1012
      %1265 = vst [vmem:[%s1214] ss:$4 sm:$0xff] %v1015
      %v1266 = vld.sshfl [vmem:[#allocation1] sm:$0xff pattern:$0x73625140]
      %v1267 = vld.sshfl [vmem:[#allocation1 + $0x20] sm:$0xff pattern:$0x73625140]
      %1268 = vst [vmem:[#allocation1] ss:$4 sm:$0xff] %v1019
      %1269 = vst [vmem:[%s1202] ss:$4 sm:$0xff] %v1022
      %1270 = vst [vmem:[%s1204] ss:$4 sm:$0xff] %v1025
      %1271 = vst [vmem:[%s1206] ss:$4 sm:$0xff] %v1028
      %1272 = vst [vmem:[%s1208] ss:$4 sm:$0xff] %v1031
      %1273 = vst [vmem:[%s1210] ss:$4 sm:$0xff] %v1034
      %1274 = vst [vmem:[%s1212] ss:$4 sm:$0xff] %v1037
      %1275 = vst [vmem:[%s1214] ss:$4 sm:$0xff] %v1040
      %v1276 = vld.sshfl [vmem:[#allocation1] sm:$0xff pattern:$0x73625140]
      %v1277 = vld.sshfl [vmem:[#allocation1 + $0x20] sm:$0xff pattern:$0x73625140]
      %1278 = vst [vmem:[#allocation1] ss:$4 sm:$0xff] %v1044
      %1279 = vst [vmem:[%s1202] ss:$4 sm:$0xff] %v1047
      %1280 = vst [vmem:[%s1204] ss:$4 sm:$0xff] %v1050
      %1281 = vst [vmem:[%s1206] ss:$4 sm:$0xff] %v1053
      %1282 = vst [vmem:[%s1208] ss:$4 sm:$0xff] %v1056
      %1283 = vst [vmem:[%s1210] ss:$4 sm:$0xff] %v1059
      %1284 = vst [vmem:[%s1212] ss:$4 sm:$0xff] %v1062
      %1285 = vst [vmem:[%s1214] ss:$4 sm:$0xff] %v1065
      %v1286 = vld.sshfl [vmem:[#allocation1] sm:$0xff pattern:$0x73625140]
      %v1287 = vld.sshfl [vmem:[#allocation1 + $0x20] sm:$0xff pattern:$0x73625140]
      %1288 = vst [vmem:[#allocation1] ss:$4 sm:$0xff] %v1069
      %1289 = vst [vmem:[%s1202] ss:$4 sm:$0xff] %v1072
      %1290 = vst [vmem:[%s1204] ss:$4 sm:$0xff] %v1075
      %1291 = vst [vmem:[%s1206] ss:$4 sm:$0xff] %v1078
      %1292 = vst [vmem:[%s1208] ss:$4 sm:$0xff] %v1081
      %1293 = vst [vmem:[%s1210] ss:$4 sm:$0xff] %v1084
      %1294 = vst [vmem:[%s1212] ss:$4 sm:$0xff] %v1087
      %1295 = vst [vmem:[%s1214] ss:$4 sm:$0xff] %v1090
      %v1296 = vld.sshfl [vmem:[#allocation1] sm:$0xff pattern:$0x73625140]
      %v1297 = vld.sshfl [vmem:[#allocation1 + $0x20] sm:$0xff pattern:$0x73625140]
      %vm1298 = vcmask 31744
      %v1299 = vsel %vm1298, %v1216, 0
      %v1301 = vsel %vm1298, %v1217, 0
      %v1303 = vsel %vm1298, %v1226, 0
      %v1305 = vsel %vm1298, %v1227, 0
      %v1307 = vsel %vm1298, %v1236, 0
      %v1309 = vsel %vm1298, %v1237, 0
      %v1311 = vsel %vm1298, %v1246, 0
      %v1313 = vsel %vm1298, %v1247, 0
      %v1315 = vsel %vm1298, %v1256, 0
      %v1317 = vsel %vm1298, %v1257, 0
      %v1319 = vsel %vm1298, %v1266, 0
      %v1321 = vsel %vm1298, %v1267, 0
      %v1323 = vsel %vm1298, %v1276, 0
      %v1325 = vsel %vm1298, %v1277, 0
      %v1327 = vsel %vm1298, %v1286, 0
      %v1329 = vsel %vm1298, %v1287, 0
      %v1331 = vsel %vm1298, %v1296, 0
      %v1333 = vsel %vm1298, %v1297, 0
      %vm1335 = vcmask 1043456
      %v1337 = vsel %vm1335, %v1200, 0
      %1339 = vmatpush.msra.mxu0 0.0
      %1340 = vmatpush.msra.mxu0 0.0
      %1341 = vmatpush.msra.mxu0 0.0
      %1342 = vmatpush.msra.mxu0 0.0
      %1343 = vmatpush.msra.mxu0 0.0
      %1344 = vmatpush.msra.mxu0 0.0
      %1345 = vmatpush.msra.mxu0 0.0
      %1346 = vmatpush.msra.mxu0 0.0
      %1347 = vmatpush.msra.mxu0 0.0
      %1348 = vmatpush.msra.mxu0 0.0
      %1349 = vmatpush.msra.mxu0 0.0
      %1350 = vmatpush.msra.mxu0 0.0
      %1351 = vmatpush.msra.mxu0 0.0
      %1352 = vmatpush.msra.mxu0 0.0
      %1353 = vmatpush.msra.mxu0 0.0
      %1354 = vmatpush.msra.mxu0 %v1337
      %1355 = vmatmul.f32.gmra.mxu0 %v1299
      %v1356 = vpop.f32.mrf.mxu0
      %v1357 = vadd.f32 0.0, %v1356
      %1358 = vmatmul.f32.gmra.mxu0 %v1301
      %v1359 = vpop.f32.mrf.mxu0
      %v1360 = vadd.f32 0.0, %v1359
      %1361 = vmatmul.f32.gmra.mxu0 %v1303
      %v1362 = vpop.f32.mrf.mxu0
      %v1363 = vadd.f32 0.0, %v1362
      %1364 = vmatmul.f32.gmra.mxu0 %v1305
      %v1365 = vpop.f32.mrf.mxu0
      %v1366 = vadd.f32 0.0, %v1365
      %1367 = vmatmul.f32.gmra.mxu0 %v1307
      %v1368 = vpop.f32.mrf.mxu0
      %v1369 = vadd.f32 0.0, %v1368
      %1370 = vmatmul.f32.gmra.mxu0 %v1309
      %v1371 = vpop.f32.mrf.mxu0
      %v1372 = vadd.f32 0.0, %v1371
      %1373 = vmatmul.f32.gmra.mxu0 %v1311
      %v1374 = vpop.f32.mrf.mxu0
      %v1375 = vadd.f32 0.0, %v1374
      %1376 = vmatmul.f32.gmra.mxu0 %v1313
      %v1377 = vpop.f32.mrf.mxu0
      %v1378 = vadd.f32 0.0, %v1377
      %1379 = vmatmul.f32.gmra.mxu0 %v1315
      %v1380 = vpop.f32.mrf.mxu0
      %v1381 = vadd.f32 0.0, %v1380
      %1382 = vmatmul.f32.gmra.mxu0 %v1317
      %v1383 = vpop.f32.mrf.mxu0
      %v1384 = vadd.f32 0.0, %v1383
      %1385 = vmatmul.f32.gmra.mxu0 %v1319
      %v1386 = vpop.f32.mrf.mxu0
      %v1387 = vadd.f32 0.0, %v1386
      %1388 = vmatmul.f32.gmra.mxu0 %v1321
      %v1389 = vpop.f32.mrf.mxu0
      %v1390 = vadd.f32 0.0, %v1389
      %1391 = vmatmul.f32.gmra.mxu0 %v1323
      %v1392 = vpop.f32.mrf.mxu0
      %v1393 = vadd.f32 0.0, %v1392
      %1394 = vmatmul.f32.gmra.mxu0 %v1325
      %v1395 = vpop.f32.mrf.mxu0
      %v1396 = vadd.f32 0.0, %v1395
      %1397 = vmatmul.f32.gmra.mxu0 %v1327
      %v1398 = vpop.f32.mrf.mxu0
      %v1399 = vadd.f32 0.0, %v1398
      %1400 = vmatmul.f32.gmra.mxu0 %v1329
      %v1401 = vpop.f32.mrf.mxu0
      %v1402 = vadd.f32 0.0, %v1401
      %1403 = vmatmul.f32.gmra.mxu0 %v1331
      %v1404 = vpop.f32.mrf.mxu0
      %v1405 = vadd.f32 0.0, %v1404
      %1406 = vmatmul.f32.gmra.mxu0 %v1333
      %v1407 = vpop.f32.mrf.mxu0
      %v1408 = vadd.f32 0.0, %v1407
      %1409 = vdwg.mxu0
      %1410 = vst [vmem:[#allocation1] ss:$4 sm:$0xff] %v702
      %s1411 = scalar_lea.vmem [#allocation1], 1
      %1412 = vst [vmem:[%s1411] ss:$4 sm:$0xff] %v793
      %s1413 = scalar_lea.vmem [#allocation1], 2
      %1414 = vst [vmem:[%s1413] ss:$4 sm:$0xff] %v794
      %s1415 = scalar_lea.vmem [#allocation1], 3
      %1416 = vst [vmem:[%s1415] ss:$4 sm:$0xff] %v795
      %s1417 = scalar_lea.vmem [#allocation1], 32
      %1418 = vst [vmem:[%s1417] ss:$4 sm:$0xff] %v705
      %s1419 = scalar_lea.vmem [#allocation1], 33
      %1420 = vst [vmem:[%s1419] ss:$4 sm:$0xff] %v796
      %s1421 = scalar_lea.vmem [#allocation1], 34
      %1422 = vst [vmem:[%s1421] ss:$4 sm:$0xff] %v797
      %s1423 = scalar_lea.vmem [#allocation1], 35
      %1424 = vst [vmem:[%s1423] ss:$4 sm:$0xff] %v798
      %v1425 = vld.sshfl [vmem:[#allocation1] sm:$0xff pattern:$0x73625140]
      %v1426 = vld.sshfl [vmem:[#allocation1 + $0x20] sm:$0xff pattern:$0x73625140]
      %1427 = vst [vmem:[#allocation1] ss:$4 sm:$0xff] %v799
      %1428 = vst [vmem:[%s1411] ss:$4 sm:$0xff] %v800
      %1429 = vst [vmem:[%s1413] ss:$4 sm:$0xff] %v801
      %1430 = vst [vmem:[%s1415] ss:$4 sm:$0xff] %v711
      %1431 = vst [vmem:[%s1417] ss:$4 sm:$0xff] %v802
      %1432 = vst [vmem:[%s1419] ss:$4 sm:$0xff] %v803
      %1433 = vst [vmem:[%s1421] ss:$4 sm:$0xff] %v804
      %1434 = vst [vmem:[%s1423] ss:$4 sm:$0xff] %v714
      %v1435 = vld.sshfl [vmem:[#allocation1] sm:$0xff pattern:$0x73625140]
      %v1436 = vld.sshfl [vmem:[#allocation1 + $0x20] sm:$0xff pattern:$0x73625140]
      %1437 = vst [vmem:[#allocation1] ss:$4 sm:$0xff] %v806
      %1438 = vst [vmem:[%s1411] ss:$4 sm:$0xff] %v807
      %1439 = vst [vmem:[%s1413] ss:$4 sm:$0xff] %v717
      %1440 = vst [vmem:[%s1415] ss:$4 sm:$0xff] %v808
      %1441 = vst [vmem:[%s1417] ss:$4 sm:$0xff] %v809
      %1442 = vst [vmem:[%s1419] ss:$4 sm:$0xff] %v810
      %1443 = vst [vmem:[%s1421] ss:$4 sm:$0xff] %v720
      %1444 = vst [vmem:[%s1423] ss:$4 sm:$0xff] %v811
      %v1445 = vld.sshfl [vmem:[#allocation1] sm:$0xff pattern:$0x73625140]
      %v1446 = vld.sshfl [vmem:[#allocation1 + $0x20] sm:$0xff pattern:$0x73625140]
      %1447 = vst [vmem:[#allocation1] ss:$4 sm:$0xff] %v813
      %1448 = vst [vmem:[%s1411] ss:$4 sm:$0xff] %v723
      %1449 = vst [vmem:[%s1413] ss:$4 sm:$0xff] %v814
      %1450 = vst [vmem:[%s1415] ss:$4 sm:$0xff] %v815
      %1451 = vst [vmem:[%s1417] ss:$4 sm:$0xff] %v816
      %1452 = vst [vmem:[%s1419] ss:$4 sm:$0xff] %v726
      %1453 = vst [vmem:[%s1421] ss:$4 sm:$0xff] %v817
      %1454 = vst [vmem:[%s1423] ss:$4 sm:$0xff] %v818
      %v1455 = vld.sshfl [vmem:[#allocation1] sm:$0xff pattern:$0x73625140]
      %v1456 = vld.sshfl [vmem:[#allocation1 + $0x20] sm:$0xff pattern:$0x73625140]
      %1457 = vst [vmem:[#allocation1] ss:$4 sm:$0xff] %v729
      %1458 = vst [vmem:[%s1411] ss:$4 sm:$0xff] %v820
      %1459 = vst [vmem:[%s1413] ss:$4 sm:$0xff] %v821
      %1460 = vst [vmem:[%s1415] ss:$4 sm:$0xff] %v822
      %1461 = vst [vmem:[%s1417] ss:$4 sm:$0xff] %v732
      %1462 = vst [vmem:[%s1419] ss:$4 sm:$0xff] %v823
      %1463 = vst [vmem:[%s1421] ss:$4 sm:$0xff] %v824
      %1464 = vst [vmem:[%s1423] ss:$4 sm:$0xff] %v825
      %v1465 = vld.sshfl [vmem:[#allocation1] sm:$0xff pattern:$0x73625140]
      %v1466 = vld.sshfl [vmem:[#allocation1 + $0x20] sm:$0xff pattern:$0x73625140]
      %1467 = vst [vmem:[#allocation1] ss:$4 sm:$0xff] %v826
      %1468 = vst [vmem:[%s1411] ss:$4 sm:$0xff] %v827
      %1469 = vst [vmem:[%s1413] ss:$4 sm:$0xff] %v828
      %1470 = vst [vmem:[%s1415] ss:$4 sm:$0xff] %v738
      %1471 = vst [vmem:[%s1417] ss:$4 sm:$0xff] %v829
      %1472 = vst [vmem:[%s1419] ss:$4 sm:$0xff] %v830
      %1473 = vst [vmem:[%s1421] ss:$4 sm:$0xff] %v831
      %1474 = vst [vmem:[%s1423] ss:$4 sm:$0xff] %v741
      %v1475 = vld.sshfl [vmem:[#allocation1] sm:$0xff pattern:$0x73625140]
      %v1476 = vld.sshfl [vmem:[#allocation1 + $0x20] sm:$0xff pattern:$0x73625140]
      %1477 = vst [vmem:[#allocation1] ss:$4 sm:$0xff] %v833
      %1478 = vst [vmem:[%s1411] ss:$4 sm:$0xff] %v834
      %1479 = vst [vmem:[%s1413] ss:$4 sm:$0xff] %v744
      %1480 = vst [vmem:[%s1415] ss:$4 sm:$0xff] %v835
      %1481 = vst [vmem:[%s1417] ss:$4 sm:$0xff] %v836
      %1482 = vst [vmem:[%s1419] ss:$4 sm:$0xff] %v837
      %1483 = vst [vmem:[%s1421] ss:$4 sm:$0xff] %v747
      %1484 = vst [vmem:[%s1423] ss:$4 sm:$0xff] %v838
      %v1485 = vld.sshfl [vmem:[#allocation1] sm:$0xff pattern:$0x73625140]
      %v1486 = vld.sshfl [vmem:[#allocation1 + $0x20] sm:$0xff pattern:$0x73625140]
      %1487 = vst [vmem:[#allocation1] ss:$4 sm:$0xff] %v840
      %1488 = vst [vmem:[%s1411] ss:$4 sm:$0xff] %v750
      %1489 = vst [vmem:[%s1413] ss:$4 sm:$0xff] %v841
      %1490 = vst [vmem:[%s1415] ss:$4 sm:$0xff] %v842
      %1491 = vst [vmem:[%s1417] ss:$4 sm:$0xff] %v843
      %1492 = vst [vmem:[%s1419] ss:$4 sm:$0xff] %v753
      %1493 = vst [vmem:[%s1421] ss:$4 sm:$0xff] %v844
      %1494 = vst [vmem:[%s1423] ss:$4 sm:$0xff] %v845
      %v1495 = vld.sshfl [vmem:[#allocation1] sm:$0xff pattern:$0x73625140]
      %v1496 = vld.sshfl [vmem:[#allocation1 + $0x20] sm:$0xff pattern:$0x73625140]
      %1497 = vst [vmem:[#allocation1] ss:$4 sm:$0xff] %v756
      %1498 = vst [vmem:[%s1411] ss:$4 sm:$0xff] %v847
      %1499 = vst [vmem:[%s1413] ss:$4 sm:$0xff] %v848
      %1500 = vst [vmem:[%s1415] ss:$4 sm:$0xff] %v849
      %1501 = vst [vmem:[%s1417] ss:$4 sm:$0xff] %v759
      %1502 = vst [vmem:[%s1419] ss:$4 sm:$0xff] %v850
      %1503 = vst [vmem:[%s1421] ss:$4 sm:$0xff] %v851
      %1504 = vst [vmem:[%s1423] ss:$4 sm:$0xff] %v852
      %v1505 = vld.sshfl [vmem:[#allocation1] sm:$0xff pattern:$0x73625140]
      %v1506 = vld.sshfl [vmem:[#allocation1 + $0x20] sm:$0xff pattern:$0x73625140]
      %v1507 = vsel %vm1298, %v1425, 0
      %v1509 = vsel %vm1298, %v1426, 0
      %v1511 = vsel %vm1298, %v1435, 0
      %v1513 = vsel %vm1298, %v1436, 0
      %v1515 = vsel %vm1298, %v1445, 0
      %v1517 = vsel %vm1298, %v1446, 0
      %v1519 = vsel %vm1298, %v1455, 0
      %v1521 = vsel %vm1298, %v1456, 0
      %v1523 = vsel %vm1298, %v1465, 0
      %v1525 = vsel %vm1298, %v1466, 0
      %v1527 = vsel %vm1298, %v1475, 0
      %v1529 = vsel %vm1298, %v1476, 0
      %v1531 = vsel %vm1298, %v1485, 0
      %v1533 = vsel %vm1298, %v1486, 0
      %v1535 = vsel %vm1298, %v1495, 0
      %v1537 = vsel %vm1298, %v1496, 0
      %v1539 = vsel %vm1298, %v1505, 0
      %v1541 = vsel %vm1298, %v1506, 0
      %v1544 = vsel %vm1335, %v1198, 0
      %1546 = vmatpush.msra.mxu0 0.0
      %1547 = vmatpush.msra.mxu0 0.0
      %1548 = vmatpush.msra.mxu0 0.0
      %1549 = vmatpush.msra.mxu0 0.0
      %1550 = vmatpush.msra.mxu0 0.0
      %1551 = vmatpush.msra.mxu0 0.0
      %1552 = vmatpush.msra.mxu0 0.0
      %1553 = vmatpush.msra.mxu0 0.0
      %1554 = vmatpush.msra.mxu0 0.0
      %1555 = vmatpush.msra.mxu0 0.0
      %1556 = vmatpush.msra.mxu0 0.0
      %1557 = vmatpush.msra.mxu0 0.0
      %1558 = vmatpush.msra.mxu0 0.0
      %1559 = vmatpush.msra.mxu0 0.0
      %1560 = vmatpush.msra.mxu0 0.0
      %1561 = vmatpush.msra.mxu0 %v1544
      %1562 = vmatmul.f32.gmra.mxu0 %v1507
      %v1563 = vpop.f32.mrf.mxu0
      %v1564 = vadd.f32 %v1357, %v1563
      %1565 = vmatmul.f32.gmra.mxu0 %v1509
      %v1566 = vpop.f32.mrf.mxu0
      %v1567 = vadd.f32 %v1360, %v1566
      %1568 = vmatmul.f32.gmra.mxu0 %v1511
      %v1569 = vpop.f32.mrf.mxu0
      %v1570 = vadd.f32 %v1363, %v1569
      %1571 = vmatmul.f32.gmra.mxu0 %v1513
      %v1572 = vpop.f32.mrf.mxu0
      %v1573 = vadd.f32 %v1366, %v1572
      %1574 = vmatmul.f32.gmra.mxu0 %v1515
      %v1575 = vpop.f32.mrf.mxu0
      %v1576 = vadd.f32 %v1369, %v1575
      %1577 = vmatmul.f32.gmra.mxu0 %v1517
      %v1578 = vpop.f32.mrf.mxu0
      %v1579 = vadd.f32 %v1372, %v1578
      %1580 = vmatmul.f32.gmra.mxu0 %v1519
      %v1581 = vpop.f32.mrf.mxu0
      %v1582 = vadd.f32 %v1375, %v1581
      %1583 = vmatmul.f32.gmra.mxu0 %v1521
      %v1584 = vpop.f32.mrf.mxu0
      %v1585 = vadd.f32 %v1378, %v1584
      %1586 = vmatmul.f32.gmra.mxu0 %v1523
      %v1587 = vpop.f32.mrf.mxu0
      %v1588 = vadd.f32 %v1381, %v1587
      %1589 = vmatmul.f32.gmra.mxu0 %v1525
      %v1590 = vpop.f32.mrf.mxu0
      %v1591 = vadd.f32 %v1384, %v1590
      %1592 = vmatmul.f32.gmra.mxu0 %v1527
      %v1593 = vpop.f32.mrf.mxu0
      %v1594 = vadd.f32 %v1387, %v1593
      %1595 = vmatmul.f32.gmra.mxu0 %v1529
      %v1596 = vpop.f32.mrf.mxu0
      %v1597 = vadd.f32 %v1390, %v1596
      %1598 = vmatmul.f32.gmra.mxu0 %v1531
      %v1599 = vpop.f32.mrf.mxu0
      %v1600 = vadd.f32 %v1393, %v1599
      %1601 = vmatmul.f32.gmra.mxu0 %v1533
      %v1602 = vpop.f32.mrf.mxu0
      %v1603 = vadd.f32 %v1396, %v1602
      %1604 = vmatmul.f32.gmra.mxu0 %v1535
      %v1605 = vpop.f32.mrf.mxu0
      %v1606 = vadd.f32 %v1399, %v1605
      %1607 = vmatmul.f32.gmra.mxu0 %v1537
      %v1608 = vpop.f32.mrf.mxu0
      %v1609 = vadd.f32 %v1402, %v1608
      %1610 = vmatmul.f32.gmra.mxu0 %v1539
      %v1611 = vpop.f32.mrf.mxu0
      %v1612 = vadd.f32 %v1405, %v1611
      %1613 = vmatmul.f32.gmra.mxu0 %v1541
      %v1614 = vpop.f32.mrf.mxu0
      %v1615 = vadd.f32 %v1408, %v1614
      %1616 = vdwg.mxu0
      %s1617 = scalar_lea.vmem %s2, 8
      %v1618 = vld [vmem:[%s1617] sm:$0xf]
      %1619 = vst [vmem:[#allocation1] ss:$4 sm:$0xff] %v799
      %s1620 = scalar_lea.vmem [#allocation1], 1
      %1621 = vst [vmem:[%s1620] ss:$4 sm:$0xff] %v800
      %s1622 = scalar_lea.vmem [#allocation1], 2
      %1623 = vst [vmem:[%s1622] ss:$4 sm:$0xff] %v801
      %s1624 = scalar_lea.vmem [#allocation1], 3
      %1625 = vst [vmem:[%s1624] ss:$4 sm:$0xff] %v711
      %s1626 = scalar_lea.vmem [#allocation1], 32
      %1627 = vst [vmem:[%s1626] ss:$4 sm:$0xff] %v802
      %s1628 = scalar_lea.vmem [#allocation1], 33
      %1629 = vst [vmem:[%s1628] ss:$4 sm:$0xff] %v803
      %s1630 = scalar_lea.vmem [#allocation1], 34
      %1631 = vst [vmem:[%s1630] ss:$4 sm:$0xff] %v804
      %s1632 = scalar_lea.vmem [#allocation1], 35
      %1633 = vst [vmem:[%s1632] ss:$4 sm:$0xff] %v714
      %v1634 = vld.sshfl [vmem:[#allocation1] sm:$0xff pattern:$0x73625140]
      %v1635 = vld.sshfl [vmem:[#allocation1 + $0x20] sm:$0xff pattern:$0x73625140]
      %1636 = vst [vmem:[#allocation1] ss:$4 sm:$0xff] %v806
      %1637 = vst [vmem:[%s1620] ss:$4 sm:$0xff] %v807
      %1638 = vst [vmem:[%s1622] ss:$4 sm:$0xff] %v717
      %1639 = vst [vmem:[%s1624] ss:$4 sm:$0xff] %v808
      %1640 = vst [vmem:[%s1626] ss:$4 sm:$0xff] %v809
      %1641 = vst [vmem:[%s1628] ss:$4 sm:$0xff] %v810
      %1642 = vst [vmem:[%s1630] ss:$4 sm:$0xff] %v720
      %1643 = vst [vmem:[%s1632] ss:$4 sm:$0xff] %v811
      %v1644 = vld.sshfl [vmem:[#allocation1] sm:$0xff pattern:$0x73625140]
      %v1645 = vld.sshfl [vmem:[#allocation1 + $0x20] sm:$0xff pattern:$0x73625140]
      %1646 = vst [vmem:[#allocation1] ss:$4 sm:$0xff] %v813
      %1647 = vst [vmem:[%s1620] ss:$4 sm:$0xff] %v723
      %1648 = vst [vmem:[%s1622] ss:$4 sm:$0xff] %v814
      %1649 = vst [vmem:[%s1624] ss:$4 sm:$0xff] %v815
      %1650 = vst [vmem:[%s1626] ss:$4 sm:$0xff] %v816
      %1651 = vst [vmem:[%s1628] ss:$4 sm:$0xff] %v726
      %1652 = vst [vmem:[%s1630] ss:$4 sm:$0xff] %v817
      %1653 = vst [vmem:[%s1632] ss:$4 sm:$0xff] %v818
      %v1654 = vld.sshfl [vmem:[#allocation1] sm:$0xff pattern:$0x73625140]
      %v1655 = vld.sshfl [vmem:[#allocation1 + $0x20] sm:$0xff pattern:$0x73625140]
      %1656 = vst [vmem:[#allocation1] ss:$4 sm:$0xff] %v729
      %1657 = vst [vmem:[%s1620] ss:$4 sm:$0xff] %v820
      %1658 = vst [vmem:[%s1622] ss:$4 sm:$0xff] %v821
      %1659 = vst [vmem:[%s1624] ss:$4 sm:$0xff] %v822
      %1660 = vst [vmem:[%s1626] ss:$4 sm:$0xff] %v732
      %1661 = vst [vmem:[%s1628] ss:$4 sm:$0xff] %v823
      %1662 = vst [vmem:[%s1630] ss:$4 sm:$0xff] %v824
      %1663 = vst [vmem:[%s1632] ss:$4 sm:$0xff] %v825
      %v1664 = vld.sshfl [vmem:[#allocation1] sm:$0xff pattern:$0x73625140]
      %v1665 = vld.sshfl [vmem:[#allocation1 + $0x20] sm:$0xff pattern:$0x73625140]
      %1666 = vst [vmem:[#allocation1] ss:$4 sm:$0xff] %v826
      %1667 = vst [vmem:[%s1620] ss:$4 sm:$0xff] %v827
      %1668 = vst [vmem:[%s1622] ss:$4 sm:$0xff] %v828
      %1669 = vst [vmem:[%s1624] ss:$4 sm:$0xff] %v738
      %1670 = vst [vmem:[%s1626] ss:$4 sm:$0xff] %v829
      %1671 = vst [vmem:[%s1628] ss:$4 sm:$0xff] %v830
      %1672 = vst [vmem:[%s1630] ss:$4 sm:$0xff] %v831
      %1673 = vst [vmem:[%s1632] ss:$4 sm:$0xff] %v741
      %v1674 = vld.sshfl [vmem:[#allocation1] sm:$0xff pattern:$0x73625140]
      %v1675 = vld.sshfl [vmem:[#allocation1 + $0x20] sm:$0xff pattern:$0x73625140]
      %1676 = vst [vmem:[#allocation1] ss:$4 sm:$0xff] %v833
      %1677 = vst [vmem:[%s1620] ss:$4 sm:$0xff] %v834
      %1678 = vst [vmem:[%s1622] ss:$4 sm:$0xff] %v744
      %1679 = vst [vmem:[%s1624] ss:$4 sm:$0xff] %v835
      %1680 = vst [vmem:[%s1626] ss:$4 sm:$0xff] %v836
      %1681 = vst [vmem:[%s1628] ss:$4 sm:$0xff] %v837
      %1682 = vst [vmem:[%s1630] ss:$4 sm:$0xff] %v747
      %1683 = vst [vmem:[%s1632] ss:$4 sm:$0xff] %v838
      %v1684 = vld.sshfl [vmem:[#allocation1] sm:$0xff pattern:$0x73625140]
      %v1685 = vld.sshfl [vmem:[#allocation1 + $0x20] sm:$0xff pattern:$0x73625140]
      %1686 = vst [vmem:[#allocation1] ss:$4 sm:$0xff] %v840
      %1687 = vst [vmem:[%s1620] ss:$4 sm:$0xff] %v750
      %1688 = vst [vmem:[%s1622] ss:$4 sm:$0xff] %v841
      %1689 = vst [vmem:[%s1624] ss:$4 sm:$0xff] %v842
      %1690 = vst [vmem:[%s1626] ss:$4 sm:$0xff] %v843
      %1691 = vst [vmem:[%s1628] ss:$4 sm:$0xff] %v753
      %1692 = vst [vmem:[%s1630] ss:$4 sm:$0xff] %v844
      %1693 = vst [vmem:[%s1632] ss:$4 sm:$0xff] %v845
      %v1694 = vld.sshfl [vmem:[#allocation1] sm:$0xff pattern:$0x73625140]
      %v1695 = vld.sshfl [vmem:[#allocation1 + $0x20] sm:$0xff pattern:$0x73625140]
      %1696 = vst [vmem:[#allocation1] ss:$4 sm:$0xff] %v756
      %1697 = vst [vmem:[%s1620] ss:$4 sm:$0xff] %v847
      %1698 = vst [vmem:[%s1622] ss:$4 sm:$0xff] %v848
      %1699 = vst [vmem:[%s1624] ss:$4 sm:$0xff] %v849
      %1700 = vst [vmem:[%s1626] ss:$4 sm:$0xff] %v759
      %1701 = vst [vmem:[%s1628] ss:$4 sm:$0xff] %v850
      %1702 = vst [vmem:[%s1630] ss:$4 sm:$0xff] %v851
      %1703 = vst [vmem:[%s1632] ss:$4 sm:$0xff] %v852
      %v1704 = vld.sshfl [vmem:[#allocation1] sm:$0xff pattern:$0x73625140]
      %v1705 = vld.sshfl [vmem:[#allocation1 + $0x20] sm:$0xff pattern:$0x73625140]
      %1706 = vst [vmem:[#allocation1] ss:$4 sm:$0xff] %v853
      %1707 = vst [vmem:[%s1620] ss:$4 sm:$0xff] %v854
      %1708 = vst [vmem:[%s1622] ss:$4 sm:$0xff] %v855
      %1709 = vst [vmem:[%s1624] ss:$4 sm:$0xff] %v765
      %1710 = vst [vmem:[%s1626] ss:$4 sm:$0xff] %v856
      %1711 = vst [vmem:[%s1628] ss:$4 sm:$0xff] %v857
      %1712 = vst [vmem:[%s1630] ss:$4 sm:$0xff] %v858
      %1713 = vst [vmem:[%s1632] ss:$4 sm:$0xff] %v768
      %v1714 = vld.sshfl [vmem:[#allocation1] sm:$0xff pattern:$0x73625140]
      %v1715 = vld.sshfl [vmem:[#allocation1 + $0x20] sm:$0xff pattern:$0x73625140]
      %v1716 = vsel %vm1298, %v1634, 0
      %v1718 = vsel %vm1298, %v1635, 0
      %v1720 = vsel %vm1298, %v1644, 0
      %v1722 = vsel %vm1298, %v1645, 0
      %v1724 = vsel %vm1298, %v1654, 0
      %v1726 = vsel %vm1298, %v1655, 0
      %v1728 = vsel %vm1298, %v1664, 0
      %v1730 = vsel %vm1298, %v1665, 0
      %v1732 = vsel %vm1298, %v1674, 0
      %v1734 = vsel %vm1298, %v1675, 0
      %v1736 = vsel %vm1298, %v1684, 0
      %v1738 = vsel %vm1298, %v1685, 0
      %v1740 = vsel %vm1298, %v1694, 0
      %v1742 = vsel %vm1298, %v1695, 0
      %v1744 = vsel %vm1298, %v1704, 0
      %v1746 = vsel %vm1298, %v1705, 0
      %v1748 = vsel %vm1298, %v1714, 0
      %v1750 = vsel %vm1298, %v1715, 0
      %v1753 = vsel %vm1335, %v1618, 0
      %1755 = vmatpush.msra.mxu0 0.0
      %1756 = vmatpush.msra.mxu0 0.0
      %1757 = vmatpush.msra.mxu0 0.0
      %1758 = vmatpush.msra.mxu0 0.0
      %1759 = vmatpush.msra.mxu0 0.0
      %1760 = vmatpush.msra.mxu0 0.0
      %1761 = vmatpush.msra.mxu0 0.0
      %1762 = vmatpush.msra.mxu0 0.0
      %1763 = vmatpush.msra.mxu0 0.0
      %1764 = vmatpush.msra.mxu0 0.0
      %1765 = vmatpush.msra.mxu0 0.0
      %1766 = vmatpush.msra.mxu0 0.0
      %1767 = vmatpush.msra.mxu0 0.0
      %1768 = vmatpush.msra.mxu0 0.0
      %1769 = vmatpush.msra.mxu0 0.0
      %1770 = vmatpush.msra.mxu0 %v1753
      %1771 = vmatmul.f32.gmra.mxu0 %v1716
      %v1772 = vpop.f32.mrf.mxu0
      %v1773 = vadd.f32 0.0, %v1772
      %1774 = vmatmul.f32.gmra.mxu0 %v1718
      %v1775 = vpop.f32.mrf.mxu0
      %v1776 = vadd.f32 0.0, %v1775
      %1777 = vmatmul.f32.gmra.mxu0 %v1720
      %v1778 = vpop.f32.mrf.mxu0
      %v1779 = vadd.f32 0.0, %v1778
      %1780 = vmatmul.f32.gmra.mxu0 %v1722
      %v1781 = vpop.f32.mrf.mxu0
      %v1782 = vadd.f32 0.0, %v1781
      %1783 = vmatmul.f32.gmra.mxu0 %v1724
      %v1784 = vpop.f32.mrf.mxu0
      %v1785 = vadd.f32 0.0, %v1784
      %1786 = vmatmul.f32.gmra.mxu0 %v1726
      %v1787 = vpop.f32.mrf.mxu0
      %v1788 = vadd.f32 0.0, %v1787
      %1789 = vmatmul.f32.gmra.mxu0 %v1728
      %v1790 = vpop.f32.mrf.mxu0
      %v1791 = vadd.f32 0.0, %v1790
      %1792 = vmatmul.f32.gmra.mxu0 %v1730
      %v1793 = vpop.f32.mrf.mxu0
      %v1794 = vadd.f32 0.0, %v1793
      %1795 = vmatmul.f32.gmra.mxu0 %v1732
      %v1796 = vpop.f32.mrf.mxu0
      %v1797 = vadd.f32 0.0, %v1796
      %1798 = vmatmul.f32.gmra.mxu0 %v1734
      %v1799 = vpop.f32.mrf.mxu0
      %v1800 = vadd.f32 0.0, %v1799
      %1801 = vmatmul.f32.gmra.mxu0 %v1736
      %v1802 = vpop.f32.mrf.mxu0
      %v1803 = vadd.f32 0.0, %v1802
      %1804 = vmatmul.f32.gmra.mxu0 %v1738
      %v1805 = vpop.f32.mrf.mxu0
      %v1806 = vadd.f32 0.0, %v1805
      %1807 = vmatmul.f32.gmra.mxu0 %v1740
      %v1808 = vpop.f32.mrf.mxu0
      %v1809 = vadd.f32 0.0, %v1808
      %1810 = vmatmul.f32.gmra.mxu0 %v1742
      %v1811 = vpop.f32.mrf.mxu0
      %v1812 = vadd.f32 0.0, %v1811
      %1813 = vmatmul.f32.gmra.mxu0 %v1744
      %v1814 = vpop.f32.mrf.mxu0
      %v1815 = vadd.f32 0.0, %v1814
      %1816 = vmatmul.f32.gmra.mxu0 %v1746
      %v1817 = vpop.f32.mrf.mxu0
      %v1818 = vadd.f32 0.0, %v1817
      %1819 = vmatmul.f32.gmra.mxu0 %v1748
      %v1820 = vpop.f32.mrf.mxu0
      %v1821 = vadd.f32 0.0, %v1820
      %1822 = vmatmul.f32.gmra.mxu0 %v1750
      %v1823 = vpop.f32.mrf.mxu0
      %v1824 = vadd.f32 0.0, %v1823
      %1825 = vdwg.mxu0
      %v1826 = vadd.f32 %v1564, %v1773
      %v1827 = vadd.f32 %v1567, %v1776
      %v1828 = vadd.f32 %v1570, %v1779
      %v1829 = vadd.f32 %v1573, %v1782
      %v1830 = vadd.f32 %v1576, %v1785
      %v1831 = vadd.f32 %v1579, %v1788
      %v1832 = vadd.f32 %v1582, %v1791
      %v1833 = vadd.f32 %v1585, %v1794
      %v1834 = vadd.f32 %v1588, %v1797
      %v1835 = vadd.f32 %v1591, %v1800
      %v1836 = vadd.f32 %v1594, %v1803
      %v1837 = vadd.f32 %v1597, %v1806
      %v1838 = vadd.f32 %v1600, %v1809
      %v1839 = vadd.f32 %v1603, %v1812
      %v1840 = vadd.f32 %v1606, %v1815
      %v1841 = vadd.f32 %v1609, %v1818
      %v1842 = vadd.f32 %v1612, %v1821
      %v1843 = vadd.f32 %v1615, %v1824
      %s1844 = scalar_lea.vmem %s2, 12
      %v1845 = vld [vmem:[%s1844] sm:$0xf]
      %1846 = vst [vmem:[#allocation1] ss:$4 sm:$0xff] %v894
      %s1847 = scalar_lea.vmem [#allocation1], 1
      %1848 = vst [vmem:[%s1847] ss:$4 sm:$0xff] %v897
      %s1849 = scalar_lea.vmem [#allocation1], 2
      %1850 = vst [vmem:[%s1849] ss:$4 sm:$0xff] %v900
      %s1851 = scalar_lea.vmem [#allocation1], 3
      %1852 = vst [vmem:[%s1851] ss:$4 sm:$0xff] %v903
      %s1853 = scalar_lea.vmem [#allocation1], 32
      %1854 = vst [vmem:[%s1853] ss:$4 sm:$0xff] %v906
      %s1855 = scalar_lea.vmem [#allocation1], 33
      %1856 = vst [vmem:[%s1855] ss:$4 sm:$0xff] %v909
      %s1857 = scalar_lea.vmem [#allocation1], 34
      %1858 = vst [vmem:[%s1857] ss:$4 sm:$0xff] %v912
      %s1859 = scalar_lea.vmem [#allocation1], 35
      %1860 = vst [vmem:[%s1859] ss:$4 sm:$0xff] %v915
      %v1861 = vld.sshfl [vmem:[#allocation1] sm:$0xff pattern:$0x73625140]
      %v1862 = vld.sshfl [vmem:[#allocation1 + $0x20] sm:$0xff pattern:$0x73625140]
      %1863 = vst [vmem:[#allocation1] ss:$4 sm:$0xff] %v919
      %1864 = vst [vmem:[%s1847] ss:$4 sm:$0xff] %v922
      %1865 = vst [vmem:[%s1849] ss:$4 sm:$0xff] %v925
      %1866 = vst [vmem:[%s1851] ss:$4 sm:$0xff] %v928
      %1867 = vst [vmem:[%s1853] ss:$4 sm:$0xff] %v931
      %1868 = vst [vmem:[%s1855] ss:$4 sm:$0xff] %v934
      %1869 = vst [vmem:[%s1857] ss:$4 sm:$0xff] %v937
      %1870 = vst [vmem:[%s1859] ss:$4 sm:$0xff] %v940
      %v1871 = vld.sshfl [vmem:[#allocation1] sm:$0xff pattern:$0x73625140]
      %v1872 = vld.sshfl [vmem:[#allocation1 + $0x20] sm:$0xff pattern:$0x73625140]
      %1873 = vst [vmem:[#allocation1] ss:$4 sm:$0xff] %v944
      %1874 = vst [vmem:[%s1847] ss:$4 sm:$0xff] %v947
      %1875 = vst [vmem:[%s1849] ss:$4 sm:$0xff] %v950
      %1876 = vst [vmem:[%s1851] ss:$4 sm:$0xff] %v953
      %1877 = vst [vmem:[%s1853] ss:$4 sm:$0xff] %v956
      %1878 = vst [vmem:[%s1855] ss:$4 sm:$0xff] %v959
      %1879 = vst [vmem:[%s1857] ss:$4 sm:$0xff] %v962
      %1880 = vst [vmem:[%s1859] ss:$4 sm:$0xff] %v965
      %v1881 = vld.sshfl [vmem:[#allocation1] sm:$0xff pattern:$0x73625140]
      %v1882 = vld.sshfl [vmem:[#allocation1 + $0x20] sm:$0xff pattern:$0x73625140]
      %1883 = vst [vmem:[#allocation1] ss:$4 sm:$0xff] %v969
      %1884 = vst [vmem:[%s1847] ss:$4 sm:$0xff] %v972
      %1885 = vst [vmem:[%s1849] ss:$4 sm:$0xff] %v975
      %1886 = vst [vmem:[%s1851] ss:$4 sm:$0xff] %v978
      %1887 = vst [vmem:[%s1853] ss:$4 sm:$0xff] %v981
      %1888 = vst [vmem:[%s1855] ss:$4 sm:$0xff] %v984
      %1889 = vst [vmem:[%s1857] ss:$4 sm:$0xff] %v987
      %1890 = vst [vmem:[%s1859] ss:$4 sm:$0xff] %v990
      %v1891 = vld.sshfl [vmem:[#allocation1] sm:$0xff pattern:$0x73625140]
      %v1892 = vld.sshfl [vmem:[#allocation1 + $0x20] sm:$0xff pattern:$0x73625140]
      %1893 = vst [vmem:[#allocation1] ss:$4 sm:$0xff] %v994
      %1894 = vst [vmem:[%s1847] ss:$4 sm:$0xff] %v997
      %1895 = vst [vmem:[%s1849] ss:$4 sm:$0xff] %v1000
      %1896 = vst [vmem:[%s1851] ss:$4 sm:$0xff] %v1003
      %1897 = vst [vmem:[%s1853] ss:$4 sm:$0xff] %v1006
      %1898 = vst [vmem:[%s1855] ss:$4 sm:$0xff] %v1009
      %1899 = vst [vmem:[%s1857] ss:$4 sm:$0xff] %v1012
      %1900 = vst [vmem:[%s1859] ss:$4 sm:$0xff] %v1015
      %v1901 = vld.sshfl [vmem:[#allocation1] sm:$0xff pattern:$0x73625140]
      %v1902 = vld.sshfl [vmem:[#allocation1 + $0x20] sm:$0xff pattern:$0x73625140]
      %1903 = vst [vmem:[#allocation1] ss:$4 sm:$0xff] %v1019
      %1904 = vst [vmem:[%s1847] ss:$4 sm:$0xff] %v1022
      %1905 = vst [vmem:[%s1849] ss:$4 sm:$0xff] %v1025
      %1906 = vst [vmem:[%s1851] ss:$4 sm:$0xff] %v1028
      %1907 = vst [vmem:[%s1853] ss:$4 sm:$0xff] %v1031
      %1908 = vst [vmem:[%s1855] ss:$4 sm:$0xff] %v1034
      %1909 = vst [vmem:[%s1857] ss:$4 sm:$0xff] %v1037
      %1910 = vst [vmem:[%s1859] ss:$4 sm:$0xff] %v1040
      %v1911 = vld.sshfl [vmem:[#allocation1] sm:$0xff pattern:$0x73625140]
      %v1912 = vld.sshfl [vmem:[#allocation1 + $0x20] sm:$0xff pattern:$0x73625140]
      %1913 = vst [vmem:[#allocation1] ss:$4 sm:$0xff] %v1044
      %1914 = vst [vmem:[%s1847] ss:$4 sm:$0xff] %v1047
      %1915 = vst [vmem:[%s1849] ss:$4 sm:$0xff] %v1050
      %1916 = vst [vmem:[%s1851] ss:$4 sm:$0xff] %v1053
      %1917 = vst [vmem:[%s1853] ss:$4 sm:$0xff] %v1056
      %1918 = vst [vmem:[%s1855] ss:$4 sm:$0xff] %v1059
      %1919 = vst [vmem:[%s1857] ss:$4 sm:$0xff] %v1062
      %1920 = vst [vmem:[%s1859] ss:$4 sm:$0xff] %v1065
      %v1921 = vld.sshfl [vmem:[#allocation1] sm:$0xff pattern:$0x73625140]
      %v1922 = vld.sshfl [vmem:[#allocation1 + $0x20] sm:$0xff pattern:$0x73625140]
      %1923 = vst [vmem:[#allocation1] ss:$4 sm:$0xff] %v1069
      %1924 = vst [vmem:[%s1847] ss:$4 sm:$0xff] %v1072
      %1925 = vst [vmem:[%s1849] ss:$4 sm:$0xff] %v1075
      %1926 = vst [vmem:[%s1851] ss:$4 sm:$0xff] %v1078
      %1927 = vst [vmem:[%s1853] ss:$4 sm:$0xff] %v1081
      %1928 = vst [vmem:[%s1855] ss:$4 sm:$0xff] %v1084
      %1929 = vst [vmem:[%s1857] ss:$4 sm:$0xff] %v1087
      %1930 = vst [vmem:[%s1859] ss:$4 sm:$0xff] %v1090
      %v1931 = vld.sshfl [vmem:[#allocation1] sm:$0xff pattern:$0x73625140]
      %v1932 = vld.sshfl [vmem:[#allocation1 + $0x20] sm:$0xff pattern:$0x73625140]
      %1933 = vst [vmem:[#allocation1] ss:$4 sm:$0xff] %v1094
      %1934 = vst [vmem:[%s1847] ss:$4 sm:$0xff] %v1097
      %1935 = vst [vmem:[%s1849] ss:$4 sm:$0xff] %v1100
      %1936 = vst [vmem:[%s1851] ss:$4 sm:$0xff] %v1103
      %1937 = vst [vmem:[%s1853] ss:$4 sm:$0xff] %v1106
      %1938 = vst [vmem:[%s1855] ss:$4 sm:$0xff] %v1109
      %1939 = vst [vmem:[%s1857] ss:$4 sm:$0xff] %v1112
      %1940 = vst [vmem:[%s1859] ss:$4 sm:$0xff] %v1115
      %v1941 = vld.sshfl [vmem:[#allocation1] sm:$0xff pattern:$0x73625140]
      %v1942 = vld.sshfl [vmem:[#allocation1 + $0x20] sm:$0xff pattern:$0x73625140]
      %v1943 = vsel %vm1298, %v1861, 0
      %v1945 = vsel %vm1298, %v1862, 0
      %v1947 = vsel %vm1298, %v1871, 0
      %v1949 = vsel %vm1298, %v1872, 0
      %v1951 = vsel %vm1298, %v1881, 0
      %v1953 = vsel %vm1298, %v1882, 0
      %v1955 = vsel %vm1298, %v1891, 0
      %v1957 = vsel %vm1298, %v1892, 0
      %v1959 = vsel %vm1298, %v1901, 0
      %v1961 = vsel %vm1298, %v1902, 0
      %v1963 = vsel %vm1298, %v1911, 0
      %v1965 = vsel %vm1298, %v1912, 0
      %v1967 = vsel %vm1298, %v1921, 0
      %v1969 = vsel %vm1298, %v1922, 0
      %v1971 = vsel %vm1298, %v1931, 0
      %v1973 = vsel %vm1298, %v1932, 0
      %v1975 = vsel %vm1298, %v1941, 0
      %v1977 = vsel %vm1298, %v1942, 0
      %v1980 = vsel %vm1335, %v1845, 0
      %1982 = vmatpush.msra.mxu0 0.0
      %1983 = vmatpush.msra.mxu0 0.0
      %1984 = vmatpush.msra.mxu0 0.0
      %1985 = vmatpush.msra.mxu0 0.0
      %1986 = vmatpush.msra.mxu0 0.0
      %1987 = vmatpush.msra.mxu0 0.0
      %1988 = vmatpush.msra.mxu0 0.0
      %1989 = vmatpush.msra.mxu0 0.0
      %1990 = vmatpush.msra.mxu0 0.0
      %1991 = vmatpush.msra.mxu0 0.0
      %1992 = vmatpush.msra.mxu0 0.0
      %1993 = vmatpush.msra.mxu0 0.0
      %1994 = vmatpush.msra.mxu0 0.0
      %1995 = vmatpush.msra.mxu0 0.0
      %1996 = vmatpush.msra.mxu0 0.0
      %1997 = vmatpush.msra.mxu0 %v1980
      %1998 = vmatmul.f32.gmra.mxu0 %v1943
      %v1999 = vpop.f32.mrf.mxu0
      %v2000 = vadd.f32 0.0, %v1999
      %2001 = vmatmul.f32.gmra.mxu0 %v1945
      %v2002 = vpop.f32.mrf.mxu0
      %v2003 = vadd.f32 0.0, %v2002
      %2004 = vmatmul.f32.gmra.mxu0 %v1947
      %v2005 = vpop.f32.mrf.mxu0
      %v2006 = vadd.f32 0.0, %v2005
      %2007 = vmatmul.f32.gmra.mxu0 %v1949
      %v2008 = vpop.f32.mrf.mxu0
      %v2009 = vadd.f32 0.0, %v2008
      %2010 = vmatmul.f32.gmra.mxu0 %v1951
      %v2011 = vpop.f32.mrf.mxu0
      %v2012 = vadd.f32 0.0, %v2011
      %2013 = vmatmul.f32.gmra.mxu0 %v1953
      %v2014 = vpop.f32.mrf.mxu0
      %v2015 = vadd.f32 0.0, %v2014
      %2016 = vmatmul.f32.gmra.mxu0 %v1955
      %v2017 = vpop.f32.mrf.mxu0
      %v2018 = vadd.f32 0.0, %v2017
      %2019 = vmatmul.f32.gmra.mxu0 %v1957
      %v2020 = vpop.f32.mrf.mxu0
      %v2021 = vadd.f32 0.0, %v2020
      %2022 = vmatmul.f32.gmra.mxu0 %v1959
      %v2023 = vpop.f32.mrf.mxu0
      %v2024 = vadd.f32 0.0, %v2023
      %2025 = vmatmul.f32.gmra.mxu0 %v1961
      %v2026 = vpop.f32.mrf.mxu0
      %v2027 = vadd.f32 0.0, %v2026
      %2028 = vmatmul.f32.gmra.mxu0 %v1963
      %v2029 = vpop.f32.mrf.mxu0
      %v2030 = vadd.f32 0.0, %v2029
      %2031 = vmatmul.f32.gmra.mxu0 %v1965
      %v2032 = vpop.f32.mrf.mxu0
      %v2033 = vadd.f32 0.0, %v2032
      %2034 = vmatmul.f32.gmra.mxu0 %v1967
      %v2035 = vpop.f32.mrf.mxu0
      %v2036 = vadd.f32 0.0, %v2035
      %2037 = vmatmul.f32.gmra.mxu0 %v1969
      %v2038 = vpop.f32.mrf.mxu0
      %v2039 = vadd.f32 0.0, %v2038
      %2040 = vmatmul.f32.gmra.mxu0 %v1971
      %v2041 = vpop.f32.mrf.mxu0
      %v2042 = vadd.f32 0.0, %v2041
      %2043 = vmatmul.f32.gmra.mxu0 %v1973
      %v2044 = vpop.f32.mrf.mxu0
      %v2045 = vadd.f32 0.0, %v2044
      %2046 = vmatmul.f32.gmra.mxu0 %v1975
      %v2047 = vpop.f32.mrf.mxu0
      %v2048 = vadd.f32 0.0, %v2047
      %2049 = vmatmul.f32.gmra.mxu0 %v1977
      %v2050 = vpop.f32.mrf.mxu0
      %v2051 = vadd.f32 0.0, %v2050
      %2052 = vdwg.mxu0
      %v2053 = vadd.f32 %v1826, %v2000
      %v2054 = vadd.f32 %v1827, %v2003
      %v2055 = vadd.f32 %v1828, %v2006
      %v2056 = vadd.f32 %v1829, %v2009
      %v2057 = vadd.f32 %v1830, %v2012
      %v2058 = vadd.f32 %v1831, %v2015
      %v2059 = vadd.f32 %v1832, %v2018
      %v2060 = vadd.f32 %v1833, %v2021
      %v2061 = vadd.f32 %v1834, %v2024
      %v2062 = vadd.f32 %v1835, %v2027
      %v2063 = vadd.f32 %v1836, %v2030
      %v2064 = vadd.f32 %v1837, %v2033
      %v2065 = vadd.f32 %v1838, %v2036
      %v2066 = vadd.f32 %v1839, %v2039
      %v2067 = vadd.f32 %v1840, %v2042
      %v2068 = vadd.f32 %v1841, %v2045
      %v2069 = vadd.f32 %v1842, %v2048
      %v2070 = vadd.f32 %v1843, %v2051
      %v2072 = vperm.slane %v1116, 0
      %v2074 = vadd.f32 %v2053, %v2072
      %v2075 = vadd.f32 %v2054, %v2072
      %v2076 = vadd.f32 %v2055, %v2072
      %v2077 = vadd.f32 %v2056, %v2072
      %v2078 = vadd.f32 %v2057, %v2072
      %v2079 = vadd.f32 %v2058, %v2072
      %v2080 = vadd.f32 %v2059, %v2072
      %v2081 = vadd.f32 %v2060, %v2072
      %v2082 = vadd.f32 %v2061, %v2072
      %v2083 = vadd.f32 %v2062, %v2072
      %v2084 = vadd.f32 %v2063, %v2072
      %v2085 = vadd.f32 %v2064, %v2072
      %v2086 = vadd.f32 %v2065, %v2072
      %v2087 = vadd.f32 %v2066, %v2072
      %v2088 = vadd.f32 %v2067, %v2072
      %v2089 = vadd.f32 %v2068, %v2072
      %v2090 = vadd.f32 %v2069, %v2072
      %v2091 = vadd.f32 %v2070, %v2072
      %v2092 = vmul.f32 %v2074, %v1153
      %v2093 = vmul.f32 %v2075, %v1153
      %v2094 = vmul.f32 %v2076, %v1154
      %v2095 = vmul.f32 %v2077, %v1154
      %v2096 = vmul.f32 %v2078, %v1155
      %v2097 = vmul.f32 %v2079, %v1155
      %v2098 = vmul.f32 %v2080, %v1156
      %v2099 = vmul.f32 %v2081, %v1156
      %v2100 = vmul.f32 %v2082, %v1157
      %v2101 = vmul.f32 %v2083, %v1157
      %v2102 = vmul.f32 %v2084, %v1158
      %v2103 = vmul.f32 %v2085, %v1158
      %v2104 = vmul.f32 %v2086, %v1159
      %v2105 = vmul.f32 %v2087, %v1159
      %v2106 = vmul.f32 %v2088, %v1160
      %v2107 = vmul.f32 %v2089, %v1160
      %v2108 = vmul.f32 %v2090, %v1161
      %v2109 = vmul.f32 %v2091, %v1161
      %v2128 = vrot.slane %v2092, 7
      %v2129 = vrot.slane %v2093, 7
      %v2130 = vsel %vm680, %v2128, %v2129
      %v2131 = vrot.slane %v2094, 7
      %v2132 = vrot.slane %v2095, 7
      %v2133 = vsel %vm680, %v2131, %v2132
      %v2134 = vrot.slane %v2096, 7
      %v2135 = vrot.slane %v2097, 7
      %v2136 = vsel %vm680, %v2134, %v2135
      %v2137 = vrot.slane %v2098, 7
      %v2138 = vrot.slane %v2099, 7
      %v2139 = vsel %vm680, %v2137, %v2138
      %v2140 = vrot.slane %v2100, 7
      %v2141 = vrot.slane %v2101, 7
      %v2142 = vsel %vm680, %v2140, %v2141
      %v2143 = vrot.slane %v2102, 7
      %v2144 = vrot.slane %v2103, 7
      %v2145 = vsel %vm680, %v2143, %v2144
      %v2146 = vrot.slane %v2104, 7
      %v2147 = vrot.slane %v2105, 7
      %v2148 = vsel %vm680, %v2146, %v2147
      %v2149 = vrot.slane %v2106, 7
      %v2150 = vrot.slane %v2107, 7
      %v2151 = vsel %vm680, %v2149, %v2150
      %v2152 = vrot.slane %v2108, 7
      %v2153 = vrot.slane %v2109, 7
      %v2154 = vsel %vm680, %v2152, %v2153
      %v2182 = vsel %vm680, 0.0, %v2128
      %v2183 = vsel %vm680, 0.0, %v2131
      %v2184 = vsel %vm680, 0.0, %v2134
      %v2185 = vsel %vm680, 0.0, %v2137
      %v2186 = vsel %vm680, 0.0, %v2140
      %v2187 = vsel %vm680, 0.0, %v2143
      %v2188 = vsel %vm680, 0.0, %v2146
      %v2189 = vsel %vm680, 0.0, %v2149
      %v2190 = vsel %vm680, 0.0, %v2152
      %v2191 = vsel %vm680, %v2129, 0.0
      %v2192 = vsel %vm680, %v2132, 0.0
      %v2193 = vsel %vm680, %v2135, 0.0
      %v2194 = vsel %vm680, %v2138, 0.0
      %v2195 = vsel %vm680, %v2141, 0.0
      %v2196 = vsel %vm680, %v2144, 0.0
      %v2197 = vsel %vm680, %v2147, 0.0
      %v2198 = vsel %vm680, %v2150, 0.0
      %v2199 = vsel %vm680, %v2153, 0.0
      %s2200 = scalar_lea.vmem %s2, 16
      %v2201 = vld [vmem:[%s2200] sm:$0xf]
      %s2202 = scalar_lea.vmem %s2, 20
      %v2203 = vld [vmem:[%s2202] sm:$0xf]
      %2204 = vst [vmem:[#allocation1] ss:$4 sm:$0xff] %v793
      %s2205 = scalar_lea.vmem [#allocation1], 1
      %2206 = vst [vmem:[%s2205] ss:$4 sm:$0xff] %v794
      %s2207 = scalar_lea.vmem [#allocation1], 2
      %2208 = vst [vmem:[%s2207] ss:$4 sm:$0xff] %v795
      %s2209 = scalar_lea.vmem [#allocation1], 3
      %2210 = vst [vmem:[%s2209] ss:$4 sm:$0xff] %v705
      %s2211 = scalar_lea.vmem [#allocation1], 32
      %2212 = vst [vmem:[%s2211] ss:$4 sm:$0xff] %v796
      %s2213 = scalar_lea.vmem [#allocation1], 33
      %2214 = vst [vmem:[%s2213] ss:$4 sm:$0xff] %v797
      %s2215 = scalar_lea.vmem [#allocation1], 34
      %2216 = vst [vmem:[%s2215] ss:$4 sm:$0xff] %v798
      %s2217 = scalar_lea.vmem [#allocation1], 35
      %2218 = vst [vmem:[%s2217] ss:$4 sm:$0xff] %v708
      %v2219 = vld.sshfl [vmem:[#allocation1] sm:$0xff pattern:$0x73625140]
      %v2220 = vld.sshfl [vmem:[#allocation1 + $0x20] sm:$0xff pattern:$0x73625140]
      %2221 = vst [vmem:[#allocation1] ss:$4 sm:$0xff] %v800
      %2222 = vst [vmem:[%s2205] ss:$4 sm:$0xff] %v801
      %2223 = vst [vmem:[%s2207] ss:$4 sm:$0xff] %v711
      %2224 = vst [vmem:[%s2209] ss:$4 sm:$0xff] %v802
      %2225 = vst [vmem:[%s2211] ss:$4 sm:$0xff] %v803
      %2226 = vst [vmem:[%s2213] ss:$4 sm:$0xff] %v804
      %2227 = vst [vmem:[%s2215] ss:$4 sm:$0xff] %v714
      %2228 = vst [vmem:[%s2217] ss:$4 sm:$0xff] %v805
      %v2229 = vld.sshfl [vmem:[#allocation1] sm:$0xff pattern:$0x73625140]
      %v2230 = vld.sshfl [vmem:[#allocation1 + $0x20] sm:$0xff pattern:$0x73625140]
      %2231 = vst [vmem:[#allocation1] ss:$4 sm:$0xff] %v807
      %2232 = vst [vmem:[%s2205] ss:$4 sm:$0xff] %v717
      %2233 = vst [vmem:[%s2207] ss:$4 sm:$0xff] %v808
      %2234 = vst [vmem:[%s2209] ss:$4 sm:$0xff] %v809
      %2235 = vst [vmem:[%s2211] ss:$4 sm:$0xff] %v810
      %2236 = vst [vmem:[%s2213] ss:$4 sm:$0xff] %v720
      %2237 = vst [vmem:[%s2215] ss:$4 sm:$0xff] %v811
      %2238 = vst [vmem:[%s2217] ss:$4 sm:$0xff] %v812
      %v2239 = vld.sshfl [vmem:[#allocation1] sm:$0xff pattern:$0x73625140]
      %v2240 = vld.sshfl [vmem:[#allocation1 + $0x20] sm:$0xff pattern:$0x73625140]
      %2241 = vst [vmem:[#allocation1] ss:$4 sm:$0xff] %v723
      %2242 = vst [vmem:[%s2205] ss:$4 sm:$0xff] %v814
      %2243 = vst [vmem:[%s2207] ss:$4 sm:$0xff] %v815
      %2244 = vst [vmem:[%s2209] ss:$4 sm:$0xff] %v816
      %2245 = vst [vmem:[%s2211] ss:$4 sm:$0xff] %v726
      %2246 = vst [vmem:[%s2213] ss:$4 sm:$0xff] %v817
      %2247 = vst [vmem:[%s2215] ss:$4 sm:$0xff] %v818
      %2248 = vst [vmem:[%s2217] ss:$4 sm:$0xff] %v819
      %v2249 = vld.sshfl [vmem:[#allocation1] sm:$0xff pattern:$0x73625140]
      %v2250 = vld.sshfl [vmem:[#allocation1 + $0x20] sm:$0xff pattern:$0x73625140]
      %2251 = vst [vmem:[#allocation1] ss:$4 sm:$0xff] %v820
      %2252 = vst [vmem:[%s2205] ss:$4 sm:$0xff] %v821
      %2253 = vst [vmem:[%s2207] ss:$4 sm:$0xff] %v822
      %2254 = vst [vmem:[%s2209] ss:$4 sm:$0xff] %v732
      %2255 = vst [vmem:[%s2211] ss:$4 sm:$0xff] %v823
      %2256 = vst [vmem:[%s2213] ss:$4 sm:$0xff] %v824
      %2257 = vst [vmem:[%s2215] ss:$4 sm:$0xff] %v825
      %2258 = vst [vmem:[%s2217] ss:$4 sm:$0xff] %v735
      %v2259 = vld.sshfl [vmem:[#allocation1] sm:$0xff pattern:$0x73625140]
      %v2260 = vld.sshfl [vmem:[#allocation1 + $0x20] sm:$0xff pattern:$0x73625140]
      %2261 = vst [vmem:[#allocation1] ss:$4 sm:$0xff] %v827
      %2262 = vst [vmem:[%s2205] ss:$4 sm:$0xff] %v828
      %2263 = vst [vmem:[%s2207] ss:$4 sm:$0xff] %v738
      %2264 = vst [vmem:[%s2209] ss:$4 sm:$0xff] %v829
      %2265 = vst [vmem:[%s2211] ss:$4 sm:$0xff] %v830
      %2266 = vst [vmem:[%s2213] ss:$4 sm:$0xff] %v831
      %2267 = vst [vmem:[%s2215] ss:$4 sm:$0xff] %v741
      %2268 = vst [vmem:[%s2217] ss:$4 sm:$0xff] %v832
      %v2269 = vld.sshfl [vmem:[#allocation1] sm:$0xff pattern:$0x73625140]
      %v2270 = vld.sshfl [vmem:[#allocation1 + $0x20] sm:$0xff pattern:$0x73625140]
      %2271 = vst [vmem:[#allocation1] ss:$4 sm:$0xff] %v834
      %2272 = vst [vmem:[%s2205] ss:$4 sm:$0xff] %v744
      %2273 = vst [vmem:[%s2207] ss:$4 sm:$0xff] %v835
      %2274 = vst [vmem:[%s2209] ss:$4 sm:$0xff] %v836
      %2275 = vst [vmem:[%s2211] ss:$4 sm:$0xff] %v837
      %2276 = vst [vmem:[%s2213] ss:$4 sm:$0xff] %v747
      %2277 = vst [vmem:[%s2215] ss:$4 sm:$0xff] %v838
      %2278 = vst [vmem:[%s2217] ss:$4 sm:$0xff] %v839
      %v2279 = vld.sshfl [vmem:[#allocation1] sm:$0xff pattern:$0x73625140]
      %v2280 = vld.sshfl [vmem:[#allocation1 + $0x20] sm:$0xff pattern:$0x73625140]
      %2281 = vst [vmem:[#allocation1] ss:$4 sm:$0xff] %v750
      %2282 = vst [vmem:[%s2205] ss:$4 sm:$0xff] %v841
      %2283 = vst [vmem:[%s2207] ss:$4 sm:$0xff] %v842
      %2284 = vst [vmem:[%s2209] ss:$4 sm:$0xff] %v843
      %2285 = vst [vmem:[%s2211] ss:$4 sm:$0xff] %v753
      %2286 = vst [vmem:[%s2213] ss:$4 sm:$0xff] %v844
      %2287 = vst [vmem:[%s2215] ss:$4 sm:$0xff] %v845
      %2288 = vst [vmem:[%s2217] ss:$4 sm:$0xff] %v846
      %v2289 = vld.sshfl [vmem:[#allocation1] sm:$0xff pattern:$0x73625140]
      %v2290 = vld.sshfl [vmem:[#allocation1 + $0x20] sm:$0xff pattern:$0x73625140]
      %2291 = vst [vmem:[#allocation1] ss:$4 sm:$0xff] %v847
      %2292 = vst [vmem:[%s2205] ss:$4 sm:$0xff] %v848
      %2293 = vst [vmem:[%s2207] ss:$4 sm:$0xff] %v849
      %2294 = vst [vmem:[%s2209] ss:$4 sm:$0xff] %v759
      %2295 = vst [vmem:[%s2211] ss:$4 sm:$0xff] %v850
      %2296 = vst [vmem:[%s2213] ss:$4 sm:$0xff] %v851
      %2297 = vst [vmem:[%s2215] ss:$4 sm:$0xff] %v852
      %2298 = vst [vmem:[%s2217] ss:$4 sm:$0xff] %v762
      %v2299 = vld.sshfl [vmem:[#allocation1] sm:$0xff pattern:$0x73625140]
      %v2300 = vld.sshfl [vmem:[#allocation1 + $0x20] sm:$0xff pattern:$0x73625140]
      %v2301 = vsel %vm1298, %v2219, 0
      %v2303 = vsel %vm1298, %v2220, 0
      %v2305 = vsel %vm1298, %v2229, 0
      %v2307 = vsel %vm1298, %v2230, 0
      %v2309 = vsel %vm1298, %v2239, 0
      %v2311 = vsel %vm1298, %v2240, 0
      %v2313 = vsel %vm1298, %v2249, 0
      %v2315 = vsel %vm1298, %v2250, 0
      %v2317 = vsel %vm1298, %v2259, 0
      %v2319 = vsel %vm1298, %v2260, 0
      %v2321 = vsel %vm1298, %v2269, 0
      %v2323 = vsel %vm1298, %v2270, 0
      %v2325 = vsel %vm1298, %v2279, 0
      %v2327 = vsel %vm1298, %v2280, 0
      %v2329 = vsel %vm1298, %v2289, 0
      %v2331 = vsel %vm1298, %v2290, 0
      %v2333 = vsel %vm1298, %v2299, 0
      %v2335 = vsel %vm1298, %v2300, 0
      %v2338 = vsel %vm1335, %v2203, 0
      %2340 = vmatpush.msra.mxu0 0.0
      %2341 = vmatpush.msra.mxu0 0.0
      %2342 = vmatpush.msra.mxu0 0.0
      %2343 = vmatpush.msra.mxu0 0.0
      %2344 = vmatpush.msra.mxu0 0.0
      %2345 = vmatpush.msra.mxu0 0.0
      %2346 = vmatpush.msra.mxu0 0.0
      %2347 = vmatpush.msra.mxu0 0.0
      %2348 = vmatpush.msra.mxu0 0.0
      %2349 = vmatpush.msra.mxu0 0.0
      %2350 = vmatpush.msra.mxu0 0.0
      %2351 = vmatpush.msra.mxu0 0.0
      %2352 = vmatpush.msra.mxu0 0.0
      %2353 = vmatpush.msra.mxu0 0.0
      %2354 = vmatpush.msra.mxu0 0.0
      %2355 = vmatpush.msra.mxu0 %v2338
      %2356 = vmatmul.f32.gmra.mxu0 %v2301
      %v2357 = vpop.f32.mrf.mxu0
      %v2358 = vadd.f32 0.0, %v2357
      %2359 = vmatmul.f32.gmra.mxu0 %v2303
      %v2360 = vpop.f32.mrf.mxu0
      %v2361 = vadd.f32 0.0, %v2360
      %2362 = vmatmul.f32.gmra.mxu0 %v2305
      %v2363 = vpop.f32.mrf.mxu0
      %v2364 = vadd.f32 0.0, %v2363
      %2365 = vmatmul.f32.gmra.mxu0 %v2307
      %v2366 = vpop.f32.mrf.mxu0
      %v2367 = vadd.f32 0.0, %v2366
      %2368 = vmatmul.f32.gmra.mxu0 %v2309
      %v2369 = vpop.f32.mrf.mxu0
      %v2370 = vadd.f32 0.0, %v2369
      %2371 = vmatmul.f32.gmra.mxu0 %v2311
      %v2372 = vpop.f32.mrf.mxu0
      %v2373 = vadd.f32 0.0, %v2372
      %2374 = vmatmul.f32.gmra.mxu0 %v2313
      %v2375 = vpop.f32.mrf.mxu0
      %v2376 = vadd.f32 0.0, %v2375
      %2377 = vmatmul.f32.gmra.mxu0 %v2315
      %v2378 = vpop.f32.mrf.mxu0
      %v2379 = vadd.f32 0.0, %v2378
      %2380 = vmatmul.f32.gmra.mxu0 %v2317
      %v2381 = vpop.f32.mrf.mxu0
      %v2382 = vadd.f32 0.0, %v2381
      %2383 = vmatmul.f32.gmra.mxu0 %v2319
      %v2384 = vpop.f32.mrf.mxu0
      %v2385 = vadd.f32 0.0, %v2384
      %2386 = vmatmul.f32.gmra.mxu0 %v2321
      %v2387 = vpop.f32.mrf.mxu0
      %v2388 = vadd.f32 0.0, %v2387
      %2389 = vmatmul.f32.gmra.mxu0 %v2323
      %v2390 = vpop.f32.mrf.mxu0
      %v2391 = vadd.f32 0.0, %v2390
      %2392 = vmatmul.f32.gmra.mxu0 %v2325
      %v2393 = vpop.f32.mrf.mxu0
      %v2394 = vadd.f32 0.0, %v2393
      %2395 = vmatmul.f32.gmra.mxu0 %v2327
      %v2396 = vpop.f32.mrf.mxu0
      %v2397 = vadd.f32 0.0, %v2396
      %2398 = vmatmul.f32.gmra.mxu0 %v2329
      %v2399 = vpop.f32.mrf.mxu0
      %v2400 = vadd.f32 0.0, %v2399
      %2401 = vmatmul.f32.gmra.mxu0 %v2331
      %v2402 = vpop.f32.mrf.mxu0
      %v2403 = vadd.f32 0.0, %v2402
      %2404 = vmatmul.f32.gmra.mxu0 %v2333
      %v2405 = vpop.f32.mrf.mxu0
      %v2406 = vadd.f32 0.0, %v2405
      %2407 = vmatmul.f32.gmra.mxu0 %v2335
      %v2408 = vpop.f32.mrf.mxu0
      %v2409 = vadd.f32 0.0, %v2408
      %2410 = vdwg.mxu0
      %2411 = vst [vmem:[#allocation1] ss:$4 sm:$0xff] %v869
      %s2412 = scalar_lea.vmem [#allocation1], 1
      %2413 = vst [vmem:[%s2412] ss:$4 sm:$0xff] %v872
      %s2414 = scalar_lea.vmem [#allocation1], 2
      %2415 = vst [vmem:[%s2414] ss:$4 sm:$0xff] %v875
      %s2416 = scalar_lea.vmem [#allocation1], 3
      %2417 = vst [vmem:[%s2416] ss:$4 sm:$0xff] %v878
      %s2418 = scalar_lea.vmem [#allocation1], 32
      %2419 = vst [vmem:[%s2418] ss:$4 sm:$0xff] %v881
      %s2420 = scalar_lea.vmem [#allocation1], 33
      %2421 = vst [vmem:[%s2420] ss:$4 sm:$0xff] %v884
      %s2422 = scalar_lea.vmem [#allocation1], 34
      %2423 = vst [vmem:[%s2422] ss:$4 sm:$0xff] %v887
      %s2424 = scalar_lea.vmem [#allocation1], 35
      %2425 = vst [vmem:[%s2424] ss:$4 sm:$0xff] %v890
      %v2426 = vld.sshfl [vmem:[#allocation1] sm:$0xff pattern:$0x73625140]
      %v2427 = vld.sshfl [vmem:[#allocation1 + $0x20] sm:$0xff pattern:$0x73625140]
      %2428 = vst [vmem:[#allocation1] ss:$4 sm:$0xff] %v894
      %2429 = vst [vmem:[%s2412] ss:$4 sm:$0xff] %v897
      %2430 = vst [vmem:[%s2414] ss:$4 sm:$0xff] %v900
      %2431 = vst [vmem:[%s2416] ss:$4 sm:$0xff] %v903
      %2432 = vst [vmem:[%s2418] ss:$4 sm:$0xff] %v906
      %2433 = vst [vmem:[%s2420] ss:$4 sm:$0xff] %v909
      %2434 = vst [vmem:[%s2422] ss:$4 sm:$0xff] %v912
      %2435 = vst [vmem:[%s2424] ss:$4 sm:$0xff] %v915
      %v2436 = vld.sshfl [vmem:[#allocation1] sm:$0xff pattern:$0x73625140]
      %v2437 = vld.sshfl [vmem:[#allocation1 + $0x20] sm:$0xff pattern:$0x73625140]
      %2438 = vst [vmem:[#allocation1] ss:$4 sm:$0xff] %v919
      %2439 = vst [vmem:[%s2412] ss:$4 sm:$0xff] %v922
      %2440 = vst [vmem:[%s2414] ss:$4 sm:$0xff] %v925
      %2441 = vst [vmem:[%s2416] ss:$4 sm:$0xff] %v928
      %2442 = vst [vmem:[%s2418] ss:$4 sm:$0xff] %v931
      %2443 = vst [vmem:[%s2420] ss:$4 sm:$0xff] %v934
      %2444 = vst [vmem:[%s2422] ss:$4 sm:$0xff] %v937
      %2445 = vst [vmem:[%s2424] ss:$4 sm:$0xff] %v940
      %v2446 = vld.sshfl [vmem:[#allocation1] sm:$0xff pattern:$0x73625140]
      %v2447 = vld.sshfl [vmem:[#allocation1 + $0x20] sm:$0xff pattern:$0x73625140]
      %2448 = vst [vmem:[#allocation1] ss:$4 sm:$0xff] %v944
      %2449 = vst [vmem:[%s2412] ss:$4 sm:$0xff] %v947
      %2450 = vst [vmem:[%s2414] ss:$4 sm:$0xff] %v950
      %2451 = vst [vmem:[%s2416] ss:$4 sm:$0xff] %v953
      %2452 = vst [vmem:[%s2418] ss:$4 sm:$0xff] %v956
      %2453 = vst [vmem:[%s2420] ss:$4 sm:$0xff] %v959
      %2454 = vst [vmem:[%s2422] ss:$4 sm:$0xff] %v962
      %2455 = vst [vmem:[%s2424] ss:$4 sm:$0xff] %v965
      %v2456 = vld.sshfl [vmem:[#allocation1] sm:$0xff pattern:$0x73625140]
      %v2457 = vld.sshfl [vmem:[#allocation1 + $0x20] sm:$0xff pattern:$0x73625140]
      %2458 = vst [vmem:[#allocation1] ss:$4 sm:$0xff] %v969
      %2459 = vst [vmem:[%s2412] ss:$4 sm:$0xff] %v972
      %2460 = vst [vmem:[%s2414] ss:$4 sm:$0xff] %v975
      %2461 = vst [vmem:[%s2416] ss:$4 sm:$0xff] %v978
      %2462 = vst [vmem:[%s2418] ss:$4 sm:$0xff] %v981
      %2463 = vst [vmem:[%s2420] ss:$4 sm:$0xff] %v984
      %2464 = vst [vmem:[%s2422] ss:$4 sm:$0xff] %v987
      %2465 = vst [vmem:[%s2424] ss:$4 sm:$0xff] %v990
      %v2466 = vld.sshfl [vmem:[#allocation1] sm:$0xff pattern:$0x73625140]
      %v2467 = vld.sshfl [vmem:[#allocation1 + $0x20] sm:$0xff pattern:$0x73625140]
      %2468 = vst [vmem:[#allocation1] ss:$4 sm:$0xff] %v994
      %2469 = vst [vmem:[%s2412] ss:$4 sm:$0xff] %v997
      %2470 = vst [vmem:[%s2414] ss:$4 sm:$0xff] %v1000
      %2471 = vst [vmem:[%s2416] ss:$4 sm:$0xff] %v1003
      %2472 = vst [vmem:[%s2418] ss:$4 sm:$0xff] %v1006
      %2473 = vst [vmem:[%s2420] ss:$4 sm:$0xff] %v1009
      %2474 = vst [vmem:[%s2422] ss:$4 sm:$0xff] %v1012
      %2475 = vst [vmem:[%s2424] ss:$4 sm:$0xff] %v1015
      %v2476 = vld.sshfl [vmem:[#allocation1] sm:$0xff pattern:$0x73625140]
      %v2477 = vld.sshfl [vmem:[#allocation1 + $0x20] sm:$0xff pattern:$0x73625140]
      %2478 = vst [vmem:[#allocation1] ss:$4 sm:$0xff] %v1019
      %2479 = vst [vmem:[%s2412] ss:$4 sm:$0xff] %v1022
      %2480 = vst [vmem:[%s2414] ss:$4 sm:$0xff] %v1025
      %2481 = vst [vmem:[%s2416] ss:$4 sm:$0xff] %v1028
      %2482 = vst [vmem:[%s2418] ss:$4 sm:$0xff] %v1031
      %2483 = vst [vmem:[%s2420] ss:$4 sm:$0xff] %v1034
      %2484 = vst [vmem:[%s2422] ss:$4 sm:$0xff] %v1037
      %2485 = vst [vmem:[%s2424] ss:$4 sm:$0xff] %v1040
      %v2486 = vld.sshfl [vmem:[#allocation1] sm:$0xff pattern:$0x73625140]
      %v2487 = vld.sshfl [vmem:[#allocation1 + $0x20] sm:$0xff pattern:$0x73625140]
      %2488 = vst [vmem:[#allocation1] ss:$4 sm:$0xff] %v1044
      %2489 = vst [vmem:[%s2412] ss:$4 sm:$0xff] %v1047
      %2490 = vst [vmem:[%s2414] ss:$4 sm:$0xff] %v1050
      %2491 = vst [vmem:[%s2416] ss:$4 sm:$0xff] %v1053
      %2492 = vst [vmem:[%s2418] ss:$4 sm:$0xff] %v1056
      %2493 = vst [vmem:[%s2420] ss:$4 sm:$0xff] %v1059
      %2494 = vst [vmem:[%s2422] ss:$4 sm:$0xff] %v1062
      %2495 = vst [vmem:[%s2424] ss:$4 sm:$0xff] %v1065
      %v2496 = vld.sshfl [vmem:[#allocation1] sm:$0xff pattern:$0x73625140]
      %v2497 = vld.sshfl [vmem:[#allocation1 + $0x20] sm:$0xff pattern:$0x73625140]
      %2498 = vst [vmem:[#allocation1] ss:$4 sm:$0xff] %v1069
      %2499 = vst [vmem:[%s2412] ss:$4 sm:$0xff] %v1072
      %2500 = vst [vmem:[%s2414] ss:$4 sm:$0xff] %v1075
      %2501 = vst [vmem:[%s2416] ss:$4 sm:$0xff] %v1078
      %2502 = vst [vmem:[%s2418] ss:$4 sm:$0xff] %v1081
      %2503 = vst [vmem:[%s2420] ss:$4 sm:$0xff] %v1084
      %2504 = vst [vmem:[%s2422] ss:$4 sm:$0xff] %v1087
      %2505 = vst [vmem:[%s2424] ss:$4 sm:$0xff] %v1090
      %v2506 = vld.sshfl [vmem:[#allocation1] sm:$0xff pattern:$0x73625140]
      %v2507 = vld.sshfl [vmem:[#allocation1 + $0x20] sm:$0xff pattern:$0x73625140]
      %v2508 = vsel %vm1298, %v2426, 0
      %v2510 = vsel %vm1298, %v2427, 0
      %v2512 = vsel %vm1298, %v2436, 0
      %v2514 = vsel %vm1298, %v2437, 0
      %v2516 = vsel %vm1298, %v2446, 0
      %v2518 = vsel %vm1298, %v2447, 0
      %v2520 = vsel %vm1298, %v2456, 0
      %v2522 = vsel %vm1298, %v2457, 0
      %v2524 = vsel %vm1298, %v2466, 0
      %v2526 = vsel %vm1298, %v2467, 0
      %v2528 = vsel %vm1298, %v2476, 0
      %v2530 = vsel %vm1298, %v2477, 0
      %v2532 = vsel %vm1298, %v2486, 0
      %v2534 = vsel %vm1298, %v2487, 0
      %v2536 = vsel %vm1298, %v2496, 0
      %v2538 = vsel %vm1298, %v2497, 0
      %v2540 = vsel %vm1298, %v2506, 0
      %v2542 = vsel %vm1298, %v2507, 0
      %v2545 = vsel %vm1335, %v2201, 0
      %2547 = vmatpush.msra.mxu0 0.0
      %2548 = vmatpush.msra.mxu0 0.0
      %2549 = vmatpush.msra.mxu0 0.0
      %2550 = vmatpush.msra.mxu0 0.0
      %2551 = vmatpush.msra.mxu0 0.0
      %2552 = vmatpush.msra.mxu0 0.0
      %2553 = vmatpush.msra.mxu0 0.0
      %2554 = vmatpush.msra.mxu0 0.0
      %2555 = vmatpush.msra.mxu0 0.0
      %2556 = vmatpush.msra.mxu0 0.0
      %2557 = vmatpush.msra.mxu0 0.0
      %2558 = vmatpush.msra.mxu0 0.0
      %2559 = vmatpush.msra.mxu0 0.0
      %2560 = vmatpush.msra.mxu0 0.0
      %2561 = vmatpush.msra.mxu0 0.0
      %2562 = vmatpush.msra.mxu0 %v2545
      %2563 = vmatmul.f32.gmra.mxu0 %v2508
      %v2564 = vpop.f32.mrf.mxu0
      %v2565 = vadd.f32 %v2358, %v2564
      %2566 = vmatmul.f32.gmra.mxu0 %v2510
      %v2567 = vpop.f32.mrf.mxu0
      %v2568 = vadd.f32 %v2361, %v2567
      %2569 = vmatmul.f32.gmra.mxu0 %v2512
      %v2570 = vpop.f32.mrf.mxu0
      %v2571 = vadd.f32 %v2364, %v2570
      %2572 = vmatmul.f32.gmra.mxu0 %v2514
      %v2573 = vpop.f32.mrf.mxu0
      %v2574 = vadd.f32 %v2367, %v2573
      %2575 = vmatmul.f32.gmra.mxu0 %v2516
      %v2576 = vpop.f32.mrf.mxu0
      %v2577 = vadd.f32 %v2370, %v2576
      %2578 = vmatmul.f32.gmra.mxu0 %v2518
      %v2579 = vpop.f32.mrf.mxu0
      %v2580 = vadd.f32 %v2373, %v2579
      %2581 = vmatmul.f32.gmra.mxu0 %v2520
      %v2582 = vpop.f32.mrf.mxu0
      %v2583 = vadd.f32 %v2376, %v2582
      %2584 = vmatmul.f32.gmra.mxu0 %v2522
      %v2585 = vpop.f32.mrf.mxu0
      %v2586 = vadd.f32 %v2379, %v2585
      %2587 = vmatmul.f32.gmra.mxu0 %v2524
      %v2588 = vpop.f32.mrf.mxu0
      %v2589 = vadd.f32 %v2382, %v2588
      %2590 = vmatmul.f32.gmra.mxu0 %v2526
      %v2591 = vpop.f32.mrf.mxu0
      %v2592 = vadd.f32 %v2385, %v2591
      %2593 = vmatmul.f32.gmra.mxu0 %v2528
      %v2594 = vpop.f32.mrf.mxu0
      %v2595 = vadd.f32 %v2388, %v2594
      %2596 = vmatmul.f32.gmra.mxu0 %v2530
      %v2597 = vpop.f32.mrf.mxu0
      %v2598 = vadd.f32 %v2391, %v2597
      %2599 = vmatmul.f32.gmra.mxu0 %v2532
      %v2600 = vpop.f32.mrf.mxu0
      %v2601 = vadd.f32 %v2394, %v2600
      %2602 = vmatmul.f32.gmra.mxu0 %v2534
      %v2603 = vpop.f32.mrf.mxu0
      %v2604 = vadd.f32 %v2397, %v2603
      %2605 = vmatmul.f32.gmra.mxu0 %v2536
      %v2606 = vpop.f32.mrf.mxu0
      %v2607 = vadd.f32 %v2400, %v2606
      %2608 = vmatmul.f32.gmra.mxu0 %v2538
      %v2609 = vpop.f32.mrf.mxu0
      %v2610 = vadd.f32 %v2403, %v2609
      %2611 = vmatmul.f32.gmra.mxu0 %v2540
      %v2612 = vpop.f32.mrf.mxu0
      %v2613 = vadd.f32 %v2406, %v2612
      %2614 = vmatmul.f32.gmra.mxu0 %v2542
      %v2615 = vpop.f32.mrf.mxu0
      %v2616 = vadd.f32 %v2409, %v2615
      %2617 = vdwg.mxu0
      %s2618 = scalar_lea.vmem %s2, 24
      %v2619 = vld [vmem:[%s2618] sm:$0xf]
      %2620 = vst [vmem:[#allocation1] ss:$4 sm:$0xff] %v894
      %s2621 = scalar_lea.vmem [#allocation1], 1
      %2622 = vst [vmem:[%s2621] ss:$4 sm:$0xff] %v897
      %s2623 = scalar_lea.vmem [#allocation1], 2
      %2624 = vst [vmem:[%s2623] ss:$4 sm:$0xff] %v900
      %s2625 = scalar_lea.vmem [#allocation1], 3
      %2626 = vst [vmem:[%s2625] ss:$4 sm:$0xff] %v903
      %s2627 = scalar_lea.vmem [#allocation1], 32
      %2628 = vst [vmem:[%s2627] ss:$4 sm:$0xff] %v906
      %s2629 = scalar_lea.vmem [#allocation1], 33
      %2630 = vst [vmem:[%s2629] ss:$4 sm:$0xff] %v909
      %s2631 = scalar_lea.vmem [#allocation1], 34
      %2632 = vst [vmem:[%s2631] ss:$4 sm:$0xff] %v912
      %s2633 = scalar_lea.vmem [#allocation1], 35
      %2634 = vst [vmem:[%s2633] ss:$4 sm:$0xff] %v915
      %v2635 = vld.sshfl [vmem:[#allocation1] sm:$0xff pattern:$0x73625140]
      %v2636 = vld.sshfl [vmem:[#allocation1 + $0x20] sm:$0xff pattern:$0x73625140]
      %2637 = vst [vmem:[#allocation1] ss:$4 sm:$0xff] %v919
      %2638 = vst [vmem:[%s2621] ss:$4 sm:$0xff] %v922
      %2639 = vst [vmem:[%s2623] ss:$4 sm:$0xff] %v925
      %2640 = vst [vmem:[%s2625] ss:$4 sm:$0xff] %v928
      %2641 = vst [vmem:[%s2627] ss:$4 sm:$0xff] %v931
      %2642 = vst [vmem:[%s2629] ss:$4 sm:$0xff] %v934
      %2643 = vst [vmem:[%s2631] ss:$4 sm:$0xff] %v937
      %2644 = vst [vmem:[%s2633] ss:$4 sm:$0xff] %v940
      %v2645 = vld.sshfl [vmem:[#allocation1] sm:$0xff pattern:$0x73625140]
      %v2646 = vld.sshfl [vmem:[#allocation1 + $0x20] sm:$0xff pattern:$0x73625140]
      %2647 = vst [vmem:[#allocation1] ss:$4 sm:$0xff] %v944
      %2648 = vst [vmem:[%s2621] ss:$4 sm:$0xff] %v947
      %2649 = vst [vmem:[%s2623] ss:$4 sm:$0xff] %v950
      %2650 = vst [vmem:[%s2625] ss:$4 sm:$0xff] %v953
      %2651 = vst [vmem:[%s2627] ss:$4 sm:$0xff] %v956
      %2652 = vst [vmem:[%s2629] ss:$4 sm:$0xff] %v959
      %2653 = vst [vmem:[%s2631] ss:$4 sm:$0xff] %v962
      %2654 = vst [vmem:[%s2633] ss:$4 sm:$0xff] %v965
      %v2655 = vld.sshfl [vmem:[#allocation1] sm:$0xff pattern:$0x73625140]
      %v2656 = vld.sshfl [vmem:[#allocation1 + $0x20] sm:$0xff pattern:$0x73625140]
      %2657 = vst [vmem:[#allocation1] ss:$4 sm:$0xff] %v969
      %2658 = vst [vmem:[%s2621] ss:$4 sm:$0xff] %v972
      %2659 = vst [vmem:[%s2623] ss:$4 sm:$0xff] %v975
      %2660 = vst [vmem:[%s2625] ss:$4 sm:$0xff] %v978
      %2661 = vst [vmem:[%s2627] ss:$4 sm:$0xff] %v981
      %2662 = vst [vmem:[%s2629] ss:$4 sm:$0xff] %v984
      %2663 = vst [vmem:[%s2631] ss:$4 sm:$0xff] %v987
      %2664 = vst [vmem:[%s2633] ss:$4 sm:$0xff] %v990
      %v2665 = vld.sshfl [vmem:[#allocation1] sm:$0xff pattern:$0x73625140]
      %v2666 = vld.sshfl [vmem:[#allocation1 + $0x20] sm:$0xff pattern:$0x73625140]
      %2667 = vst [vmem:[#allocation1] ss:$4 sm:$0xff] %v994
      %2668 = vst [vmem:[%s2621] ss:$4 sm:$0xff] %v997
      %2669 = vst [vmem:[%s2623] ss:$4 sm:$0xff] %v1000
      %2670 = vst [vmem:[%s2625] ss:$4 sm:$0xff] %v1003
      %2671 = vst [vmem:[%s2627] ss:$4 sm:$0xff] %v1006
      %2672 = vst [vmem:[%s2629] ss:$4 sm:$0xff] %v1009
      %2673 = vst [vmem:[%s2631] ss:$4 sm:$0xff] %v1012
      %2674 = vst [vmem:[%s2633] ss:$4 sm:$0xff] %v1015
      %v2675 = vld.sshfl [vmem:[#allocation1] sm:$0xff pattern:$0x73625140]
      %v2676 = vld.sshfl [vmem:[#allocation1 + $0x20] sm:$0xff pattern:$0x73625140]
      %2677 = vst [vmem:[#allocation1] ss:$4 sm:$0xff] %v1019
      %2678 = vst [vmem:[%s2621] ss:$4 sm:$0xff] %v1022
      %2679 = vst [vmem:[%s2623] ss:$4 sm:$0xff] %v1025
      %2680 = vst [vmem:[%s2625] ss:$4 sm:$0xff] %v1028
      %2681 = vst [vmem:[%s2627] ss:$4 sm:$0xff] %v1031
      %2682 = vst [vmem:[%s2629] ss:$4 sm:$0xff] %v1034
      %2683 = vst [vmem:[%s2631] ss:$4 sm:$0xff] %v1037
      %2684 = vst [vmem:[%s2633] ss:$4 sm:$0xff] %v1040
      %v2685 = vld.sshfl [vmem:[#allocation1] sm:$0xff pattern:$0x73625140]
      %v2686 = vld.sshfl [vmem:[#allocation1 + $0x20] sm:$0xff pattern:$0x73625140]
      %2687 = vst [vmem:[#allocation1] ss:$4 sm:$0xff] %v1044
      %2688 = vst [vmem:[%s2621] ss:$4 sm:$0xff] %v1047
      %2689 = vst [vmem:[%s2623] ss:$4 sm:$0xff] %v1050
      %2690 = vst [vmem:[%s2625] ss:$4 sm:$0xff] %v1053
      %2691 = vst [vmem:[%s2627] ss:$4 sm:$0xff] %v1056
      %2692 = vst [vmem:[%s2629] ss:$4 sm:$0xff] %v1059
      %2693 = vst [vmem:[%s2631] ss:$4 sm:$0xff] %v1062
      %2694 = vst [vmem:[%s2633] ss:$4 sm:$0xff] %v1065
      %v2695 = vld.sshfl [vmem:[#allocation1] sm:$0xff pattern:$0x73625140]
      %v2696 = vld.sshfl [vmem:[#allocation1 + $0x20] sm:$0xff pattern:$0x73625140]
      %2697 = vst [vmem:[#allocation1] ss:$4 sm:$0xff] %v1069
      %2698 = vst [vmem:[%s2621] ss:$4 sm:$0xff] %v1072
      %2699 = vst [vmem:[%s2623] ss:$4 sm:$0xff] %v1075
      %2700 = vst [vmem:[%s2625] ss:$4 sm:$0xff] %v1078
      %2701 = vst [vmem:[%s2627] ss:$4 sm:$0xff] %v1081
      %2702 = vst [vmem:[%s2629] ss:$4 sm:$0xff] %v1084
      %2703 = vst [vmem:[%s2631] ss:$4 sm:$0xff] %v1087
      %2704 = vst [vmem:[%s2633] ss:$4 sm:$0xff] %v1090
      %v2705 = vld.sshfl [vmem:[#allocation1] sm:$0xff pattern:$0x73625140]
      %v2706 = vld.sshfl [vmem:[#allocation1 + $0x20] sm:$0xff pattern:$0x73625140]
      %2707 = vst [vmem:[#allocation1] ss:$4 sm:$0xff] %v1094
      %2708 = vst [vmem:[%s2621] ss:$4 sm:$0xff] %v1097
      %2709 = vst [vmem:[%s2623] ss:$4 sm:$0xff] %v1100
      %2710 = vst [vmem:[%s2625] ss:$4 sm:$0xff] %v1103
      %2711 = vst [vmem:[%s2627] ss:$4 sm:$0xff] %v1106
      %2712 = vst [vmem:[%s2629] ss:$4 sm:$0xff] %v1109
      %2713 = vst [vmem:[%s2631] ss:$4 sm:$0xff] %v1112
      %2714 = vst [vmem:[%s2633] ss:$4 sm:$0xff] %v1115
      %v2715 = vld.sshfl [vmem:[#allocation1] sm:$0xff pattern:$0x73625140]
      %v2716 = vld.sshfl [vmem:[#allocation1 + $0x20] sm:$0xff pattern:$0x73625140]
      %v2717 = vsel %vm1298, %v2635, 0
      %v2719 = vsel %vm1298, %v2636, 0
      %v2721 = vsel %vm1298, %v2645, 0
      %v2723 = vsel %vm1298, %v2646, 0
      %v2725 = vsel %vm1298, %v2655, 0
      %v2727 = vsel %vm1298, %v2656, 0
      %v2729 = vsel %vm1298, %v2665, 0
      %v2731 = vsel %vm1298, %v2666, 0
      %v2733 = vsel %vm1298, %v2675, 0
      %v2735 = vsel %vm1298, %v2676, 0
      %v2737 = vsel %vm1298, %v2685, 0
      %v2739 = vsel %vm1298, %v2686, 0
      %v2741 = vsel %vm1298, %v2695, 0
      %v2743 = vsel %vm1298, %v2696, 0
      %v2745 = vsel %vm1298, %v2705, 0
      %v2747 = vsel %vm1298, %v2706, 0
      %v2749 = vsel %vm1298, %v2715, 0
      %v2751 = vsel %vm1298, %v2716, 0
      %v2754 = vsel %vm1335, %v2619, 0
      %2756 = vmatpush.msra.mxu0 0.0
      %2757 = vmatpush.msra.mxu0 0.0
      %2758 = vmatpush.msra.mxu0 0.0
      %2759 = vmatpush.msra.mxu0 0.0
      %2760 = vmatpush.msra.mxu0 0.0
      %2761 = vmatpush.msra.mxu0 0.0
      %2762 = vmatpush.msra.mxu0 0.0
      %2763 = vmatpush.msra.mxu0 0.0
      %2764 = vmatpush.msra.mxu0 0.0
      %2765 = vmatpush.msra.mxu0 0.0
      %2766 = vmatpush.msra.mxu0 0.0
      %2767 = vmatpush.msra.mxu0 0.0
      %2768 = vmatpush.msra.mxu0 0.0
      %2769 = vmatpush.msra.mxu0 0.0
      %2770 = vmatpush.msra.mxu0 0.0
      %2771 = vmatpush.msra.mxu0 %v2754
      %2772 = vmatmul.f32.gmra.mxu0 %v2717
      %v2773 = vpop.f32.mrf.mxu0
      %v2774 = vadd.f32 0.0, %v2773
      %2775 = vmatmul.f32.gmra.mxu0 %v2719
      %v2776 = vpop.f32.mrf.mxu0
      %v2777 = vadd.f32 0.0, %v2776
      %2778 = vmatmul.f32.gmra.mxu0 %v2721
      %v2779 = vpop.f32.mrf.mxu0
      %v2780 = vadd.f32 0.0, %v2779
      %2781 = vmatmul.f32.gmra.mxu0 %v2723
      %v2782 = vpop.f32.mrf.mxu0
      %v2783 = vadd.f32 0.0, %v2782
      %2784 = vmatmul.f32.gmra.mxu0 %v2725
      %v2785 = vpop.f32.mrf.mxu0
      %v2786 = vadd.f32 0.0, %v2785
      %2787 = vmatmul.f32.gmra.mxu0 %v2727
      %v2788 = vpop.f32.mrf.mxu0
      %v2789 = vadd.f32 0.0, %v2788
      %2790 = vmatmul.f32.gmra.mxu0 %v2729
      %v2791 = vpop.f32.mrf.mxu0
      %v2792 = vadd.f32 0.0, %v2791
      %2793 = vmatmul.f32.gmra.mxu0 %v2731
      %v2794 = vpop.f32.mrf.mxu0
      %v2795 = vadd.f32 0.0, %v2794
      %2796 = vmatmul.f32.gmra.mxu0 %v2733
      %v2797 = vpop.f32.mrf.mxu0
      %v2798 = vadd.f32 0.0, %v2797
      %2799 = vmatmul.f32.gmra.mxu0 %v2735
      %v2800 = vpop.f32.mrf.mxu0
      %v2801 = vadd.f32 0.0, %v2800
      %2802 = vmatmul.f32.gmra.mxu0 %v2737
      %v2803 = vpop.f32.mrf.mxu0
      %v2804 = vadd.f32 0.0, %v2803
      %2805 = vmatmul.f32.gmra.mxu0 %v2739
      %v2806 = vpop.f32.mrf.mxu0
      %v2807 = vadd.f32 0.0, %v2806
      %2808 = vmatmul.f32.gmra.mxu0 %v2741
      %v2809 = vpop.f32.mrf.mxu0
      %v2810 = vadd.f32 0.0, %v2809
      %2811 = vmatmul.f32.gmra.mxu0 %v2743
      %v2812 = vpop.f32.mrf.mxu0
      %v2813 = vadd.f32 0.0, %v2812
      %2814 = vmatmul.f32.gmra.mxu0 %v2745
      %v2815 = vpop.f32.mrf.mxu0
      %v2816 = vadd.f32 0.0, %v2815
      %2817 = vmatmul.f32.gmra.mxu0 %v2747
      %v2818 = vpop.f32.mrf.mxu0
      %v2819 = vadd.f32 0.0, %v2818
      %2820 = vmatmul.f32.gmra.mxu0 %v2749
      %v2821 = vpop.f32.mrf.mxu0
      %v2822 = vadd.f32 0.0, %v2821
      %2823 = vmatmul.f32.gmra.mxu0 %v2751
      %v2824 = vpop.f32.mrf.mxu0
      %v2825 = vadd.f32 0.0, %v2824
      %2826 = vdwg.mxu0
      %v2827 = vadd.f32 %v2565, %v2774
      %v2828 = vadd.f32 %v2568, %v2777
      %v2829 = vadd.f32 %v2571, %v2780
      %v2830 = vadd.f32 %v2574, %v2783
      %v2831 = vadd.f32 %v2577, %v2786
      %v2832 = vadd.f32 %v2580, %v2789
      %v2833 = vadd.f32 %v2583, %v2792
      %v2834 = vadd.f32 %v2586, %v2795
      %v2835 = vadd.f32 %v2589, %v2798
      %v2836 = vadd.f32 %v2592, %v2801
      %v2837 = vadd.f32 %v2595, %v2804
      %v2838 = vadd.f32 %v2598, %v2807
      %v2839 = vadd.f32 %v2601, %v2810
      %v2840 = vadd.f32 %v2604, %v2813
      %v2841 = vadd.f32 %v2607, %v2816
      %v2842 = vadd.f32 %v2610, %v2819
      %v2843 = vadd.f32 %v2613, %v2822
      %v2844 = vadd.f32 %v2616, %v2825
      %s2845 = scalar_lea.vmem %s2, 28
      %v2846 = vld [vmem:[%s2845] sm:$0xf]
      %2847 = vst [vmem:[#allocation1] ss:$4 sm:$0xff] %v800
      %s2848 = scalar_lea.vmem [#allocation1], 1
      %2849 = vst [vmem:[%s2848] ss:$4 sm:$0xff] %v801
      %s2850 = scalar_lea.vmem [#allocation1], 2
      %2851 = vst [vmem:[%s2850] ss:$4 sm:$0xff] %v711
      %s2852 = scalar_lea.vmem [#allocation1], 3
      %2853 = vst [vmem:[%s2852] ss:$4 sm:$0xff] %v802
      %s2854 = scalar_lea.vmem [#allocation1], 32
      %2855 = vst [vmem:[%s2854] ss:$4 sm:$0xff] %v803
      %s2856 = scalar_lea.vmem [#allocation1], 33
      %2857 = vst [vmem:[%s2856] ss:$4 sm:$0xff] %v804
      %s2858 = scalar_lea.vmem [#allocation1], 34
      %2859 = vst [vmem:[%s2858] ss:$4 sm:$0xff] %v714
      %s2860 = scalar_lea.vmem [#allocation1], 35
      %2861 = vst [vmem:[%s2860] ss:$4 sm:$0xff] %v805
      %v2862 = vld.sshfl [vmem:[#allocation1] sm:$0xff pattern:$0x73625140]
      %v2863 = vld.sshfl [vmem:[#allocation1 + $0x20] sm:$0xff pattern:$0x73625140]
      %2864 = vst [vmem:[#allocation1] ss:$4 sm:$0xff] %v807
      %2865 = vst [vmem:[%s2848] ss:$4 sm:$0xff] %v717
      %2866 = vst [vmem:[%s2850] ss:$4 sm:$0xff] %v808
      %2867 = vst [vmem:[%s2852] ss:$4 sm:$0xff] %v809
      %2868 = vst [vmem:[%s2854] ss:$4 sm:$0xff] %v810
      %2869 = vst [vmem:[%s2856] ss:$4 sm:$0xff] %v720
      %2870 = vst [vmem:[%s2858] ss:$4 sm:$0xff] %v811
      %2871 = vst [vmem:[%s2860] ss:$4 sm:$0xff] %v812
      %v2872 = vld.sshfl [vmem:[#allocation1] sm:$0xff pattern:$0x73625140]
      %v2873 = vld.sshfl [vmem:[#allocation1 + $0x20] sm:$0xff pattern:$0x73625140]
      %2874 = vst [vmem:[#allocation1] ss:$4 sm:$0xff] %v723
      %2875 = vst [vmem:[%s2848] ss:$4 sm:$0xff] %v814
      %2876 = vst [vmem:[%s2850] ss:$4 sm:$0xff] %v815
      %2877 = vst [vmem:[%s2852] ss:$4 sm:$0xff] %v816
      %2878 = vst [vmem:[%s2854] ss:$4 sm:$0xff] %v726
      %2879 = vst [vmem:[%s2856] ss:$4 sm:$0xff] %v817
      %2880 = vst [vmem:[%s2858] ss:$4 sm:$0xff] %v818
      %2881 = vst [vmem:[%s2860] ss:$4 sm:$0xff] %v819
      %v2882 = vld.sshfl [vmem:[#allocation1] sm:$0xff pattern:$0x73625140]
      %v2883 = vld.sshfl [vmem:[#allocation1 + $0x20] sm:$0xff pattern:$0x73625140]
      %2884 = vst [vmem:[#allocation1] ss:$4 sm:$0xff] %v820
      %2885 = vst [vmem:[%s2848] ss:$4 sm:$0xff] %v821
      %2886 = vst [vmem:[%s2850] ss:$4 sm:$0xff] %v822
      %2887 = vst [vmem:[%s2852] ss:$4 sm:$0xff] %v732
      %2888 = vst [vmem:[%s2854] ss:$4 sm:$0xff] %v823
      %2889 = vst [vmem:[%s2856] ss:$4 sm:$0xff] %v824
      %2890 = vst [vmem:[%s2858] ss:$4 sm:$0xff] %v825
      %2891 = vst [vmem:[%s2860] ss:$4 sm:$0xff] %v735
      %v2892 = vld.sshfl [vmem:[#allocation1] sm:$0xff pattern:$0x73625140]
      %v2893 = vld.sshfl [vmem:[#allocation1 + $0x20] sm:$0xff pattern:$0x73625140]
      %2894 = vst [vmem:[#allocation1] ss:$4 sm:$0xff] %v827
      %2895 = vst [vmem:[%s2848] ss:$4 sm:$0xff] %v828
      %2896 = vst [vmem:[%s2850] ss:$4 sm:$0xff] %v738
      %2897 = vst [vmem:[%s2852] ss:$4 sm:$0xff] %v829
      %2898 = vst [vmem:[%s2854] ss:$4 sm:$0xff] %v830
      %2899 = vst [vmem:[%s2856] ss:$4 sm:$0xff] %v831
      %2900 = vst [vmem:[%s2858] ss:$4 sm:$0xff] %v741
      %2901 = vst [vmem:[%s2860] ss:$4 sm:$0xff] %v832
      %v2902 = vld.sshfl [vmem:[#allocation1] sm:$0xff pattern:$0x73625140]
      %v2903 = vld.sshfl [vmem:[#allocation1 + $0x20] sm:$0xff pattern:$0x73625140]
      %2904 = vst [vmem:[#allocation1] ss:$4 sm:$0xff] %v834
      %2905 = vst [vmem:[%s2848] ss:$4 sm:$0xff] %v744
      %2906 = vst [vmem:[%s2850] ss:$4 sm:$0xff] %v835
      %2907 = vst [vmem:[%s2852] ss:$4 sm:$0xff] %v836
      %2908 = vst [vmem:[%s2854] ss:$4 sm:$0xff] %v837
      %2909 = vst [vmem:[%s2856] ss:$4 sm:$0xff] %v747
      %2910 = vst [vmem:[%s2858] ss:$4 sm:$0xff] %v838
      %2911 = vst [vmem:[%s2860] ss:$4 sm:$0xff] %v839
      %v2912 = vld.sshfl [vmem:[#allocation1] sm:$0xff pattern:$0x73625140]
      %v2913 = vld.sshfl [vmem:[#allocation1 + $0x20] sm:$0xff pattern:$0x73625140]
      %2914 = vst [vmem:[#allocation1] ss:$4 sm:$0xff] %v750
      %2915 = vst [vmem:[%s2848] ss:$4 sm:$0xff] %v841
      %2916 = vst [vmem:[%s2850] ss:$4 sm:$0xff] %v842
      %2917 = vst [vmem:[%s2852] ss:$4 sm:$0xff] %v843
      %2918 = vst [vmem:[%s2854] ss:$4 sm:$0xff] %v753
      %2919 = vst [vmem:[%s2856] ss:$4 sm:$0xff] %v844
      %2920 = vst [vmem:[%s2858] ss:$4 sm:$0xff] %v845
      %2921 = vst [vmem:[%s2860] ss:$4 sm:$0xff] %v846
      %v2922 = vld.sshfl [vmem:[#allocation1] sm:$0xff pattern:$0x73625140]
      %v2923 = vld.sshfl [vmem:[#allocation1 + $0x20] sm:$0xff pattern:$0x73625140]
      %2924 = vst [vmem:[#allocation1] ss:$4 sm:$0xff] %v847
      %2925 = vst [vmem:[%s2848] ss:$4 sm:$0xff] %v848
      %2926 = vst [vmem:[%s2850] ss:$4 sm:$0xff] %v849
      %2927 = vst [vmem:[%s2852] ss:$4 sm:$0xff] %v759
      %2928 = vst [vmem:[%s2854] ss:$4 sm:$0xff] %v850
      %2929 = vst [vmem:[%s2856] ss:$4 sm:$0xff] %v851
      %2930 = vst [vmem:[%s2858] ss:$4 sm:$0xff] %v852
      %2931 = vst [vmem:[%s2860] ss:$4 sm:$0xff] %v762
      %v2932 = vld.sshfl [vmem:[#allocation1] sm:$0xff pattern:$0x73625140]
      %v2933 = vld.sshfl [vmem:[#allocation1 + $0x20] sm:$0xff pattern:$0x73625140]
      %2934 = vst [vmem:[#allocation1] ss:$4 sm:$0xff] %v854
      %2935 = vst [vmem:[%s2848] ss:$4 sm:$0xff] %v855
      %2936 = vst [vmem:[%s2850] ss:$4 sm:$0xff] %v765
      %2937 = vst [vmem:[%s2852] ss:$4 sm:$0xff] %v856
      %2938 = vst [vmem:[%s2854] ss:$4 sm:$0xff] %v857
      %2939 = vst [vmem:[%s2856] ss:$4 sm:$0xff] %v858
      %2940 = vst [vmem:[%s2858] ss:$4 sm:$0xff] %v768
      %2941 = vst [vmem:[%s2860] ss:$4 sm:$0xff] %v859
      %v2942 = vld.sshfl [vmem:[#allocation1] sm:$0xff pattern:$0x73625140]
      %v2943 = vld.sshfl [vmem:[#allocation1 + $0x20] sm:$0xff pattern:$0x73625140]
      %v2944 = vsel %vm1298, %v2862, 0
      %v2946 = vsel %vm1298, %v2863, 0
      %v2948 = vsel %vm1298, %v2872, 0
      %v2950 = vsel %vm1298, %v2873, 0
      %v2952 = vsel %vm1298, %v2882, 0
      %v2954 = vsel %vm1298, %v2883, 0
      %v2956 = vsel %vm1298, %v2892, 0
      %v2958 = vsel %vm1298, %v2893, 0
      %v2960 = vsel %vm1298, %v2902, 0
      %v2962 = vsel %vm1298, %v2903, 0
      %v2964 = vsel %vm1298, %v2912, 0
      %v2966 = vsel %vm1298, %v2913, 0
      %v2968 = vsel %vm1298, %v2922, 0
      %v2970 = vsel %vm1298, %v2923, 0
      %v2972 = vsel %vm1298, %v2932, 0
      %v2974 = vsel %vm1298, %v2933, 0
      %v2976 = vsel %vm1298, %v2942, 0
      %v2978 = vsel %vm1298, %v2943, 0
      %v2981 = vsel %vm1335, %v2846, 0
      %2983 = vmatpush.msra.mxu0 0.0
      %2984 = vmatpush.msra.mxu0 0.0
      %2985 = vmatpush.msra.mxu0 0.0
      %2986 = vmatpush.msra.mxu0 0.0
      %2987 = vmatpush.msra.mxu0 0.0
      %2988 = vmatpush.msra.mxu0 0.0
      %2989 = vmatpush.msra.mxu0 0.0
      %2990 = vmatpush.msra.mxu0 0.0
      %2991 = vmatpush.msra.mxu0 0.0
      %2992 = vmatpush.msra.mxu0 0.0
      %2993 = vmatpush.msra.mxu0 0.0
      %2994 = vmatpush.msra.mxu0 0.0
      %2995 = vmatpush.msra.mxu0 0.0
      %2996 = vmatpush.msra.mxu0 0.0
      %2997 = vmatpush.msra.mxu0 0.0
      %2998 = vmatpush.msra.mxu0 %v2981
      %2999 = vmatmul.f32.gmra.mxu0 %v2944
      %v3000 = vpop.f32.mrf.mxu0
      %v3001 = vadd.f32 0.0, %v3000
      %3002 = vmatmul.f32.gmra.mxu0 %v2946
      %v3003 = vpop.f32.mrf.mxu0
      %v3004 = vadd.f32 0.0, %v3003
      %3005 = vmatmul.f32.gmra.mxu0 %v2948
      %v3006 = vpop.f32.mrf.mxu0
      %v3007 = vadd.f32 0.0, %v3006
      %3008 = vmatmul.f32.gmra.mxu0 %v2950
      %v3009 = vpop.f32.mrf.mxu0
      %v3010 = vadd.f32 0.0, %v3009
      %3011 = vmatmul.f32.gmra.mxu0 %v2952
      %v3012 = vpop.f32.mrf.mxu0
      %v3013 = vadd.f32 0.0, %v3012
      %3014 = vmatmul.f32.gmra.mxu0 %v2954
      %v3015 = vpop.f32.mrf.mxu0
      %v3016 = vadd.f32 0.0, %v3015
      %3017 = vmatmul.f32.gmra.mxu0 %v2956
      %v3018 = vpop.f32.mrf.mxu0
      %v3019 = vadd.f32 0.0, %v3018
      %3020 = vmatmul.f32.gmra.mxu0 %v2958
      %v3021 = vpop.f32.mrf.mxu0
      %v3022 = vadd.f32 0.0, %v3021
      %3023 = vmatmul.f32.gmra.mxu0 %v2960
      %v3024 = vpop.f32.mrf.mxu0
      %v3025 = vadd.f32 0.0, %v3024
      %3026 = vmatmul.f32.gmra.mxu0 %v2962
      %v3027 = vpop.f32.mrf.mxu0
      %v3028 = vadd.f32 0.0, %v3027
      %3029 = vmatmul.f32.gmra.mxu0 %v2964
      %v3030 = vpop.f32.mrf.mxu0
      %v3031 = vadd.f32 0.0, %v3030
      %3032 = vmatmul.f32.gmra.mxu0 %v2966
      %v3033 = vpop.f32.mrf.mxu0
      %v3034 = vadd.f32 0.0, %v3033
      %3035 = vmatmul.f32.gmra.mxu0 %v2968
      %v3036 = vpop.f32.mrf.mxu0
      %v3037 = vadd.f32 0.0, %v3036
      %3038 = vmatmul.f32.gmra.mxu0 %v2970
      %v3039 = vpop.f32.mrf.mxu0
      %v3040 = vadd.f32 0.0, %v3039
      %3041 = vmatmul.f32.gmra.mxu0 %v2972
      %v3042 = vpop.f32.mrf.mxu0
      %v3043 = vadd.f32 0.0, %v3042
      %3044 = vmatmul.f32.gmra.mxu0 %v2974
      %v3045 = vpop.f32.mrf.mxu0
      %v3046 = vadd.f32 0.0, %v3045
      %3047 = vmatmul.f32.gmra.mxu0 %v2976
      %v3048 = vpop.f32.mrf.mxu0
      %v3049 = vadd.f32 0.0, %v3048
      %3050 = vmatmul.f32.gmra.mxu0 %v2978
      %v3051 = vpop.f32.mrf.mxu0
      %v3052 = vadd.f32 0.0, %v3051
      %3053 = vdwg.mxu0
      %v3054 = vadd.f32 %v2827, %v3001
      %v3055 = vadd.f32 %v2828, %v3004
      %v3056 = vadd.f32 %v2829, %v3007
      %v3057 = vadd.f32 %v2830, %v3010
      %v3058 = vadd.f32 %v2831, %v3013
      %v3059 = vadd.f32 %v2832, %v3016
      %v3060 = vadd.f32 %v2833, %v3019
      %v3061 = vadd.f32 %v2834, %v3022
      %v3062 = vadd.f32 %v2835, %v3025
      %v3063 = vadd.f32 %v2836, %v3028
      %v3064 = vadd.f32 %v2837, %v3031
      %v3065 = vadd.f32 %v2838, %v3034
      %v3066 = vadd.f32 %v2839, %v3037
      %v3067 = vadd.f32 %v2840, %v3040
      %v3068 = vadd.f32 %v2841, %v3043
      %v3069 = vadd.f32 %v2842, %v3046
      %v3070 = vadd.f32 %v2843, %v3049
      %v3071 = vadd.f32 %v2844, %v3052
      %v3072 = vadd.f32 %v3054, %v2072
      %v3073 = vadd.f32 %v3055, %v2072
      %v3074 = vadd.f32 %v3056, %v2072
      %v3075 = vadd.f32 %v3057, %v2072
      %v3076 = vadd.f32 %v3058, %v2072
      %v3077 = vadd.f32 %v3059, %v2072
      %v3078 = vadd.f32 %v3060, %v2072
      %v3079 = vadd.f32 %v3061, %v2072
      %v3080 = vadd.f32 %v3062, %v2072
      %v3081 = vadd.f32 %v3063, %v2072
      %v3082 = vadd.f32 %v3064, %v2072
      %v3083 = vadd.f32 %v3065, %v2072
      %v3084 = vadd.f32 %v3066, %v2072
      %v3085 = vadd.f32 %v3067, %v2072
      %v3086 = vadd.f32 %v3068, %v2072
      %v3087 = vadd.f32 %v3069, %v2072
      %v3088 = vadd.f32 %v3070, %v2072
      %v3089 = vadd.f32 %v3071, %v2072
      %v3090 = vmul.f32 %v3072, %v1153
      %v3091 = vmul.f32 %v3073, %v1153
      %v3092 = vmul.f32 %v3074, %v1154
      %v3093 = vmul.f32 %v3075, %v1154
      %v3094 = vmul.f32 %v3076, %v1155
      %v3095 = vmul.f32 %v3077, %v1155
      %v3096 = vmul.f32 %v3078, %v1156
      %v3097 = vmul.f32 %v3079, %v1156
      %v3098 = vmul.f32 %v3080, %v1157
      %v3099 = vmul.f32 %v3081, %v1157
      %v3100 = vmul.f32 %v3082, %v1158
      %v3101 = vmul.f32 %v3083, %v1158
      %v3102 = vmul.f32 %v3084, %v1159
      %v3103 = vmul.f32 %v3085, %v1159
      %v3104 = vmul.f32 %v3086, %v1160
      %v3105 = vmul.f32 %v3087, %v1160
      %v3106 = vmul.f32 %v3088, %v1161
      %v3107 = vmul.f32 %v3089, %v1161
      %v3126 = vrot.slane %v3090, 7
      %v3127 = vrot.slane %v3091, 7
      %v3128 = vsel %vm680, %v3126, %v3127
      %v3129 = vrot.slane %v3092, 7
      %v3130 = vrot.slane %v3093, 7
      %v3131 = vsel %vm680, %v3129, %v3130
      %v3132 = vrot.slane %v3094, 7
      %v3133 = vrot.slane %v3095, 7
      %v3134 = vsel %vm680, %v3132, %v3133
      %v3135 = vrot.slane %v3096, 7
      %v3136 = vrot.slane %v3097, 7
      %v3137 = vsel %vm680, %v3135, %v3136
      %v3138 = vrot.slane %v3098, 7
      %v3139 = vrot.slane %v3099, 7
      %v3140 = vsel %vm680, %v3138, %v3139
      %v3141 = vrot.slane %v3100, 7
      %v3142 = vrot.slane %v3101, 7
      %v3143 = vsel %vm680, %v3141, %v3142
      %v3144 = vrot.slane %v3102, 7
      %v3145 = vrot.slane %v3103, 7
      %v3146 = vsel %vm680, %v3144, %v3145
      %v3147 = vrot.slane %v3104, 7
      %v3148 = vrot.slane %v3105, 7
      %v3149 = vsel %vm680, %v3147, %v3148
      %v3150 = vrot.slane %v3106, 7
      %v3151 = vrot.slane %v3107, 7
      %v3152 = vsel %vm680, %v3150, %v3151
      %v3180 = vsel %vm680, 0.0, %v3126
      %v3181 = vsel %vm680, 0.0, %v3129
      %v3182 = vsel %vm680, 0.0, %v3132
      %v3183 = vsel %vm680, 0.0, %v3135
      %v3184 = vsel %vm680, 0.0, %v3138
      %v3185 = vsel %vm680, 0.0, %v3141
      %v3186 = vsel %vm680, 0.0, %v3144
      %v3187 = vsel %vm680, 0.0, %v3147
      %v3188 = vsel %vm680, 0.0, %v3150
      %v3189 = vsel %vm680, %v3127, 0.0
      %v3190 = vsel %vm680, %v3130, 0.0
      %v3191 = vsel %vm680, %v3133, 0.0
      %v3192 = vsel %vm680, %v3136, 0.0
      %v3193 = vsel %vm680, %v3139, 0.0
      %v3194 = vsel %vm680, %v3142, 0.0
      %v3195 = vsel %vm680, %v3145, 0.0
      %v3196 = vsel %vm680, %v3148, 0.0
      %v3197 = vsel %vm680, %v3151, 0.0
      %s3198 = scalar_lea.vmem %s2, 32
      %v3199 = vld [vmem:[%s3198] sm:$0xf]
      %s3200 = scalar_lea.vmem %s2, 36
      %v3201 = vld [vmem:[%s3200] sm:$0xf]
      %3202 = vst [vmem:[#allocation1] ss:$4 sm:$0xff] %v869
      %s3203 = scalar_lea.vmem [#allocation1], 1
      %3204 = vst [vmem:[%s3203] ss:$4 sm:$0xff] %v872
      %s3205 = scalar_lea.vmem [#allocation1], 2
      %3206 = vst [vmem:[%s3205] ss:$4 sm:$0xff] %v875
      %s3207 = scalar_lea.vmem [#allocation1], 3
      %3208 = vst [vmem:[%s3207] ss:$4 sm:$0xff] %v878
      %s3209 = scalar_lea.vmem [#allocation1], 32
      %3210 = vst [vmem:[%s3209] ss:$4 sm:$0xff] %v881
      %s3211 = scalar_lea.vmem [#allocation1], 33
      %3212 = vst [vmem:[%s3211] ss:$4 sm:$0xff] %v884
      %s3213 = scalar_lea.vmem [#allocation1], 34
      %3214 = vst [vmem:[%s3213] ss:$4 sm:$0xff] %v887
      %s3215 = scalar_lea.vmem [#allocation1], 35
      %3216 = vst [vmem:[%s3215] ss:$4 sm:$0xff] %v890
      %v3217 = vld.sshfl [vmem:[#allocation1] sm:$0xff pattern:$0x73625140]
      %v3218 = vld.sshfl [vmem:[#allocation1 + $0x20] sm:$0xff pattern:$0x73625140]
      %3219 = vst [vmem:[#allocation1] ss:$4 sm:$0xff] %v894
      %3220 = vst [vmem:[%s3203] ss:$4 sm:$0xff] %v897
      %3221 = vst [vmem:[%s3205] ss:$4 sm:$0xff] %v900
      %3222 = vst [vmem:[%s3207] ss:$4 sm:$0xff] %v903
      %3223 = vst [vmem:[%s3209] ss:$4 sm:$0xff] %v906
      %3224 = vst [vmem:[%s3211] ss:$4 sm:$0xff] %v909
      %3225 = vst [vmem:[%s3213] ss:$4 sm:$0xff] %v912
      %3226 = vst [vmem:[%s3215] ss:$4 sm:$0xff] %v915
      %v3227 = vld.sshfl [vmem:[#allocation1] sm:$0xff pattern:$0x73625140]
      %v3228 = vld.sshfl [vmem:[#allocation1 + $0x20] sm:$0xff pattern:$0x73625140]
      %3229 = vst [vmem:[#allocation1] ss:$4 sm:$0xff] %v919
      %3230 = vst [vmem:[%s3203] ss:$4 sm:$0xff] %v922
      %3231 = vst [vmem:[%s3205] ss:$4 sm:$0xff] %v925
      %3232 = vst [vmem:[%s3207] ss:$4 sm:$0xff] %v928
      %3233 = vst [vmem:[%s3209] ss:$4 sm:$0xff] %v931
      %3234 = vst [vmem:[%s3211] ss:$4 sm:$0xff] %v934
      %3235 = vst [vmem:[%s3213] ss:$4 sm:$0xff] %v937
      %3236 = vst [vmem:[%s3215] ss:$4 sm:$0xff] %v940
      %v3237 = vld.sshfl [vmem:[#allocation1] sm:$0xff pattern:$0x73625140]
      %v3238 = vld.sshfl [vmem:[#allocation1 + $0x20] sm:$0xff pattern:$0x73625140]
      %3239 = vst [vmem:[#allocation1] ss:$4 sm:$0xff] %v944
      %3240 = vst [vmem:[%s3203] ss:$4 sm:$0xff] %v947
      %3241 = vst [vmem:[%s3205] ss:$4 sm:$0xff] %v950
      %3242 = vst [vmem:[%s3207] ss:$4 sm:$0xff] %v953
      %3243 = vst [vmem:[%s3209] ss:$4 sm:$0xff] %v956
      %3244 = vst [vmem:[%s3211] ss:$4 sm:$0xff] %v959
      %3245 = vst [vmem:[%s3213] ss:$4 sm:$0xff] %v962
      %3246 = vst [vmem:[%s3215] ss:$4 sm:$0xff] %v965
      %v3247 = vld.sshfl [vmem:[#allocation1] sm:$0xff pattern:$0x73625140]
      %v3248 = vld.sshfl [vmem:[#allocation1 + $0x20] sm:$0xff pattern:$0x73625140]
      %3249 = vst [vmem:[#allocation1] ss:$4 sm:$0xff] %v969
      %3250 = vst [vmem:[%s3203] ss:$4 sm:$0xff] %v972
      %3251 = vst [vmem:[%s3205] ss:$4 sm:$0xff] %v975
      %3252 = vst [vmem:[%s3207] ss:$4 sm:$0xff] %v978
      %3253 = vst [vmem:[%s3209] ss:$4 sm:$0xff] %v981
      %3254 = vst [vmem:[%s3211] ss:$4 sm:$0xff] %v984
      %3255 = vst [vmem:[%s3213] ss:$4 sm:$0xff] %v987
      %3256 = vst [vmem:[%s3215] ss:$4 sm:$0xff] %v990
      %v3257 = vld.sshfl [vmem:[#allocation1] sm:$0xff pattern:$0x73625140]
      %v3258 = vld.sshfl [vmem:[#allocation1 + $0x20] sm:$0xff pattern:$0x73625140]
      %3259 = vst [vmem:[#allocation1] ss:$4 sm:$0xff] %v994
      %3260 = vst [vmem:[%s3203] ss:$4 sm:$0xff] %v997
      %3261 = vst [vmem:[%s3205] ss:$4 sm:$0xff] %v1000
      %3262 = vst [vmem:[%s3207] ss:$4 sm:$0xff] %v1003
      %3263 = vst [vmem:[%s3209] ss:$4 sm:$0xff] %v1006
      %3264 = vst [vmem:[%s3211] ss:$4 sm:$0xff] %v1009
      %3265 = vst [vmem:[%s3213] ss:$4 sm:$0xff] %v1012
      %3266 = vst [vmem:[%s3215] ss:$4 sm:$0xff] %v1015
      %v3267 = vld.sshfl [vmem:[#allocation1] sm:$0xff pattern:$0x73625140]
      %v3268 = vld.sshfl [vmem:[#allocation1 + $0x20] sm:$0xff pattern:$0x73625140]
      %3269 = vst [vmem:[#allocation1] ss:$4 sm:$0xff] %v1019
      %3270 = vst [vmem:[%s3203] ss:$4 sm:$0xff] %v1022
      %3271 = vst [vmem:[%s3205] ss:$4 sm:$0xff] %v1025
      %3272 = vst [vmem:[%s3207] ss:$4 sm:$0xff] %v1028
      %3273 = vst [vmem:[%s3209] ss:$4 sm:$0xff] %v1031
      %3274 = vst [vmem:[%s3211] ss:$4 sm:$0xff] %v1034
      %3275 = vst [vmem:[%s3213] ss:$4 sm:$0xff] %v1037
      %3276 = vst [vmem:[%s3215] ss:$4 sm:$0xff] %v1040
      %v3277 = vld.sshfl [vmem:[#allocation1] sm:$0xff pattern:$0x73625140]
      %v3278 = vld.sshfl [vmem:[#allocation1 + $0x20] sm:$0xff pattern:$0x73625140]
      %3279 = vst [vmem:[#allocation1] ss:$4 sm:$0xff] %v1044
      %3280 = vst [vmem:[%s3203] ss:$4 sm:$0xff] %v1047
      %3281 = vst [vmem:[%s3205] ss:$4 sm:$0xff] %v1050
      %3282 = vst [vmem:[%s3207] ss:$4 sm:$0xff] %v1053
      %3283 = vst [vmem:[%s3209] ss:$4 sm:$0xff] %v1056
      %3284 = vst [vmem:[%s3211] ss:$4 sm:$0xff] %v1059
      %3285 = vst [vmem:[%s3213] ss:$4 sm:$0xff] %v1062
      %3286 = vst [vmem:[%s3215] ss:$4 sm:$0xff] %v1065
      %v3287 = vld.sshfl [vmem:[#allocation1] sm:$0xff pattern:$0x73625140]
      %v3288 = vld.sshfl [vmem:[#allocation1 + $0x20] sm:$0xff pattern:$0x73625140]
      %3289 = vst [vmem:[#allocation1] ss:$4 sm:$0xff] %v1069
      %3290 = vst [vmem:[%s3203] ss:$4 sm:$0xff] %v1072
      %3291 = vst [vmem:[%s3205] ss:$4 sm:$0xff] %v1075
      %3292 = vst [vmem:[%s3207] ss:$4 sm:$0xff] %v1078
      %3293 = vst [vmem:[%s3209] ss:$4 sm:$0xff] %v1081
      %3294 = vst [vmem:[%s3211] ss:$4 sm:$0xff] %v1084
      %3295 = vst [vmem:[%s3213] ss:$4 sm:$0xff] %v1087
      %3296 = vst [vmem:[%s3215] ss:$4 sm:$0xff] %v1090
      %v3297 = vld.sshfl [vmem:[#allocation1] sm:$0xff pattern:$0x73625140]
      %v3298 = vld.sshfl [vmem:[#allocation1 + $0x20] sm:$0xff pattern:$0x73625140]
      %v3299 = vsel %vm1298, %v3217, 0
      %v3301 = vsel %vm1298, %v3218, 0
      %v3303 = vsel %vm1298, %v3227, 0
      %v3305 = vsel %vm1298, %v3228, 0
      %v3307 = vsel %vm1298, %v3237, 0
      %v3309 = vsel %vm1298, %v3238, 0
      %v3311 = vsel %vm1298, %v3247, 0
      %v3313 = vsel %vm1298, %v3248, 0
      %v3315 = vsel %vm1298, %v3257, 0
      %v3317 = vsel %vm1298, %v3258, 0
      %v3319 = vsel %vm1298, %v3267, 0
      %v3321 = vsel %vm1298, %v3268, 0
      %v3323 = vsel %vm1298, %v3277, 0
      %v3325 = vsel %vm1298, %v3278, 0
      %v3327 = vsel %vm1298, %v3287, 0
      %v3329 = vsel %vm1298, %v3288, 0
      %v3331 = vsel %vm1298, %v3297, 0
      %v3333 = vsel %vm1298, %v3298, 0
      %v3336 = vsel %vm1335, %v3201, 0
      %3338 = vmatpush.msra.mxu0 0.0
      %3339 = vmatpush.msra.mxu0 0.0
      %3340 = vmatpush.msra.mxu0 0.0
      %3341 = vmatpush.msra.mxu0 0.0
      %3342 = vmatpush.msra.mxu0 0.0
      %3343 = vmatpush.msra.mxu0 0.0
      %3344 = vmatpush.msra.mxu0 0.0
      %3345 = vmatpush.msra.mxu0 0.0
      %3346 = vmatpush.msra.mxu0 0.0
      %3347 = vmatpush.msra.mxu0 0.0
      %3348 = vmatpush.msra.mxu0 0.0
      %3349 = vmatpush.msra.mxu0 0.0
      %3350 = vmatpush.msra.mxu0 0.0
      %3351 = vmatpush.msra.mxu0 0.0
      %3352 = vmatpush.msra.mxu0 0.0
      %3353 = vmatpush.msra.mxu0 %v3336
      %3354 = vmatmul.f32.gmra.mxu0 %v3299
      %v3355 = vpop.f32.mrf.mxu0
      %v3356 = vadd.f32 0.0, %v3355
      %3357 = vmatmul.f32.gmra.mxu0 %v3301
      %v3358 = vpop.f32.mrf.mxu0
      %v3359 = vadd.f32 0.0, %v3358
      %3360 = vmatmul.f32.gmra.mxu0 %v3303
      %v3361 = vpop.f32.mrf.mxu0
      %v3362 = vadd.f32 0.0, %v3361
      %3363 = vmatmul.f32.gmra.mxu0 %v3305
      %v3364 = vpop.f32.mrf.mxu0
      %v3365 = vadd.f32 0.0, %v3364
      %3366 = vmatmul.f32.gmra.mxu0 %v3307
      %v3367 = vpop.f32.mrf.mxu0
      %v3368 = vadd.f32 0.0, %v3367
      %3369 = vmatmul.f32.gmra.mxu0 %v3309
      %v3370 = vpop.f32.mrf.mxu0
      %v3371 = vadd.f32 0.0, %v3370
      %3372 = vmatmul.f32.gmra.mxu0 %v3311
      %v3373 = vpop.f32.mrf.mxu0
      %v3374 = vadd.f32 0.0, %v3373
      %3375 = vmatmul.f32.gmra.mxu0 %v3313
      %v3376 = vpop.f32.mrf.mxu0
      %v3377 = vadd.f32 0.0, %v3376
      %3378 = vmatmul.f32.gmra.mxu0 %v3315
      %v3379 = vpop.f32.mrf.mxu0
      %v3380 = vadd.f32 0.0, %v3379
      %3381 = vmatmul.f32.gmra.mxu0 %v3317
      %v3382 = vpop.f32.mrf.mxu0
      %v3383 = vadd.f32 0.0, %v3382
      %3384 = vmatmul.f32.gmra.mxu0 %v3319
      %v3385 = vpop.f32.mrf.mxu0
      %v3386 = vadd.f32 0.0, %v3385
      %3387 = vmatmul.f32.gmra.mxu0 %v3321
      %v3388 = vpop.f32.mrf.mxu0
      %v3389 = vadd.f32 0.0, %v3388
      %3390 = vmatmul.f32.gmra.mxu0 %v3323
      %v3391 = vpop.f32.mrf.mxu0
      %v3392 = vadd.f32 0.0, %v3391
      %3393 = vmatmul.f32.gmra.mxu0 %v3325
      %v3394 = vpop.f32.mrf.mxu0
      %v3395 = vadd.f32 0.0, %v3394
      %3396 = vmatmul.f32.gmra.mxu0 %v3327
      %v3397 = vpop.f32.mrf.mxu0
      %v3398 = vadd.f32 0.0, %v3397
      %3399 = vmatmul.f32.gmra.mxu0 %v3329
      %v3400 = vpop.f32.mrf.mxu0
      %v3401 = vadd.f32 0.0, %v3400
      %3402 = vmatmul.f32.gmra.mxu0 %v3331
      %v3403 = vpop.f32.mrf.mxu0
      %v3404 = vadd.f32 0.0, %v3403
      %3405 = vmatmul.f32.gmra.mxu0 %v3333
      %v3406 = vpop.f32.mrf.mxu0
      %v3407 = vadd.f32 0.0, %v3406
      %3408 = vdwg.mxu0
      %3409 = vst [vmem:[#allocation1] ss:$4 sm:$0xff] %v702
      %s3410 = scalar_lea.vmem [#allocation1], 1
      %3411 = vst [vmem:[%s3410] ss:$4 sm:$0xff] %v793
      %s3412 = scalar_lea.vmem [#allocation1], 2
      %3413 = vst [vmem:[%s3412] ss:$4 sm:$0xff] %v794
      %s3414 = scalar_lea.vmem [#allocation1], 3
      %3415 = vst [vmem:[%s3414] ss:$4 sm:$0xff] %v795
      %s3416 = scalar_lea.vmem [#allocation1], 32
      %3417 = vst [vmem:[%s3416] ss:$4 sm:$0xff] %v705
      %s3418 = scalar_lea.vmem [#allocation1], 33
      %3419 = vst [vmem:[%s3418] ss:$4 sm:$0xff] %v796
      %s3420 = scalar_lea.vmem [#allocation1], 34
      %3421 = vst [vmem:[%s3420] ss:$4 sm:$0xff] %v797
      %s3422 = scalar_lea.vmem [#allocation1], 35
      %3423 = vst [vmem:[%s3422] ss:$4 sm:$0xff] %v798
      %v3424 = vld.sshfl [vmem:[#allocation1] sm:$0xff pattern:$0x73625140]
      %v3425 = vld.sshfl [vmem:[#allocation1 + $0x20] sm:$0xff pattern:$0x73625140]
      %3426 = vst [vmem:[#allocation1] ss:$4 sm:$0xff] %v799
      %3427 = vst [vmem:[%s3410] ss:$4 sm:$0xff] %v800
      %3428 = vst [vmem:[%s3412] ss:$4 sm:$0xff] %v801
      %3429 = vst [vmem:[%s3414] ss:$4 sm:$0xff] %v711
      %3430 = vst [vmem:[%s3416] ss:$4 sm:$0xff] %v802
      %3431 = vst [vmem:[%s3418] ss:$4 sm:$0xff] %v803
      %3432 = vst [vmem:[%s3420] ss:$4 sm:$0xff] %v804
      %3433 = vst [vmem:[%s3422] ss:$4 sm:$0xff] %v714
      %v3434 = vld.sshfl [vmem:[#allocation1] sm:$0xff pattern:$0x73625140]
      %v3435 = vld.sshfl [vmem:[#allocation1 + $0x20] sm:$0xff pattern:$0x73625140]
      %3436 = vst [vmem:[#allocation1] ss:$4 sm:$0xff] %v806
      %3437 = vst [vmem:[%s3410] ss:$4 sm:$0xff] %v807
      %3438 = vst [vmem:[%s3412] ss:$4 sm:$0xff] %v717
      %3439 = vst [vmem:[%s3414] ss:$4 sm:$0xff] %v808
      %3440 = vst [vmem:[%s3416] ss:$4 sm:$0xff] %v809
      %3441 = vst [vmem:[%s3418] ss:$4 sm:$0xff] %v810
      %3442 = vst [vmem:[%s3420] ss:$4 sm:$0xff] %v720
      %3443 = vst [vmem:[%s3422] ss:$4 sm:$0xff] %v811
      %v3444 = vld.sshfl [vmem:[#allocation1] sm:$0xff pattern:$0x73625140]
      %v3445 = vld.sshfl [vmem:[#allocation1 + $0x20] sm:$0xff pattern:$0x73625140]
      %3446 = vst [vmem:[#allocation1] ss:$4 sm:$0xff] %v813
      %3447 = vst [vmem:[%s3410] ss:$4 sm:$0xff] %v723
      %3448 = vst [vmem:[%s3412] ss:$4 sm:$0xff] %v814
      %3449 = vst [vmem:[%s3414] ss:$4 sm:$0xff] %v815
      %3450 = vst [vmem:[%s3416] ss:$4 sm:$0xff] %v816
      %3451 = vst [vmem:[%s3418] ss:$4 sm:$0xff] %v726
      %3452 = vst [vmem:[%s3420] ss:$4 sm:$0xff] %v817
      %3453 = vst [vmem:[%s3422] ss:$4 sm:$0xff] %v818
      %v3454 = vld.sshfl [vmem:[#allocation1] sm:$0xff pattern:$0x73625140]
      %v3455 = vld.sshfl [vmem:[#allocation1 + $0x20] sm:$0xff pattern:$0x73625140]
      %3456 = vst [vmem:[#allocation1] ss:$4 sm:$0xff] %v729
      %3457 = vst [vmem:[%s3410] ss:$4 sm:$0xff] %v820
      %3458 = vst [vmem:[%s3412] ss:$4 sm:$0xff] %v821
      %3459 = vst [vmem:[%s3414] ss:$4 sm:$0xff] %v822
      %3460 = vst [vmem:[%s3416] ss:$4 sm:$0xff] %v732
      %3461 = vst [vmem:[%s3418] ss:$4 sm:$0xff] %v823
      %3462 = vst [vmem:[%s3420] ss:$4 sm:$0xff] %v824
      %3463 = vst [vmem:[%s3422] ss:$4 sm:$0xff] %v825
      %v3464 = vld.sshfl [vmem:[#allocation1] sm:$0xff pattern:$0x73625140]
      %v3465 = vld.sshfl [vmem:[#allocation1 + $0x20] sm:$0xff pattern:$0x73625140]
      %3466 = vst [vmem:[#allocation1] ss:$4 sm:$0xff] %v826
      %3467 = vst [vmem:[%s3410] ss:$4 sm:$0xff] %v827
      %3468 = vst [vmem:[%s3412] ss:$4 sm:$0xff] %v828
      %3469 = vst [vmem:[%s3414] ss:$4 sm:$0xff] %v738
      %3470 = vst [vmem:[%s3416] ss:$4 sm:$0xff] %v829
      %3471 = vst [vmem:[%s3418] ss:$4 sm:$0xff] %v830
      %3472 = vst [vmem:[%s3420] ss:$4 sm:$0xff] %v831
      %3473 = vst [vmem:[%s3422] ss:$4 sm:$0xff] %v741
      %v3474 = vld.sshfl [vmem:[#allocation1] sm:$0xff pattern:$0x73625140]
      %v3475 = vld.sshfl [vmem:[#allocation1 + $0x20] sm:$0xff pattern:$0x73625140]
      %3476 = vst [vmem:[#allocation1] ss:$4 sm:$0xff] %v833
      %3477 = vst [vmem:[%s3410] ss:$4 sm:$0xff] %v834
      %3478 = vst [vmem:[%s3412] ss:$4 sm:$0xff] %v744
      %3479 = vst [vmem:[%s3414] ss:$4 sm:$0xff] %v835
      %3480 = vst [vmem:[%s3416] ss:$4 sm:$0xff] %v836
      %3481 = vst [vmem:[%s3418] ss:$4 sm:$0xff] %v837
      %3482 = vst [vmem:[%s3420] ss:$4 sm:$0xff] %v747
      %3483 = vst [vmem:[%s3422] ss:$4 sm:$0xff] %v838
      %v3484 = vld.sshfl [vmem:[#allocation1] sm:$0xff pattern:$0x73625140]
      %v3485 = vld.sshfl [vmem:[#allocation1 + $0x20] sm:$0xff pattern:$0x73625140]
      %3486 = vst [vmem:[#allocation1] ss:$4 sm:$0xff] %v840
      %3487 = vst [vmem:[%s3410] ss:$4 sm:$0xff] %v750
      %3488 = vst [vmem:[%s3412] ss:$4 sm:$0xff] %v841
      %3489 = vst [vmem:[%s3414] ss:$4 sm:$0xff] %v842
      %3490 = vst [vmem:[%s3416] ss:$4 sm:$0xff] %v843
      %3491 = vst [vmem:[%s3418] ss:$4 sm:$0xff] %v753
      %3492 = vst [vmem:[%s3420] ss:$4 sm:$0xff] %v844
      %3493 = vst [vmem:[%s3422] ss:$4 sm:$0xff] %v845
      %v3494 = vld.sshfl [vmem:[#allocation1] sm:$0xff pattern:$0x73625140]
      %v3495 = vld.sshfl [vmem:[#allocation1 + $0x20] sm:$0xff pattern:$0x73625140]
      %3496 = vst [vmem:[#allocation1] ss:$4 sm:$0xff] %v756
      %3497 = vst [vmem:[%s3410] ss:$4 sm:$0xff] %v847
      %3498 = vst [vmem:[%s3412] ss:$4 sm:$0xff] %v848
      %3499 = vst [vmem:[%s3414] ss:$4 sm:$0xff] %v849
      %3500 = vst [vmem:[%s3416] ss:$4 sm:$0xff] %v759
      %3501 = vst [vmem:[%s3418] ss:$4 sm:$0xff] %v850
      %3502 = vst [vmem:[%s3420] ss:$4 sm:$0xff] %v851
      %3503 = vst [vmem:[%s3422] ss:$4 sm:$0xff] %v852
      %v3504 = vld.sshfl [vmem:[#allocation1] sm:$0xff pattern:$0x73625140]
      %v3505 = vld.sshfl [vmem:[#allocation1 + $0x20] sm:$0xff pattern:$0x73625140]
      %v3506 = vsel %vm1298, %v3424, 0
      %v3508 = vsel %vm1298, %v3425, 0
      %v3510 = vsel %vm1298, %v3434, 0
      %v3512 = vsel %vm1298, %v3435, 0
      %v3514 = vsel %vm1298, %v3444, 0
      %v3516 = vsel %vm1298, %v3445, 0
      %v3518 = vsel %vm1298, %v3454, 0
      %v3520 = vsel %vm1298, %v3455, 0
      %v3522 = vsel %vm1298, %v3464, 0
      %v3524 = vsel %vm1298, %v3465, 0
      %v3526 = vsel %vm1298, %v3474, 0
      %v3528 = vsel %vm1298, %v3475, 0
      %v3530 = vsel %vm1298, %v3484, 0
      %v3532 = vsel %vm1298, %v3485, 0
      %v3534 = vsel %vm1298, %v3494, 0
      %v3536 = vsel %vm1298, %v3495, 0
      %v3538 = vsel %vm1298, %v3504, 0
      %v3540 = vsel %vm1298, %v3505, 0
      %v3543 = vsel %vm1335, %v3199, 0
      %3545 = vmatpush.msra.mxu0 0.0
      %3546 = vmatpush.msra.mxu0 0.0
      %3547 = vmatpush.msra.mxu0 0.0
      %3548 = vmatpush.msra.mxu0 0.0
      %3549 = vmatpush.msra.mxu0 0.0
      %3550 = vmatpush.msra.mxu0 0.0
      %3551 = vmatpush.msra.mxu0 0.0
      %3552 = vmatpush.msra.mxu0 0.0
      %3553 = vmatpush.msra.mxu0 0.0
      %3554 = vmatpush.msra.mxu0 0.0
      %3555 = vmatpush.msra.mxu0 0.0
      %3556 = vmatpush.msra.mxu0 0.0
      %3557 = vmatpush.msra.mxu0 0.0
      %3558 = vmatpush.msra.mxu0 0.0
      %3559 = vmatpush.msra.mxu0 0.0
      %3560 = vmatpush.msra.mxu0 %v3543
      %3561 = vmatmul.f32.gmra.mxu0 %v3506
      %v3562 = vpop.f32.mrf.mxu0
      %v3563 = vadd.f32 %v3356, %v3562
      %3564 = vmatmul.f32.gmra.mxu0 %v3508
      %v3565 = vpop.f32.mrf.mxu0
      %v3566 = vadd.f32 %v3359, %v3565
      %3567 = vmatmul.f32.gmra.mxu0 %v3510
      %v3568 = vpop.f32.mrf.mxu0
      %v3569 = vadd.f32 %v3362, %v3568
      %3570 = vmatmul.f32.gmra.mxu0 %v3512
      %v3571 = vpop.f32.mrf.mxu0
      %v3572 = vadd.f32 %v3365, %v3571
      %3573 = vmatmul.f32.gmra.mxu0 %v3514
      %v3574 = vpop.f32.mrf.mxu0
      %v3575 = vadd.f32 %v3368, %v3574
      %3576 = vmatmul.f32.gmra.mxu0 %v3516
      %v3577 = vpop.f32.mrf.mxu0
      %v3578 = vadd.f32 %v3371, %v3577
      %3579 = vmatmul.f32.gmra.mxu0 %v3518
      %v3580 = vpop.f32.mrf.mxu0
      %v3581 = vadd.f32 %v3374, %v3580
      %3582 = vmatmul.f32.gmra.mxu0 %v3520
      %v3583 = vpop.f32.mrf.mxu0
      %v3584 = vadd.f32 %v3377, %v3583
      %3585 = vmatmul.f32.gmra.mxu0 %v3522
      %v3586 = vpop.f32.mrf.mxu0
      %v3587 = vadd.f32 %v3380, %v3586
      %3588 = vmatmul.f32.gmra.mxu0 %v3524
      %v3589 = vpop.f32.mrf.mxu0
      %v3590 = vadd.f32 %v3383, %v3589
      %3591 = vmatmul.f32.gmra.mxu0 %v3526
      %v3592 = vpop.f32.mrf.mxu0
      %v3593 = vadd.f32 %v3386, %v3592
      %3594 = vmatmul.f32.gmra.mxu0 %v3528
      %v3595 = vpop.f32.mrf.mxu0
      %v3596 = vadd.f32 %v3389, %v3595
      %3597 = vmatmul.f32.gmra.mxu0 %v3530
      %v3598 = vpop.f32.mrf.mxu0
      %v3599 = vadd.f32 %v3392, %v3598
      %3600 = vmatmul.f32.gmra.mxu0 %v3532
      %v3601 = vpop.f32.mrf.mxu0
      %v3602 = vadd.f32 %v3395, %v3601
      %3603 = vmatmul.f32.gmra.mxu0 %v3534
      %v3604 = vpop.f32.mrf.mxu0
      %v3605 = vadd.f32 %v3398, %v3604
      %3606 = vmatmul.f32.gmra.mxu0 %v3536
      %v3607 = vpop.f32.mrf.mxu0
      %v3608 = vadd.f32 %v3401, %v3607
      %3609 = vmatmul.f32.gmra.mxu0 %v3538
      %v3610 = vpop.f32.mrf.mxu0
      %v3611 = vadd.f32 %v3404, %v3610
      %3612 = vmatmul.f32.gmra.mxu0 %v3540
      %v3613 = vpop.f32.mrf.mxu0
      %v3614 = vadd.f32 %v3407, %v3613
      %3615 = vdwg.mxu0
      %s3616 = scalar_lea.vmem %s2, 40
      %v3617 = vld [vmem:[%s3616] sm:$0xf]
      %3618 = vst [vmem:[#allocation1] ss:$4 sm:$0xff] %v799
      %s3619 = scalar_lea.vmem [#allocation1], 1
      %3620 = vst [vmem:[%s3619] ss:$4 sm:$0xff] %v800
      %s3621 = scalar_lea.vmem [#allocation1], 2
      %3622 = vst [vmem:[%s3621] ss:$4 sm:$0xff] %v801
      %s3623 = scalar_lea.vmem [#allocation1], 3
      %3624 = vst [vmem:[%s3623] ss:$4 sm:$0xff] %v711
      %s3625 = scalar_lea.vmem [#allocation1], 32
      %3626 = vst [vmem:[%s3625] ss:$4 sm:$0xff] %v802
      %s3627 = scalar_lea.vmem [#allocation1], 33
      %3628 = vst [vmem:[%s3627] ss:$4 sm:$0xff] %v803
      %s3629 = scalar_lea.vmem [#allocation1], 34
      %3630 = vst [vmem:[%s3629] ss:$4 sm:$0xff] %v804
      %s3631 = scalar_lea.vmem [#allocation1], 35
      %3632 = vst [vmem:[%s3631] ss:$4 sm:$0xff] %v714
      %v3633 = vld.sshfl [vmem:[#allocation1] sm:$0xff pattern:$0x73625140]
      %v3634 = vld.sshfl [vmem:[#allocation1 + $0x20] sm:$0xff pattern:$0x73625140]
      %3635 = vst [vmem:[#allocation1] ss:$4 sm:$0xff] %v806
      %3636 = vst [vmem:[%s3619] ss:$4 sm:$0xff] %v807
      %3637 = vst [vmem:[%s3621] ss:$4 sm:$0xff] %v717
      %3638 = vst [vmem:[%s3623] ss:$4 sm:$0xff] %v808
      %3639 = vst [vmem:[%s3625] ss:$4 sm:$0xff] %v809
      %3640 = vst [vmem:[%s3627] ss:$4 sm:$0xff] %v810
      %3641 = vst [vmem:[%s3629] ss:$4 sm:$0xff] %v720
      %3642 = vst [vmem:[%s3631] ss:$4 sm:$0xff] %v811
      %v3643 = vld.sshfl [vmem:[#allocation1] sm:$0xff pattern:$0x73625140]
      %v3644 = vld.sshfl [vmem:[#allocation1 + $0x20] sm:$0xff pattern:$0x73625140]
      %3645 = vst [vmem:[#allocation1] ss:$4 sm:$0xff] %v813
      %3646 = vst [vmem:[%s3619] ss:$4 sm:$0xff] %v723
      %3647 = vst [vmem:[%s3621] ss:$4 sm:$0xff] %v814
      %3648 = vst [vmem:[%s3623] ss:$4 sm:$0xff] %v815
      %3649 = vst [vmem:[%s3625] ss:$4 sm:$0xff] %v816
      %3650 = vst [vmem:[%s3627] ss:$4 sm:$0xff] %v726
      %3651 = vst [vmem:[%s3629] ss:$4 sm:$0xff] %v817
      %3652 = vst [vmem:[%s3631] ss:$4 sm:$0xff] %v818
      %v3653 = vld.sshfl [vmem:[#allocation1] sm:$0xff pattern:$0x73625140]
      %v3654 = vld.sshfl [vmem:[#allocation1 + $0x20] sm:$0xff pattern:$0x73625140]
      %3655 = vst [vmem:[#allocation1] ss:$4 sm:$0xff] %v729
      %3656 = vst [vmem:[%s3619] ss:$4 sm:$0xff] %v820
      %3657 = vst [vmem:[%s3621] ss:$4 sm:$0xff] %v821
      %3658 = vst [vmem:[%s3623] ss:$4 sm:$0xff] %v822
      %3659 = vst [vmem:[%s3625] ss:$4 sm:$0xff] %v732
      %3660 = vst [vmem:[%s3627] ss:$4 sm:$0xff] %v823
      %3661 = vst [vmem:[%s3629] ss:$4 sm:$0xff] %v824
      %3662 = vst [vmem:[%s3631] ss:$4 sm:$0xff] %v825
      %v3663 = vld.sshfl [vmem:[#allocation1] sm:$0xff pattern:$0x73625140]
      %v3664 = vld.sshfl [vmem:[#allocation1 + $0x20] sm:$0xff pattern:$0x73625140]
      %3665 = vst [vmem:[#allocation1] ss:$4 sm:$0xff] %v826
      %3666 = vst [vmem:[%s3619] ss:$4 sm:$0xff] %v827
      %3667 = vst [vmem:[%s3621] ss:$4 sm:$0xff] %v828
      %3668 = vst [vmem:[%s3623] ss:$4 sm:$0xff] %v738
      %3669 = vst [vmem:[%s3625] ss:$4 sm:$0xff] %v829
      %3670 = vst [vmem:[%s3627] ss:$4 sm:$0xff] %v830
      %3671 = vst [vmem:[%s3629] ss:$4 sm:$0xff] %v831
      %3672 = vst [vmem:[%s3631] ss:$4 sm:$0xff] %v741
      %v3673 = vld.sshfl [vmem:[#allocation1] sm:$0xff pattern:$0x73625140]
      %v3674 = vld.sshfl [vmem:[#allocation1 + $0x20] sm:$0xff pattern:$0x73625140]
      %3675 = vst [vmem:[#allocation1] ss:$4 sm:$0xff] %v833
      %3676 = vst [vmem:[%s3619] ss:$4 sm:$0xff] %v834
      %3677 = vst [vmem:[%s3621] ss:$4 sm:$0xff] %v744
      %3678 = vst [vmem:[%s3623] ss:$4 sm:$0xff] %v835
      %3679 = vst [vmem:[%s3625] ss:$4 sm:$0xff] %v836
      %3680 = vst [vmem:[%s3627] ss:$4 sm:$0xff] %v837
      %3681 = vst [vmem:[%s3629] ss:$4 sm:$0xff] %v747
      %3682 = vst [vmem:[%s3631] ss:$4 sm:$0xff] %v838
      %v3683 = vld.sshfl [vmem:[#allocation1] sm:$0xff pattern:$0x73625140]
      %v3684 = vld.sshfl [vmem:[#allocation1 + $0x20] sm:$0xff pattern:$0x73625140]
      %3685 = vst [vmem:[#allocation1] ss:$4 sm:$0xff] %v840
      %3686 = vst [vmem:[%s3619] ss:$4 sm:$0xff] %v750
      %3687 = vst [vmem:[%s3621] ss:$4 sm:$0xff] %v841
      %3688 = vst [vmem:[%s3623] ss:$4 sm:$0xff] %v842
      %3689 = vst [vmem:[%s3625] ss:$4 sm:$0xff] %v843
      %3690 = vst [vmem:[%s3627] ss:$4 sm:$0xff] %v753
      %3691 = vst [vmem:[%s3629] ss:$4 sm:$0xff] %v844
      %3692 = vst [vmem:[%s3631] ss:$4 sm:$0xff] %v845
      %v3693 = vld.sshfl [vmem:[#allocation1] sm:$0xff pattern:$0x73625140]
      %v3694 = vld.sshfl [vmem:[#allocation1 + $0x20] sm:$0xff pattern:$0x73625140]
      %3695 = vst [vmem:[#allocation1] ss:$4 sm:$0xff] %v756
      %3696 = vst [vmem:[%s3619] ss:$4 sm:$0xff] %v847
      %3697 = vst [vmem:[%s3621] ss:$4 sm:$0xff] %v848
      %3698 = vst [vmem:[%s3623] ss:$4 sm:$0xff] %v849
      %3699 = vst [vmem:[%s3625] ss:$4 sm:$0xff] %v759
      %3700 = vst [vmem:[%s3627] ss:$4 sm:$0xff] %v850
      %3701 = vst [vmem:[%s3629] ss:$4 sm:$0xff] %v851
      %3702 = vst [vmem:[%s3631] ss:$4 sm:$0xff] %v852
      %v3703 = vld.sshfl [vmem:[#allocation1] sm:$0xff pattern:$0x73625140]
      %v3704 = vld.sshfl [vmem:[#allocation1 + $0x20] sm:$0xff pattern:$0x73625140]
      %3705 = vst [vmem:[#allocation1] ss:$4 sm:$0xff] %v853
      %3706 = vst [vmem:[%s3619] ss:$4 sm:$0xff] %v854
      %3707 = vst [vmem:[%s3621] ss:$4 sm:$0xff] %v855
      %3708 = vst [vmem:[%s3623] ss:$4 sm:$0xff] %v765
      %3709 = vst [vmem:[%s3625] ss:$4 sm:$0xff] %v856
      %3710 = vst [vmem:[%s3627] ss:$4 sm:$0xff] %v857
      %3711 = vst [vmem:[%s3629] ss:$4 sm:$0xff] %v858
      %3712 = vst [vmem:[%s3631] ss:$4 sm:$0xff] %v768
      %v3713 = vld.sshfl [vmem:[#allocation1] sm:$0xff pattern:$0x73625140]
      %v3714 = vld.sshfl [vmem:[#allocation1 + $0x20] sm:$0xff pattern:$0x73625140]
      %v3715 = vsel %vm1298, %v3633, 0
      %v3717 = vsel %vm1298, %v3634, 0
      %v3719 = vsel %vm1298, %v3643, 0
      %v3721 = vsel %vm1298, %v3644, 0
      %v3723 = vsel %vm1298, %v3653, 0
      %v3725 = vsel %vm1298, %v3654, 0
      %v3727 = vsel %vm1298, %v3663, 0
      %v3729 = vsel %vm1298, %v3664, 0
      %v3731 = vsel %vm1298, %v3673, 0
      %v3733 = vsel %vm1298, %v3674, 0
      %v3735 = vsel %vm1298, %v3683, 0
      %v3737 = vsel %vm1298, %v3684, 0
      %v3739 = vsel %vm1298, %v3693, 0
      %v3741 = vsel %vm1298, %v3694, 0
      %v3743 = vsel %vm1298, %v3703, 0
      %v3745 = vsel %vm1298, %v3704, 0
      %v3747 = vsel %vm1298, %v3713, 0
      %v3749 = vsel %vm1298, %v3714, 0
      %v3752 = vsel %vm1335, %v3617, 0
      %3754 = vmatpush.msra.mxu0 0.0
      %3755 = vmatpush.msra.mxu0 0.0
      %3756 = vmatpush.msra.mxu0 0.0
      %3757 = vmatpush.msra.mxu0 0.0
      %3758 = vmatpush.msra.mxu0 0.0
      %3759 = vmatpush.msra.mxu0 0.0
      %3760 = vmatpush.msra.mxu0 0.0
      %3761 = vmatpush.msra.mxu0 0.0
      %3762 = vmatpush.msra.mxu0 0.0
      %3763 = vmatpush.msra.mxu0 0.0
      %3764 = vmatpush.msra.mxu0 0.0
      %3765 = vmatpush.msra.mxu0 0.0
      %3766 = vmatpush.msra.mxu0 0.0
      %3767 = vmatpush.msra.mxu0 0.0
      %3768 = vmatpush.msra.mxu0 0.0
      %3769 = vmatpush.msra.mxu0 %v3752
      %3770 = vmatmul.f32.gmra.mxu0 %v3715
      %v3771 = vpop.f32.mrf.mxu0
      %v3772 = vadd.f32 0.0, %v3771
      %3773 = vmatmul.f32.gmra.mxu0 %v3717
      %v3774 = vpop.f32.mrf.mxu0
      %v3775 = vadd.f32 0.0, %v3774
      %3776 = vmatmul.f32.gmra.mxu0 %v3719
      %v3777 = vpop.f32.mrf.mxu0
      %v3778 = vadd.f32 0.0, %v3777
      %3779 = vmatmul.f32.gmra.mxu0 %v3721
      %v3780 = vpop.f32.mrf.mxu0
      %v3781 = vadd.f32 0.0, %v3780
      %3782 = vmatmul.f32.gmra.mxu0 %v3723
      %v3783 = vpop.f32.mrf.mxu0
      %v3784 = vadd.f32 0.0, %v3783
      %3785 = vmatmul.f32.gmra.mxu0 %v3725
      %v3786 = vpop.f32.mrf.mxu0
      %v3787 = vadd.f32 0.0, %v3786
      %3788 = vmatmul.f32.gmra.mxu0 %v3727
      %v3789 = vpop.f32.mrf.mxu0
      %v3790 = vadd.f32 0.0, %v3789
      %3791 = vmatmul.f32.gmra.mxu0 %v3729
      %v3792 = vpop.f32.mrf.mxu0
      %v3793 = vadd.f32 0.0, %v3792
      %3794 = vmatmul.f32.gmra.mxu0 %v3731
      %v3795 = vpop.f32.mrf.mxu0
      %v3796 = vadd.f32 0.0, %v3795
      %3797 = vmatmul.f32.gmra.mxu0 %v3733
      %v3798 = vpop.f32.mrf.mxu0
      %v3799 = vadd.f32 0.0, %v3798
      %3800 = vmatmul.f32.gmra.mxu0 %v3735
      %v3801 = vpop.f32.mrf.mxu0
      %v3802 = vadd.f32 0.0, %v3801
      %3803 = vmatmul.f32.gmra.mxu0 %v3737
      %v3804 = vpop.f32.mrf.mxu0
      %v3805 = vadd.f32 0.0, %v3804
      %3806 = vmatmul.f32.gmra.mxu0 %v3739
      %v3807 = vpop.f32.mrf.mxu0
      %v3808 = vadd.f32 0.0, %v3807
      %3809 = vmatmul.f32.gmra.mxu0 %v3741
      %v3810 = vpop.f32.mrf.mxu0
      %v3811 = vadd.f32 0.0, %v3810
      %3812 = vmatmul.f32.gmra.mxu0 %v3743
      %v3813 = vpop.f32.mrf.mxu0
      %v3814 = vadd.f32 0.0, %v3813
      %3815 = vmatmul.f32.gmra.mxu0 %v3745
      %v3816 = vpop.f32.mrf.mxu0
      %v3817 = vadd.f32 0.0, %v3816
      %3818 = vmatmul.f32.gmra.mxu0 %v3747
      %v3819 = vpop.f32.mrf.mxu0
      %v3820 = vadd.f32 0.0, %v3819
      %3821 = vmatmul.f32.gmra.mxu0 %v3749
      %v3822 = vpop.f32.mrf.mxu0
      %v3823 = vadd.f32 0.0, %v3822
      %3824 = vdwg.mxu0
      %v3825 = vadd.f32 %v3563, %v3772
      %v3826 = vadd.f32 %v3566, %v3775
      %v3827 = vadd.f32 %v3569, %v3778
      %v3828 = vadd.f32 %v3572, %v3781
      %v3829 = vadd.f32 %v3575, %v3784
      %v3830 = vadd.f32 %v3578, %v3787
      %v3831 = vadd.f32 %v3581, %v3790
      %v3832 = vadd.f32 %v3584, %v3793
      %v3833 = vadd.f32 %v3587, %v3796
      %v3834 = vadd.f32 %v3590, %v3799
      %v3835 = vadd.f32 %v3593, %v3802
      %v3836 = vadd.f32 %v3596, %v3805
      %v3837 = vadd.f32 %v3599, %v3808
      %v3838 = vadd.f32 %v3602, %v3811
      %v3839 = vadd.f32 %v3605, %v3814
      %v3840 = vadd.f32 %v3608, %v3817
      %v3841 = vadd.f32 %v3611, %v3820
      %v3842 = vadd.f32 %v3614, %v3823
      %s3843 = scalar_lea.vmem %s2, 44
      %v3844 = vld [vmem:[%s3843] sm:$0xf]
      %3845 = vst [vmem:[#allocation1] ss:$4 sm:$0xff] %v894
      %s3846 = scalar_lea.vmem [#allocation1], 1
      %3847 = vst [vmem:[%s3846] ss:$4 sm:$0xff] %v897
      %s3848 = scalar_lea.vmem [#allocation1], 2
      %3849 = vst [vmem:[%s3848] ss:$4 sm:$0xff] %v900
      %s3850 = scalar_lea.vmem [#allocation1], 3
      %3851 = vst [vmem:[%s3850] ss:$4 sm:$0xff] %v903
      %s3852 = scalar_lea.vmem [#allocation1], 32
      %3853 = vst [vmem:[%s3852] ss:$4 sm:$0xff] %v906
      %s3854 = scalar_lea.vmem [#allocation1], 33
      %3855 = vst [vmem:[%s3854] ss:$4 sm:$0xff] %v909
      %s3856 = scalar_lea.vmem [#allocation1], 34
      %3857 = vst [vmem:[%s3856] ss:$4 sm:$0xff] %v912
      %s3858 = scalar_lea.vmem [#allocation1], 35
      %3859 = vst [vmem:[%s3858] ss:$4 sm:$0xff] %v915
      %v3860 = vld.sshfl [vmem:[#allocation1] sm:$0xff pattern:$0x73625140]
      %v3861 = vld.sshfl [vmem:[#allocation1 + $0x20] sm:$0xff pattern:$0x73625140]
      %3862 = vst [vmem:[#allocation1] ss:$4 sm:$0xff] %v919
      %3863 = vst [vmem:[%s3846] ss:$4 sm:$0xff] %v922
      %3864 = vst [vmem:[%s3848] ss:$4 sm:$0xff] %v925
      %3865 = vst [vmem:[%s3850] ss:$4 sm:$0xff] %v928
      %3866 = vst [vmem:[%s3852] ss:$4 sm:$0xff] %v931
      %3867 = vst [vmem:[%s3854] ss:$4 sm:$0xff] %v934
      %3868 = vst [vmem:[%s3856] ss:$4 sm:$0xff] %v937
      %3869 = vst [vmem:[%s3858] ss:$4 sm:$0xff] %v940
      %v3870 = vld.sshfl [vmem:[#allocation1] sm:$0xff pattern:$0x73625140]
      %v3871 = vld.sshfl [vmem:[#allocation1 + $0x20] sm:$0xff pattern:$0x73625140]
      %3872 = vst [vmem:[#allocation1] ss:$4 sm:$0xff] %v944
      %3873 = vst [vmem:[%s3846] ss:$4 sm:$0xff] %v947
      %3874 = vst [vmem:[%s3848] ss:$4 sm:$0xff] %v950
      %3875 = vst [vmem:[%s3850] ss:$4 sm:$0xff] %v953
      %3876 = vst [vmem:[%s3852] ss:$4 sm:$0xff] %v956
      %3877 = vst [vmem:[%s3854] ss:$4 sm:$0xff] %v959
      %3878 = vst [vmem:[%s3856] ss:$4 sm:$0xff] %v962
      %3879 = vst [vmem:[%s3858] ss:$4 sm:$0xff] %v965
      %v3880 = vld.sshfl [vmem:[#allocation1] sm:$0xff pattern:$0x73625140]
      %v3881 = vld.sshfl [vmem:[#allocation1 + $0x20] sm:$0xff pattern:$0x73625140]
      %3882 = vst [vmem:[#allocation1] ss:$4 sm:$0xff] %v969
      %3883 = vst [vmem:[%s3846] ss:$4 sm:$0xff] %v972
      %3884 = vst [vmem:[%s3848] ss:$4 sm:$0xff] %v975
      %3885 = vst [vmem:[%s3850] ss:$4 sm:$0xff] %v978
      %3886 = vst [vmem:[%s3852] ss:$4 sm:$0xff] %v981
      %3887 = vst [vmem:[%s3854] ss:$4 sm:$0xff] %v984
      %3888 = vst [vmem:[%s3856] ss:$4 sm:$0xff] %v987
      %3889 = vst [vmem:[%s3858] ss:$4 sm:$0xff] %v990
      %v3890 = vld.sshfl [vmem:[#allocation1] sm:$0xff pattern:$0x73625140]
      %v3891 = vld.sshfl [vmem:[#allocation1 + $0x20] sm:$0xff pattern:$0x73625140]
      %3892 = vst [vmem:[#allocation1] ss:$4 sm:$0xff] %v994
      %3893 = vst [vmem:[%s3846] ss:$4 sm:$0xff] %v997
      %3894 = vst [vmem:[%s3848] ss:$4 sm:$0xff] %v1000
      %3895 = vst [vmem:[%s3850] ss:$4 sm:$0xff] %v1003
      %3896 = vst [vmem:[%s3852] ss:$4 sm:$0xff] %v1006
      %3897 = vst [vmem:[%s3854] ss:$4 sm:$0xff] %v1009
      %3898 = vst [vmem:[%s3856] ss:$4 sm:$0xff] %v1012
      %3899 = vst [vmem:[%s3858] ss:$4 sm:$0xff] %v1015
      %v3900 = vld.sshfl [vmem:[#allocation1] sm:$0xff pattern:$0x73625140]
      %v3901 = vld.sshfl [vmem:[#allocation1 + $0x20] sm:$0xff pattern:$0x73625140]
      %3902 = vst [vmem:[#allocation1] ss:$4 sm:$0xff] %v1019
      %3903 = vst [vmem:[%s3846] ss:$4 sm:$0xff] %v1022
      %3904 = vst [vmem:[%s3848] ss:$4 sm:$0xff] %v1025
      %3905 = vst [vmem:[%s3850] ss:$4 sm:$0xff] %v1028
      %3906 = vst [vmem:[%s3852] ss:$4 sm:$0xff] %v1031
      %3907 = vst [vmem:[%s3854] ss:$4 sm:$0xff] %v1034
      %3908 = vst [vmem:[%s3856] ss:$4 sm:$0xff] %v1037
      %3909 = vst [vmem:[%s3858] ss:$4 sm:$0xff] %v1040
      %v3910 = vld.sshfl [vmem:[#allocation1] sm:$0xff pattern:$0x73625140]
      %v3911 = vld.sshfl [vmem:[#allocation1 + $0x20] sm:$0xff pattern:$0x73625140]
      %3912 = vst [vmem:[#allocation1] ss:$4 sm:$0xff] %v1044
      %3913 = vst [vmem:[%s3846] ss:$4 sm:$0xff] %v1047
      %3914 = vst [vmem:[%s3848] ss:$4 sm:$0xff] %v1050
      %3915 = vst [vmem:[%s3850] ss:$4 sm:$0xff] %v1053
      %3916 = vst [vmem:[%s3852] ss:$4 sm:$0xff] %v1056
      %3917 = vst [vmem:[%s3854] ss:$4 sm:$0xff] %v1059
      %3918 = vst [vmem:[%s3856] ss:$4 sm:$0xff] %v1062
      %3919 = vst [vmem:[%s3858] ss:$4 sm:$0xff] %v1065
      %v3920 = vld.sshfl [vmem:[#allocation1] sm:$0xff pattern:$0x73625140]
      %v3921 = vld.sshfl [vmem:[#allocation1 + $0x20] sm:$0xff pattern:$0x73625140]
      %3922 = vst [vmem:[#allocation1] ss:$4 sm:$0xff] %v1069
      %3923 = vst [vmem:[%s3846] ss:$4 sm:$0xff] %v1072
      %3924 = vst [vmem:[%s3848] ss:$4 sm:$0xff] %v1075
      %3925 = vst [vmem:[%s3850] ss:$4 sm:$0xff] %v1078
      %3926 = vst [vmem:[%s3852] ss:$4 sm:$0xff] %v1081
      %3927 = vst [vmem:[%s3854] ss:$4 sm:$0xff] %v1084
      %3928 = vst [vmem:[%s3856] ss:$4 sm:$0xff] %v1087
      %3929 = vst [vmem:[%s3858] ss:$4 sm:$0xff] %v1090
      %v3930 = vld.sshfl [vmem:[#allocation1] sm:$0xff pattern:$0x73625140]
      %v3931 = vld.sshfl [vmem:[#allocation1 + $0x20] sm:$0xff pattern:$0x73625140]
      %3932 = vst [vmem:[#allocation1] ss:$4 sm:$0xff] %v1094
      %3933 = vst [vmem:[%s3846] ss:$4 sm:$0xff] %v1097
      %3934 = vst [vmem:[%s3848] ss:$4 sm:$0xff] %v1100
      %3935 = vst [vmem:[%s3850] ss:$4 sm:$0xff] %v1103
      %3936 = vst [vmem:[%s3852] ss:$4 sm:$0xff] %v1106
      %3937 = vst [vmem:[%s3854] ss:$4 sm:$0xff] %v1109
      %3938 = vst [vmem:[%s3856] ss:$4 sm:$0xff] %v1112
      %3939 = vst [vmem:[%s3858] ss:$4 sm:$0xff] %v1115
      %v3940 = vld.sshfl [vmem:[#allocation1] sm:$0xff pattern:$0x73625140]
      %v3941 = vld.sshfl [vmem:[#allocation1 + $0x20] sm:$0xff pattern:$0x73625140]
      %v3942 = vsel %vm1298, %v3860, 0
      %v3944 = vsel %vm1298, %v3861, 0
      %v3946 = vsel %vm1298, %v3870, 0
      %v3948 = vsel %vm1298, %v3871, 0
      %v3950 = vsel %vm1298, %v3880, 0
      %v3952 = vsel %vm1298, %v3881, 0
      %v3954 = vsel %vm1298, %v3890, 0
      %v3956 = vsel %vm1298, %v3891, 0
      %v3958 = vsel %vm1298, %v3900, 0
      %v3960 = vsel %vm1298, %v3901, 0
      %v3962 = vsel %vm1298, %v3910, 0
      %v3964 = vsel %vm1298, %v3911, 0
      %v3966 = vsel %vm1298, %v3920, 0
      %v3968 = vsel %vm1298, %v3921, 0
      %v3970 = vsel %vm1298, %v3930, 0
      %v3972 = vsel %vm1298, %v3931, 0
      %v3974 = vsel %vm1298, %v3940, 0
      %v3976 = vsel %vm1298, %v3941, 0
      %v3979 = vsel %vm1335, %v3844, 0
      %3981 = vmatpush.msra.mxu0 0.0
      %3982 = vmatpush.msra.mxu0 0.0
      %3983 = vmatpush.msra.mxu0 0.0
      %3984 = vmatpush.msra.mxu0 0.0
      %3985 = vmatpush.msra.mxu0 0.0
      %3986 = vmatpush.msra.mxu0 0.0
      %3987 = vmatpush.msra.mxu0 0.0
      %3988 = vmatpush.msra.mxu0 0.0
      %3989 = vmatpush.msra.mxu0 0.0
      %3990 = vmatpush.msra.mxu0 0.0
      %3991 = vmatpush.msra.mxu0 0.0
      %3992 = vmatpush.msra.mxu0 0.0
      %3993 = vmatpush.msra.mxu0 0.0
      %3994 = vmatpush.msra.mxu0 0.0
      %3995 = vmatpush.msra.mxu0 0.0
      %3996 = vmatpush.msra.mxu0 %v3979
      %3997 = vmatmul.f32.gmra.mxu0 %v3942
      %v3998 = vpop.f32.mrf.mxu0
      %v3999 = vadd.f32 0.0, %v3998
      %4000 = vmatmul.f32.gmra.mxu0 %v3944
      %v4001 = vpop.f32.mrf.mxu0
      %v4002 = vadd.f32 0.0, %v4001
      %4003 = vmatmul.f32.gmra.mxu0 %v3946
      %v4004 = vpop.f32.mrf.mxu0
      %v4005 = vadd.f32 0.0, %v4004
      %4006 = vmatmul.f32.gmra.mxu0 %v3948
      %v4007 = vpop.f32.mrf.mxu0
      %v4008 = vadd.f32 0.0, %v4007
      %4009 = vmatmul.f32.gmra.mxu0 %v3950
      %v4010 = vpop.f32.mrf.mxu0
      %v4011 = vadd.f32 0.0, %v4010
      %4012 = vmatmul.f32.gmra.mxu0 %v3952
      %v4013 = vpop.f32.mrf.mxu0
      %v4014 = vadd.f32 0.0, %v4013
      %4015 = vmatmul.f32.gmra.mxu0 %v3954
      %v4016 = vpop.f32.mrf.mxu0
      %v4017 = vadd.f32 0.0, %v4016
      %4018 = vmatmul.f32.gmra.mxu0 %v3956
      %v4019 = vpop.f32.mrf.mxu0
      %v4020 = vadd.f32 0.0, %v4019
      %4021 = vmatmul.f32.gmra.mxu0 %v3958
      %v4022 = vpop.f32.mrf.mxu0
      %v4023 = vadd.f32 0.0, %v4022
      %4024 = vmatmul.f32.gmra.mxu0 %v3960
      %v4025 = vpop.f32.mrf.mxu0
      %v4026 = vadd.f32 0.0, %v4025
      %4027 = vmatmul.f32.gmra.mxu0 %v3962
      %v4028 = vpop.f32.mrf.mxu0
      %v4029 = vadd.f32 0.0, %v4028
      %4030 = vmatmul.f32.gmra.mxu0 %v3964
      %v4031 = vpop.f32.mrf.mxu0
      %v4032 = vadd.f32 0.0, %v4031
      %4033 = vmatmul.f32.gmra.mxu0 %v3966
      %v4034 = vpop.f32.mrf.mxu0
      %v4035 = vadd.f32 0.0, %v4034
      %4036 = vmatmul.f32.gmra.mxu0 %v3968
      %v4037 = vpop.f32.mrf.mxu0
      %v4038 = vadd.f32 0.0, %v4037
      %4039 = vmatmul.f32.gmra.mxu0 %v3970
      %v4040 = vpop.f32.mrf.mxu0
      %v4041 = vadd.f32 0.0, %v4040
      %4042 = vmatmul.f32.gmra.mxu0 %v3972
      %v4043 = vpop.f32.mrf.mxu0
      %v4044 = vadd.f32 0.0, %v4043
      %4045 = vmatmul.f32.gmra.mxu0 %v3974
      %v4046 = vpop.f32.mrf.mxu0
      %v4047 = vadd.f32 0.0, %v4046
      %4048 = vmatmul.f32.gmra.mxu0 %v3976
      %v4049 = vpop.f32.mrf.mxu0
      %v4050 = vadd.f32 0.0, %v4049
      %4051 = vdwg.mxu0
      %v4052 = vadd.f32 %v3825, %v3999
      %v4053 = vadd.f32 %v3826, %v4002
      %v4054 = vadd.f32 %v3827, %v4005
      %v4055 = vadd.f32 %v3828, %v4008
      %v4056 = vadd.f32 %v3829, %v4011
      %v4057 = vadd.f32 %v3830, %v4014
      %v4058 = vadd.f32 %v3831, %v4017
      %v4059 = vadd.f32 %v3832, %v4020
      %v4060 = vadd.f32 %v3833, %v4023
      %v4061 = vadd.f32 %v3834, %v4026
      %v4062 = vadd.f32 %v3835, %v4029
      %v4063 = vadd.f32 %v3836, %v4032
      %v4064 = vadd.f32 %v3837, %v4035
      %v4065 = vadd.f32 %v3838, %v4038
      %v4066 = vadd.f32 %v3839, %v4041
      %v4067 = vadd.f32 %v3840, %v4044
      %v4068 = vadd.f32 %v3841, %v4047
      %v4069 = vadd.f32 %v3842, %v4050
      %v4070 = vadd.f32 %v4052, %v2072
      %v4071 = vadd.f32 %v4053, %v2072
      %v4072 = vadd.f32 %v4054, %v2072
      %v4073 = vadd.f32 %v4055, %v2072
      %v4074 = vadd.f32 %v4056, %v2072
      %v4075 = vadd.f32 %v4057, %v2072
      %v4076 = vadd.f32 %v4058, %v2072
      %v4077 = vadd.f32 %v4059, %v2072
      %v4078 = vadd.f32 %v4060, %v2072
      %v4079 = vadd.f32 %v4061, %v2072
      %v4080 = vadd.f32 %v4062, %v2072
      %v4081 = vadd.f32 %v4063, %v2072
      %v4082 = vadd.f32 %v4064, %v2072
      %v4083 = vadd.f32 %v4065, %v2072
      %v4084 = vadd.f32 %v4066, %v2072
      %v4085 = vadd.f32 %v4067, %v2072
      %v4086 = vadd.f32 %v4068, %v2072
      %v4087 = vadd.f32 %v4069, %v2072
      %v4088 = vmul.f32 %v4070, %v1189
      %v4089 = vmul.f32 %v4071, %v1189
      %v4090 = vmul.f32 %v4072, %v1190
      %v4091 = vmul.f32 %v4073, %v1190
      %v4092 = vmul.f32 %v4074, %v1191
      %v4093 = vmul.f32 %v4075, %v1191
      %v4094 = vmul.f32 %v4076, %v1192
      %v4095 = vmul.f32 %v4077, %v1192
      %v4096 = vmul.f32 %v4078, %v1193
      %v4097 = vmul.f32 %v4079, %v1193
      %v4098 = vmul.f32 %v4080, %v1194
      %v4099 = vmul.f32 %v4081, %v1194
      %v4100 = vmul.f32 %v4082, %v1195
      %v4101 = vmul.f32 %v4083, %v1195
      %v4102 = vmul.f32 %v4084, %v1196
      %v4103 = vmul.f32 %v4085, %v1196
      %v4104 = vmul.f32 %v4086, %v1197
      %v4105 = vmul.f32 %v4087, %v1197
      %v4124 = vrot.slane %v4088, 7
      %v4125 = vrot.slane %v4089, 7
      %v4126 = vsel %vm680, %v4124, %v4125
      %v4127 = vrot.slane %v4090, 7
      %v4128 = vrot.slane %v4091, 7
      %v4129 = vsel %vm680, %v4127, %v4128
      %v4130 = vrot.slane %v4092, 7
      %v4131 = vrot.slane %v4093, 7
      %v4132 = vsel %vm680, %v4130, %v4131
      %v4133 = vrot.slane %v4094, 7
      %v4134 = vrot.slane %v4095, 7
      %v4135 = vsel %vm680, %v4133, %v4134
      %v4136 = vrot.slane %v4096, 7
      %v4137 = vrot.slane %v4097, 7
      %v4138 = vsel %vm680, %v4136, %v4137
      %v4139 = vrot.slane %v4098, 7
      %v4140 = vrot.slane %v4099, 7
      %v4141 = vsel %vm680, %v4139, %v4140
      %v4142 = vrot.slane %v4100, 7
      %v4143 = vrot.slane %v4101, 7
      %v4144 = vsel %vm680, %v4142, %v4143
      %v4145 = vrot.slane %v4102, 7
      %v4146 = vrot.slane %v4103, 7
      %v4147 = vsel %vm680, %v4145, %v4146
      %v4148 = vrot.slane %v4104, 7
      %v4149 = vrot.slane %v4105, 7
      %v4150 = vsel %vm680, %v4148, %v4149
      %v4178 = vsel %vm680, 0.0, %v4124
      %v4179 = vsel %vm680, 0.0, %v4127
      %v4180 = vsel %vm680, 0.0, %v4130
      %v4181 = vsel %vm680, 0.0, %v4133
      %v4182 = vsel %vm680, 0.0, %v4136
      %v4183 = vsel %vm680, 0.0, %v4139
      %v4184 = vsel %vm680, 0.0, %v4142
      %v4185 = vsel %vm680, 0.0, %v4145
      %v4186 = vsel %vm680, 0.0, %v4148
      %v4187 = vsel %vm680, %v4125, 0.0
      %v4188 = vsel %vm680, %v4128, 0.0
      %v4189 = vsel %vm680, %v4131, 0.0
      %v4190 = vsel %vm680, %v4134, 0.0
      %v4191 = vsel %vm680, %v4137, 0.0
      %v4192 = vsel %vm680, %v4140, 0.0
      %v4193 = vsel %vm680, %v4143, 0.0
      %v4194 = vsel %vm680, %v4146, 0.0
      %v4195 = vsel %vm680, %v4149, 0.0
      %s4196 = scalar_lea.vmem %s2, 48
      %v4197 = vld [vmem:[%s4196] sm:$0xf]
      %s4198 = scalar_lea.vmem %s2, 52
      %v4199 = vld [vmem:[%s4198] sm:$0xf]
      %4200 = vst [vmem:[#allocation1] ss:$4 sm:$0xff] %v793
      %s4201 = scalar_lea.vmem [#allocation1], 1
      %4202 = vst [vmem:[%s4201] ss:$4 sm:$0xff] %v794
      %s4203 = scalar_lea.vmem [#allocation1], 2
      %4204 = vst [vmem:[%s4203] ss:$4 sm:$0xff] %v795
      %s4205 = scalar_lea.vmem [#allocation1], 3
      %4206 = vst [vmem:[%s4205] ss:$4 sm:$0xff] %v705
      %s4207 = scalar_lea.vmem [#allocation1], 32
      %4208 = vst [vmem:[%s4207] ss:$4 sm:$0xff] %v796
      %s4209 = scalar_lea.vmem [#allocation1], 33
      %4210 = vst [vmem:[%s4209] ss:$4 sm:$0xff] %v797
      %s4211 = scalar_lea.vmem [#allocation1], 34
      %4212 = vst [vmem:[%s4211] ss:$4 sm:$0xff] %v798
      %s4213 = scalar_lea.vmem [#allocation1], 35
      %4214 = vst [vmem:[%s4213] ss:$4 sm:$0xff] %v708
      %v4215 = vld.sshfl [vmem:[#allocation1] sm:$0xff pattern:$0x73625140]
      %v4216 = vld.sshfl [vmem:[#allocation1 + $0x20] sm:$0xff pattern:$0x73625140]
      %4217 = vst [vmem:[#allocation1] ss:$4 sm:$0xff] %v800
      %4218 = vst [vmem:[%s4201] ss:$4 sm:$0xff] %v801
      %4219 = vst [vmem:[%s4203] ss:$4 sm:$0xff] %v711
      %4220 = vst [vmem:[%s4205] ss:$4 sm:$0xff] %v802
      %4221 = vst [vmem:[%s4207] ss:$4 sm:$0xff] %v803
      %4222 = vst [vmem:[%s4209] ss:$4 sm:$0xff] %v804
      %4223 = vst [vmem:[%s4211] ss:$4 sm:$0xff] %v714
      %4224 = vst [vmem:[%s4213] ss:$4 sm:$0xff] %v805
      %v4225 = vld.sshfl [vmem:[#allocation1] sm:$0xff pattern:$0x73625140]
      %v4226 = vld.sshfl [vmem:[#allocation1 + $0x20] sm:$0xff pattern:$0x73625140]
      %4227 = vst [vmem:[#allocation1] ss:$4 sm:$0xff] %v807
      %4228 = vst [vmem:[%s4201] ss:$4 sm:$0xff] %v717
      %4229 = vst [vmem:[%s4203] ss:$4 sm:$0xff] %v808
      %4230 = vst [vmem:[%s4205] ss:$4 sm:$0xff] %v809
      %4231 = vst [vmem:[%s4207] ss:$4 sm:$0xff] %v810
      %4232 = vst [vmem:[%s4209] ss:$4 sm:$0xff] %v720
      %4233 = vst [vmem:[%s4211] ss:$4 sm:$0xff] %v811
      %4234 = vst [vmem:[%s4213] ss:$4 sm:$0xff] %v812
      %v4235 = vld.sshfl [vmem:[#allocation1] sm:$0xff pattern:$0x73625140]
      %v4236 = vld.sshfl [vmem:[#allocation1 + $0x20] sm:$0xff pattern:$0x73625140]
      %4237 = vst [vmem:[#allocation1] ss:$4 sm:$0xff] %v723
      %4238 = vst [vmem:[%s4201] ss:$4 sm:$0xff] %v814
      %4239 = vst [vmem:[%s4203] ss:$4 sm:$0xff] %v815
      %4240 = vst [vmem:[%s4205] ss:$4 sm:$0xff] %v816
      %4241 = vst [vmem:[%s4207] ss:$4 sm:$0xff] %v726
      %4242 = vst [vmem:[%s4209] ss:$4 sm:$0xff] %v817
      %4243 = vst [vmem:[%s4211] ss:$4 sm:$0xff] %v818
      %4244 = vst [vmem:[%s4213] ss:$4 sm:$0xff] %v819
      %v4245 = vld.sshfl [vmem:[#allocation1] sm:$0xff pattern:$0x73625140]
      %v4246 = vld.sshfl [vmem:[#allocation1 + $0x20] sm:$0xff pattern:$0x73625140]
      %4247 = vst [vmem:[#allocation1] ss:$4 sm:$0xff] %v820
      %4248 = vst [vmem:[%s4201] ss:$4 sm:$0xff] %v821
      %4249 = vst [vmem:[%s4203] ss:$4 sm:$0xff] %v822
      %4250 = vst [vmem:[%s4205] ss:$4 sm:$0xff] %v732
      %4251 = vst [vmem:[%s4207] ss:$4 sm:$0xff] %v823
      %4252 = vst [vmem:[%s4209] ss:$4 sm:$0xff] %v824
      %4253 = vst [vmem:[%s4211] ss:$4 sm:$0xff] %v825
      %4254 = vst [vmem:[%s4213] ss:$4 sm:$0xff] %v735
      %v4255 = vld.sshfl [vmem:[#allocation1] sm:$0xff pattern:$0x73625140]
      %v4256 = vld.sshfl [vmem:[#allocation1 + $0x20] sm:$0xff pattern:$0x73625140]
      %4257 = vst [vmem:[#allocation1] ss:$4 sm:$0xff] %v827
      %4258 = vst [vmem:[%s4201] ss:$4 sm:$0xff] %v828
      %4259 = vst [vmem:[%s4203] ss:$4 sm:$0xff] %v738
      %4260 = vst [vmem:[%s4205] ss:$4 sm:$0xff] %v829
      %4261 = vst [vmem:[%s4207] ss:$4 sm:$0xff] %v830
      %4262 = vst [vmem:[%s4209] ss:$4 sm:$0xff] %v831
      %4263 = vst [vmem:[%s4211] ss:$4 sm:$0xff] %v741
      %4264 = vst [vmem:[%s4213] ss:$4 sm:$0xff] %v832
      %v4265 = vld.sshfl [vmem:[#allocation1] sm:$0xff pattern:$0x73625140]
      %v4266 = vld.sshfl [vmem:[#allocation1 + $0x20] sm:$0xff pattern:$0x73625140]
      %4267 = vst [vmem:[#allocation1] ss:$4 sm:$0xff] %v834
      %4268 = vst [vmem:[%s4201] ss:$4 sm:$0xff] %v744
      %4269 = vst [vmem:[%s4203] ss:$4 sm:$0xff] %v835
      %4270 = vst [vmem:[%s4205] ss:$4 sm:$0xff] %v836
      %4271 = vst [vmem:[%s4207] ss:$4 sm:$0xff] %v837
      %4272 = vst [vmem:[%s4209] ss:$4 sm:$0xff] %v747
      %4273 = vst [vmem:[%s4211] ss:$4 sm:$0xff] %v838
      %4274 = vst [vmem:[%s4213] ss:$4 sm:$0xff] %v839
      %v4275 = vld.sshfl [vmem:[#allocation1] sm:$0xff pattern:$0x73625140]
      %v4276 = vld.sshfl [vmem:[#allocation1 + $0x20] sm:$0xff pattern:$0x73625140]
      %4277 = vst [vmem:[#allocation1] ss:$4 sm:$0xff] %v750
      %4278 = vst [vmem:[%s4201] ss:$4 sm:$0xff] %v841
      %4279 = vst [vmem:[%s4203] ss:$4 sm:$0xff] %v842
      %4280 = vst [vmem:[%s4205] ss:$4 sm:$0xff] %v843
      %4281 = vst [vmem:[%s4207] ss:$4 sm:$0xff] %v753
      %4282 = vst [vmem:[%s4209] ss:$4 sm:$0xff] %v844
      %4283 = vst [vmem:[%s4211] ss:$4 sm:$0xff] %v845
      %4284 = vst [vmem:[%s4213] ss:$4 sm:$0xff] %v846
      %v4285 = vld.sshfl [vmem:[#allocation1] sm:$0xff pattern:$0x73625140]
      %v4286 = vld.sshfl [vmem:[#allocation1 + $0x20] sm:$0xff pattern:$0x73625140]
      %4287 = vst [vmem:[#allocation1] ss:$4 sm:$0xff] %v847
      %4288 = vst [vmem:[%s4201] ss:$4 sm:$0xff] %v848
      %4289 = vst [vmem:[%s4203] ss:$4 sm:$0xff] %v849
      %4290 = vst [vmem:[%s4205] ss:$4 sm:$0xff] %v759
      %4291 = vst [vmem:[%s4207] ss:$4 sm:$0xff] %v850
      %4292 = vst [vmem:[%s4209] ss:$4 sm:$0xff] %v851
      %4293 = vst [vmem:[%s4211] ss:$4 sm:$0xff] %v852
      %4294 = vst [vmem:[%s4213] ss:$4 sm:$0xff] %v762
      %v4295 = vld.sshfl [vmem:[#allocation1] sm:$0xff pattern:$0x73625140]
      %v4296 = vld.sshfl [vmem:[#allocation1 + $0x20] sm:$0xff pattern:$0x73625140]
      %v4297 = vsel %vm1298, %v4215, 0
      %v4299 = vsel %vm1298, %v4216, 0
      %v4301 = vsel %vm1298, %v4225, 0
      %v4303 = vsel %vm1298, %v4226, 0
      %v4305 = vsel %vm1298, %v4235, 0
      %v4307 = vsel %vm1298, %v4236, 0
      %v4309 = vsel %vm1298, %v4245, 0
      %v4311 = vsel %vm1298, %v4246, 0
      %v4313 = vsel %vm1298, %v4255, 0
      %v4315 = vsel %vm1298, %v4256, 0
      %v4317 = vsel %vm1298, %v4265, 0
      %v4319 = vsel %vm1298, %v4266, 0
      %v4321 = vsel %vm1298, %v4275, 0
      %v4323 = vsel %vm1298, %v4276, 0
      %v4325 = vsel %vm1298, %v4285, 0
      %v4327 = vsel %vm1298, %v4286, 0
      %v4329 = vsel %vm1298, %v4295, 0
      %v4331 = vsel %vm1298, %v4296, 0
      %v4334 = vsel %vm1335, %v4199, 0
      %4336 = vmatpush.msra.mxu0 0.0
      %4337 = vmatpush.msra.mxu0 0.0
      %4338 = vmatpush.msra.mxu0 0.0
      %4339 = vmatpush.msra.mxu0 0.0
      %4340 = vmatpush.msra.mxu0 0.0
      %4341 = vmatpush.msra.mxu0 0.0
      %4342 = vmatpush.msra.mxu0 0.0
      %4343 = vmatpush.msra.mxu0 0.0
      %4344 = vmatpush.msra.mxu0 0.0
      %4345 = vmatpush.msra.mxu0 0.0
      %4346 = vmatpush.msra.mxu0 0.0
      %4347 = vmatpush.msra.mxu0 0.0
      %4348 = vmatpush.msra.mxu0 0.0
      %4349 = vmatpush.msra.mxu0 0.0
      %4350 = vmatpush.msra.mxu0 0.0
      %4351 = vmatpush.msra.mxu0 %v4334
      %4352 = vmatmul.f32.gmra.mxu0 %v4297
      %v4353 = vpop.f32.mrf.mxu0
      %v4354 = vadd.f32 0.0, %v4353
      %4355 = vmatmul.f32.gmra.mxu0 %v4299
      %v4356 = vpop.f32.mrf.mxu0
      %v4357 = vadd.f32 0.0, %v4356
      %4358 = vmatmul.f32.gmra.mxu0 %v4301
      %v4359 = vpop.f32.mrf.mxu0
      %v4360 = vadd.f32 0.0, %v4359
      %4361 = vmatmul.f32.gmra.mxu0 %v4303
      %v4362 = vpop.f32.mrf.mxu0
      %v4363 = vadd.f32 0.0, %v4362
      %4364 = vmatmul.f32.gmra.mxu0 %v4305
      %v4365 = vpop.f32.mrf.mxu0
      %v4366 = vadd.f32 0.0, %v4365
      %4367 = vmatmul.f32.gmra.mxu0 %v4307
      %v4368 = vpop.f32.mrf.mxu0
      %v4369 = vadd.f32 0.0, %v4368
      %4370 = vmatmul.f32.gmra.mxu0 %v4309
      %v4371 = vpop.f32.mrf.mxu0
      %v4372 = vadd.f32 0.0, %v4371
      %4373 = vmatmul.f32.gmra.mxu0 %v4311
      %v4374 = vpop.f32.mrf.mxu0
      %v4375 = vadd.f32 0.0, %v4374
      %4376 = vmatmul.f32.gmra.mxu0 %v4313
      %v4377 = vpop.f32.mrf.mxu0
      %v4378 = vadd.f32 0.0, %v4377
      %4379 = vmatmul.f32.gmra.mxu0 %v4315
      %v4380 = vpop.f32.mrf.mxu0
      %v4381 = vadd.f32 0.0, %v4380
      %4382 = vmatmul.f32.gmra.mxu0 %v4317
      %v4383 = vpop.f32.mrf.mxu0
      %v4384 = vadd.f32 0.0, %v4383
      %4385 = vmatmul.f32.gmra.mxu0 %v4319
      %v4386 = vpop.f32.mrf.mxu0
      %v4387 = vadd.f32 0.0, %v4386
      %4388 = vmatmul.f32.gmra.mxu0 %v4321
      %v4389 = vpop.f32.mrf.mxu0
      %v4390 = vadd.f32 0.0, %v4389
      %4391 = vmatmul.f32.gmra.mxu0 %v4323
      %v4392 = vpop.f32.mrf.mxu0
      %v4393 = vadd.f32 0.0, %v4392
      %4394 = vmatmul.f32.gmra.mxu0 %v4325
      %v4395 = vpop.f32.mrf.mxu0
      %v4396 = vadd.f32 0.0, %v4395
      %4397 = vmatmul.f32.gmra.mxu0 %v4327
      %v4398 = vpop.f32.mrf.mxu0
      %v4399 = vadd.f32 0.0, %v4398
      %4400 = vmatmul.f32.gmra.mxu0 %v4329
      %v4401 = vpop.f32.mrf.mxu0
      %v4402 = vadd.f32 0.0, %v4401
      %4403 = vmatmul.f32.gmra.mxu0 %v4331
      %v4404 = vpop.f32.mrf.mxu0
      %v4405 = vadd.f32 0.0, %v4404
      %4406 = vdwg.mxu0
      %4407 = vst [vmem:[#allocation1] ss:$4 sm:$0xff] %v869
      %s4408 = scalar_lea.vmem [#allocation1], 1
      %4409 = vst [vmem:[%s4408] ss:$4 sm:$0xff] %v872
      %s4410 = scalar_lea.vmem [#allocation1], 2
      %4411 = vst [vmem:[%s4410] ss:$4 sm:$0xff] %v875
      %s4412 = scalar_lea.vmem [#allocation1], 3
      %4413 = vst [vmem:[%s4412] ss:$4 sm:$0xff] %v878
      %s4414 = scalar_lea.vmem [#allocation1], 32
      %4415 = vst [vmem:[%s4414] ss:$4 sm:$0xff] %v881
      %s4416 = scalar_lea.vmem [#allocation1], 33
      %4417 = vst [vmem:[%s4416] ss:$4 sm:$0xff] %v884
      %s4418 = scalar_lea.vmem [#allocation1], 34
      %4419 = vst [vmem:[%s4418] ss:$4 sm:$0xff] %v887
      %s4420 = scalar_lea.vmem [#allocation1], 35
      %4421 = vst [vmem:[%s4420] ss:$4 sm:$0xff] %v890
      %v4422 = vld.sshfl [vmem:[#allocation1] sm:$0xff pattern:$0x73625140]
      %v4423 = vld.sshfl [vmem:[#allocation1 + $0x20] sm:$0xff pattern:$0x73625140]
      %4424 = vst [vmem:[#allocation1] ss:$4 sm:$0xff] %v894
      %4425 = vst [vmem:[%s4408] ss:$4 sm:$0xff] %v897
      %4426 = vst [vmem:[%s4410] ss:$4 sm:$0xff] %v900
      %4427 = vst [vmem:[%s4412] ss:$4 sm:$0xff] %v903
      %4428 = vst [vmem:[%s4414] ss:$4 sm:$0xff] %v906
      %4429 = vst [vmem:[%s4416] ss:$4 sm:$0xff] %v909
      %4430 = vst [vmem:[%s4418] ss:$4 sm:$0xff] %v912
      %4431 = vst [vmem:[%s4420] ss:$4 sm:$0xff] %v915
      %v4432 = vld.sshfl [vmem:[#allocation1] sm:$0xff pattern:$0x73625140]
      %v4433 = vld.sshfl [vmem:[#allocation1 + $0x20] sm:$0xff pattern:$0x73625140]
      %4434 = vst [vmem:[#allocation1] ss:$4 sm:$0xff] %v919
      %4435 = vst [vmem:[%s4408] ss:$4 sm:$0xff] %v922
      %4436 = vst [vmem:[%s4410] ss:$4 sm:$0xff] %v925
      %4437 = vst [vmem:[%s4412] ss:$4 sm:$0xff] %v928
      %4438 = vst [vmem:[%s4414] ss:$4 sm:$0xff] %v931
      %4439 = vst [vmem:[%s4416] ss:$4 sm:$0xff] %v934
      %4440 = vst [vmem:[%s4418] ss:$4 sm:$0xff] %v937
      %4441 = vst [vmem:[%s4420] ss:$4 sm:$0xff] %v940
      %v4442 = vld.sshfl [vmem:[#allocation1] sm:$0xff pattern:$0x73625140]
      %v4443 = vld.sshfl [vmem:[#allocation1 + $0x20] sm:$0xff pattern:$0x73625140]
      %4444 = vst [vmem:[#allocation1] ss:$4 sm:$0xff] %v944
      %4445 = vst [vmem:[%s4408] ss:$4 sm:$0xff] %v947
      %4446 = vst [vmem:[%s4410] ss:$4 sm:$0xff] %v950
      %4447 = vst [vmem:[%s4412] ss:$4 sm:$0xff] %v953
      %4448 = vst [vmem:[%s4414] ss:$4 sm:$0xff] %v956
      %4449 = vst [vmem:[%s4416] ss:$4 sm:$0xff] %v959
      %4450 = vst [vmem:[%s4418] ss:$4 sm:$0xff] %v962
      %4451 = vst [vmem:[%s4420] ss:$4 sm:$0xff] %v965
      %v4452 = vld.sshfl [vmem:[#allocation1] sm:$0xff pattern:$0x73625140]
      %v4453 = vld.sshfl [vmem:[#allocation1 + $0x20] sm:$0xff pattern:$0x73625140]
      %4454 = vst [vmem:[#allocation1] ss:$4 sm:$0xff] %v969
      %4455 = vst [vmem:[%s4408] ss:$4 sm:$0xff] %v972
      %4456 = vst [vmem:[%s4410] ss:$4 sm:$0xff] %v975
      %4457 = vst [vmem:[%s4412] ss:$4 sm:$0xff] %v978
      %4458 = vst [vmem:[%s4414] ss:$4 sm:$0xff] %v981
      %4459 = vst [vmem:[%s4416] ss:$4 sm:$0xff] %v984
      %4460 = vst [vmem:[%s4418] ss:$4 sm:$0xff] %v987
      %4461 = vst [vmem:[%s4420] ss:$4 sm:$0xff] %v990
      %v4462 = vld.sshfl [vmem:[#allocation1] sm:$0xff pattern:$0x73625140]
      %v4463 = vld.sshfl [vmem:[#allocation1 + $0x20] sm:$0xff pattern:$0x73625140]
      %4464 = vst [vmem:[#allocation1] ss:$4 sm:$0xff] %v994
      %4465 = vst [vmem:[%s4408] ss:$4 sm:$0xff] %v997
      %4466 = vst [vmem:[%s4410] ss:$4 sm:$0xff] %v1000
      %4467 = vst [vmem:[%s4412] ss:$4 sm:$0xff] %v1003
      %4468 = vst [vmem:[%s4414] ss:$4 sm:$0xff] %v1006
      %4469 = vst [vmem:[%s4416] ss:$4 sm:$0xff] %v1009
      %4470 = vst [vmem:[%s4418] ss:$4 sm:$0xff] %v1012
      %4471 = vst [vmem:[%s4420] ss:$4 sm:$0xff] %v1015
      %v4472 = vld.sshfl [vmem:[#allocation1] sm:$0xff pattern:$0x73625140]
      %v4473 = vld.sshfl [vmem:[#allocation1 + $0x20] sm:$0xff pattern:$0x73625140]
      %4474 = vst [vmem:[#allocation1] ss:$4 sm:$0xff] %v1019
      %4475 = vst [vmem:[%s4408] ss:$4 sm:$0xff] %v1022
      %4476 = vst [vmem:[%s4410] ss:$4 sm:$0xff] %v1025
      %4477 = vst [vmem:[%s4412] ss:$4 sm:$0xff] %v1028
      %4478 = vst [vmem:[%s4414] ss:$4 sm:$0xff] %v1031
      %4479 = vst [vmem:[%s4416] ss:$4 sm:$0xff] %v1034
      %4480 = vst [vmem:[%s4418] ss:$4 sm:$0xff] %v1037
      %4481 = vst [vmem:[%s4420] ss:$4 sm:$0xff] %v1040
      %v4482 = vld.sshfl [vmem:[#allocation1] sm:$0xff pattern:$0x73625140]
      %v4483 = vld.sshfl [vmem:[#allocation1 + $0x20] sm:$0xff pattern:$0x73625140]
      %4484 = vst [vmem:[#allocation1] ss:$4 sm:$0xff] %v1044
      %4485 = vst [vmem:[%s4408] ss:$4 sm:$0xff] %v1047
      %4486 = vst [vmem:[%s4410] ss:$4 sm:$0xff] %v1050
      %4487 = vst [vmem:[%s4412] ss:$4 sm:$0xff] %v1053
      %4488 = vst [vmem:[%s4414] ss:$4 sm:$0xff] %v1056
      %4489 = vst [vmem:[%s4416] ss:$4 sm:$0xff] %v1059
      %4490 = vst [vmem:[%s4418] ss:$4 sm:$0xff] %v1062
      %4491 = vst [vmem:[%s4420] ss:$4 sm:$0xff] %v1065
      %v4492 = vld.sshfl [vmem:[#allocation1] sm:$0xff pattern:$0x73625140]
      %v4493 = vld.sshfl [vmem:[#allocation1 + $0x20] sm:$0xff pattern:$0x73625140]
      %4494 = vst [vmem:[#allocation1] ss:$4 sm:$0xff] %v1069
      %4495 = vst [vmem:[%s4408] ss:$4 sm:$0xff] %v1072
      %4496 = vst [vmem:[%s4410] ss:$4 sm:$0xff] %v1075
      %4497 = vst [vmem:[%s4412] ss:$4 sm:$0xff] %v1078
      %4498 = vst [vmem:[%s4414] ss:$4 sm:$0xff] %v1081
      %4499 = vst [vmem:[%s4416] ss:$4 sm:$0xff] %v1084
      %4500 = vst [vmem:[%s4418] ss:$4 sm:$0xff] %v1087
      %4501 = vst [vmem:[%s4420] ss:$4 sm:$0xff] %v1090
      %v4502 = vld.sshfl [vmem:[#allocation1] sm:$0xff pattern:$0x73625140]
      %v4503 = vld.sshfl [vmem:[#allocation1 + $0x20] sm:$0xff pattern:$0x73625140]
      %v4504 = vsel %vm1298, %v4422, 0
      %v4506 = vsel %vm1298, %v4423, 0
      %v4508 = vsel %vm1298, %v4432, 0
      %v4510 = vsel %vm1298, %v4433, 0
      %v4512 = vsel %vm1298, %v4442, 0
      %v4514 = vsel %vm1298, %v4443, 0
      %v4516 = vsel %vm1298, %v4452, 0
      %v4518 = vsel %vm1298, %v4453, 0
      %v4520 = vsel %vm1298, %v4462, 0
      %v4522 = vsel %vm1298, %v4463, 0
      %v4524 = vsel %vm1298, %v4472, 0
      %v4526 = vsel %vm1298, %v4473, 0
      %v4528 = vsel %vm1298, %v4482, 0
      %v4530 = vsel %vm1298, %v4483, 0
      %v4532 = vsel %vm1298, %v4492, 0
      %v4534 = vsel %vm1298, %v4493, 0
      %v4536 = vsel %vm1298, %v4502, 0
      %v4538 = vsel %vm1298, %v4503, 0
      %v4541 = vsel %vm1335, %v4197, 0
      %4543 = vmatpush.msra.mxu0 0.0
      %4544 = vmatpush.msra.mxu0 0.0
      %4545 = vmatpush.msra.mxu0 0.0
      %4546 = vmatpush.msra.mxu0 0.0
      %4547 = vmatpush.msra.mxu0 0.0
      %4548 = vmatpush.msra.mxu0 0.0
      %4549 = vmatpush.msra.mxu0 0.0
      %4550 = vmatpush.msra.mxu0 0.0
      %4551 = vmatpush.msra.mxu0 0.0
      %4552 = vmatpush.msra.mxu0 0.0
      %4553 = vmatpush.msra.mxu0 0.0
      %4554 = vmatpush.msra.mxu0 0.0
      %4555 = vmatpush.msra.mxu0 0.0
      %4556 = vmatpush.msra.mxu0 0.0
      %4557 = vmatpush.msra.mxu0 0.0
      %4558 = vmatpush.msra.mxu0 %v4541
      %4559 = vmatmul.f32.gmra.mxu0 %v4504
      %v4560 = vpop.f32.mrf.mxu0
      %v4561 = vadd.f32 %v4354, %v4560
      %4562 = vmatmul.f32.gmra.mxu0 %v4506
      %v4563 = vpop.f32.mrf.mxu0
      %v4564 = vadd.f32 %v4357, %v4563
      %4565 = vmatmul.f32.gmra.mxu0 %v4508
      %v4566 = vpop.f32.mrf.mxu0
      %v4567 = vadd.f32 %v4360, %v4566
      %4568 = vmatmul.f32.gmra.mxu0 %v4510
      %v4569 = vpop.f32.mrf.mxu0
      %v4570 = vadd.f32 %v4363, %v4569
      %4571 = vmatmul.f32.gmra.mxu0 %v4512
      %v4572 = vpop.f32.mrf.mxu0
      %v4573 = vadd.f32 %v4366, %v4572
      %4574 = vmatmul.f32.gmra.mxu0 %v4514
      %v4575 = vpop.f32.mrf.mxu0
      %v4576 = vadd.f32 %v4369, %v4575
      %4577 = vmatmul.f32.gmra.mxu0 %v4516
      %v4578 = vpop.f32.mrf.mxu0
      %v4579 = vadd.f32 %v4372, %v4578
      %4580 = vmatmul.f32.gmra.mxu0 %v4518
      %v4581 = vpop.f32.mrf.mxu0
      %v4582 = vadd.f32 %v4375, %v4581
      %4583 = vmatmul.f32.gmra.mxu0 %v4520
      %v4584 = vpop.f32.mrf.mxu0
      %v4585 = vadd.f32 %v4378, %v4584
      %4586 = vmatmul.f32.gmra.mxu0 %v4522
      %v4587 = vpop.f32.mrf.mxu0
      %v4588 = vadd.f32 %v4381, %v4587
      %4589 = vmatmul.f32.gmra.mxu0 %v4524
      %v4590 = vpop.f32.mrf.mxu0
      %v4591 = vadd.f32 %v4384, %v4590
      %4592 = vmatmul.f32.gmra.mxu0 %v4526
      %v4593 = vpop.f32.mrf.mxu0
      %v4594 = vadd.f32 %v4387, %v4593
      %4595 = vmatmul.f32.gmra.mxu0 %v4528
      %v4596 = vpop.f32.mrf.mxu0
      %v4597 = vadd.f32 %v4390, %v4596
      %4598 = vmatmul.f32.gmra.mxu0 %v4530
      %v4599 = vpop.f32.mrf.mxu0
      %v4600 = vadd.f32 %v4393, %v4599
      %4601 = vmatmul.f32.gmra.mxu0 %v4532
      %v4602 = vpop.f32.mrf.mxu0
      %v4603 = vadd.f32 %v4396, %v4602
      %4604 = vmatmul.f32.gmra.mxu0 %v4534
      %v4605 = vpop.f32.mrf.mxu0
      %v4606 = vadd.f32 %v4399, %v4605
      %4607 = vmatmul.f32.gmra.mxu0 %v4536
      %v4608 = vpop.f32.mrf.mxu0
      %v4609 = vadd.f32 %v4402, %v4608
      %4610 = vmatmul.f32.gmra.mxu0 %v4538
      %v4611 = vpop.f32.mrf.mxu0
      %v4612 = vadd.f32 %v4405, %v4611
      %4613 = vdwg.mxu0
      %s4614 = scalar_lea.vmem %s2, 56
      %v4615 = vld [vmem:[%s4614] sm:$0xf]
      %4616 = vst [vmem:[#allocation1] ss:$4 sm:$0xff] %v894
      %s4617 = scalar_lea.vmem [#allocation1], 1
      %4618 = vst [vmem:[%s4617] ss:$4 sm:$0xff] %v897
      %s4619 = scalar_lea.vmem [#allocation1], 2
      %4620 = vst [vmem:[%s4619] ss:$4 sm:$0xff] %v900
      %s4621 = scalar_lea.vmem [#allocation1], 3
      %4622 = vst [vmem:[%s4621] ss:$4 sm:$0xff] %v903
      %s4623 = scalar_lea.vmem [#allocation1], 32
      %4624 = vst [vmem:[%s4623] ss:$4 sm:$0xff] %v906
      %s4625 = scalar_lea.vmem [#allocation1], 33
      %4626 = vst [vmem:[%s4625] ss:$4 sm:$0xff] %v909
      %s4627 = scalar_lea.vmem [#allocation1], 34
      %4628 = vst [vmem:[%s4627] ss:$4 sm:$0xff] %v912
      %s4629 = scalar_lea.vmem [#allocation1], 35
      %4630 = vst [vmem:[%s4629] ss:$4 sm:$0xff] %v915
      %v4631 = vld.sshfl [vmem:[#allocation1] sm:$0xff pattern:$0x73625140]
      %v4632 = vld.sshfl [vmem:[#allocation1 + $0x20] sm:$0xff pattern:$0x73625140]
      %4633 = vst [vmem:[#allocation1] ss:$4 sm:$0xff] %v919
      %4634 = vst [vmem:[%s4617] ss:$4 sm:$0xff] %v922
      %4635 = vst [vmem:[%s4619] ss:$4 sm:$0xff] %v925
      %4636 = vst [vmem:[%s4621] ss:$4 sm:$0xff] %v928
      %4637 = vst [vmem:[%s4623] ss:$4 sm:$0xff] %v931
      %4638 = vst [vmem:[%s4625] ss:$4 sm:$0xff] %v934
      %4639 = vst [vmem:[%s4627] ss:$4 sm:$0xff] %v937
      %4640 = vst [vmem:[%s4629] ss:$4 sm:$0xff] %v940
      %v4641 = vld.sshfl [vmem:[#allocation1] sm:$0xff pattern:$0x73625140]
      %v4642 = vld.sshfl [vmem:[#allocation1 + $0x20] sm:$0xff pattern:$0x73625140]
      %4643 = vst [vmem:[#allocation1] ss:$4 sm:$0xff] %v944
      %4644 = vst [vmem:[%s4617] ss:$4 sm:$0xff] %v947
      %4645 = vst [vmem:[%s4619] ss:$4 sm:$0xff] %v950
      %4646 = vst [vmem:[%s4621] ss:$4 sm:$0xff] %v953
      %4647 = vst [vmem:[%s4623] ss:$4 sm:$0xff] %v956
      %4648 = vst [vmem:[%s4625] ss:$4 sm:$0xff] %v959
      %4649 = vst [vmem:[%s4627] ss:$4 sm:$0xff] %v962
      %4650 = vst [vmem:[%s4629] ss:$4 sm:$0xff] %v965
      %v4651 = vld.sshfl [vmem:[#allocation1] sm:$0xff pattern:$0x73625140]
      %v4652 = vld.sshfl [vmem:[#allocation1 + $0x20] sm:$0xff pattern:$0x73625140]
      %4653 = vst [vmem:[#allocation1] ss:$4 sm:$0xff] %v969
      %4654 = vst [vmem:[%s4617] ss:$4 sm:$0xff] %v972
      %4655 = vst [vmem:[%s4619] ss:$4 sm:$0xff] %v975
      %4656 = vst [vmem:[%s4621] ss:$4 sm:$0xff] %v978
      %4657 = vst [vmem:[%s4623] ss:$4 sm:$0xff] %v981
      %4658 = vst [vmem:[%s4625] ss:$4 sm:$0xff] %v984
      %4659 = vst [vmem:[%s4627] ss:$4 sm:$0xff] %v987
      %4660 = vst [vmem:[%s4629] ss:$4 sm:$0xff] %v990
      %v4661 = vld.sshfl [vmem:[#allocation1] sm:$0xff pattern:$0x73625140]
      %v4662 = vld.sshfl [vmem:[#allocation1 + $0x20] sm:$0xff pattern:$0x73625140]
      %4663 = vst [vmem:[#allocation1] ss:$4 sm:$0xff] %v994
      %4664 = vst [vmem:[%s4617] ss:$4 sm:$0xff] %v997
      %4665 = vst [vmem:[%s4619] ss:$4 sm:$0xff] %v1000
      %4666 = vst [vmem:[%s4621] ss:$4 sm:$0xff] %v1003
      %4667 = vst [vmem:[%s4623] ss:$4 sm:$0xff] %v1006
      %4668 = vst [vmem:[%s4625] ss:$4 sm:$0xff] %v1009
      %4669 = vst [vmem:[%s4627] ss:$4 sm:$0xff] %v1012
      %4670 = vst [vmem:[%s4629] ss:$4 sm:$0xff] %v1015
      %v4671 = vld.sshfl [vmem:[#allocation1] sm:$0xff pattern:$0x73625140]
      %v4672 = vld.sshfl [vmem:[#allocation1 + $0x20] sm:$0xff pattern:$0x73625140]
      %4673 = vst [vmem:[#allocation1] ss:$4 sm:$0xff] %v1019
      %4674 = vst [vmem:[%s4617] ss:$4 sm:$0xff] %v1022
      %4675 = vst [vmem:[%s4619] ss:$4 sm:$0xff] %v1025
      %4676 = vst [vmem:[%s4621] ss:$4 sm:$0xff] %v1028
      %4677 = vst [vmem:[%s4623] ss:$4 sm:$0xff] %v1031
      %4678 = vst [vmem:[%s4625] ss:$4 sm:$0xff] %v1034
      %4679 = vst [vmem:[%s4627] ss:$4 sm:$0xff] %v1037
      %4680 = vst [vmem:[%s4629] ss:$4 sm:$0xff] %v1040
      %v4681 = vld.sshfl [vmem:[#allocation1] sm:$0xff pattern:$0x73625140]
      %v4682 = vld.sshfl [vmem:[#allocation1 + $0x20] sm:$0xff pattern:$0x73625140]
      %4683 = vst [vmem:[#allocation1] ss:$4 sm:$0xff] %v1044
      %4684 = vst [vmem:[%s4617] ss:$4 sm:$0xff] %v1047
      %4685 = vst [vmem:[%s4619] ss:$4 sm:$0xff] %v1050
      %4686 = vst [vmem:[%s4621] ss:$4 sm:$0xff] %v1053
      %4687 = vst [vmem:[%s4623] ss:$4 sm:$0xff] %v1056
      %4688 = vst [vmem:[%s4625] ss:$4 sm:$0xff] %v1059
      %4689 = vst [vmem:[%s4627] ss:$4 sm:$0xff] %v1062
      %4690 = vst [vmem:[%s4629] ss:$4 sm:$0xff] %v1065
      %v4691 = vld.sshfl [vmem:[#allocation1] sm:$0xff pattern:$0x73625140]
      %v4692 = vld.sshfl [vmem:[#allocation1 + $0x20] sm:$0xff pattern:$0x73625140]
      %4693 = vst [vmem:[#allocation1] ss:$4 sm:$0xff] %v1069
      %4694 = vst [vmem:[%s4617] ss:$4 sm:$0xff] %v1072
      %4695 = vst [vmem:[%s4619] ss:$4 sm:$0xff] %v1075
      %4696 = vst [vmem:[%s4621] ss:$4 sm:$0xff] %v1078
      %4697 = vst [vmem:[%s4623] ss:$4 sm:$0xff] %v1081
      %4698 = vst [vmem:[%s4625] ss:$4 sm:$0xff] %v1084
      %4699 = vst [vmem:[%s4627] ss:$4 sm:$0xff] %v1087
      %4700 = vst [vmem:[%s4629] ss:$4 sm:$0xff] %v1090
      %v4701 = vld.sshfl [vmem:[#allocation1] sm:$0xff pattern:$0x73625140]
      %v4702 = vld.sshfl [vmem:[#allocation1 + $0x20] sm:$0xff pattern:$0x73625140]
      %4703 = vst [vmem:[#allocation1] ss:$4 sm:$0xff] %v1094
      %4704 = vst [vmem:[%s4617] ss:$4 sm:$0xff] %v1097
      %4705 = vst [vmem:[%s4619] ss:$4 sm:$0xff] %v1100
      %4706 = vst [vmem:[%s4621] ss:$4 sm:$0xff] %v1103
      %4707 = vst [vmem:[%s4623] ss:$4 sm:$0xff] %v1106
      %4708 = vst [vmem:[%s4625] ss:$4 sm:$0xff] %v1109
      %4709 = vst [vmem:[%s4627] ss:$4 sm:$0xff] %v1112
      %4710 = vst [vmem:[%s4629] ss:$4 sm:$0xff] %v1115
      %v4711 = vld.sshfl [vmem:[#allocation1] sm:$0xff pattern:$0x73625140]
      %v4712 = vld.sshfl [vmem:[#allocation1 + $0x20] sm:$0xff pattern:$0x73625140]
      %v4713 = vsel %vm1298, %v4631, 0
      %v4715 = vsel %vm1298, %v4632, 0
      %v4717 = vsel %vm1298, %v4641, 0
      %v4719 = vsel %vm1298, %v4642, 0
      %v4721 = vsel %vm1298, %v4651, 0
      %v4723 = vsel %vm1298, %v4652, 0
      %v4725 = vsel %vm1298, %v4661, 0
      %v4727 = vsel %vm1298, %v4662, 0
      %v4729 = vsel %vm1298, %v4671, 0
      %v4731 = vsel %vm1298, %v4672, 0
      %v4733 = vsel %vm1298, %v4681, 0
      %v4735 = vsel %vm1298, %v4682, 0
      %v4737 = vsel %vm1298, %v4691, 0
      %v4739 = vsel %vm1298, %v4692, 0
      %v4741 = vsel %vm1298, %v4701, 0
      %v4743 = vsel %vm1298, %v4702, 0
      %v4745 = vsel %vm1298, %v4711, 0
      %v4747 = vsel %vm1298, %v4712, 0
      %v4750 = vsel %vm1335, %v4615, 0
      %4752 = vmatpush.msra.mxu0 0.0
      %4753 = vmatpush.msra.mxu0 0.0
      %4754 = vmatpush.msra.mxu0 0.0
      %4755 = vmatpush.msra.mxu0 0.0
      %4756 = vmatpush.msra.mxu0 0.0
      %4757 = vmatpush.msra.mxu0 0.0
      %4758 = vmatpush.msra.mxu0 0.0
      %4759 = vmatpush.msra.mxu0 0.0
      %4760 = vmatpush.msra.mxu0 0.0
      %4761 = vmatpush.msra.mxu0 0.0
      %4762 = vmatpush.msra.mxu0 0.0
      %4763 = vmatpush.msra.mxu0 0.0
      %4764 = vmatpush.msra.mxu0 0.0
      %4765 = vmatpush.msra.mxu0 0.0
      %4766 = vmatpush.msra.mxu0 0.0
      %4767 = vmatpush.msra.mxu0 %v4750
      %4768 = vmatmul.f32.gmra.mxu0 %v4713
      %v4769 = vpop.f32.mrf.mxu0
      %v4770 = vadd.f32 0.0, %v4769
      %4771 = vmatmul.f32.gmra.mxu0 %v4715
      %v4772 = vpop.f32.mrf.mxu0
      %v4773 = vadd.f32 0.0, %v4772
      %4774 = vmatmul.f32.gmra.mxu0 %v4717
      %v4775 = vpop.f32.mrf.mxu0
      %v4776 = vadd.f32 0.0, %v4775
      %4777 = vmatmul.f32.gmra.mxu0 %v4719
      %v4778 = vpop.f32.mrf.mxu0
      %v4779 = vadd.f32 0.0, %v4778
      %4780 = vmatmul.f32.gmra.mxu0 %v4721
      %v4781 = vpop.f32.mrf.mxu0
      %v4782 = vadd.f32 0.0, %v4781
      %4783 = vmatmul.f32.gmra.mxu0 %v4723
      %v4784 = vpop.f32.mrf.mxu0
      %v4785 = vadd.f32 0.0, %v4784
      %4786 = vmatmul.f32.gmra.mxu0 %v4725
      %v4787 = vpop.f32.mrf.mxu0
      %v4788 = vadd.f32 0.0, %v4787
      %4789 = vmatmul.f32.gmra.mxu0 %v4727
      %v4790 = vpop.f32.mrf.mxu0
      %v4791 = vadd.f32 0.0, %v4790
      %4792 = vmatmul.f32.gmra.mxu0 %v4729
      %v4793 = vpop.f32.mrf.mxu0
      %v4794 = vadd.f32 0.0, %v4793
      %4795 = vmatmul.f32.gmra.mxu0 %v4731
      %v4796 = vpop.f32.mrf.mxu0
      %v4797 = vadd.f32 0.0, %v4796
      %4798 = vmatmul.f32.gmra.mxu0 %v4733
      %v4799 = vpop.f32.mrf.mxu0
      %v4800 = vadd.f32 0.0, %v4799
      %4801 = vmatmul.f32.gmra.mxu0 %v4735
      %v4802 = vpop.f32.mrf.mxu0
      %v4803 = vadd.f32 0.0, %v4802
      %4804 = vmatmul.f32.gmra.mxu0 %v4737
      %v4805 = vpop.f32.mrf.mxu0
      %v4806 = vadd.f32 0.0, %v4805
      %4807 = vmatmul.f32.gmra.mxu0 %v4739
      %v4808 = vpop.f32.mrf.mxu0
      %v4809 = vadd.f32 0.0, %v4808
      %4810 = vmatmul.f32.gmra.mxu0 %v4741
      %v4811 = vpop.f32.mrf.mxu0
      %v4812 = vadd.f32 0.0, %v4811
      %4813 = vmatmul.f32.gmra.mxu0 %v4743
      %v4814 = vpop.f32.mrf.mxu0
      %v4815 = vadd.f32 0.0, %v4814
      %4816 = vmatmul.f32.gmra.mxu0 %v4745
      %v4817 = vpop.f32.mrf.mxu0
      %v4818 = vadd.f32 0.0, %v4817
      %4819 = vmatmul.f32.gmra.mxu0 %v4747
      %v4820 = vpop.f32.mrf.mxu0
      %v4821 = vadd.f32 0.0, %v4820
      %4822 = vdwg.mxu0
      %v4823 = vadd.f32 %v4561, %v4770
      %v4824 = vadd.f32 %v4564, %v4773
      %v4825 = vadd.f32 %v4567, %v4776
      %v4826 = vadd.f32 %v4570, %v4779
      %v4827 = vadd.f32 %v4573, %v4782
      %v4828 = vadd.f32 %v4576, %v4785
      %v4829 = vadd.f32 %v4579, %v4788
      %v4830 = vadd.f32 %v4582, %v4791
      %v4831 = vadd.f32 %v4585, %v4794
      %v4832 = vadd.f32 %v4588, %v4797
      %v4833 = vadd.f32 %v4591, %v4800
      %v4834 = vadd.f32 %v4594, %v4803
      %v4835 = vadd.f32 %v4597, %v4806
      %v4836 = vadd.f32 %v4600, %v4809
      %v4837 = vadd.f32 %v4603, %v4812
      %v4838 = vadd.f32 %v4606, %v4815
      %v4839 = vadd.f32 %v4609, %v4818
      %v4840 = vadd.f32 %v4612, %v4821
      %s4841 = scalar_lea.vmem %s2, 60
      %v4842 = vld [vmem:[%s4841] sm:$0xf]
      %4843 = vst [vmem:[#allocation1] ss:$4 sm:$0xff] %v800
      %s4844 = scalar_lea.vmem [#allocation1], 1
      %4845 = vst [vmem:[%s4844] ss:$4 sm:$0xff] %v801
      %s4846 = scalar_lea.vmem [#allocation1], 2
      %4847 = vst [vmem:[%s4846] ss:$4 sm:$0xff] %v711
      %s4848 = scalar_lea.vmem [#allocation1], 3
      %4849 = vst [vmem:[%s4848] ss:$4 sm:$0xff] %v802
      %s4850 = scalar_lea.vmem [#allocation1], 32
      %4851 = vst [vmem:[%s4850] ss:$4 sm:$0xff] %v803
      %s4852 = scalar_lea.vmem [#allocation1], 33
      %4853 = vst [vmem:[%s4852] ss:$4 sm:$0xff] %v804
      %s4854 = scalar_lea.vmem [#allocation1], 34
      %4855 = vst [vmem:[%s4854] ss:$4 sm:$0xff] %v714
      %s4856 = scalar_lea.vmem [#allocation1], 35
      %4857 = vst [vmem:[%s4856] ss:$4 sm:$0xff] %v805
      %v4858 = vld.sshfl [vmem:[#allocation1] sm:$0xff pattern:$0x73625140]
      %v4859 = vld.sshfl [vmem:[#allocation1 + $0x20] sm:$0xff pattern:$0x73625140]
      %4860 = vst [vmem:[#allocation1] ss:$4 sm:$0xff] %v807
      %4861 = vst [vmem:[%s4844] ss:$4 sm:$0xff] %v717
      %4862 = vst [vmem:[%s4846] ss:$4 sm:$0xff] %v808
      %4863 = vst [vmem:[%s4848] ss:$4 sm:$0xff] %v809
      %4864 = vst [vmem:[%s4850] ss:$4 sm:$0xff] %v810
      %4865 = vst [vmem:[%s4852] ss:$4 sm:$0xff] %v720
      %4866 = vst [vmem:[%s4854] ss:$4 sm:$0xff] %v811
      %4867 = vst [vmem:[%s4856] ss:$4 sm:$0xff] %v812
      %v4868 = vld.sshfl [vmem:[#allocation1] sm:$0xff pattern:$0x73625140]
      %v4869 = vld.sshfl [vmem:[#allocation1 + $0x20] sm:$0xff pattern:$0x73625140]
      %4870 = vst [vmem:[#allocation1] ss:$4 sm:$0xff] %v723
      %4871 = vst [vmem:[%s4844] ss:$4 sm:$0xff] %v814
      %4872 = vst [vmem:[%s4846] ss:$4 sm:$0xff] %v815
      %4873 = vst [vmem:[%s4848] ss:$4 sm:$0xff] %v816
      %4874 = vst [vmem:[%s4850] ss:$4 sm:$0xff] %v726
      %4875 = vst [vmem:[%s4852] ss:$4 sm:$0xff] %v817
      %4876 = vst [vmem:[%s4854] ss:$4 sm:$0xff] %v818
      %4877 = vst [vmem:[%s4856] ss:$4 sm:$0xff] %v819
      %v4878 = vld.sshfl [vmem:[#allocation1] sm:$0xff pattern:$0x73625140]
      %v4879 = vld.sshfl [vmem:[#allocation1 + $0x20] sm:$0xff pattern:$0x73625140]
      %4880 = vst [vmem:[#allocation1] ss:$4 sm:$0xff] %v820
      %4881 = vst [vmem:[%s4844] ss:$4 sm:$0xff] %v821
      %4882 = vst [vmem:[%s4846] ss:$4 sm:$0xff] %v822
      %4883 = vst [vmem:[%s4848] ss:$4 sm:$0xff] %v732
      %4884 = vst [vmem:[%s4850] ss:$4 sm:$0xff] %v823
      %4885 = vst [vmem:[%s4852] ss:$4 sm:$0xff] %v824
      %4886 = vst [vmem:[%s4854] ss:$4 sm:$0xff] %v825
      %4887 = vst [vmem:[%s4856] ss:$4 sm:$0xff] %v735
      %v4888 = vld.sshfl [vmem:[#allocation1] sm:$0xff pattern:$0x73625140]
      %v4889 = vld.sshfl [vmem:[#allocation1 + $0x20] sm:$0xff pattern:$0x73625140]
      %4890 = vst [vmem:[#allocation1] ss:$4 sm:$0xff] %v827
      %4891 = vst [vmem:[%s4844] ss:$4 sm:$0xff] %v828
      %4892 = vst [vmem:[%s4846] ss:$4 sm:$0xff] %v738
      %4893 = vst [vmem:[%s4848] ss:$4 sm:$0xff] %v829
      %4894 = vst [vmem:[%s4850] ss:$4 sm:$0xff] %v830
      %4895 = vst [vmem:[%s4852] ss:$4 sm:$0xff] %v831
      %4896 = vst [vmem:[%s4854] ss:$4 sm:$0xff] %v741
      %4897 = vst [vmem:[%s4856] ss:$4 sm:$0xff] %v832
      %v4898 = vld.sshfl [vmem:[#allocation1] sm:$0xff pattern:$0x73625140]
      %v4899 = vld.sshfl [vmem:[#allocation1 + $0x20] sm:$0xff pattern:$0x73625140]
      %4900 = vst [vmem:[#allocation1] ss:$4 sm:$0xff] %v834
      %4901 = vst [vmem:[%s4844] ss:$4 sm:$0xff] %v744
      %4902 = vst [vmem:[%s4846] ss:$4 sm:$0xff] %v835
      %4903 = vst [vmem:[%s4848] ss:$4 sm:$0xff] %v836
      %4904 = vst [vmem:[%s4850] ss:$4 sm:$0xff] %v837
      %4905 = vst [vmem:[%s4852] ss:$4 sm:$0xff] %v747
      %4906 = vst [vmem:[%s4854] ss:$4 sm:$0xff] %v838
      %4907 = vst [vmem:[%s4856] ss:$4 sm:$0xff] %v839
      %v4908 = vld.sshfl [vmem:[#allocation1] sm:$0xff pattern:$0x73625140]
      %v4909 = vld.sshfl [vmem:[#allocation1 + $0x20] sm:$0xff pattern:$0x73625140]
      %4910 = vst [vmem:[#allocation1] ss:$4 sm:$0xff] %v750
      %4911 = vst [vmem:[%s4844] ss:$4 sm:$0xff] %v841
      %4912 = vst [vmem:[%s4846] ss:$4 sm:$0xff] %v842
      %4913 = vst [vmem:[%s4848] ss:$4 sm:$0xff] %v843
      %4914 = vst [vmem:[%s4850] ss:$4 sm:$0xff] %v753
      %4915 = vst [vmem:[%s4852] ss:$4 sm:$0xff] %v844
      %4916 = vst [vmem:[%s4854] ss:$4 sm:$0xff] %v845
      %4917 = vst [vmem:[%s4856] ss:$4 sm:$0xff] %v846
      %v4918 = vld.sshfl [vmem:[#allocation1] sm:$0xff pattern:$0x73625140]
      %v4919 = vld.sshfl [vmem:[#allocation1 + $0x20] sm:$0xff pattern:$0x73625140]
      %4920 = vst [vmem:[#allocation1] ss:$4 sm:$0xff] %v847
      %4921 = vst [vmem:[%s4844] ss:$4 sm:$0xff] %v848
      %4922 = vst [vmem:[%s4846] ss:$4 sm:$0xff] %v849
      %4923 = vst [vmem:[%s4848] ss:$4 sm:$0xff] %v759
      %4924 = vst [vmem:[%s4850] ss:$4 sm:$0xff] %v850
      %4925 = vst [vmem:[%s4852] ss:$4 sm:$0xff] %v851
      %4926 = vst [vmem:[%s4854] ss:$4 sm:$0xff] %v852
      %4927 = vst [vmem:[%s4856] ss:$4 sm:$0xff] %v762
      %v4928 = vld.sshfl [vmem:[#allocation1] sm:$0xff pattern:$0x73625140]
      %v4929 = vld.sshfl [vmem:[#allocation1 + $0x20] sm:$0xff pattern:$0x73625140]
      %4930 = vst [vmem:[#allocation1] ss:$4 sm:$0xff] %v854
      %4931 = vst [vmem:[%s4844] ss:$4 sm:$0xff] %v855
      %4932 = vst [vmem:[%s4846] ss:$4 sm:$0xff] %v765
      %4933 = vst [vmem:[%s4848] ss:$4 sm:$0xff] %v856
      %4934 = vst [vmem:[%s4850] ss:$4 sm:$0xff] %v857
      %4935 = vst [vmem:[%s4852] ss:$4 sm:$0xff] %v858
      %4936 = vst [vmem:[%s4854] ss:$4 sm:$0xff] %v768
      %4937 = vst [vmem:[%s4856] ss:$4 sm:$0xff] %v859
      %v4938 = vld.sshfl [vmem:[#allocation1] sm:$0xff pattern:$0x73625140]
      %v4939 = vld.sshfl [vmem:[#allocation1 + $0x20] sm:$0xff pattern:$0x73625140]
      %v4940 = vsel %vm1298, %v4858, 0
      %v4942 = vsel %vm1298, %v4859, 0
      %v4944 = vsel %vm1298, %v4868, 0
      %v4946 = vsel %vm1298, %v4869, 0
      %v4948 = vsel %vm1298, %v4878, 0
      %v4950 = vsel %vm1298, %v4879, 0
      %v4952 = vsel %vm1298, %v4888, 0
      %v4954 = vsel %vm1298, %v4889, 0
      %v4956 = vsel %vm1298, %v4898, 0
      %v4958 = vsel %vm1298, %v4899, 0
      %v4960 = vsel %vm1298, %v4908, 0
      %v4962 = vsel %vm1298, %v4909, 0
      %v4964 = vsel %vm1298, %v4918, 0
      %v4966 = vsel %vm1298, %v4919, 0
      %v4968 = vsel %vm1298, %v4928, 0
      %v4970 = vsel %vm1298, %v4929, 0
      %v4972 = vsel %vm1298, %v4938, 0
      %v4974 = vsel %vm1298, %v4939, 0
      %v4977 = vsel %vm1335, %v4842, 0
      %4979 = vmatpush.msra.mxu0 0.0
      %4980 = vmatpush.msra.mxu0 0.0
      %4981 = vmatpush.msra.mxu0 0.0
      %4982 = vmatpush.msra.mxu0 0.0
      %4983 = vmatpush.msra.mxu0 0.0
      %4984 = vmatpush.msra.mxu0 0.0
      %4985 = vmatpush.msra.mxu0 0.0
      %4986 = vmatpush.msra.mxu0 0.0
      %4987 = vmatpush.msra.mxu0 0.0
      %4988 = vmatpush.msra.mxu0 0.0
      %4989 = vmatpush.msra.mxu0 0.0
      %4990 = vmatpush.msra.mxu0 0.0
      %4991 = vmatpush.msra.mxu0 0.0
      %4992 = vmatpush.msra.mxu0 0.0
      %4993 = vmatpush.msra.mxu0 0.0
      %4994 = vmatpush.msra.mxu0 %v4977
      %4995 = vmatmul.f32.gmra.mxu0 %v4940
      %v4996 = vpop.f32.mrf.mxu0
      %v4997 = vadd.f32 0.0, %v4996
      %4998 = vmatmul.f32.gmra.mxu0 %v4942
      %v4999 = vpop.f32.mrf.mxu0
      %v5000 = vadd.f32 0.0, %v4999
      %5001 = vmatmul.f32.gmra.mxu0 %v4944
      %v5002 = vpop.f32.mrf.mxu0
      %v5003 = vadd.f32 0.0, %v5002
      %5004 = vmatmul.f32.gmra.mxu0 %v4946
      %v5005 = vpop.f32.mrf.mxu0
      %v5006 = vadd.f32 0.0, %v5005
      %5007 = vmatmul.f32.gmra.mxu0 %v4948
      %v5008 = vpop.f32.mrf.mxu0
      %v5009 = vadd.f32 0.0, %v5008
      %5010 = vmatmul.f32.gmra.mxu0 %v4950
      %v5011 = vpop.f32.mrf.mxu0
      %v5012 = vadd.f32 0.0, %v5011
      %5013 = vmatmul.f32.gmra.mxu0 %v4952
      %v5014 = vpop.f32.mrf.mxu0
      %v5015 = vadd.f32 0.0, %v5014
      %5016 = vmatmul.f32.gmra.mxu0 %v4954
      %v5017 = vpop.f32.mrf.mxu0
      %v5018 = vadd.f32 0.0, %v5017
      %5019 = vmatmul.f32.gmra.mxu0 %v4956
      %v5020 = vpop.f32.mrf.mxu0
      %v5021 = vadd.f32 0.0, %v5020
      %5022 = vmatmul.f32.gmra.mxu0 %v4958
      %v5023 = vpop.f32.mrf.mxu0
      %v5024 = vadd.f32 0.0, %v5023
      %5025 = vmatmul.f32.gmra.mxu0 %v4960
      %v5026 = vpop.f32.mrf.mxu0
      %v5027 = vadd.f32 0.0, %v5026
      %5028 = vmatmul.f32.gmra.mxu0 %v4962
      %v5029 = vpop.f32.mrf.mxu0
      %v5030 = vadd.f32 0.0, %v5029
      %5031 = vmatmul.f32.gmra.mxu0 %v4964
      %v5032 = vpop.f32.mrf.mxu0
      %v5033 = vadd.f32 0.0, %v5032
      %5034 = vmatmul.f32.gmra.mxu0 %v4966
      %v5035 = vpop.f32.mrf.mxu0
      %v5036 = vadd.f32 0.0, %v5035
      %5037 = vmatmul.f32.gmra.mxu0 %v4968
      %v5038 = vpop.f32.mrf.mxu0
      %v5039 = vadd.f32 0.0, %v5038
      %5040 = vmatmul.f32.gmra.mxu0 %v4970
      %v5041 = vpop.f32.mrf.mxu0
      %v5042 = vadd.f32 0.0, %v5041
      %5043 = vmatmul.f32.gmra.mxu0 %v4972
      %v5044 = vpop.f32.mrf.mxu0
      %v5045 = vadd.f32 0.0, %v5044
      %5046 = vmatmul.f32.gmra.mxu0 %v4974
      %v5047 = vpop.f32.mrf.mxu0
      %v5048 = vadd.f32 0.0, %v5047
      %5049 = vdwg.mxu0
      %v5050 = vadd.f32 %v4823, %v4997
      %v5051 = vadd.f32 %v4824, %v5000
      %v5052 = vadd.f32 %v4825, %v5003
      %v5053 = vadd.f32 %v4826, %v5006
      %v5054 = vadd.f32 %v4827, %v5009
      %v5055 = vadd.f32 %v4828, %v5012
      %v5056 = vadd.f32 %v4829, %v5015
      %v5057 = vadd.f32 %v4830, %v5018
      %v5058 = vadd.f32 %v4831, %v5021
      %v5059 = vadd.f32 %v4832, %v5024
      %v5060 = vadd.f32 %v4833, %v5027
      %v5061 = vadd.f32 %v4834, %v5030
      %v5062 = vadd.f32 %v4835, %v5033
      %v5063 = vadd.f32 %v4836, %v5036
      %v5064 = vadd.f32 %v4837, %v5039
      %v5065 = vadd.f32 %v4838, %v5042
      %v5066 = vadd.f32 %v4839, %v5045
      %v5067 = vadd.f32 %v4840, %v5048
      %v5068 = vadd.f32 %v5050, %v2072
      %v5069 = vadd.f32 %v5051, %v2072
      %v5070 = vadd.f32 %v5052, %v2072
      %v5071 = vadd.f32 %v5053, %v2072
      %v5072 = vadd.f32 %v5054, %v2072
      %v5073 = vadd.f32 %v5055, %v2072
      %v5074 = vadd.f32 %v5056, %v2072
      %v5075 = vadd.f32 %v5057, %v2072
      %v5076 = vadd.f32 %v5058, %v2072
      %v5077 = vadd.f32 %v5059, %v2072
      %v5078 = vadd.f32 %v5060, %v2072
      %v5079 = vadd.f32 %v5061, %v2072
      %v5080 = vadd.f32 %v5062, %v2072
      %v5081 = vadd.f32 %v5063, %v2072
      %v5082 = vadd.f32 %v5064, %v2072
      %v5083 = vadd.f32 %v5065, %v2072
      %v5084 = vadd.f32 %v5066, %v2072
      %v5085 = vadd.f32 %v5067, %v2072
      %v5086 = vmul.f32 %v5068, %v1189
      %v5087 = vmul.f32 %v5069, %v1189
      %v5088 = vmul.f32 %v5070, %v1190
      %v5089 = vmul.f32 %v5071, %v1190
      %v5090 = vmul.f32 %v5072, %v1191
      %v5091 = vmul.f32 %v5073, %v1191
      %v5092 = vmul.f32 %v5074, %v1192
      %v5093 = vmul.f32 %v5075, %v1192
      %v5094 = vmul.f32 %v5076, %v1193
      %v5095 = vmul.f32 %v5077, %v1193
      %v5096 = vmul.f32 %v5078, %v1194
      %v5097 = vmul.f32 %v5079, %v1194
      %v5098 = vmul.f32 %v5080, %v1195
      %v5099 = vmul.f32 %v5081, %v1195
      %v5100 = vmul.f32 %v5082, %v1196
      %v5101 = vmul.f32 %v5083, %v1196
      %v5102 = vmul.f32 %v5084, %v1197
      %v5103 = vmul.f32 %v5085, %v1197
      %v5122 = vrot.slane %v5086, 7
      %v5123 = vrot.slane %v5087, 7
      %v5124 = vsel %vm680, %v5122, %v5123
      %v5125 = vrot.slane %v5088, 7
      %v5126 = vrot.slane %v5089, 7
      %v5127 = vsel %vm680, %v5125, %v5126
      %v5128 = vrot.slane %v5090, 7
      %v5129 = vrot.slane %v5091, 7
      %v5130 = vsel %vm680, %v5128, %v5129
      %v5131 = vrot.slane %v5092, 7
      %v5132 = vrot.slane %v5093, 7
      %v5133 = vsel %vm680, %v5131, %v5132
      %v5134 = vrot.slane %v5094, 7
      %v5135 = vrot.slane %v5095, 7
      %v5136 = vsel %vm680, %v5134, %v5135
      %v5137 = vrot.slane %v5096, 7
      %v5138 = vrot.slane %v5097, 7
      %v5139 = vsel %vm680, %v5137, %v5138
      %v5140 = vrot.slane %v5098, 7
      %v5141 = vrot.slane %v5099, 7
      %v5142 = vsel %vm680, %v5140, %v5141
      %v5143 = vrot.slane %v5100, 7
      %v5144 = vrot.slane %v5101, 7
      %v5145 = vsel %vm680, %v5143, %v5144
      %v5146 = vrot.slane %v5102, 7
      %v5147 = vrot.slane %v5103, 7
      %v5148 = vsel %vm680, %v5146, %v5147
      %v5176 = vsel %vm680, 0.0, %v5122
      %v5177 = vsel %vm680, 0.0, %v5125
      %v5178 = vsel %vm680, 0.0, %v5128
      %v5179 = vsel %vm680, 0.0, %v5131
      %v5180 = vsel %vm680, 0.0, %v5134
      %v5181 = vsel %vm680, 0.0, %v5137
      %v5182 = vsel %vm680, 0.0, %v5140
      %v5183 = vsel %vm680, 0.0, %v5143
      %v5184 = vsel %vm680, 0.0, %v5146
      %v5185 = vsel %vm680, %v5123, 0.0
      %v5186 = vsel %vm680, %v5126, 0.0
      %v5187 = vsel %vm680, %v5129, 0.0
      %v5188 = vsel %vm680, %v5132, 0.0
      %v5189 = vsel %vm680, %v5135, 0.0
      %v5190 = vsel %vm680, %v5138, 0.0
      %v5191 = vsel %vm680, %v5141, 0.0
      %v5192 = vsel %vm680, %v5144, 0.0
      %v5193 = vsel %vm680, %v5147, 0.0
      %v5194 = vld [vmem:[%s4] sm:$0x7]
      %v5195 = vld [vmem:[%s4 + $0x4] sm:$0x7]
      %v5196 = vld [vmem:[%s4 + $0x8] sm:$0x7]
      %v5197 = vld [vmem:[%s5] sm:$0x1]
      %v5198 = vperm.slane %v5194, 0
      %v5199 = vmul.f32 %v5176, %v5198
      %v5200 = vmul.f32 %v5124, %v5198
      %v5201 = vmul.f32 %v5177, %v5198
      %v5202 = vmul.f32 %v5127, %v5198
      %v5203 = vmul.f32 %v5178, %v5198
      %v5204 = vmul.f32 %v5130, %v5198
      %v5205 = vmul.f32 %v5179, %v5198
      %v5206 = vmul.f32 %v5133, %v5198
      %v5207 = vmul.f32 %v5180, %v5198
      %v5208 = vmul.f32 %v5136, %v5198
      %v5209 = vmul.f32 %v5181, %v5198
      %v5210 = vmul.f32 %v5139, %v5198
      %v5211 = vmul.f32 %v5182, %v5198
      %v5212 = vmul.f32 %v5142, %v5198
      %v5213 = vmul.f32 %v5183, %v5198
      %v5214 = vmul.f32 %v5145, %v5198
      %v5215 = vadd.f32 %v5199, 0.0
      %v5216 = vadd.f32 %v5200, 0.0
      %v5217 = vadd.f32 %v5201, 0.0
      %v5218 = vadd.f32 %v5202, 0.0
      %v5219 = vadd.f32 %v5203, 0.0
      %v5220 = vadd.f32 %v5204, 0.0
      %v5221 = vadd.f32 %v5205, 0.0
      %v5222 = vadd.f32 %v5206, 0.0
      %v5223 = vadd.f32 %v5207, 0.0
      %v5224 = vadd.f32 %v5208, 0.0
      %v5225 = vadd.f32 %v5209, 0.0
      %v5226 = vadd.f32 %v5210, 0.0
      %v5227 = vadd.f32 %v5211, 0.0
      %v5228 = vadd.f32 %v5212, 0.0
      %v5229 = vadd.f32 %v5213, 0.0
      %v5230 = vadd.f32 %v5214, 0.0
      %v5231 = vperm.slane %v5194, 1
      %v5232 = vmul.f32 %v4178, %v5231
      %v5233 = vmul.f32 %v4126, %v5231
      %v5234 = vmul.f32 %v4187, %v5231
      %v5235 = vmul.f32 %v4179, %v5231
      %v5236 = vmul.f32 %v4129, %v5231
      %v5237 = vmul.f32 %v4188, %v5231
      %v5238 = vmul.f32 %v4180, %v5231
      %v5239 = vmul.f32 %v4132, %v5231
      %v5240 = vmul.f32 %v4189, %v5231
      %v5241 = vmul.f32 %v4181, %v5231
      %v5242 = vmul.f32 %v4135, %v5231
      %v5243 = vmul.f32 %v4190, %v5231
      %v5244 = vmul.f32 %v4182, %v5231
      %v5245 = vmul.f32 %v4138, %v5231
      %v5246 = vmul.f32 %v4191, %v5231
      %v5247 = vmul.f32 %v4183, %v5231
      %v5248 = vmul.f32 %v4141, %v5231
      %v5249 = vmul.f32 %v4192, %v5231
      %v5250 = vmul.f32 %v4184, %v5231
      %v5251 = vmul.f32 %v4144, %v5231
      %v5252 = vmul.f32 %v4193, %v5231
      %v5253 = vmul.f32 %v4185, %v5231
      %v5254 = vmul.f32 %v4147, %v5231
      %v5255 = vmul.f32 %v4194, %v5231
      %vm5280 = vcmask 1046528
      %v5281 = vrot.slane %v5232, 1
      %v5282 = vrot.slane %v5233, 1
      %v5283 = vsel %vm5280, %v5281, %v5282
      %v5284 = vrot.slane %v5234, 1
      %v5285 = vsel %vm5280, %v5282, %v5284
      %v5286 = vrot.slane %v5235, 1
      %v5287 = vrot.slane %v5236, 1
      %v5288 = vsel %vm5280, %v5286, %v5287
      %v5289 = vrot.slane %v5237, 1
      %v5290 = vsel %vm5280, %v5287, %v5289
      %v5291 = vrot.slane %v5238, 1
      %v5292 = vrot.slane %v5239, 1
      %v5293 = vsel %vm5280, %v5291, %v5292
      %v5294 = vrot.slane %v5240, 1
      %v5295 = vsel %vm5280, %v5292, %v5294
      %v5296 = vrot.slane %v5241, 1
      %v5297 = vrot.slane %v5242, 1
      %v5298 = vsel %vm5280, %v5296, %v5297
      %v5299 = vrot.slane %v5243, 1
      %v5300 = vsel %vm5280, %v5297, %v5299
      %v5301 = vrot.slane %v5244, 1
      %v5302 = vrot.slane %v5245, 1
      %v5303 = vsel %vm5280, %v5301, %v5302
      %v5304 = vrot.slane %v5246, 1
      %v5305 = vsel %vm5280, %v5302, %v5304
      %v5306 = vrot.slane %v5247, 1
      %v5307 = vrot.slane %v5248, 1
      %v5308 = vsel %vm5280, %v5306, %v5307
      %v5309 = vrot.slane %v5249, 1
      %v5310 = vsel %vm5280, %v5307, %v5309
      %v5311 = vrot.slane %v5250, 1
      %v5312 = vrot.slane %v5251, 1
      %v5313 = vsel %vm5280, %v5311, %v5312
      %v5314 = vrot.slane %v5252, 1
      %v5315 = vsel %vm5280, %v5312, %v5314
      %v5316 = vrot.slane %v5253, 1
      %v5317 = vrot.slane %v5254, 1
      %v5318 = vsel %vm5280, %v5316, %v5317
      %v5319 = vrot.slane %v5255, 1
      %v5320 = vsel %vm5280, %v5317, %v5319
      %v5337 = vadd.f32 %v5215, %v5283
      %v5338 = vadd.f32 %v5216, %v5285
      %v5339 = vadd.f32 %v5217, %v5288
      %v5340 = vadd.f32 %v5218, %v5290
      %v5341 = vadd.f32 %v5219, %v5293
      %v5342 = vadd.f32 %v5220, %v5295
      %v5343 = vadd.f32 %v5221, %v5298
      %v5344 = vadd.f32 %v5222, %v5300
      %v5345 = vadd.f32 %v5223, %v5303
      %v5346 = vadd.f32 %v5224, %v5305
      %v5347 = vadd.f32 %v5225, %v5308
      %v5348 = vadd.f32 %v5226, %v5310
      %v5349 = vadd.f32 %v5227, %v5313
      %v5350 = vadd.f32 %v5228, %v5315
      %v5351 = vadd.f32 %v5229, %v5318
      %v5352 = vadd.f32 %v5230, %v5320
      %v5353 = vperm.slane %v5194, 2
      %v5354 = vmul.f32 %v5176, %v5353
      %v5355 = vmul.f32 %v5124, %v5353
      %v5356 = vmul.f32 %v5185, %v5353
      %v5357 = vmul.f32 %v5177, %v5353
      %v5358 = vmul.f32 %v5127, %v5353
      %v5359 = vmul.f32 %v5186, %v5353
      %v5360 = vmul.f32 %v5178, %v5353
      %v5361 = vmul.f32 %v5130, %v5353
      %v5362 = vmul.f32 %v5187, %v5353
      %v5363 = vmul.f32 %v5179, %v5353
      %v5364 = vmul.f32 %v5133, %v5353
      %v5365 = vmul.f32 %v5188, %v5353
      %v5366 = vmul.f32 %v5180, %v5353
      %v5367 = vmul.f32 %v5136, %v5353
      %v5368 = vmul.f32 %v5189, %v5353
      %v5369 = vmul.f32 %v5181, %v5353
      %v5370 = vmul.f32 %v5139, %v5353
      %v5371 = vmul.f32 %v5190, %v5353
      %v5372 = vmul.f32 %v5182, %v5353
      %v5373 = vmul.f32 %v5142, %v5353
      %v5374 = vmul.f32 %v5191, %v5353
      %v5375 = vmul.f32 %v5183, %v5353
      %v5376 = vmul.f32 %v5145, %v5353
      %v5377 = vmul.f32 %v5192, %v5353
      %v5402 = vrot.slane %v5354, 1
      %v5403 = vrot.slane %v5355, 1
      %v5404 = vsel %vm5280, %v5402, %v5403
      %v5405 = vrot.slane %v5356, 1
      %v5406 = vsel %vm5280, %v5403, %v5405
      %v5407 = vrot.slane %v5357, 1
      %v5408 = vrot.slane %v5358, 1
      %v5409 = vsel %vm5280, %v5407, %v5408
      %v5410 = vrot.slane %v5359, 1
      %v5411 = vsel %vm5280, %v5408, %v5410
      %v5412 = vrot.slane %v5360, 1
      %v5413 = vrot.slane %v5361, 1
      %v5414 = vsel %vm5280, %v5412, %v5413
      %v5415 = vrot.slane %v5362, 1
      %v5416 = vsel %vm5280, %v5413, %v5415
      %v5417 = vrot.slane %v5363, 1
      %v5418 = vrot.slane %v5364, 1
      %v5419 = vsel %vm5280, %v5417, %v5418
      %v5420 = vrot.slane %v5365, 1
      %v5421 = vsel %vm5280, %v5418, %v5420
      %v5422 = vrot.slane %v5366, 1
      %v5423 = vrot.slane %v5367, 1
      %v5424 = vsel %vm5280, %v5422, %v5423
      %v5425 = vrot.slane %v5368, 1
      %v5426 = vsel %vm5280, %v5423, %v5425
      %v5427 = vrot.slane %v5369, 1
      %v5428 = vrot.slane %v5370, 1
      %v5429 = vsel %vm5280, %v5427, %v5428
      %v5430 = vrot.slane %v5371, 1
      %v5431 = vsel %vm5280, %v5428, %v5430
      %v5432 = vrot.slane %v5372, 1
      %v5433 = vrot.slane %v5373, 1
      %v5434 = vsel %vm5280, %v5432, %v5433
      %v5435 = vrot.slane %v5374, 1
      %v5436 = vsel %vm5280, %v5433, %v5435
      %v5437 = vrot.slane %v5375, 1
      %v5438 = vrot.slane %v5376, 1
      %v5439 = vsel %vm5280, %v5437, %v5438
      %v5440 = vrot.slane %v5377, 1
      %v5441 = vsel %vm5280, %v5438, %v5440
      %v5458 = vadd.f32 %v5337, %v5404
      %v5459 = vadd.f32 %v5338, %v5406
      %v5460 = vadd.f32 %v5339, %v5409
      %v5461 = vadd.f32 %v5340, %v5411
      %v5462 = vadd.f32 %v5341, %v5414
      %v5463 = vadd.f32 %v5342, %v5416
      %v5464 = vadd.f32 %v5343, %v5419
      %v5465 = vadd.f32 %v5344, %v5421
      %v5466 = vadd.f32 %v5345, %v5424
      %v5467 = vadd.f32 %v5346, %v5426
      %v5468 = vadd.f32 %v5347, %v5429
      %v5469 = vadd.f32 %v5348, %v5431
      %v5470 = vadd.f32 %v5349, %v5434
      %v5471 = vadd.f32 %v5350, %v5436
      %v5472 = vadd.f32 %v5351, %v5439
      %v5473 = vadd.f32 %v5352, %v5441
      %v5474 = vperm.slane %v5195, 0
      %v5475 = vmul.f32 %v3180, %v5474
      %v5476 = vmul.f32 %v3128, %v5474
      %v5477 = vmul.f32 %v3181, %v5474
      %v5478 = vmul.f32 %v3131, %v5474
      %v5479 = vmul.f32 %v3182, %v5474
      %v5480 = vmul.f32 %v3134, %v5474
      %v5481 = vmul.f32 %v3183, %v5474
      %v5482 = vmul.f32 %v3137, %v5474
      %v5483 = vmul.f32 %v3184, %v5474
      %v5484 = vmul.f32 %v3140, %v5474
      %v5485 = vmul.f32 %v3185, %v5474
      %v5486 = vmul.f32 %v3143, %v5474
      %v5487 = vmul.f32 %v3186, %v5474
      %v5488 = vmul.f32 %v3146, %v5474
      %v5489 = vmul.f32 %v3187, %v5474
      %v5490 = vmul.f32 %v3149, %v5474
      %v5491 = vadd.f32 %v5458, %v5475
      %v5492 = vadd.f32 %v5459, %v5476
      %v5493 = vadd.f32 %v5460, %v5477
      %v5494 = vadd.f32 %v5461, %v5478
      %v5495 = vadd.f32 %v5462, %v5479
      %v5496 = vadd.f32 %v5463, %v5480
      %v5497 = vadd.f32 %v5464, %v5481
      %v5498 = vadd.f32 %v5465, %v5482
      %v5499 = vadd.f32 %v5466, %v5483
      %v5500 = vadd.f32 %v5467, %v5484
      %v5501 = vadd.f32 %v5468, %v5485
      %v5502 = vadd.f32 %v5469, %v5486
      %v5503 = vadd.f32 %v5470, %v5487
      %v5504 = vadd.f32 %v5471, %v5488
      %v5505 = vadd.f32 %v5472, %v5489
      %v5506 = vadd.f32 %v5473, %v5490
      %v5507 = vperm.slane %v5195, 1
      %v5508 = vmul.f32 %v2182, %v5507
      %v5509 = vmul.f32 %v2130, %v5507
      %v5510 = vmul.f32 %v2191, %v5507
      %v5511 = vmul.f32 %v2183, %v5507
      %v5512 = vmul.f32 %v2133, %v5507
      %v5513 = vmul.f32 %v2192, %v5507
      %v5514 = vmul.f32 %v2184, %v5507
      %v5515 = vmul.f32 %v2136, %v5507
      %v5516 = vmul.f32 %v2193, %v5507
      %v5517 = vmul.f32 %v2185, %v5507
      %v5518 = vmul.f32 %v2139, %v5507
      %v5519 = vmul.f32 %v2194, %v5507
      %v5520 = vmul.f32 %v2186, %v5507
      %v5521 = vmul.f32 %v2142, %v5507
      %v5522 = vmul.f32 %v2195, %v5507
      %v5523 = vmul.f32 %v2187, %v5507
      %v5524 = vmul.f32 %v2145, %v5507
      %v5525 = vmul.f32 %v2196, %v5507
      %v5526 = vmul.f32 %v2188, %v5507
      %v5527 = vmul.f32 %v2148, %v5507
      %v5528 = vmul.f32 %v2197, %v5507
      %v5529 = vmul.f32 %v2189, %v5507
      %v5530 = vmul.f32 %v2151, %v5507
      %v5531 = vmul.f32 %v2198, %v5507
      %v5556 = vrot.slane %v5508, 1
      %v5557 = vrot.slane %v5509, 1
      %v5558 = vsel %vm5280, %v5556, %v5557
      %v5559 = vrot.slane %v5510, 1
      %v5560 = vsel %vm5280, %v5557, %v5559
      %v5561 = vrot.slane %v5511, 1
      %v5562 = vrot.slane %v5512, 1
      %v5563 = vsel %vm5280, %v5561, %v5562
      %v5564 = vrot.slane %v5513, 1
      %v5565 = vsel %vm5280, %v5562, %v5564
      %v5566 = vrot.slane %v5514, 1
      %v5567 = vrot.slane %v5515, 1
      %v5568 = vsel %vm5280, %v5566, %v5567
      %v5569 = vrot.slane %v5516, 1
      %v5570 = vsel %vm5280, %v5567, %v5569
      %v5571 = vrot.slane %v5517, 1
      %v5572 = vrot.slane %v5518, 1
      %v5573 = vsel %vm5280, %v5571, %v5572
      %v5574 = vrot.slane %v5519, 1
      %v5575 = vsel %vm5280, %v5572, %v5574
      %v5576 = vrot.slane %v5520, 1
      %v5577 = vrot.slane %v5521, 1
      %v5578 = vsel %vm5280, %v5576, %v5577
      %v5579 = vrot.slane %v5522, 1
      %v5580 = vsel %vm5280, %v5577, %v5579
      %v5581 = vrot.slane %v5523, 1
      %v5582 = vrot.slane %v5524, 1
      %v5583 = vsel %vm5280, %v5581, %v5582
      %v5584 = vrot.slane %v5525, 1
      %v5585 = vsel %vm5280, %v5582, %v5584
      %v5586 = vrot.slane %v5526, 1
      %v5587 = vrot.slane %v5527, 1
      %v5588 = vsel %vm5280, %v5586, %v5587
      %v5589 = vrot.slane %v5528, 1
      %v5590 = vsel %vm5280, %v5587, %v5589
      %v5591 = vrot.slane %v5529, 1
      %v5592 = vrot.slane %v5530, 1
      %v5593 = vsel %vm5280, %v5591, %v5592
      %v5594 = vrot.slane %v5531, 1
      %v5595 = vsel %vm5280, %v5592, %v5594
      %v5612 = vadd.f32 %v5491, %v5558
      %v5613 = vadd.f32 %v5492, %v5560
      %v5614 = vadd.f32 %v5493, %v5563
      %v5615 = vadd.f32 %v5494, %v5565
      %v5616 = vadd.f32 %v5495, %v5568
      %v5617 = vadd.f32 %v5496, %v5570
      %v5618 = vadd.f32 %v5497, %v5573
      %v5619 = vadd.f32 %v5498, %v5575
      %v5620 = vadd.f32 %v5499, %v5578
      %v5621 = vadd.f32 %v5500, %v5580
      %v5622 = vadd.f32 %v5501, %v5583
      %v5623 = vadd.f32 %v5502, %v5585
      %v5624 = vadd.f32 %v5503, %v5588
      %v5625 = vadd.f32 %v5504, %v5590
      %v5626 = vadd.f32 %v5505, %v5593
      %v5627 = vadd.f32 %v5506, %v5595
      %v5628 = vperm.slane %v5195, 2
      %v5629 = vmul.f32 %v3180, %v5628
      %v5630 = vmul.f32 %v3128, %v5628
      %v5631 = vmul.f32 %v3189, %v5628
      %v5632 = vmul.f32 %v3181, %v5628
      %v5633 = vmul.f32 %v3131, %v5628
      %v5634 = vmul.f32 %v3190, %v5628
      %v5635 = vmul.f32 %v3182, %v5628
      %v5636 = vmul.f32 %v3134, %v5628
      %v5637 = vmul.f32 %v3191, %v5628
      %v5638 = vmul.f32 %v3183, %v5628
      %v5639 = vmul.f32 %v3137, %v5628
      %v5640 = vmul.f32 %v3192, %v5628
      %v5641 = vmul.f32 %v3184, %v5628
      %v5642 = vmul.f32 %v3140, %v5628
      %v5643 = vmul.f32 %v3193, %v5628
      %v5644 = vmul.f32 %v3185, %v5628
      %v5645 = vmul.f32 %v3143, %v5628
      %v5646 = vmul.f32 %v3194, %v5628
      %v5647 = vmul.f32 %v3186, %v5628
      %v5648 = vmul.f32 %v3146, %v5628
      %v5649 = vmul.f32 %v3195, %v5628
      %v5650 = vmul.f32 %v3187, %v5628
      %v5651 = vmul.f32 %v3149, %v5628
      %v5652 = vmul.f32 %v3196, %v5628
      %v5677 = vrot.slane %v5629, 1
      %v5678 = vrot.slane %v5630, 1
      %v5679 = vsel %vm5280, %v5677, %v5678
      %v5680 = vrot.slane %v5631, 1
      %v5681 = vsel %vm5280, %v5678, %v5680
      %v5682 = vrot.slane %v5632, 1
      %v5683 = vrot.slane %v5633, 1
      %v5684 = vsel %vm5280, %v5682, %v5683
      %v5685 = vrot.slane %v5634, 1
      %v5686 = vsel %vm5280, %v5683, %v5685
      %v5687 = vrot.slane %v5635, 1
      %v5688 = vrot.slane %v5636, 1
      %v5689 = vsel %vm5280, %v5687, %v5688
      %v5690 = vrot.slane %v5637, 1
      %v5691 = vsel %vm5280, %v5688, %v5690
      %v5692 = vrot.slane %v5638, 1
      %v5693 = vrot.slane %v5639, 1
      %v5694 = vsel %vm5280, %v5692, %v5693
      %v5695 = vrot.slane %v5640, 1
      %v5696 = vsel %vm5280, %v5693, %v5695
      %v5697 = vrot.slane %v5641, 1
      %v5698 = vrot.slane %v5642, 1
      %v5699 = vsel %vm5280, %v5697, %v5698
      %v5700 = vrot.slane %v5643, 1
      %v5701 = vsel %vm5280, %v5698, %v5700
      %v5702 = vrot.slane %v5644, 1
      %v5703 = vrot.slane %v5645, 1
      %v5704 = vsel %vm5280, %v5702, %v5703
      %v5705 = vrot.slane %v5646, 1
      %v5706 = vsel %vm5280, %v5703, %v5705
      %v5707 = vrot.slane %v5647, 1
      %v5708 = vrot.slane %v5648, 1
      %v5709 = vsel %vm5280, %v5707, %v5708
      %v5710 = vrot.slane %v5649, 1
      %v5711 = vsel %vm5280, %v5708, %v5710
      %v5712 = vrot.slane %v5650, 1
      %v5713 = vrot.slane %v5651, 1
      %v5714 = vsel %vm5280, %v5712, %v5713
      %v5715 = vrot.slane %v5652, 1
      %v5716 = vsel %vm5280, %v5713, %v5715
      %v5733 = vadd.f32 %v5612, %v5679
      %v5734 = vadd.f32 %v5613, %v5681
      %v5735 = vadd.f32 %v5614, %v5684
      %v5736 = vadd.f32 %v5615, %v5686
      %v5737 = vadd.f32 %v5616, %v5689
      %v5738 = vadd.f32 %v5617, %v5691
      %v5739 = vadd.f32 %v5618, %v5694
      %v5740 = vadd.f32 %v5619, %v5696
      %v5741 = vadd.f32 %v5620, %v5699
      %v5742 = vadd.f32 %v5621, %v5701
      %v5743 = vadd.f32 %v5622, %v5704
      %v5744 = vadd.f32 %v5623, %v5706
      %v5745 = vadd.f32 %v5624, %v5709
      %v5746 = vadd.f32 %v5625, %v5711
      %v5747 = vadd.f32 %v5626, %v5714
      %v5748 = vadd.f32 %v5627, %v5716
      %v5749 = vperm.slane %v5196, 0
      %v5750 = vmul.f32 %v5177, %v5749
      %v5751 = vmul.f32 %v5127, %v5749
      %v5752 = vmul.f32 %v5178, %v5749
      %v5753 = vmul.f32 %v5130, %v5749
      %v5754 = vmul.f32 %v5179, %v5749
      %v5755 = vmul.f32 %v5133, %v5749
      %v5756 = vmul.f32 %v5180, %v5749
      %v5757 = vmul.f32 %v5136, %v5749
      %v5758 = vmul.f32 %v5181, %v5749
      %v5759 = vmul.f32 %v5139, %v5749
      %v5760 = vmul.f32 %v5182, %v5749
      %v5761 = vmul.f32 %v5142, %v5749
      %v5762 = vmul.f32 %v5183, %v5749
      %v5763 = vmul.f32 %v5145, %v5749
      %v5764 = vmul.f32 %v5184, %v5749
      %v5765 = vmul.f32 %v5148, %v5749
      %v5766 = vadd.f32 %v5733, %v5750
      %v5767 = vadd.f32 %v5734, %v5751
      %v5768 = vadd.f32 %v5735, %v5752
      %v5769 = vadd.f32 %v5736, %v5753
      %v5770 = vadd.f32 %v5737, %v5754
      %v5771 = vadd.f32 %v5738, %v5755
      %v5772 = vadd.f32 %v5739, %v5756
      %v5773 = vadd.f32 %v5740, %v5757
      %v5774 = vadd.f32 %v5741, %v5758
      %v5775 = vadd.f32 %v5742, %v5759
      %v5776 = vadd.f32 %v5743, %v5760
      %v5777 = vadd.f32 %v5744, %v5761
      %v5778 = vadd.f32 %v5745, %v5762
      %v5779 = vadd.f32 %v5746, %v5763
      %v5780 = vadd.f32 %v5747, %v5764
      %v5781 = vadd.f32 %v5748, %v5765
      %v5782 = vperm.slane %v5196, 1
      %v5783 = vmul.f32 %v4179, %v5782
      %v5784 = vmul.f32 %v4129, %v5782
      %v5785 = vmul.f32 %v4188, %v5782
      %v5786 = vmul.f32 %v4180, %v5782
      %v5787 = vmul.f32 %v4132, %v5782
      %v5788 = vmul.f32 %v4189, %v5782
      %v5789 = vmul.f32 %v4181, %v5782
      %v5790 = vmul.f32 %v4135, %v5782
      %v5791 = vmul.f32 %v4190, %v5782
      %v5792 = vmul.f32 %v4182, %v5782
      %v5793 = vmul.f32 %v4138, %v5782
      %v5794 = vmul.f32 %v4191, %v5782
      %v5795 = vmul.f32 %v4183, %v5782
      %v5796 = vmul.f32 %v4141, %v5782
      %v5797 = vmul.f32 %v4192, %v5782
      %v5798 = vmul.f32 %v4184, %v5782
      %v5799 = vmul.f32 %v4144, %v5782
      %v5800 = vmul.f32 %v4193, %v5782
      %v5801 = vmul.f32 %v4185, %v5782
      %v5802 = vmul.f32 %v4147, %v5782
      %v5803 = vmul.f32 %v4194, %v5782
      %v5804 = vmul.f32 %v4186, %v5782
      %v5805 = vmul.f32 %v4150, %v5782
      %v5806 = vmul.f32 %v4195, %v5782
      %v5831 = vrot.slane %v5783, 1
      %v5832 = vrot.slane %v5784, 1
      %v5833 = vsel %vm5280, %v5831, %v5832
      %v5834 = vrot.slane %v5785, 1
      %v5835 = vsel %vm5280, %v5832, %v5834
      %v5836 = vrot.slane %v5786, 1
      %v5837 = vrot.slane %v5787, 1
      %v5838 = vsel %vm5280, %v5836, %v5837
      %v5839 = vrot.slane %v5788, 1
      %v5840 = vsel %vm5280, %v5837, %v5839
      %v5841 = vrot.slane %v5789, 1
      %v5842 = vrot.slane %v5790, 1
      %v5843 = vsel %vm5280, %v5841, %v5842
      %v5844 = vrot.slane %v5791, 1
      %v5845 = vsel %vm5280, %v5842, %v5844
      %v5846 = vrot.slane %v5792, 1
      %v5847 = vrot.slane %v5793, 1
      %v5848 = vsel %vm5280, %v5846, %v5847
      %v5849 = vrot.slane %v5794, 1
      %v5850 = vsel %vm5280, %v5847, %v5849
      %v5851 = vrot.slane %v5795, 1
      %v5852 = vrot.slane %v5796, 1
      %v5853 = vsel %vm5280, %v5851, %v5852
      %v5854 = vrot.slane %v5797, 1
      %v5855 = vsel %vm5280, %v5852, %v5854
      %v5856 = vrot.slane %v5798, 1
      %v5857 = vrot.slane %v5799, 1
      %v5858 = vsel %vm5280, %v5856, %v5857
      %v5859 = vrot.slane %v5800, 1
      %v5860 = vsel %vm5280, %v5857, %v5859
      %v5861 = vrot.slane %v5801, 1
      %v5862 = vrot.slane %v5802, 1
      %v5863 = vsel %vm5280, %v5861, %v5862
      %v5864 = vrot.slane %v5803, 1
      %v5865 = vsel %vm5280, %v5862, %v5864
      %v5866 = vrot.slane %v5804, 1
      %v5867 = vrot.slane %v5805, 1
      %v5868 = vsel %vm5280, %v5866, %v5867
      %v5869 = vrot.slane %v5806, 1
      %v5870 = vsel %vm5280, %v5867, %v5869
      %v5887 = vadd.f32 %v5766, %v5833
      %v5888 = vadd.f32 %v5767, %v5835
      %v5889 = vadd.f32 %v5768, %v5838
      %v5890 = vadd.f32 %v5769, %v5840
      %v5891 = vadd.f32 %v5770, %v5843
      %v5892 = vadd.f32 %v5771, %v5845
      %v5893 = vadd.f32 %v5772, %v5848
      %v5894 = vadd.f32 %v5773, %v5850
      %v5895 = vadd.f32 %v5774, %v5853
      %v5896 = vadd.f32 %v5775, %v5855
      %v5897 = vadd.f32 %v5776, %v5858
      %v5898 = vadd.f32 %v5777, %v5860
      %v5899 = vadd.f32 %v5778, %v5863
      %v5900 = vadd.f32 %v5779, %v5865
      %v5901 = vadd.f32 %v5780, %v5868
      %v5902 = vadd.f32 %v5781, %v5870
      %v5903 = vperm.slane %v5196, 2
      %v5904 = vmul.f32 %v5177, %v5903
      %v5905 = vmul.f32 %v5127, %v5903
      %v5906 = vmul.f32 %v5186, %v5903
      %v5907 = vmul.f32 %v5178, %v5903
      %v5908 = vmul.f32 %v5130, %v5903
      %v5909 = vmul.f32 %v5187, %v5903
      %v5910 = vmul.f32 %v5179, %v5903
      %v5911 = vmul.f32 %v5133, %v5903
      %v5912 = vmul.f32 %v5188, %v5903
      %v5913 = vmul.f32 %v5180, %v5903
      %v5914 = vmul.f32 %v5136, %v5903
      %v5915 = vmul.f32 %v5189, %v5903
      %v5916 = vmul.f32 %v5181, %v5903
      %v5917 = vmul.f32 %v5139, %v5903
      %v5918 = vmul.f32 %v5190, %v5903
      %v5919 = vmul.f32 %v5182, %v5903
      %v5920 = vmul.f32 %v5142, %v5903
      %v5921 = vmul.f32 %v5191, %v5903
      %v5922 = vmul.f32 %v5183, %v5903
      %v5923 = vmul.f32 %v5145, %v5903
      %v5924 = vmul.f32 %v5192, %v5903
      %v5925 = vmul.f32 %v5184, %v5903
      %v5926 = vmul.f32 %v5148, %v5903
      %v5927 = vmul.f32 %v5193, %v5903
      %v5952 = vrot.slane %v5904, 1
      %v5953 = vrot.slane %v5905, 1
      %v5954 = vsel %vm5280, %v5952, %v5953
      %v5955 = vrot.slane %v5906, 1
      %v5956 = vsel %vm5280, %v5953, %v5955
      %v5957 = vrot.slane %v5907, 1
      %v5958 = vrot.slane %v5908, 1
      %v5959 = vsel %vm5280, %v5957, %v5958
      %v5960 = vrot.slane %v5909, 1
      %v5961 = vsel %vm5280, %v5958, %v5960
      %v5962 = vrot.slane %v5910, 1
      %v5963 = vrot.slane %v5911, 1
      %v5964 = vsel %vm5280, %v5962, %v5963
      %v5965 = vrot.slane %v5912, 1
      %v5966 = vsel %vm5280, %v5963, %v5965
      %v5967 = vrot.slane %v5913, 1
      %v5968 = vrot.slane %v5914, 1
      %v5969 = vsel %vm5280, %v5967, %v5968
      %v5970 = vrot.slane %v5915, 1
      %v5971 = vsel %vm5280, %v5968, %v5970
      %v5972 = vrot.slane %v5916, 1
      %v5973 = vrot.slane %v5917, 1
      %v5974 = vsel %vm5280, %v5972, %v5973
      %v5975 = vrot.slane %v5918, 1
      %v5976 = vsel %vm5280, %v5973, %v5975
      %v5977 = vrot.slane %v5919, 1
      %v5978 = vrot.slane %v5920, 1
      %v5979 = vsel %vm5280, %v5977, %v5978
      %v5980 = vrot.slane %v5921, 1
      %v5981 = vsel %vm5280, %v5978, %v5980
      %v5982 = vrot.slane %v5922, 1
      %v5983 = vrot.slane %v5923, 1
      %v5984 = vsel %vm5280, %v5982, %v5983
      %v5985 = vrot.slane %v5924, 1
      %v5986 = vsel %vm5280, %v5983, %v5985
      %v5987 = vrot.slane %v5925, 1
      %v5988 = vrot.slane %v5926, 1
      %v5989 = vsel %vm5280, %v5987, %v5988
      %v5990 = vrot.slane %v5927, 1
      %v5991 = vsel %vm5280, %v5988, %v5990
      %v6008 = vadd.f32 %v5887, %v5954
      %v6009 = vadd.f32 %v5888, %v5956
      %v6010 = vadd.f32 %v5889, %v5959
      %v6011 = vadd.f32 %v5890, %v5961
      %v6012 = vadd.f32 %v5891, %v5964
      %v6013 = vadd.f32 %v5892, %v5966
      %v6014 = vadd.f32 %v5893, %v5969
      %v6015 = vadd.f32 %v5894, %v5971
      %v6016 = vadd.f32 %v5895, %v5974
      %v6017 = vadd.f32 %v5896, %v5976
      %v6018 = vadd.f32 %v5897, %v5979
      %v6019 = vadd.f32 %v5898, %v5981
      %v6020 = vadd.f32 %v5899, %v5984
      %v6021 = vadd.f32 %v5900, %v5986
      %v6022 = vadd.f32 %v5901, %v5989
      %v6023 = vadd.f32 %v5902, %v5991
      %v6025 = vperm.slane %v5197, 0
      %v6027 = vadd.f32 %v6008, %v6025
      %v6028 = vadd.f32 %v6009, %v6025
      %v6029 = vadd.f32 %v6010, %v6025
      %v6030 = vadd.f32 %v6011, %v6025
      %v6031 = vadd.f32 %v6012, %v6025
      %v6032 = vadd.f32 %v6013, %v6025
      %v6033 = vadd.f32 %v6014, %v6025
      %v6034 = vadd.f32 %v6015, %v6025
      %v6035 = vadd.f32 %v6016, %v6025
      %v6036 = vadd.f32 %v6017, %v6025
      %v6037 = vadd.f32 %v6018, %v6025
      %v6038 = vadd.f32 %v6019, %v6025
      %v6039 = vadd.f32 %v6020, %v6025
      %v6040 = vadd.f32 %v6021, %v6025
      %v6041 = vadd.f32 %v6022, %v6025
      %v6042 = vadd.f32 %v6023, %v6025
      %v6043 = vmul.f32 %v4178, %v5198
      %v6044 = vmul.f32 %v4126, %v5198
      %v6045 = vmul.f32 %v4187, %v5198
      %v6046 = vmul.f32 %v4179, %v5198
      %v6047 = vmul.f32 %v4129, %v5198
      %v6048 = vmul.f32 %v4188, %v5198
      %v6049 = vmul.f32 %v4180, %v5198
      %v6050 = vmul.f32 %v4132, %v5198
      %v6051 = vmul.f32 %v4189, %v5198
      %v6052 = vmul.f32 %v4181, %v5198
      %v6053 = vmul.f32 %v4135, %v5198
      %v6054 = vmul.f32 %v4190, %v5198
      %v6055 = vmul.f32 %v4182, %v5198
      %v6056 = vmul.f32 %v4138, %v5198
      %v6057 = vmul.f32 %v4191, %v5198
      %v6058 = vmul.f32 %v4183, %v5198
      %v6059 = vmul.f32 %v4141, %v5198
      %v6060 = vmul.f32 %v4192, %v5198
      %v6061 = vmul.f32 %v4184, %v5198
      %v6062 = vmul.f32 %v4144, %v5198
      %v6063 = vmul.f32 %v4193, %v5198
      %v6064 = vmul.f32 %v4185, %v5198
      %v6065 = vmul.f32 %v4147, %v5198
      %v6066 = vmul.f32 %v4194, %v5198
      %v6067 = vadd.f32 %v6043, 0.0
      %v6068 = vadd.f32 %v6044, 0.0
      %v6069 = vadd.f32 %v6045, 0.0
      %v6070 = vadd.f32 %v6046, 0.0
      %v6071 = vadd.f32 %v6047, 0.0
      %v6072 = vadd.f32 %v6048, 0.0
      %v6073 = vadd.f32 %v6049, 0.0
      %v6074 = vadd.f32 %v6050, 0.0
      %v6075 = vadd.f32 %v6051, 0.0
      %v6076 = vadd.f32 %v6052, 0.0
      %v6077 = vadd.f32 %v6053, 0.0
      %v6078 = vadd.f32 %v6054, 0.0
      %v6079 = vadd.f32 %v6055, 0.0
      %v6080 = vadd.f32 %v6056, 0.0
      %v6081 = vadd.f32 %v6057, 0.0
      %v6082 = vadd.f32 %v6058, 0.0
      %v6083 = vadd.f32 %v6059, 0.0
      %v6084 = vadd.f32 %v6060, 0.0
      %v6085 = vadd.f32 %v6061, 0.0
      %v6086 = vadd.f32 %v6062, 0.0
      %v6087 = vadd.f32 %v6063, 0.0
      %v6088 = vadd.f32 %v6064, 0.0
      %v6089 = vadd.f32 %v6065, 0.0
      %v6090 = vadd.f32 %v6066, 0.0
      %v6091 = vmul.f32 %v5176, %v5231
      %v6092 = vmul.f32 %v5124, %v5231
      %v6093 = vmul.f32 %v5185, %v5231
      %v6094 = vmul.f32 %v5177, %v5231
      %v6095 = vmul.f32 %v5127, %v5231
      %v6096 = vmul.f32 %v5186, %v5231
      %v6097 = vmul.f32 %v5178, %v5231
      %v6098 = vmul.f32 %v5130, %v5231
      %v6099 = vmul.f32 %v5187, %v5231
      %v6100 = vmul.f32 %v5179, %v5231
      %v6101 = vmul.f32 %v5133, %v5231
      %v6102 = vmul.f32 %v5188, %v5231
      %v6103 = vmul.f32 %v5180, %v5231
      %v6104 = vmul.f32 %v5136, %v5231
      %v6105 = vmul.f32 %v5189, %v5231
      %v6106 = vmul.f32 %v5181, %v5231
      %v6107 = vmul.f32 %v5139, %v5231
      %v6108 = vmul.f32 %v5190, %v5231
      %v6109 = vmul.f32 %v5182, %v5231
      %v6110 = vmul.f32 %v5142, %v5231
      %v6111 = vmul.f32 %v5191, %v5231
      %v6112 = vmul.f32 %v5183, %v5231
      %v6113 = vmul.f32 %v5145, %v5231
      %v6114 = vmul.f32 %v5192, %v5231
      %v6115 = vadd.f32 %v6067, %v6091
      %v6116 = vadd.f32 %v6068, %v6092
      %v6117 = vadd.f32 %v6069, %v6093
      %v6118 = vadd.f32 %v6070, %v6094
      %v6119 = vadd.f32 %v6071, %v6095
      %v6120 = vadd.f32 %v6072, %v6096
      %v6121 = vadd.f32 %v6073, %v6097
      %v6122 = vadd.f32 %v6074, %v6098
      %v6123 = vadd.f32 %v6075, %v6099
      %v6124 = vadd.f32 %v6076, %v6100
      %v6125 = vadd.f32 %v6077, %v6101
      %v6126 = vadd.f32 %v6078, %v6102
      %v6127 = vadd.f32 %v6079, %v6103
      %v6128 = vadd.f32 %v6080, %v6104
      %v6129 = vadd.f32 %v6081, %v6105
      %v6130 = vadd.f32 %v6082, %v6106
      %v6131 = vadd.f32 %v6083, %v6107
      %v6132 = vadd.f32 %v6084, %v6108
      %v6133 = vadd.f32 %v6085, %v6109
      %v6134 = vadd.f32 %v6086, %v6110
      %v6135 = vadd.f32 %v6087, %v6111
      %v6136 = vadd.f32 %v6088, %v6112
      %v6137 = vadd.f32 %v6089, %v6113
      %v6138 = vadd.f32 %v6090, %v6114
      %v6139 = vmul.f32 %v4178, %v5353
      %v6140 = vmul.f32 %v4126, %v5353
      %v6141 = vmul.f32 %v4187, %v5353
      %v6142 = vmul.f32 %v4179, %v5353
      %v6143 = vmul.f32 %v4129, %v5353
      %v6144 = vmul.f32 %v4188, %v5353
      %v6145 = vmul.f32 %v4180, %v5353
      %v6146 = vmul.f32 %v4132, %v5353
      %v6147 = vmul.f32 %v4189, %v5353
      %v6148 = vmul.f32 %v4181, %v5353
      %v6149 = vmul.f32 %v4135, %v5353
      %v6150 = vmul.f32 %v4190, %v5353
      %v6151 = vmul.f32 %v4182, %v5353
      %v6152 = vmul.f32 %v4138, %v5353
      %v6153 = vmul.f32 %v4191, %v5353
      %v6154 = vmul.f32 %v4183, %v5353
      %v6155 = vmul.f32 %v4141, %v5353
      %v6156 = vmul.f32 %v4192, %v5353
      %v6157 = vmul.f32 %v4184, %v5353
      %v6158 = vmul.f32 %v4144, %v5353
      %v6159 = vmul.f32 %v4193, %v5353
      %v6160 = vmul.f32 %v4185, %v5353
      %v6161 = vmul.f32 %v4147, %v5353
      %v6162 = vmul.f32 %v4194, %v5353
      %v6187 = vrot.slane %v6139, 1
      %v6188 = vrot.slane %v6140, 1
      %v6189 = vsel %vm5280, %v6187, %v6188
      %v6190 = vrot.slane %v6141, 1
      %v6191 = vsel %vm5280, %v6188, %v6190
      %v6192 = vrot.slane %v6142, 1
      %v6193 = vrot.slane %v6143, 1
      %v6194 = vsel %vm5280, %v6192, %v6193
      %v6195 = vrot.slane %v6144, 1
      %v6196 = vsel %vm5280, %v6193, %v6195
      %v6197 = vrot.slane %v6145, 1
      %v6198 = vrot.slane %v6146, 1
      %v6199 = vsel %vm5280, %v6197, %v6198
      %v6200 = vrot.slane %v6147, 1
      %v6201 = vsel %vm5280, %v6198, %v6200
      %v6202 = vrot.slane %v6148, 1
      %v6203 = vrot.slane %v6149, 1
      %v6204 = vsel %vm5280, %v6202, %v6203
      %v6205 = vrot.slane %v6150, 1
      %v6206 = vsel %vm5280, %v6203, %v6205
      %v6207 = vrot.slane %v6151, 1
      %v6208 = vrot.slane %v6152, 1
      %v6209 = vsel %vm5280, %v6207, %v6208
      %v6210 = vrot.slane %v6153, 1
      %v6211 = vsel %vm5280, %v6208, %v6210
      %v6212 = vrot.slane %v6154, 1
      %v6213 = vrot.slane %v6155, 1
      %v6214 = vsel %vm5280, %v6212, %v6213
      %v6215 = vrot.slane %v6156, 1
      %v6216 = vsel %vm5280, %v6213, %v6215
      %v6217 = vrot.slane %v6157, 1
      %v6218 = vrot.slane %v6158, 1
      %v6219 = vsel %vm5280, %v6217, %v6218
      %v6220 = vrot.slane %v6159, 1
      %v6221 = vsel %vm5280, %v6218, %v6220
      %v6222 = vrot.slane %v6160, 1
      %v6223 = vrot.slane %v6161, 1
      %v6224 = vsel %vm5280, %v6222, %v6223
      %v6225 = vrot.slane %v6162, 1
      %v6226 = vsel %vm5280, %v6223, %v6225
      %v6251 = vadd.f32 %v6115, %v6189
      %v6252 = vadd.f32 %v6116, %v6191
      %v6253 = vadd.f32 %v6117, %v6190
      %v6254 = vadd.f32 %v6118, %v6194
      %v6255 = vadd.f32 %v6119, %v6196
      %v6256 = vadd.f32 %v6120, %v6195
      %v6257 = vadd.f32 %v6121, %v6199
      %v6258 = vadd.f32 %v6122, %v6201
      %v6259 = vadd.f32 %v6123, %v6200
      %v6260 = vadd.f32 %v6124, %v6204
      %v6261 = vadd.f32 %v6125, %v6206
      %v6262 = vadd.f32 %v6126, %v6205
      %v6263 = vadd.f32 %v6127, %v6209
      %v6264 = vadd.f32 %v6128, %v6211
      %v6265 = vadd.f32 %v6129, %v6210
      %v6266 = vadd.f32 %v6130, %v6214
      %v6267 = vadd.f32 %v6131, %v6216
      %v6268 = vadd.f32 %v6132, %v6215
      %v6269 = vadd.f32 %v6133, %v6219
      %v6270 = vadd.f32 %v6134, %v6221
      %v6271 = vadd.f32 %v6135, %v6220
      %v6272 = vadd.f32 %v6136, %v6224
      %v6273 = vadd.f32 %v6137, %v6226
      %v6274 = vadd.f32 %v6138, %v6225
      %v6275 = vmul.f32 %v2182, %v5474
      %v6276 = vmul.f32 %v2130, %v5474
      %v6277 = vmul.f32 %v2191, %v5474
      %v6278 = vmul.f32 %v2183, %v5474
      %v6279 = vmul.f32 %v2133, %v5474
      %v6280 = vmul.f32 %v2192, %v5474
      %v6281 = vmul.f32 %v2184, %v5474
      %v6282 = vmul.f32 %v2136, %v5474
      %v6283 = vmul.f32 %v2193, %v5474
      %v6284 = vmul.f32 %v2185, %v5474
      %v6285 = vmul.f32 %v2139, %v5474
      %v6286 = vmul.f32 %v2194, %v5474
      %v6287 = vmul.f32 %v2186, %v5474
      %v6288 = vmul.f32 %v2142, %v5474
      %v6289 = vmul.f32 %v2195, %v5474
      %v6290 = vmul.f32 %v2187, %v5474
      %v6291 = vmul.f32 %v2145, %v5474
      %v6292 = vmul.f32 %v2196, %v5474
      %v6293 = vmul.f32 %v2188, %v5474
      %v6294 = vmul.f32 %v2148, %v5474
      %v6295 = vmul.f32 %v2197, %v5474
      %v6296 = vmul.f32 %v2189, %v5474
      %v6297 = vmul.f32 %v2151, %v5474
      %v6298 = vmul.f32 %v2198, %v5474
      %v6299 = vadd.f32 %v6251, %v6275
      %v6300 = vadd.f32 %v6252, %v6276
      %v6301 = vadd.f32 %v6253, %v6277
      %v6302 = vadd.f32 %v6254, %v6278
      %v6303 = vadd.f32 %v6255, %v6279
      %v6304 = vadd.f32 %v6256, %v6280
      %v6305 = vadd.f32 %v6257, %v6281
      %v6306 = vadd.f32 %v6258, %v6282
      %v6307 = vadd.f32 %v6259, %v6283
      %v6308 = vadd.f32 %v6260, %v6284
      %v6309 = vadd.f32 %v6261, %v6285
      %v6310 = vadd.f32 %v6262, %v6286
      %v6311 = vadd.f32 %v6263, %v6287
      %v6312 = vadd.f32 %v6264, %v6288
      %v6313 = vadd.f32 %v6265, %v6289
      %v6314 = vadd.f32 %v6266, %v6290
      %v6315 = vadd.f32 %v6267, %v6291
      %v6316 = vadd.f32 %v6268, %v6292
      %v6317 = vadd.f32 %v6269, %v6293
      %v6318 = vadd.f32 %v6270, %v6294
      %v6319 = vadd.f32 %v6271, %v6295
      %v6320 = vadd.f32 %v6272, %v6296
      %v6321 = vadd.f32 %v6273, %v6297
      %v6322 = vadd.f32 %v6274, %v6298
      %v6323 = vmul.f32 %v3180, %v5507
      %v6324 = vmul.f32 %v3128, %v5507
      %v6325 = vmul.f32 %v3189, %v5507
      %v6326 = vmul.f32 %v3181, %v5507
      %v6327 = vmul.f32 %v3131, %v5507
      %v6328 = vmul.f32 %v3190, %v5507
      %v6329 = vmul.f32 %v3182, %v5507
      %v6330 = vmul.f32 %v3134, %v5507
      %v6331 = vmul.f32 %v3191, %v5507
      %v6332 = vmul.f32 %v3183, %v5507
      %v6333 = vmul.f32 %v3137, %v5507
      %v6334 = vmul.f32 %v3192, %v5507
      %v6335 = vmul.f32 %v3184, %v5507
      %v6336 = vmul.f32 %v3140, %v5507
      %v6337 = vmul.f32 %v3193, %v5507
      %v6338 = vmul.f32 %v3185, %v5507
      %v6339 = vmul.f32 %v3143, %v5507
      %v6340 = vmul.f32 %v3194, %v5507
      %v6341 = vmul.f32 %v3186, %v5507
      %v6342 = vmul.f32 %v3146, %v5507
      %v6343 = vmul.f32 %v3195, %v5507
      %v6344 = vmul.f32 %v3187, %v5507
      %v6345 = vmul.f32 %v3149, %v5507
      %v6346 = vmul.f32 %v3196, %v5507
      %v6347 = vadd.f32 %v6299, %v6323
      %v6348 = vadd.f32 %v6300, %v6324
      %v6349 = vadd.f32 %v6301, %v6325
      %v6350 = vadd.f32 %v6302, %v6326
      %v6351 = vadd.f32 %v6303, %v6327
      %v6352 = vadd.f32 %v6304, %v6328
      %v6353 = vadd.f32 %v6305, %v6329
      %v6354 = vadd.f32 %v6306, %v6330
      %v6355 = vadd.f32 %v6307, %v6331
      %v6356 = vadd.f32 %v6308, %v6332
      %v6357 = vadd.f32 %v6309, %v6333
      %v6358 = vadd.f32 %v6310, %v6334
      %v6359 = vadd.f32 %v6311, %v6335
      %v6360 = vadd.f32 %v6312, %v6336
      %v6361 = vadd.f32 %v6313, %v6337
      %v6362 = vadd.f32 %v6314, %v6338
      %v6363 = vadd.f32 %v6315, %v6339
      %v6364 = vadd.f32 %v6316, %v6340
      %v6365 = vadd.f32 %v6317, %v6341
      %v6366 = vadd.f32 %v6318, %v6342
      %v6367 = vadd.f32 %v6319, %v6343
      %v6368 = vadd.f32 %v6320, %v6344
      %v6369 = vadd.f32 %v6321, %v6345
      %v6370 = vadd.f32 %v6322, %v6346
      %v6371 = vmul.f32 %v2182, %v5628
      %v6372 = vmul.f32 %v2130, %v5628
      %v6373 = vmul.f32 %v2191, %v5628
      %v6374 = vmul.f32 %v2183, %v5628
      %v6375 = vmul.f32 %v2133, %v5628
      %v6376 = vmul.f32 %v2192, %v5628
      %v6377 = vmul.f32 %v2184, %v5628
      %v6378 = vmul.f32 %v2136, %v5628
      %v6379 = vmul.f32 %v2193, %v5628
      %v6380 = vmul.f32 %v2185, %v5628
      %v6381 = vmul.f32 %v2139, %v5628
      %v6382 = vmul.f32 %v2194, %v5628
      %v6383 = vmul.f32 %v2186, %v5628
      %v6384 = vmul.f32 %v2142, %v5628
      %v6385 = vmul.f32 %v2195, %v5628
      %v6386 = vmul.f32 %v2187, %v5628
      %v6387 = vmul.f32 %v2145, %v5628
      %v6388 = vmul.f32 %v2196, %v5628
      %v6389 = vmul.f32 %v2188, %v5628
      %v6390 = vmul.f32 %v2148, %v5628
      %v6391 = vmul.f32 %v2197, %v5628
      %v6392 = vmul.f32 %v2189, %v5628
      %v6393 = vmul.f32 %v2151, %v5628
      %v6394 = vmul.f32 %v2198, %v5628
      %v6419 = vrot.slane %v6371, 1
      %v6420 = vrot.slane %v6372, 1
      %v6421 = vsel %vm5280, %v6419, %v6420
      %v6422 = vrot.slane %v6373, 1
      %v6423 = vsel %vm5280, %v6420, %v6422
      %v6424 = vrot.slane %v6374, 1
      %v6425 = vrot.slane %v6375, 1
      %v6426 = vsel %vm5280, %v6424, %v6425
      %v6427 = vrot.slane %v6376, 1
      %v6428 = vsel %vm5280, %v6425, %v6427
      %v6429 = vrot.slane %v6377, 1
      %v6430 = vrot.slane %v6378, 1
      %v6431 = vsel %vm5280, %v6429, %v6430
      %v6432 = vrot.slane %v6379, 1
      %v6433 = vsel %vm5280, %v6430, %v6432
      %v6434 = vrot.slane %v6380, 1
      %v6435 = vrot.slane %v6381, 1
      %v6436 = vsel %vm5280, %v6434, %v6435
      %v6437 = vrot.slane %v6382, 1
      %v6438 = vsel %vm5280, %v6435, %v6437
      %v6439 = vrot.slane %v6383, 1
      %v6440 = vrot.slane %v6384, 1
      %v6441 = vsel %vm5280, %v6439, %v6440
      %v6442 = vrot.slane %v6385, 1
      %v6443 = vsel %vm5280, %v6440, %v6442
      %v6444 = vrot.slane %v6386, 1
      %v6445 = vrot.slane %v6387, 1
      %v6446 = vsel %vm5280, %v6444, %v6445
      %v6447 = vrot.slane %v6388, 1
      %v6448 = vsel %vm5280, %v6445, %v6447
      %v6449 = vrot.slane %v6389, 1
      %v6450 = vrot.slane %v6390, 1
      %v6451 = vsel %vm5280, %v6449, %v6450
      %v6452 = vrot.slane %v6391, 1
      %v6453 = vsel %vm5280, %v6450, %v6452
      %v6454 = vrot.slane %v6392, 1
      %v6455 = vrot.slane %v6393, 1
      %v6456 = vsel %vm5280, %v6454, %v6455
      %v6457 = vrot.slane %v6394, 1
      %v6458 = vsel %vm5280, %v6455, %v6457
      %v6483 = vadd.f32 %v6347, %v6421
      %v6484 = vadd.f32 %v6348, %v6423
      %v6485 = vadd.f32 %v6349, %v6422
      %v6486 = vadd.f32 %v6350, %v6426
      %v6487 = vadd.f32 %v6351, %v6428
      %v6488 = vadd.f32 %v6352, %v6427
      %v6489 = vadd.f32 %v6353, %v6431
      %v6490 = vadd.f32 %v6354, %v6433
      %v6491 = vadd.f32 %v6355, %v6432
      %v6492 = vadd.f32 %v6356, %v6436
      %v6493 = vadd.f32 %v6357, %v6438
      %v6494 = vadd.f32 %v6358, %v6437
      %v6495 = vadd.f32 %v6359, %v6441
      %v6496 = vadd.f32 %v6360, %v6443
      %v6497 = vadd.f32 %v6361, %v6442
      %v6498 = vadd.f32 %v6362, %v6446
      %v6499 = vadd.f32 %v6363, %v6448
      %v6500 = vadd.f32 %v6364, %v6447
      %v6501 = vadd.f32 %v6365, %v6451
      %v6502 = vadd.f32 %v6366, %v6453
      %v6503 = vadd.f32 %v6367, %v6452
      %v6504 = vadd.f32 %v6368, %v6456
      %v6505 = vadd.f32 %v6369, %v6458
      %v6506 = vadd.f32 %v6370, %v6457
      %v6507 = vmul.f32 %v4179, %v5749
      %v6508 = vmul.f32 %v4129, %v5749
      %v6509 = vmul.f32 %v4188, %v5749
      %v6510 = vmul.f32 %v4180, %v5749
      %v6511 = vmul.f32 %v4132, %v5749
      %v6512 = vmul.f32 %v4189, %v5749
      %v6513 = vmul.f32 %v4181, %v5749
      %v6514 = vmul.f32 %v4135, %v5749
      %v6515 = vmul.f32 %v4190, %v5749
      %v6516 = vmul.f32 %v4182, %v5749
      %v6517 = vmul.f32 %v4138, %v5749
      %v6518 = vmul.f32 %v4191, %v5749
      %v6519 = vmul.f32 %v4183, %v5749
      %v6520 = vmul.f32 %v4141, %v5749
      %v6521 = vmul.f32 %v4192, %v5749
      %v6522 = vmul.f32 %v4184, %v5749
      %v6523 = vmul.f32 %v4144, %v5749
      %v6524 = vmul.f32 %v4193, %v5749
      %v6525 = vmul.f32 %v4185, %v5749
      %v6526 = vmul.f32 %v4147, %v5749
      %v6527 = vmul.f32 %v4194, %v5749
      %v6528 = vmul.f32 %v4186, %v5749
      %v6529 = vmul.f32 %v4150, %v5749
      %v6530 = vmul.f32 %v4195, %v5749
      %v6531 = vadd.f32 %v6483, %v6507
      %v6532 = vadd.f32 %v6484, %v6508
      %v6533 = vadd.f32 %v6485, %v6509
      %v6534 = vadd.f32 %v6486, %v6510
      %v6535 = vadd.f32 %v6487, %v6511
      %v6536 = vadd.f32 %v6488, %v6512
      %v6537 = vadd.f32 %v6489, %v6513
      %v6538 = vadd.f32 %v6490, %v6514
      %v6539 = vadd.f32 %v6491, %v6515
      %v6540 = vadd.f32 %v6492, %v6516
      %v6541 = vadd.f32 %v6493, %v6517
      %v6542 = vadd.f32 %v6494, %v6518
      %v6543 = vadd.f32 %v6495, %v6519
      %v6544 = vadd.f32 %v6496, %v6520
      %v6545 = vadd.f32 %v6497, %v6521
      %v6546 = vadd.f32 %v6498, %v6522
      %v6547 = vadd.f32 %v6499, %v6523
      %v6548 = vadd.f32 %v6500, %v6524
      %v6549 = vadd.f32 %v6501, %v6525
      %v6550 = vadd.f32 %v6502, %v6526
      %v6551 = vadd.f32 %v6503, %v6527
      %v6552 = vadd.f32 %v6504, %v6528
      %v6553 = vadd.f32 %v6505, %v6529
      %v6554 = vadd.f32 %v6506, %v6530
      %v6555 = vmul.f32 %v5177, %v5782
      %v6556 = vmul.f32 %v5127, %v5782
      %v6557 = vmul.f32 %v5186, %v5782
      %v6558 = vmul.f32 %v5178, %v5782
      %v6559 = vmul.f32 %v5130, %v5782
      %v6560 = vmul.f32 %v5187, %v5782
      %v6561 = vmul.f32 %v5179, %v5782
      %v6562 = vmul.f32 %v5133, %v5782
      %v6563 = vmul.f32 %v5188, %v5782
      %v6564 = vmul.f32 %v5180, %v5782
      %v6565 = vmul.f32 %v5136, %v5782
      %v6566 = vmul.f32 %v5189, %v5782
      %v6567 = vmul.f32 %v5181, %v5782
      %v6568 = vmul.f32 %v5139, %v5782
      %v6569 = vmul.f32 %v5190, %v5782
      %v6570 = vmul.f32 %v5182, %v5782
      %v6571 = vmul.f32 %v5142, %v5782
      %v6572 = vmul.f32 %v5191, %v5782
      %v6573 = vmul.f32 %v5183, %v5782
      %v6574 = vmul.f32 %v5145, %v5782
      %v6575 = vmul.f32 %v5192, %v5782
      %v6576 = vmul.f32 %v5184, %v5782
      %v6577 = vmul.f32 %v5148, %v5782
      %v6578 = vmul.f32 %v5193, %v5782
      %v6579 = vadd.f32 %v6531, %v6555
      %v6580 = vadd.f32 %v6532, %v6556
      %v6581 = vadd.f32 %v6533, %v6557
      %v6582 = vadd.f32 %v6534, %v6558
      %v6583 = vadd.f32 %v6535, %v6559
      %v6584 = vadd.f32 %v6536, %v6560
      %v6585 = vadd.f32 %v6537, %v6561
      %v6586 = vadd.f32 %v6538, %v6562
      %v6587 = vadd.f32 %v6539, %v6563
      %v6588 = vadd.f32 %v6540, %v6564
      %v6589 = vadd.f32 %v6541, %v6565
      %v6590 = vadd.f32 %v6542, %v6566
      %v6591 = vadd.f32 %v6543, %v6567
      %v6592 = vadd.f32 %v6544, %v6568
      %v6593 = vadd.f32 %v6545, %v6569
      %v6594 = vadd.f32 %v6546, %v6570
      %v6595 = vadd.f32 %v6547, %v6571
      %v6596 = vadd.f32 %v6548, %v6572
      %v6597 = vadd.f32 %v6549, %v6573
      %v6598 = vadd.f32 %v6550, %v6574
      %v6599 = vadd.f32 %v6551, %v6575
      %v6600 = vadd.f32 %v6552, %v6576
      %v6601 = vadd.f32 %v6553, %v6577
      %v6602 = vadd.f32 %v6554, %v6578
      %v6603 = vmul.f32 %v4179, %v5903
      %v6604 = vmul.f32 %v4129, %v5903
      %v6605 = vmul.f32 %v4188, %v5903
      %v6606 = vmul.f32 %v4180, %v5903
      %v6607 = vmul.f32 %v4132, %v5903
      %v6608 = vmul.f32 %v4189, %v5903
      %v6609 = vmul.f32 %v4181, %v5903
      %v6610 = vmul.f32 %v4135, %v5903
      %v6611 = vmul.f32 %v4190, %v5903
      %v6612 = vmul.f32 %v4182, %v5903
      %v6613 = vmul.f32 %v4138, %v5903
      %v6614 = vmul.f32 %v4191, %v5903
      %v6615 = vmul.f32 %v4183, %v5903
      %v6616 = vmul.f32 %v4141, %v5903
      %v6617 = vmul.f32 %v4192, %v5903
      %v6618 = vmul.f32 %v4184, %v5903
      %v6619 = vmul.f32 %v4144, %v5903
      %v6620 = vmul.f32 %v4193, %v5903
      %v6621 = vmul.f32 %v4185, %v5903
      %v6622 = vmul.f32 %v4147, %v5903
      %v6623 = vmul.f32 %v4194, %v5903
      %v6624 = vmul.f32 %v4186, %v5903
      %v6625 = vmul.f32 %v4150, %v5903
      %v6626 = vmul.f32 %v4195, %v5903
      %v6651 = vrot.slane %v6603, 1
      %v6652 = vrot.slane %v6604, 1
      %v6653 = vsel %vm5280, %v6651, %v6652
      %v6654 = vrot.slane %v6605, 1
      %v6655 = vsel %vm5280, %v6652, %v6654
      %v6656 = vrot.slane %v6606, 1
      %v6657 = vrot.slane %v6607, 1
      %v6658 = vsel %vm5280, %v6656, %v6657
      %v6659 = vrot.slane %v6608, 1
      %v6660 = vsel %vm5280, %v6657, %v6659
      %v6661 = vrot.slane %v6609, 1
      %v6662 = vrot.slane %v6610, 1
      %v6663 = vsel %vm5280, %v6661, %v6662
      %v6664 = vrot.slane %v6611, 1
      %v6665 = vsel %vm5280, %v6662, %v6664
      %v6666 = vrot.slane %v6612, 1
      %v6667 = vrot.slane %v6613, 1
      %v6668 = vsel %vm5280, %v6666, %v6667
      %v6669 = vrot.slane %v6614, 1
      %v6670 = vsel %vm5280, %v6667, %v6669
      %v6671 = vrot.slane %v6615, 1
      %v6672 = vrot.slane %v6616, 1
      %v6673 = vsel %vm5280, %v6671, %v6672
      %v6674 = vrot.slane %v6617, 1
      %v6675 = vsel %vm5280, %v6672, %v6674
      %v6676 = vrot.slane %v6618, 1
      %v6677 = vrot.slane %v6619, 1
      %v6678 = vsel %vm5280, %v6676, %v6677
      %v6679 = vrot.slane %v6620, 1
      %v6680 = vsel %vm5280, %v6677, %v6679
      %v6681 = vrot.slane %v6621, 1
      %v6682 = vrot.slane %v6622, 1
      %v6683 = vsel %vm5280, %v6681, %v6682
      %v6684 = vrot.slane %v6623, 1
      %v6685 = vsel %vm5280, %v6682, %v6684
      %v6686 = vrot.slane %v6624, 1
      %v6687 = vrot.slane %v6625, 1
      %v6688 = vsel %vm5280, %v6686, %v6687
      %v6689 = vrot.slane %v6626, 1
      %v6690 = vsel %vm5280, %v6687, %v6689
      %v6715 = vadd.f32 %v6579, %v6653
      %v6716 = vadd.f32 %v6580, %v6655
      %v6717 = vadd.f32 %v6581, %v6654
      %v6718 = vadd.f32 %v6582, %v6658
      %v6719 = vadd.f32 %v6583, %v6660
      %v6720 = vadd.f32 %v6584, %v6659
      %v6721 = vadd.f32 %v6585, %v6663
      %v6722 = vadd.f32 %v6586, %v6665
      %v6723 = vadd.f32 %v6587, %v6664
      %v6724 = vadd.f32 %v6588, %v6668
      %v6725 = vadd.f32 %v6589, %v6670
      %v6726 = vadd.f32 %v6590, %v6669
      %v6727 = vadd.f32 %v6591, %v6673
      %v6728 = vadd.f32 %v6592, %v6675
      %v6729 = vadd.f32 %v6593, %v6674
      %v6730 = vadd.f32 %v6594, %v6678
      %v6731 = vadd.f32 %v6595, %v6680
      %v6732 = vadd.f32 %v6596, %v6679
      %v6733 = vadd.f32 %v6597, %v6683
      %v6734 = vadd.f32 %v6598, %v6685
      %v6735 = vadd.f32 %v6599, %v6684
      %v6736 = vadd.f32 %v6600, %v6688
      %v6737 = vadd.f32 %v6601, %v6690
      %v6738 = vadd.f32 %v6602, %v6689
      %v6739 = vadd.f32 %v6715, %v6025
      %v6740 = vadd.f32 %v6716, %v6025
      %v6741 = vadd.f32 %v6717, %v6025
      %v6742 = vadd.f32 %v6718, %v6025
      %v6743 = vadd.f32 %v6719, %v6025
      %v6744 = vadd.f32 %v6720, %v6025
      %v6745 = vadd.f32 %v6721, %v6025
      %v6746 = vadd.f32 %v6722, %v6025
      %v6747 = vadd.f32 %v6723, %v6025
      %v6748 = vadd.f32 %v6724, %v6025
      %v6749 = vadd.f32 %v6725, %v6025
      %v6750 = vadd.f32 %v6726, %v6025
      %v6751 = vadd.f32 %v6727, %v6025
      %v6752 = vadd.f32 %v6728, %v6025
      %v6753 = vadd.f32 %v6729, %v6025
      %v6754 = vadd.f32 %v6730, %v6025
      %v6755 = vadd.f32 %v6731, %v6025
      %v6756 = vadd.f32 %v6732, %v6025
      %v6757 = vadd.f32 %v6733, %v6025
      %v6758 = vadd.f32 %v6734, %v6025
      %v6759 = vadd.f32 %v6735, %v6025
      %v6760 = vadd.f32 %v6736, %v6025
      %v6761 = vadd.f32 %v6737, %v6025
      %v6762 = vadd.f32 %v6738, %v6025
      %v6763 = vmul.f32 %v3180, %v5198
      %v6764 = vmul.f32 %v3128, %v5198
      %v6765 = vmul.f32 %v3181, %v5198
      %v6766 = vmul.f32 %v3131, %v5198
      %v6767 = vmul.f32 %v3182, %v5198
      %v6768 = vmul.f32 %v3134, %v5198
      %v6769 = vmul.f32 %v3183, %v5198
      %v6770 = vmul.f32 %v3137, %v5198
      %v6771 = vmul.f32 %v3184, %v5198
      %v6772 = vmul.f32 %v3140, %v5198
      %v6773 = vmul.f32 %v3185, %v5198
      %v6774 = vmul.f32 %v3143, %v5198
      %v6775 = vmul.f32 %v3186, %v5198
      %v6776 = vmul.f32 %v3146, %v5198
      %v6777 = vmul.f32 %v3187, %v5198
      %v6778 = vmul.f32 %v3149, %v5198
      %v6779 = vadd.f32 %v6763, 0.0
      %v6780 = vadd.f32 %v6764, 0.0
      %v6781 = vadd.f32 %v6765, 0.0
      %v6782 = vadd.f32 %v6766, 0.0
      %v6783 = vadd.f32 %v6767, 0.0
      %v6784 = vadd.f32 %v6768, 0.0
      %v6785 = vadd.f32 %v6769, 0.0
      %v6786 = vadd.f32 %v6770, 0.0
      %v6787 = vadd.f32 %v6771, 0.0
      %v6788 = vadd.f32 %v6772, 0.0
      %v6789 = vadd.f32 %v6773, 0.0
      %v6790 = vadd.f32 %v6774, 0.0
      %v6791 = vadd.f32 %v6775, 0.0
      %v6792 = vadd.f32 %v6776, 0.0
      %v6793 = vadd.f32 %v6777, 0.0
      %v6794 = vadd.f32 %v6778, 0.0
      %v6795 = vmul.f32 %v2182, %v5231
      %v6796 = vmul.f32 %v2130, %v5231
      %v6797 = vmul.f32 %v2191, %v5231
      %v6798 = vmul.f32 %v2183, %v5231
      %v6799 = vmul.f32 %v2133, %v5231
      %v6800 = vmul.f32 %v2192, %v5231
      %v6801 = vmul.f32 %v2184, %v5231
      %v6802 = vmul.f32 %v2136, %v5231
      %v6803 = vmul.f32 %v2193, %v5231
      %v6804 = vmul.f32 %v2185, %v5231
      %v6805 = vmul.f32 %v2139, %v5231
      %v6806 = vmul.f32 %v2194, %v5231
      %v6807 = vmul.f32 %v2186, %v5231
      %v6808 = vmul.f32 %v2142, %v5231
      %v6809 = vmul.f32 %v2195, %v5231
      %v6810 = vmul.f32 %v2187, %v5231
      %v6811 = vmul.f32 %v2145, %v5231
      %v6812 = vmul.f32 %v2196, %v5231
      %v6813 = vmul.f32 %v2188, %v5231
      %v6814 = vmul.f32 %v2148, %v5231
      %v6815 = vmul.f32 %v2197, %v5231
      %v6816 = vmul.f32 %v2189, %v5231
      %v6817 = vmul.f32 %v2151, %v5231
      %v6818 = vmul.f32 %v2198, %v5231
      %v6843 = vrot.slane %v6795, 1
      %v6844 = vrot.slane %v6796, 1
      %v6845 = vsel %vm5280, %v6843, %v6844
      %v6846 = vrot.slane %v6797, 1
      %v6847 = vsel %vm5280, %v6844, %v6846
      %v6848 = vrot.slane %v6798, 1
      %v6849 = vrot.slane %v6799, 1
      %v6850 = vsel %vm5280, %v6848, %v6849
      %v6851 = vrot.slane %v6800, 1
      %v6852 = vsel %vm5280, %v6849, %v6851
      %v6853 = vrot.slane %v6801, 1
      %v6854 = vrot.slane %v6802, 1
      %v6855 = vsel %vm5280, %v6853, %v6854
      %v6856 = vrot.slane %v6803, 1
      %v6857 = vsel %vm5280, %v6854, %v6856
      %v6858 = vrot.slane %v6804, 1
      %v6859 = vrot.slane %v6805, 1
      %v6860 = vsel %vm5280, %v6858, %v6859
      %v6861 = vrot.slane %v6806, 1
      %v6862 = vsel %vm5280, %v6859, %v6861
      %v6863 = vrot.slane %v6807, 1
      %v6864 = vrot.slane %v6808, 1
      %v6865 = vsel %vm5280, %v6863, %v6864
      %v6866 = vrot.slane %v6809, 1
      %v6867 = vsel %vm5280, %v6864, %v6866
      %v6868 = vrot.slane %v6810, 1
      %v6869 = vrot.slane %v6811, 1
      %v6870 = vsel %vm5280, %v6868, %v6869
      %v6871 = vrot.slane %v6812, 1
      %v6872 = vsel %vm5280, %v6869, %v6871
      %v6873 = vrot.slane %v6813, 1
      %v6874 = vrot.slane %v6814, 1
      %v6875 = vsel %vm5280, %v6873, %v6874
      %v6876 = vrot.slane %v6815, 1
      %v6877 = vsel %vm5280, %v6874, %v6876
      %v6878 = vrot.slane %v6816, 1
      %v6879 = vrot.slane %v6817, 1
      %v6880 = vsel %vm5280, %v6878, %v6879
      %v6881 = vrot.slane %v6818, 1
      %v6882 = vsel %vm5280, %v6879, %v6881
      %v6899 = vadd.f32 %v6779, %v6845
      %v6900 = vadd.f32 %v6780, %v6847
      %v6901 = vadd.f32 %v6781, %v6850
      %v6902 = vadd.f32 %v6782, %v6852
      %v6903 = vadd.f32 %v6783, %v6855
      %v6904 = vadd.f32 %v6784, %v6857
      %v6905 = vadd.f32 %v6785, %v6860
      %v6906 = vadd.f32 %v6786, %v6862
      %v6907 = vadd.f32 %v6787, %v6865
      %v6908 = vadd.f32 %v6788, %v6867
      %v6909 = vadd.f32 %v6789, %v6870
      %v6910 = vadd.f32 %v6790, %v6872
      %v6911 = vadd.f32 %v6791, %v6875
      %v6912 = vadd.f32 %v6792, %v6877
      %v6913 = vadd.f32 %v6793, %v6880
      %v6914 = vadd.f32 %v6794, %v6882
      %v6915 = vmul.f32 %v3180, %v5353
      %v6916 = vmul.f32 %v3128, %v5353
      %v6917 = vmul.f32 %v3189, %v5353
      %v6918 = vmul.f32 %v3181, %v5353
      %v6919 = vmul.f32 %v3131, %v5353
      %v6920 = vmul.f32 %v3190, %v5353
      %v6921 = vmul.f32 %v3182, %v5353
      %v6922 = vmul.f32 %v3134, %v5353
      %v6923 = vmul.f32 %v3191, %v5353
      %v6924 = vmul.f32 %v3183, %v5353
      %v6925 = vmul.f32 %v3137, %v5353
      %v6926 = vmul.f32 %v3192, %v5353
      %v6927 = vmul.f32 %v3184, %v5353
      %v6928 = vmul.f32 %v3140, %v5353
      %v6929 = vmul.f32 %v3193, %v5353
      %v6930 = vmul.f32 %v3185, %v5353
      %v6931 = vmul.f32 %v3143, %v5353
      %v6932 = vmul.f32 %v3194, %v5353
      %v6933 = vmul.f32 %v3186, %v5353
      %v6934 = vmul.f32 %v3146, %v5353
      %v6935 = vmul.f32 %v3195, %v5353
      %v6936 = vmul.f32 %v3187, %v5353
      %v6937 = vmul.f32 %v3149, %v5353
      %v6938 = vmul.f32 %v3196, %v5353
      %v6963 = vrot.slane %v6915, 1
      %v6964 = vrot.slane %v6916, 1
      %v6965 = vsel %vm5280, %v6963, %v6964
      %v6966 = vrot.slane %v6917, 1
      %v6967 = vsel %vm5280, %v6964, %v6966
      %v6968 = vrot.slane %v6918, 1
      %v6969 = vrot.slane %v6919, 1
      %v6970 = vsel %vm5280, %v6968, %v6969
      %v6971 = vrot.slane %v6920, 1
      %v6972 = vsel %vm5280, %v6969, %v6971
      %v6973 = vrot.slane %v6921, 1
      %v6974 = vrot.slane %v6922, 1
      %v6975 = vsel %vm5280, %v6973, %v6974
      %v6976 = vrot.slane %v6923, 1
      %v6977 = vsel %vm5280, %v6974, %v6976
      %v6978 = vrot.slane %v6924, 1
      %v6979 = vrot.slane %v6925, 1
      %v6980 = vsel %vm5280, %v6978, %v6979
      %v6981 = vrot.slane %v6926, 1
      %v6982 = vsel %vm5280, %v6979, %v6981
      %v6983 = vrot.slane %v6927, 1
      %v6984 = vrot.slane %v6928, 1
      %v6985 = vsel %vm5280, %v6983, %v6984
      %v6986 = vrot.slane %v6929, 1
      %v6987 = vsel %vm5280, %v6984, %v6986
      %v6988 = vrot.slane %v6930, 1
      %v6989 = vrot.slane %v6931, 1
      %v6990 = vsel %vm5280, %v6988, %v6989
      %v6991 = vrot.slane %v6932, 1
      %v6992 = vsel %vm5280, %v6989, %v6991
      %v6993 = vrot.slane %v6933, 1
      %v6994 = vrot.slane %v6934, 1
      %v6995 = vsel %vm5280, %v6993, %v6994
      %v6996 = vrot.slane %v6935, 1
      %v6997 = vsel %vm5280, %v6994, %v6996
      %v6998 = vrot.slane %v6936, 1
      %v6999 = vrot.slane %v6937, 1
      %v7000 = vsel %vm5280, %v6998, %v6999
      %v7001 = vrot.slane %v6938, 1
      %v7002 = vsel %vm5280, %v6999, %v7001
      %v7019 = vadd.f32 %v6899, %v6965
      %v7020 = vadd.f32 %v6900, %v6967
      %v7021 = vadd.f32 %v6901, %v6970
      %v7022 = vadd.f32 %v6902, %v6972
      %v7023 = vadd.f32 %v6903, %v6975
      %v7024 = vadd.f32 %v6904, %v6977
      %v7025 = vadd.f32 %v6905, %v6980
      %v7026 = vadd.f32 %v6906, %v6982
      %v7027 = vadd.f32 %v6907, %v6985
      %v7028 = vadd.f32 %v6908, %v6987
      %v7029 = vadd.f32 %v6909, %v6990
      %v7030 = vadd.f32 %v6910, %v6992
      %v7031 = vadd.f32 %v6911, %v6995
      %v7032 = vadd.f32 %v6912, %v6997
      %v7033 = vadd.f32 %v6913, %v7000
      %v7034 = vadd.f32 %v6914, %v7002
      %v7035 = vmul.f32 %v5177, %v5474
      %v7036 = vmul.f32 %v5127, %v5474
      %v7037 = vmul.f32 %v5178, %v5474
      %v7038 = vmul.f32 %v5130, %v5474
      %v7039 = vmul.f32 %v5179, %v5474
      %v7040 = vmul.f32 %v5133, %v5474
      %v7041 = vmul.f32 %v5180, %v5474
      %v7042 = vmul.f32 %v5136, %v5474
      %v7043 = vmul.f32 %v5181, %v5474
      %v7044 = vmul.f32 %v5139, %v5474
      %v7045 = vmul.f32 %v5182, %v5474
      %v7046 = vmul.f32 %v5142, %v5474
      %v7047 = vmul.f32 %v5183, %v5474
      %v7048 = vmul.f32 %v5145, %v5474
      %v7049 = vmul.f32 %v5184, %v5474
      %v7050 = vmul.f32 %v5148, %v5474
      %v7051 = vadd.f32 %v7019, %v7035
      %v7052 = vadd.f32 %v7020, %v7036
      %v7053 = vadd.f32 %v7021, %v7037
      %v7054 = vadd.f32 %v7022, %v7038
      %v7055 = vadd.f32 %v7023, %v7039
      %v7056 = vadd.f32 %v7024, %v7040
      %v7057 = vadd.f32 %v7025, %v7041
      %v7058 = vadd.f32 %v7026, %v7042
      %v7059 = vadd.f32 %v7027, %v7043
      %v7060 = vadd.f32 %v7028, %v7044
      %v7061 = vadd.f32 %v7029, %v7045
      %v7062 = vadd.f32 %v7030, %v7046
      %v7063 = vadd.f32 %v7031, %v7047
      %v7064 = vadd.f32 %v7032, %v7048
      %v7065 = vadd.f32 %v7033, %v7049
      %v7066 = vadd.f32 %v7034, %v7050
      %v7067 = vmul.f32 %v4179, %v5507
      %v7068 = vmul.f32 %v4129, %v5507
      %v7069 = vmul.f32 %v4188, %v5507
      %v7070 = vmul.f32 %v4180, %v5507
      %v7071 = vmul.f32 %v4132, %v5507
      %v7072 = vmul.f32 %v4189, %v5507
      %v7073 = vmul.f32 %v4181, %v5507
      %v7074 = vmul.f32 %v4135, %v5507
      %v7075 = vmul.f32 %v4190, %v5507
      %v7076 = vmul.f32 %v4182, %v5507
      %v7077 = vmul.f32 %v4138, %v5507
      %v7078 = vmul.f32 %v4191, %v5507
      %v7079 = vmul.f32 %v4183, %v5507
      %v7080 = vmul.f32 %v4141, %v5507
      %v7081 = vmul.f32 %v4192, %v5507
      %v7082 = vmul.f32 %v4184, %v5507
      %v7083 = vmul.f32 %v4144, %v5507
      %v7084 = vmul.f32 %v4193, %v5507
      %v7085 = vmul.f32 %v4185, %v5507
      %v7086 = vmul.f32 %v4147, %v5507
      %v7087 = vmul.f32 %v4194, %v5507
      %v7088 = vmul.f32 %v4186, %v5507
      %v7089 = vmul.f32 %v4150, %v5507
      %v7090 = vmul.f32 %v4195, %v5507
      %v7115 = vrot.slane %v7067, 1
      %v7116 = vrot.slane %v7068, 1
      %v7117 = vsel %vm5280, %v7115, %v7116
      %v7118 = vrot.slane %v7069, 1
      %v7119 = vsel %vm5280, %v7116, %v7118
      %v7120 = vrot.slane %v7070, 1
      %v7121 = vrot.slane %v7071, 1
      %v7122 = vsel %vm5280, %v7120, %v7121
      %v7123 = vrot.slane %v7072, 1
      %v7124 = vsel %vm5280, %v7121, %v7123
      %v7125 = vrot.slane %v7073, 1
      %v7126 = vrot.slane %v7074, 1
      %v7127 = vsel %vm5280, %v7125, %v7126
      %v7128 = vrot.slane %v7075, 1
      %v7129 = vsel %vm5280, %v7126, %v7128
      %v7130 = vrot.slane %v7076, 1
      %v7131 = vrot.slane %v7077, 1
      %v7132 = vsel %vm5280, %v7130, %v7131
      %v7133 = vrot.slane %v7078, 1
      %v7134 = vsel %vm5280, %v7131, %v7133
      %v7135 = vrot.slane %v7079, 1
      %v7136 = vrot.slane %v7080, 1
      %v7137 = vsel %vm5280, %v7135, %v7136
      %v7138 = vrot.slane %v7081, 1
      %v7139 = vsel %vm5280, %v7136, %v7138
      %v7140 = vrot.slane %v7082, 1
      %v7141 = vrot.slane %v7083, 1
      %v7142 = vsel %vm5280, %v7140, %v7141
      %v7143 = vrot.slane %v7084, 1
      %v7144 = vsel %vm5280, %v7141, %v7143
      %v7145 = vrot.slane %v7085, 1
      %v7146 = vrot.slane %v7086, 1
      %v7147 = vsel %vm5280, %v7145, %v7146
      %v7148 = vrot.slane %v7087, 1
      %v7149 = vsel %vm5280, %v7146, %v7148
      %v7150 = vrot.slane %v7088, 1
      %v7151 = vrot.slane %v7089, 1
      %v7152 = vsel %vm5280, %v7150, %v7151
      %v7153 = vrot.slane %v7090, 1
      %v7154 = vsel %vm5280, %v7151, %v7153
      %v7171 = vadd.f32 %v7051, %v7117
      %v7172 = vadd.f32 %v7052, %v7119
      %v7173 = vadd.f32 %v7053, %v7122
      %v7174 = vadd.f32 %v7054, %v7124
      %v7175 = vadd.f32 %v7055, %v7127
      %v7176 = vadd.f32 %v7056, %v7129
      %v7177 = vadd.f32 %v7057, %v7132
      %v7178 = vadd.f32 %v7058, %v7134
      %v7179 = vadd.f32 %v7059, %v7137
      %v7180 = vadd.f32 %v7060, %v7139
      %v7181 = vadd.f32 %v7061, %v7142
      %v7182 = vadd.f32 %v7062, %v7144
      %v7183 = vadd.f32 %v7063, %v7147
      %v7184 = vadd.f32 %v7064, %v7149
      %v7185 = vadd.f32 %v7065, %v7152
      %v7186 = vadd.f32 %v7066, %v7154
      %v7187 = vmul.f32 %v5177, %v5628
      %v7188 = vmul.f32 %v5127, %v5628
      %v7189 = vmul.f32 %v5186, %v5628
      %v7190 = vmul.f32 %v5178, %v5628
      %v7191 = vmul.f32 %v5130, %v5628
      %v7192 = vmul.f32 %v5187, %v5628
      %v7193 = vmul.f32 %v5179, %v5628
      %v7194 = vmul.f32 %v5133, %v5628
      %v7195 = vmul.f32 %v5188, %v5628
      %v7196 = vmul.f32 %v5180, %v5628
      %v7197 = vmul.f32 %v5136, %v5628
      %v7198 = vmul.f32 %v5189, %v5628
      %v7199 = vmul.f32 %v5181, %v5628
      %v7200 = vmul.f32 %v5139, %v5628
      %v7201 = vmul.f32 %v5190, %v5628
      %v7202 = vmul.f32 %v5182, %v5628
      %v7203 = vmul.f32 %v5142, %v5628
      %v7204 = vmul.f32 %v5191, %v5628
      %v7205 = vmul.f32 %v5183, %v5628
      %v7206 = vmul.f32 %v5145, %v5628
      %v7207 = vmul.f32 %v5192, %v5628
      %v7208 = vmul.f32 %v5184, %v5628
      %v7209 = vmul.f32 %v5148, %v5628
      %v7210 = vmul.f32 %v5193, %v5628
      %v7235 = vrot.slane %v7187, 1
      %v7236 = vrot.slane %v7188, 1
      %v7237 = vsel %vm5280, %v7235, %v7236
      %v7238 = vrot.slane %v7189, 1
      %v7239 = vsel %vm5280, %v7236, %v7238
      %v7240 = vrot.slane %v7190, 1
      %v7241 = vrot.slane %v7191, 1
      %v7242 = vsel %vm5280, %v7240, %v7241
      %v7243 = vrot.slane %v7192, 1
      %v7244 = vsel %vm5280, %v7241, %v7243
      %v7245 = vrot.slane %v7193, 1
      %v7246 = vrot.slane %v7194, 1
      %v7247 = vsel %vm5280, %v7245, %v7246
      %v7248 = vrot.slane %v7195, 1
      %v7249 = vsel %vm5280, %v7246, %v7248
      %v7250 = vrot.slane %v7196, 1
      %v7251 = vrot.slane %v7197, 1
      %v7252 = vsel %vm5280, %v7250, %v7251
      %v7253 = vrot.slane %v7198, 1
      %v7254 = vsel %vm5280, %v7251, %v7253
      %v7255 = vrot.slane %v7199, 1
      %v7256 = vrot.slane %v7200, 1
      %v7257 = vsel %vm5280, %v7255, %v7256
      %v7258 = vrot.slane %v7201, 1
      %v7259 = vsel %vm5280, %v7256, %v7258
      %v7260 = vrot.slane %v7202, 1
      %v7261 = vrot.slane %v7203, 1
      %v7262 = vsel %vm5280, %v7260, %v7261
      %v7263 = vrot.slane %v7204, 1
      %v7264 = vsel %vm5280, %v7261, %v7263
      %v7265 = vrot.slane %v7205, 1
      %v7266 = vrot.slane %v7206, 1
      %v7267 = vsel %vm5280, %v7265, %v7266
      %v7268 = vrot.slane %v7207, 1
      %v7269 = vsel %vm5280, %v7266, %v7268
      %v7270 = vrot.slane %v7208, 1
      %v7271 = vrot.slane %v7209, 1
      %v7272 = vsel %vm5280, %v7270, %v7271
      %v7273 = vrot.slane %v7210, 1
      %v7274 = vsel %vm5280, %v7271, %v7273
      %v7291 = vadd.f32 %v7171, %v7237
      %v7292 = vadd.f32 %v7172, %v7239
      %v7293 = vadd.f32 %v7173, %v7242
      %v7294 = vadd.f32 %v7174, %v7244
      %v7295 = vadd.f32 %v7175, %v7247
      %v7296 = vadd.f32 %v7176, %v7249
      %v7297 = vadd.f32 %v7177, %v7252
      %v7298 = vadd.f32 %v7178, %v7254
      %v7299 = vadd.f32 %v7179, %v7257
      %v7300 = vadd.f32 %v7180, %v7259
      %v7301 = vadd.f32 %v7181, %v7262
      %v7302 = vadd.f32 %v7182, %v7264
      %v7303 = vadd.f32 %v7183, %v7267
      %v7304 = vadd.f32 %v7184, %v7269
      %v7305 = vadd.f32 %v7185, %v7272
      %v7306 = vadd.f32 %v7186, %v7274
      %v7307 = vmul.f32 %v3181, %v5749
      %v7308 = vmul.f32 %v3131, %v5749
      %v7309 = vmul.f32 %v3182, %v5749
      %v7310 = vmul.f32 %v3134, %v5749
      %v7311 = vmul.f32 %v3183, %v5749
      %v7312 = vmul.f32 %v3137, %v5749
      %v7313 = vmul.f32 %v3184, %v5749
      %v7314 = vmul.f32 %v3140, %v5749
      %v7315 = vmul.f32 %v3185, %v5749
      %v7316 = vmul.f32 %v3143, %v5749
      %v7317 = vmul.f32 %v3186, %v5749
      %v7318 = vmul.f32 %v3146, %v5749
      %v7319 = vmul.f32 %v3187, %v5749
      %v7320 = vmul.f32 %v3149, %v5749
      %v7321 = vmul.f32 %v3188, %v5749
      %v7322 = vmul.f32 %v3152, %v5749
      %v7323 = vadd.f32 %v7291, %v7307
      %v7324 = vadd.f32 %v7292, %v7308
      %v7325 = vadd.f32 %v7293, %v7309
      %v7326 = vadd.f32 %v7294, %v7310
      %v7327 = vadd.f32 %v7295, %v7311
      %v7328 = vadd.f32 %v7296, %v7312
      %v7329 = vadd.f32 %v7297, %v7313
      %v7330 = vadd.f32 %v7298, %v7314
      %v7331 = vadd.f32 %v7299, %v7315
      %v7332 = vadd.f32 %v7300, %v7316
      %v7333 = vadd.f32 %v7301, %v7317
      %v7334 = vadd.f32 %v7302, %v7318
      %v7335 = vadd.f32 %v7303, %v7319
      %v7336 = vadd.f32 %v7304, %v7320
      %v7337 = vadd.f32 %v7305, %v7321
      %v7338 = vadd.f32 %v7306, %v7322
      %v7339 = vmul.f32 %v2183, %v5782
      %v7340 = vmul.f32 %v2133, %v5782
      %v7341 = vmul.f32 %v2192, %v5782
      %v7342 = vmul.f32 %v2184, %v5782
      %v7343 = vmul.f32 %v2136, %v5782
      %v7344 = vmul.f32 %v2193, %v5782
      %v7345 = vmul.f32 %v2185, %v5782
      %v7346 = vmul.f32 %v2139, %v5782
      %v7347 = vmul.f32 %v2194, %v5782
      %v7348 = vmul.f32 %v2186, %v5782
      %v7349 = vmul.f32 %v2142, %v5782
      %v7350 = vmul.f32 %v2195, %v5782
      %v7351 = vmul.f32 %v2187, %v5782
      %v7352 = vmul.f32 %v2145, %v5782
      %v7353 = vmul.f32 %v2196, %v5782
      %v7354 = vmul.f32 %v2188, %v5782
      %v7355 = vmul.f32 %v2148, %v5782
      %v7356 = vmul.f32 %v2197, %v5782
      %v7357 = vmul.f32 %v2189, %v5782
      %v7358 = vmul.f32 %v2151, %v5782
      %v7359 = vmul.f32 %v2198, %v5782
      %v7360 = vmul.f32 %v2190, %v5782
      %v7361 = vmul.f32 %v2154, %v5782
      %v7362 = vmul.f32 %v2199, %v5782
      %v7387 = vrot.slane %v7339, 1
      %v7388 = vrot.slane %v7340, 1
      %v7389 = vsel %vm5280, %v7387, %v7388
      %v7390 = vrot.slane %v7341, 1
      %v7391 = vsel %vm5280, %v7388, %v7390
      %v7392 = vrot.slane %v7342, 1
      %v7393 = vrot.slane %v7343, 1
      %v7394 = vsel %vm5280, %v7392, %v7393
      %v7395 = vrot.slane %v7344, 1
      %v7396 = vsel %vm5280, %v7393, %v7395
      %v7397 = vrot.slane %v7345, 1
      %v7398 = vrot.slane %v7346, 1
      %v7399 = vsel %vm5280, %v7397, %v7398
      %v7400 = vrot.slane %v7347, 1
      %v7401 = vsel %vm5280, %v7398, %v7400
      %v7402 = vrot.slane %v7348, 1
      %v7403 = vrot.slane %v7349, 1
      %v7404 = vsel %vm5280, %v7402, %v7403
      %v7405 = vrot.slane %v7350, 1
      %v7406 = vsel %vm5280, %v7403, %v7405
      %v7407 = vrot.slane %v7351, 1
      %v7408 = vrot.slane %v7352, 1
      %v7409 = vsel %vm5280, %v7407, %v7408
      %v7410 = vrot.slane %v7353, 1
      %v7411 = vsel %vm5280, %v7408, %v7410
      %v7412 = vrot.slane %v7354, 1
      %v7413 = vrot.slane %v7355, 1
      %v7414 = vsel %vm5280, %v7412, %v7413
      %v7415 = vrot.slane %v7356, 1
      %v7416 = vsel %vm5280, %v7413, %v7415
      %v7417 = vrot.slane %v7357, 1
      %v7418 = vrot.slane %v7358, 1
      %v7419 = vsel %vm5280, %v7417, %v7418
      %v7420 = vrot.slane %v7359, 1
      %v7421 = vsel %vm5280, %v7418, %v7420
      %v7422 = vrot.slane %v7360, 1
      %v7423 = vrot.slane %v7361, 1
      %v7424 = vsel %vm5280, %v7422, %v7423
      %v7425 = vrot.slane %v7362, 1
      %v7426 = vsel %vm5280, %v7423, %v7425
      %v7443 = vadd.f32 %v7323, %v7389
      %v7444 = vadd.f32 %v7324, %v7391
      %v7445 = vadd.f32 %v7325, %v7394
      %v7446 = vadd.f32 %v7326, %v7396
      %v7447 = vadd.f32 %v7327, %v7399
      %v7448 = vadd.f32 %v7328, %v7401
      %v7449 = vadd.f32 %v7329, %v7404
      %v7450 = vadd.f32 %v7330, %v7406
      %v7451 = vadd.f32 %v7331, %v7409
      %v7452 = vadd.f32 %v7332, %v7411
      %v7453 = vadd.f32 %v7333, %v7414
      %v7454 = vadd.f32 %v7334, %v7416
      %v7455 = vadd.f32 %v7335, %v7419
      %v7456 = vadd.f32 %v7336, %v7421
      %v7457 = vadd.f32 %v7337, %v7424
      %v7458 = vadd.f32 %v7338, %v7426
      %v7459 = vmul.f32 %v3181, %v5903
      %v7460 = vmul.f32 %v3131, %v5903
      %v7461 = vmul.f32 %v3190, %v5903
      %v7462 = vmul.f32 %v3182, %v5903
      %v7463 = vmul.f32 %v3134, %v5903
      %v7464 = vmul.f32 %v3191, %v5903
      %v7465 = vmul.f32 %v3183, %v5903
      %v7466 = vmul.f32 %v3137, %v5903
      %v7467 = vmul.f32 %v3192, %v5903
      %v7468 = vmul.f32 %v3184, %v5903
      %v7469 = vmul.f32 %v3140, %v5903
      %v7470 = vmul.f32 %v3193, %v5903
      %v7471 = vmul.f32 %v3185, %v5903
      %v7472 = vmul.f32 %v3143, %v5903
      %v7473 = vmul.f32 %v3194, %v5903
      %v7474 = vmul.f32 %v3186, %v5903
      %v7475 = vmul.f32 %v3146, %v5903
      %v7476 = vmul.f32 %v3195, %v5903
      %v7477 = vmul.f32 %v3187, %v5903
      %v7478 = vmul.f32 %v3149, %v5903
      %v7479 = vmul.f32 %v3196, %v5903
      %v7480 = vmul.f32 %v3188, %v5903
      %v7481 = vmul.f32 %v3152, %v5903
      %v7482 = vmul.f32 %v3197, %v5903
      %v7507 = vrot.slane %v7459, 1
      %v7508 = vrot.slane %v7460, 1
      %v7509 = vsel %vm5280, %v7507, %v7508
      %v7510 = vrot.slane %v7461, 1
      %v7511 = vsel %vm5280, %v7508, %v7510
      %v7512 = vrot.slane %v7462, 1
      %v7513 = vrot.slane %v7463, 1
      %v7514 = vsel %vm5280, %v7512, %v7513
      %v7515 = vrot.slane %v7464, 1
      %v7516 = vsel %vm5280, %v7513, %v7515
      %v7517 = vrot.slane %v7465, 1
      %v7518 = vrot.slane %v7466, 1
      %v7519 = vsel %vm5280, %v7517, %v7518
      %v7520 = vrot.slane %v7467, 1
      %v7521 = vsel %vm5280, %v7518, %v7520
      %v7522 = vrot.slane %v7468, 1
      %v7523 = vrot.slane %v7469, 1
      %v7524 = vsel %vm5280, %v7522, %v7523
      %v7525 = vrot.slane %v7470, 1
      %v7526 = vsel %vm5280, %v7523, %v7525
      %v7527 = vrot.slane %v7471, 1
      %v7528 = vrot.slane %v7472, 1
      %v7529 = vsel %vm5280, %v7527, %v7528
      %v7530 = vrot.slane %v7473, 1
      %v7531 = vsel %vm5280, %v7528, %v7530
      %v7532 = vrot.slane %v7474, 1
      %v7533 = vrot.slane %v7475, 1
      %v7534 = vsel %vm5280, %v7532, %v7533
      %v7535 = vrot.slane %v7476, 1
      %v7536 = vsel %vm5280, %v7533, %v7535
      %v7537 = vrot.slane %v7477, 1
      %v7538 = vrot.slane %v7478, 1
      %v7539 = vsel %vm5280, %v7537, %v7538
      %v7540 = vrot.slane %v7479, 1
      %v7541 = vsel %vm5280, %v7538, %v7540
      %v7542 = vrot.slane %v7480, 1
      %v7543 = vrot.slane %v7481, 1
      %v7544 = vsel %vm5280, %v7542, %v7543
      %v7545 = vrot.slane %v7482, 1
      %v7546 = vsel %vm5280, %v7543, %v7545
      %v7563 = vadd.f32 %v7443, %v7509
      %v7564 = vadd.f32 %v7444, %v7511
      %v7565 = vadd.f32 %v7445, %v7514
      %v7566 = vadd.f32 %v7446, %v7516
      %v7567 = vadd.f32 %v7447, %v7519
      %v7568 = vadd.f32 %v7448, %v7521
      %v7569 = vadd.f32 %v7449, %v7524
      %v7570 = vadd.f32 %v7450, %v7526
      %v7571 = vadd.f32 %v7451, %v7529
      %v7572 = vadd.f32 %v7452, %v7531
      %v7573 = vadd.f32 %v7453, %v7534
      %v7574 = vadd.f32 %v7454, %v7536
      %v7575 = vadd.f32 %v7455, %v7539
      %v7576 = vadd.f32 %v7456, %v7541
      %v7577 = vadd.f32 %v7457, %v7544
      %v7578 = vadd.f32 %v7458, %v7546
      %v7579 = vadd.f32 %v7563, %v6025
      %v7580 = vadd.f32 %v7564, %v6025
      %v7581 = vadd.f32 %v7565, %v6025
      %v7582 = vadd.f32 %v7566, %v6025
      %v7583 = vadd.f32 %v7567, %v6025
      %v7584 = vadd.f32 %v7568, %v6025
      %v7585 = vadd.f32 %v7569, %v6025
      %v7586 = vadd.f32 %v7570, %v6025
      %v7587 = vadd.f32 %v7571, %v6025
      %v7588 = vadd.f32 %v7572, %v6025
      %v7589 = vadd.f32 %v7573, %v6025
      %v7590 = vadd.f32 %v7574, %v6025
      %v7591 = vadd.f32 %v7575, %v6025
      %v7592 = vadd.f32 %v7576, %v6025
      %v7593 = vadd.f32 %v7577, %v6025
      %v7594 = vadd.f32 %v7578, %v6025
      %v7595 = vmul.f32 %v2182, %v5198
      %v7596 = vmul.f32 %v2130, %v5198
      %v7597 = vmul.f32 %v2191, %v5198
      %v7598 = vmul.f32 %v2183, %v5198
      %v7599 = vmul.f32 %v2133, %v5198
      %v7600 = vmul.f32 %v2192, %v5198
      %v7601 = vmul.f32 %v2184, %v5198
      %v7602 = vmul.f32 %v2136, %v5198
      %v7603 = vmul.f32 %v2193, %v5198
      %v7604 = vmul.f32 %v2185, %v5198
      %v7605 = vmul.f32 %v2139, %v5198
      %v7606 = vmul.f32 %v2194, %v5198
      %v7607 = vmul.f32 %v2186, %v5198
      %v7608 = vmul.f32 %v2142, %v5198
      %v7609 = vmul.f32 %v2195, %v5198
      %v7610 = vmul.f32 %v2187, %v5198
      %v7611 = vmul.f32 %v2145, %v5198
      %v7612 = vmul.f32 %v2196, %v5198
      %v7613 = vmul.f32 %v2188, %v5198
      %v7614 = vmul.f32 %v2148, %v5198
      %v7615 = vmul.f32 %v2197, %v5198
      %v7616 = vmul.f32 %v2189, %v5198
      %v7617 = vmul.f32 %v2151, %v5198
      %v7618 = vmul.f32 %v2198, %v5198
      %v7619 = vadd.f32 %v7595, 0.0
      %v7620 = vadd.f32 %v7596, 0.0
      %v7621 = vadd.f32 %v7597, 0.0
      %v7622 = vadd.f32 %v7598, 0.0
      %v7623 = vadd.f32 %v7599, 0.0
      %v7624 = vadd.f32 %v7600, 0.0
      %v7625 = vadd.f32 %v7601, 0.0
      %v7626 = vadd.f32 %v7602, 0.0
      %v7627 = vadd.f32 %v7603, 0.0
      %v7628 = vadd.f32 %v7604, 0.0
      %v7629 = vadd.f32 %v7605, 0.0
      %v7630 = vadd.f32 %v7606, 0.0
      %v7631 = vadd.f32 %v7607, 0.0
      %v7632 = vadd.f32 %v7608, 0.0
      %v7633 = vadd.f32 %v7609, 0.0
      %v7634 = vadd.f32 %v7610, 0.0
      %v7635 = vadd.f32 %v7611, 0.0
      %v7636 = vadd.f32 %v7612, 0.0
      %v7637 = vadd.f32 %v7613, 0.0
      %v7638 = vadd.f32 %v7614, 0.0
      %v7639 = vadd.f32 %v7615, 0.0
      %v7640 = vadd.f32 %v7616, 0.0
      %v7641 = vadd.f32 %v7617, 0.0
      %v7642 = vadd.f32 %v7618, 0.0
      %v7643 = vmul.f32 %v3180, %v5231
      %v7644 = vmul.f32 %v3128, %v5231
      %v7645 = vmul.f32 %v3189, %v5231
      %v7646 = vmul.f32 %v3181, %v5231
      %v7647 = vmul.f32 %v3131, %v5231
      %v7648 = vmul.f32 %v3190, %v5231
      %v7649 = vmul.f32 %v3182, %v5231
      %v7650 = vmul.f32 %v3134, %v5231
      %v7651 = vmul.f32 %v3191, %v5231
      %v7652 = vmul.f32 %v3183, %v5231
      %v7653 = vmul.f32 %v3137, %v5231
      %v7654 = vmul.f32 %v3192, %v5231
      %v7655 = vmul.f32 %v3184, %v5231
      %v7656 = vmul.f32 %v3140, %v5231
      %v7657 = vmul.f32 %v3193, %v5231
      %v7658 = vmul.f32 %v3185, %v5231
      %v7659 = vmul.f32 %v3143, %v5231
      %v7660 = vmul.f32 %v3194, %v5231
      %v7661 = vmul.f32 %v3186, %v5231
      %v7662 = vmul.f32 %v3146, %v5231
      %v7663 = vmul.f32 %v3195, %v5231
      %v7664 = vmul.f32 %v3187, %v5231
      %v7665 = vmul.f32 %v3149, %v5231
      %v7666 = vmul.f32 %v3196, %v5231
      %v7667 = vadd.f32 %v7619, %v7643
      %v7668 = vadd.f32 %v7620, %v7644
      %v7669 = vadd.f32 %v7621, %v7645
      %v7670 = vadd.f32 %v7622, %v7646
      %v7671 = vadd.f32 %v7623, %v7647
      %v7672 = vadd.f32 %v7624, %v7648
      %v7673 = vadd.f32 %v7625, %v7649
      %v7674 = vadd.f32 %v7626, %v7650
      %v7675 = vadd.f32 %v7627, %v7651
      %v7676 = vadd.f32 %v7628, %v7652
      %v7677 = vadd.f32 %v7629, %v7653
      %v7678 = vadd.f32 %v7630, %v7654
      %v7679 = vadd.f32 %v7631, %v7655
      %v7680 = vadd.f32 %v7632, %v7656
      %v7681 = vadd.f32 %v7633, %v7657
      %v7682 = vadd.f32 %v7634, %v7658
      %v7683 = vadd.f32 %v7635, %v7659
      %v7684 = vadd.f32 %v7636, %v7660
      %v7685 = vadd.f32 %v7637, %v7661
      %v7686 = vadd.f32 %v7638, %v7662
      %v7687 = vadd.f32 %v7639, %v7663
      %v7688 = vadd.f32 %v7640, %v7664
      %v7689 = vadd.f32 %v7641, %v7665
      %v7690 = vadd.f32 %v7642, %v7666
      %v7691 = vmul.f32 %v2182, %v5353
      %v7692 = vmul.f32 %v2130, %v5353
      %v7693 = vmul.f32 %v2191, %v5353
      %v7694 = vmul.f32 %v2183, %v5353
      %v7695 = vmul.f32 %v2133, %v5353
      %v7696 = vmul.f32 %v2192, %v5353
      %v7697 = vmul.f32 %v2184, %v5353
      %v7698 = vmul.f32 %v2136, %v5353
      %v7699 = vmul.f32 %v2193, %v5353
      %v7700 = vmul.f32 %v2185, %v5353
      %v7701 = vmul.f32 %v2139, %v5353
      %v7702 = vmul.f32 %v2194, %v5353
      %v7703 = vmul.f32 %v2186, %v5353
      %v7704 = vmul.f32 %v2142, %v5353
      %v7705 = vmul.f32 %v2195, %v5353
      %v7706 = vmul.f32 %v2187, %v5353
      %v7707 = vmul.f32 %v2145, %v5353
      %v7708 = vmul.f32 %v2196, %v5353
      %v7709 = vmul.f32 %v2188, %v5353
      %v7710 = vmul.f32 %v2148, %v5353
      %v7711 = vmul.f32 %v2197, %v5353
      %v7712 = vmul.f32 %v2189, %v5353
      %v7713 = vmul.f32 %v2151, %v5353
      %v7714 = vmul.f32 %v2198, %v5353
      %v7739 = vrot.slane %v7691, 1
      %v7740 = vrot.slane %v7692, 1
      %v7741 = vsel %vm5280, %v7739, %v7740
      %v7742 = vrot.slane %v7693, 1
      %v7743 = vsel %vm5280, %v7740, %v7742
      %v7744 = vrot.slane %v7694, 1
      %v7745 = vrot.slane %v7695, 1
      %v7746 = vsel %vm5280, %v7744, %v7745
      %v7747 = vrot.slane %v7696, 1
      %v7748 = vsel %vm5280, %v7745, %v7747
      %v7749 = vrot.slane %v7697, 1
      %v7750 = vrot.slane %v7698, 1
      %v7751 = vsel %vm5280, %v7749, %v7750
      %v7752 = vrot.slane %v7699, 1
      %v7753 = vsel %vm5280, %v7750, %v7752
      %v7754 = vrot.slane %v7700, 1
      %v7755 = vrot.slane %v7701, 1
      %v7756 = vsel %vm5280, %v7754, %v7755
      %v7757 = vrot.slane %v7702, 1
      %v7758 = vsel %vm5280, %v7755, %v7757
      %v7759 = vrot.slane %v7703, 1
      %v7760 = vrot.slane %v7704, 1
      %v7761 = vsel %vm5280, %v7759, %v7760
      %v7762 = vrot.slane %v7705, 1
      %v7763 = vsel %vm5280, %v7760, %v7762
      %v7764 = vrot.slane %v7706, 1
      %v7765 = vrot.slane %v7707, 1
      %v7766 = vsel %vm5280, %v7764, %v7765
      %v7767 = vrot.slane %v7708, 1
      %v7768 = vsel %vm5280, %v7765, %v7767
      %v7769 = vrot.slane %v7709, 1
      %v7770 = vrot.slane %v7710, 1
      %v7771 = vsel %vm5280, %v7769, %v7770
      %v7772 = vrot.slane %v7711, 1
      %v7773 = vsel %vm5280, %v7770, %v7772
      %v7774 = vrot.slane %v7712, 1
      %v7775 = vrot.slane %v7713, 1
      %v7776 = vsel %vm5280, %v7774, %v7775
      %v7777 = vrot.slane %v7714, 1
      %v7778 = vsel %vm5280, %v7775, %v7777
      %v7803 = vadd.f32 %v7667, %v7741
      %v7804 = vadd.f32 %v7668, %v7743
      %v7805 = vadd.f32 %v7669, %v7742
      %v7806 = vadd.f32 %v7670, %v7746
      %v7807 = vadd.f32 %v7671, %v7748
      %v7808 = vadd.f32 %v7672, %v7747
      %v7809 = vadd.f32 %v7673, %v7751
      %v7810 = vadd.f32 %v7674, %v7753
      %v7811 = vadd.f32 %v7675, %v7752
      %v7812 = vadd.f32 %v7676, %v7756
      %v7813 = vadd.f32 %v7677, %v7758
      %v7814 = vadd.f32 %v7678, %v7757
      %v7815 = vadd.f32 %v7679, %v7761
      %v7816 = vadd.f32 %v7680, %v7763
      %v7817 = vadd.f32 %v7681, %v7762
      %v7818 = vadd.f32 %v7682, %v7766
      %v7819 = vadd.f32 %v7683, %v7768
      %v7820 = vadd.f32 %v7684, %v7767
      %v7821 = vadd.f32 %v7685, %v7771
      %v7822 = vadd.f32 %v7686, %v7773
      %v7823 = vadd.f32 %v7687, %v7772
      %v7824 = vadd.f32 %v7688, %v7776
      %v7825 = vadd.f32 %v7689, %v7778
      %v7826 = vadd.f32 %v7690, %v7777
      %v7827 = vmul.f32 %v4179, %v5474
      %v7828 = vmul.f32 %v4129, %v5474
      %v7829 = vmul.f32 %v4188, %v5474
      %v7830 = vmul.f32 %v4180, %v5474
      %v7831 = vmul.f32 %v4132, %v5474
      %v7832 = vmul.f32 %v4189, %v5474
      %v7833 = vmul.f32 %v4181, %v5474
      %v7834 = vmul.f32 %v4135, %v5474
      %v7835 = vmul.f32 %v4190, %v5474
      %v7836 = vmul.f32 %v4182, %v5474
      %v7837 = vmul.f32 %v4138, %v5474
      %v7838 = vmul.f32 %v4191, %v5474
      %v7839 = vmul.f32 %v4183, %v5474
      %v7840 = vmul.f32 %v4141, %v5474
      %v7841 = vmul.f32 %v4192, %v5474
      %v7842 = vmul.f32 %v4184, %v5474
      %v7843 = vmul.f32 %v4144, %v5474
      %v7844 = vmul.f32 %v4193, %v5474
      %v7845 = vmul.f32 %v4185, %v5474
      %v7846 = vmul.f32 %v4147, %v5474
      %v7847 = vmul.f32 %v4194, %v5474
      %v7848 = vmul.f32 %v4186, %v5474
      %v7849 = vmul.f32 %v4150, %v5474
      %v7850 = vmul.f32 %v4195, %v5474
      %v7851 = vadd.f32 %v7803, %v7827
      %v7852 = vadd.f32 %v7804, %v7828
      %v7853 = vadd.f32 %v7805, %v7829
      %v7854 = vadd.f32 %v7806, %v7830
      %v7855 = vadd.f32 %v7807, %v7831
      %v7856 = vadd.f32 %v7808, %v7832
      %v7857 = vadd.f32 %v7809, %v7833
      %v7858 = vadd.f32 %v7810, %v7834
      %v7859 = vadd.f32 %v7811, %v7835
      %v7860 = vadd.f32 %v7812, %v7836
      %v7861 = vadd.f32 %v7813, %v7837
      %v7862 = vadd.f32 %v7814, %v7838
      %v7863 = vadd.f32 %v7815, %v7839
      %v7864 = vadd.f32 %v7816, %v7840
      %v7865 = vadd.f32 %v7817, %v7841
      %v7866 = vadd.f32 %v7818, %v7842
      %v7867 = vadd.f32 %v7819, %v7843
      %v7868 = vadd.f32 %v7820, %v7844
      %v7869 = vadd.f32 %v7821, %v7845
      %v7870 = vadd.f32 %v7822, %v7846
      %v7871 = vadd.f32 %v7823, %v7847
      %v7872 = vadd.f32 %v7824, %v7848
      %v7873 = vadd.f32 %v7825, %v7849
      %v7874 = vadd.f32 %v7826, %v7850
      %v7875 = vmul.f32 %v5177, %v5507
      %v7876 = vmul.f32 %v5127, %v5507
      %v7877 = vmul.f32 %v5186, %v5507
      %v7878 = vmul.f32 %v5178, %v5507
      %v7879 = vmul.f32 %v5130, %v5507
      %v7880 = vmul.f32 %v5187, %v5507
      %v7881 = vmul.f32 %v5179, %v5507
      %v7882 = vmul.f32 %v5133, %v5507
      %v7883 = vmul.f32 %v5188, %v5507
      %v7884 = vmul.f32 %v5180, %v5507
      %v7885 = vmul.f32 %v5136, %v5507
      %v7886 = vmul.f32 %v5189, %v5507
      %v7887 = vmul.f32 %v5181, %v5507
      %v7888 = vmul.f32 %v5139, %v5507
      %v7889 = vmul.f32 %v5190, %v5507
      %v7890 = vmul.f32 %v5182, %v5507
      %v7891 = vmul.f32 %v5142, %v5507
      %v7892 = vmul.f32 %v5191, %v5507
      %v7893 = vmul.f32 %v5183, %v5507
      %v7894 = vmul.f32 %v5145, %v5507
      %v7895 = vmul.f32 %v5192, %v5507
      %v7896 = vmul.f32 %v5184, %v5507
      %v7897 = vmul.f32 %v5148, %v5507
      %v7898 = vmul.f32 %v5193, %v5507
      %v7899 = vadd.f32 %v7851, %v7875
      %v7900 = vadd.f32 %v7852, %v7876
      %v7901 = vadd.f32 %v7853, %v7877
      %v7902 = vadd.f32 %v7854, %v7878
      %v7903 = vadd.f32 %v7855, %v7879
      %v7904 = vadd.f32 %v7856, %v7880
      %v7905 = vadd.f32 %v7857, %v7881
      %v7906 = vadd.f32 %v7858, %v7882
      %v7907 = vadd.f32 %v7859, %v7883
      %v7908 = vadd.f32 %v7860, %v7884
      %v7909 = vadd.f32 %v7861, %v7885
      %v7910 = vadd.f32 %v7862, %v7886
      %v7911 = vadd.f32 %v7863, %v7887
      %v7912 = vadd.f32 %v7864, %v7888
      %v7913 = vadd.f32 %v7865, %v7889
      %v7914 = vadd.f32 %v7866, %v7890
      %v7915 = vadd.f32 %v7867, %v7891
      %v7916 = vadd.f32 %v7868, %v7892
      %v7917 = vadd.f32 %v7869, %v7893
      %v7918 = vadd.f32 %v7870, %v7894
      %v7919 = vadd.f32 %v7871, %v7895
      %v7920 = vadd.f32 %v7872, %v7896
      %v7921 = vadd.f32 %v7873, %v7897
      %v7922 = vadd.f32 %v7874, %v7898
      %v7923 = vmul.f32 %v4179, %v5628
      %v7924 = vmul.f32 %v4129, %v5628
      %v7925 = vmul.f32 %v4188, %v5628
      %v7926 = vmul.f32 %v4180, %v5628
      %v7927 = vmul.f32 %v4132, %v5628
      %v7928 = vmul.f32 %v4189, %v5628
      %v7929 = vmul.f32 %v4181, %v5628
      %v7930 = vmul.f32 %v4135, %v5628
      %v7931 = vmul.f32 %v4190, %v5628
      %v7932 = vmul.f32 %v4182, %v5628
      %v7933 = vmul.f32 %v4138, %v5628
      %v7934 = vmul.f32 %v4191, %v5628
      %v7935 = vmul.f32 %v4183, %v5628
      %v7936 = vmul.f32 %v4141, %v5628
      %v7937 = vmul.f32 %v4192, %v5628
      %v7938 = vmul.f32 %v4184, %v5628
      %v7939 = vmul.f32 %v4144, %v5628
      %v7940 = vmul.f32 %v4193, %v5628
      %v7941 = vmul.f32 %v4185, %v5628
      %v7942 = vmul.f32 %v4147, %v5628
      %v7943 = vmul.f32 %v4194, %v5628
      %v7944 = vmul.f32 %v4186, %v5628
      %v7945 = vmul.f32 %v4150, %v5628
      %v7946 = vmul.f32 %v4195, %v5628
      %v7971 = vrot.slane %v7923, 1
      %v7972 = vrot.slane %v7924, 1
      %v7973 = vsel %vm5280, %v7971, %v7972
      %v7974 = vrot.slane %v7925, 1
      %v7975 = vsel %vm5280, %v7972, %v7974
      %v7976 = vrot.slane %v7926, 1
      %v7977 = vrot.slane %v7927, 1
      %v7978 = vsel %vm5280, %v7976, %v7977
      %v7979 = vrot.slane %v7928, 1
      %v7980 = vsel %vm5280, %v7977, %v7979
      %v7981 = vrot.slane %v7929, 1
      %v7982 = vrot.slane %v7930, 1
      %v7983 = vsel %vm5280, %v7981, %v7982
      %v7984 = vrot.slane %v7931, 1
      %v7985 = vsel %vm5280, %v7982, %v7984
      %v7986 = vrot.slane %v7932, 1
      %v7987 = vrot.slane %v7933, 1
      %v7988 = vsel %vm5280, %v7986, %v7987
      %v7989 = vrot.slane %v7934, 1
      %v7990 = vsel %vm5280, %v7987, %v7989
      %v7991 = vrot.slane %v7935, 1
      %v7992 = vrot.slane %v7936, 1
      %v7993 = vsel %vm5280, %v7991, %v7992
      %v7994 = vrot.slane %v7937, 1
      %v7995 = vsel %vm5280, %v7992, %v7994
      %v7996 = vrot.slane %v7938, 1
      %v7997 = vrot.slane %v7939, 1
      %v7998 = vsel %vm5280, %v7996, %v7997
      %v7999 = vrot.slane %v7940, 1
      %v8000 = vsel %vm5280, %v7997, %v7999
      %v8001 = vrot.slane %v7941, 1
      %v8002 = vrot.slane %v7942, 1
      %v8003 = vsel %vm5280, %v8001, %v8002
      %v8004 = vrot.slane %v7943, 1
      %v8005 = vsel %vm5280, %v8002, %v8004
      %v8006 = vrot.slane %v7944, 1
      %v8007 = vrot.slane %v7945, 1
      %v8008 = vsel %vm5280, %v8006, %v8007
      %v8009 = vrot.slane %v7946, 1
      %v8010 = vsel %vm5280, %v8007, %v8009
      %v8035 = vadd.f32 %v7899, %v7973
      %v8036 = vadd.f32 %v7900, %v7975
      %v8037 = vadd.f32 %v7901, %v7974
      %v8038 = vadd.f32 %v7902, %v7978
      %v8039 = vadd.f32 %v7903, %v7980
      %v8040 = vadd.f32 %v7904, %v7979
      %v8041 = vadd.f32 %v7905, %v7983
      %v8042 = vadd.f32 %v7906, %v7985
      %v8043 = vadd.f32 %v7907, %v7984
      %v8044 = vadd.f32 %v7908, %v7988
      %v8045 = vadd.f32 %v7909, %v7990
      %v8046 = vadd.f32 %v7910, %v7989
      %v8047 = vadd.f32 %v7911, %v7993
      %v8048 = vadd.f32 %v7912, %v7995
      %v8049 = vadd.f32 %v7913, %v7994
      %v8050 = vadd.f32 %v7914, %v7998
      %v8051 = vadd.f32 %v7915, %v8000
      %v8052 = vadd.f32 %v7916, %v7999
      %v8053 = vadd.f32 %v7917, %v8003
      %v8054 = vadd.f32 %v7918, %v8005
      %v8055 = vadd.f32 %v7919, %v8004
      %v8056 = vadd.f32 %v7920, %v8008
      %v8057 = vadd.f32 %v7921, %v8010
      %v8058 = vadd.f32 %v7922, %v8009
      %v8059 = vmul.f32 %v2183, %v5749
      %v8060 = vmul.f32 %v2133, %v5749
      %v8061 = vmul.f32 %v2192, %v5749
      %v8062 = vmul.f32 %v2184, %v5749
      %v8063 = vmul.f32 %v2136, %v5749
      %v8064 = vmul.f32 %v2193, %v5749
      %v8065 = vmul.f32 %v2185, %v5749
      %v8066 = vmul.f32 %v2139, %v5749
      %v8067 = vmul.f32 %v2194, %v5749
      %v8068 = vmul.f32 %v2186, %v5749
      %v8069 = vmul.f32 %v2142, %v5749
      %v8070 = vmul.f32 %v2195, %v5749
      %v8071 = vmul.f32 %v2187, %v5749
      %v8072 = vmul.f32 %v2145, %v5749
      %v8073 = vmul.f32 %v2196, %v5749
      %v8074 = vmul.f32 %v2188, %v5749
      %v8075 = vmul.f32 %v2148, %v5749
      %v8076 = vmul.f32 %v2197, %v5749
      %v8077 = vmul.f32 %v2189, %v5749
      %v8078 = vmul.f32 %v2151, %v5749
      %v8079 = vmul.f32 %v2198, %v5749
      %v8080 = vmul.f32 %v2190, %v5749
      %v8081 = vmul.f32 %v2154, %v5749
      %v8082 = vmul.f32 %v2199, %v5749
      %v8083 = vadd.f32 %v8035, %v8059
      %v8084 = vadd.f32 %v8036, %v8060
      %v8085 = vadd.f32 %v8037, %v8061
      %v8086 = vadd.f32 %v8038, %v8062
      %v8087 = vadd.f32 %v8039, %v8063
      %v8088 = vadd.f32 %v8040, %v8064
      %v8089 = vadd.f32 %v8041, %v8065
      %v8090 = vadd.f32 %v8042, %v8066
      %v8091 = vadd.f32 %v8043, %v8067
      %v8092 = vadd.f32 %v8044, %v8068
      %v8093 = vadd.f32 %v8045, %v8069
      %v8094 = vadd.f32 %v8046, %v8070
      %v8095 = vadd.f32 %v8047, %v8071
      %v8096 = vadd.f32 %v8048, %v8072
      %v8097 = vadd.f32 %v8049, %v8073
      %v8098 = vadd.f32 %v8050, %v8074
      %v8099 = vadd.f32 %v8051, %v8075
      %v8100 = vadd.f32 %v8052, %v8076
      %v8101 = vadd.f32 %v8053, %v8077
      %v8102 = vadd.f32 %v8054, %v8078
      %v8103 = vadd.f32 %v8055, %v8079
      %v8104 = vadd.f32 %v8056, %v8080
      %v8105 = vadd.f32 %v8057, %v8081
      %v8106 = vadd.f32 %v8058, %v8082
      %v8107 = vmul.f32 %v3181, %v5782
      %v8108 = vmul.f32 %v3131, %v5782
      %v8109 = vmul.f32 %v3190, %v5782
      %v8110 = vmul.f32 %v3182, %v5782
      %v8111 = vmul.f32 %v3134, %v5782
      %v8112 = vmul.f32 %v3191, %v5782
      %v8113 = vmul.f32 %v3183, %v5782
      %v8114 = vmul.f32 %v3137, %v5782
      %v8115 = vmul.f32 %v3192, %v5782
      %v8116 = vmul.f32 %v3184, %v5782
      %v8117 = vmul.f32 %v3140, %v5782
      %v8118 = vmul.f32 %v3193, %v5782
      %v8119 = vmul.f32 %v3185, %v5782
      %v8120 = vmul.f32 %v3143, %v5782
      %v8121 = vmul.f32 %v3194, %v5782
      %v8122 = vmul.f32 %v3186, %v5782
      %v8123 = vmul.f32 %v3146, %v5782
      %v8124 = vmul.f32 %v3195, %v5782
      %v8125 = vmul.f32 %v3187, %v5782
      %v8126 = vmul.f32 %v3149, %v5782
      %v8127 = vmul.f32 %v3196, %v5782
      %v8128 = vmul.f32 %v3188, %v5782
      %v8129 = vmul.f32 %v3152, %v5782
      %v8130 = vmul.f32 %v3197, %v5782
      %v8131 = vadd.f32 %v8083, %v8107
      %v8132 = vadd.f32 %v8084, %v8108
      %v8133 = vadd.f32 %v8085, %v8109
      %v8134 = vadd.f32 %v8086, %v8110
      %v8135 = vadd.f32 %v8087, %v8111
      %v8136 = vadd.f32 %v8088, %v8112
      %v8137 = vadd.f32 %v8089, %v8113
      %v8138 = vadd.f32 %v8090, %v8114
      %v8139 = vadd.f32 %v8091, %v8115
      %v8140 = vadd.f32 %v8092, %v8116
      %v8141 = vadd.f32 %v8093, %v8117
      %v8142 = vadd.f32 %v8094, %v8118
      %v8143 = vadd.f32 %v8095, %v8119
      %v8144 = vadd.f32 %v8096, %v8120
      %v8145 = vadd.f32 %v8097, %v8121
      %v8146 = vadd.f32 %v8098, %v8122
      %v8147 = vadd.f32 %v8099, %v8123
      %v8148 = vadd.f32 %v8100, %v8124
      %v8149 = vadd.f32 %v8101, %v8125
      %v8150 = vadd.f32 %v8102, %v8126
      %v8151 = vadd.f32 %v8103, %v8127
      %v8152 = vadd.f32 %v8104, %v8128
      %v8153 = vadd.f32 %v8105, %v8129
      %v8154 = vadd.f32 %v8106, %v8130
      %v8155 = vmul.f32 %v2183, %v5903
      %v8156 = vmul.f32 %v2133, %v5903
      %v8157 = vmul.f32 %v2192, %v5903
      %v8158 = vmul.f32 %v2184, %v5903
      %v8159 = vmul.f32 %v2136, %v5903
      %v8160 = vmul.f32 %v2193, %v5903
      %v8161 = vmul.f32 %v2185, %v5903
      %v8162 = vmul.f32 %v2139, %v5903
      %v8163 = vmul.f32 %v2194, %v5903
      %v8164 = vmul.f32 %v2186, %v5903
      %v8165 = vmul.f32 %v2142, %v5903
      %v8166 = vmul.f32 %v2195, %v5903
      %v8167 = vmul.f32 %v2187, %v5903
      %v8168 = vmul.f32 %v2145, %v5903
      %v8169 = vmul.f32 %v2196, %v5903
      %v8170 = vmul.f32 %v2188, %v5903
      %v8171 = vmul.f32 %v2148, %v5903
      %v8172 = vmul.f32 %v2197, %v5903
      %v8173 = vmul.f32 %v2189, %v5903
      %v8174 = vmul.f32 %v2151, %v5903
      %v8175 = vmul.f32 %v2198, %v5903
      %v8176 = vmul.f32 %v2190, %v5903
      %v8177 = vmul.f32 %v2154, %v5903
      %v8178 = vmul.f32 %v2199, %v5903
      %v8203 = vrot.slane %v8155, 1
      %v8204 = vrot.slane %v8156, 1
      %v8205 = vsel %vm5280, %v8203, %v8204
      %v8206 = vrot.slane %v8157, 1
      %v8207 = vsel %vm5280, %v8204, %v8206
      %v8208 = vrot.slane %v8158, 1
      %v8209 = vrot.slane %v8159, 1
      %v8210 = vsel %vm5280, %v8208, %v8209
      %v8211 = vrot.slane %v8160, 1
      %v8212 = vsel %vm5280, %v8209, %v8211
      %v8213 = vrot.slane %v8161, 1
      %v8214 = vrot.slane %v8162, 1
      %v8215 = vsel %vm5280, %v8213, %v8214
      %v8216 = vrot.slane %v8163, 1
      %v8217 = vsel %vm5280, %v8214, %v8216
      %v8218 = vrot.slane %v8164, 1
      %v8219 = vrot.slane %v8165, 1
      %v8220 = vsel %vm5280, %v8218, %v8219
      %v8221 = vrot.slane %v8166, 1
      %v8222 = vsel %vm5280, %v8219, %v8221
      %v8223 = vrot.slane %v8167, 1
      %v8224 = vrot.slane %v8168, 1
      %v8225 = vsel %vm5280, %v8223, %v8224
      %v8226 = vrot.slane %v8169, 1
      %v8227 = vsel %vm5280, %v8224, %v8226
      %v8228 = vrot.slane %v8170, 1
      %v8229 = vrot.slane %v8171, 1
      %v8230 = vsel %vm5280, %v8228, %v8229
      %v8231 = vrot.slane %v8172, 1
      %v8232 = vsel %vm5280, %v8229, %v8231
      %v8233 = vrot.slane %v8173, 1
      %v8234 = vrot.slane %v8174, 1
      %v8235 = vsel %vm5280, %v8233, %v8234
      %v8236 = vrot.slane %v8175, 1
      %v8237 = vsel %vm5280, %v8234, %v8236
      %v8238 = vrot.slane %v8176, 1
      %v8239 = vrot.slane %v8177, 1
      %v8240 = vsel %vm5280, %v8238, %v8239
      %v8241 = vrot.slane %v8178, 1
      %v8242 = vsel %vm5280, %v8239, %v8241
      %v8267 = vadd.f32 %v8131, %v8205
      %v8268 = vadd.f32 %v8132, %v8207
      %v8269 = vadd.f32 %v8133, %v8206
      %v8270 = vadd.f32 %v8134, %v8210
      %v8271 = vadd.f32 %v8135, %v8212
      %v8272 = vadd.f32 %v8136, %v8211
      %v8273 = vadd.f32 %v8137, %v8215
      %v8274 = vadd.f32 %v8138, %v8217
      %v8275 = vadd.f32 %v8139, %v8216
      %v8276 = vadd.f32 %v8140, %v8220
      %v8277 = vadd.f32 %v8141, %v8222
      %v8278 = vadd.f32 %v8142, %v8221
      %v8279 = vadd.f32 %v8143, %v8225
      %v8280 = vadd.f32 %v8144, %v8227
      %v8281 = vadd.f32 %v8145, %v8226
      %v8282 = vadd.f32 %v8146, %v8230
      %v8283 = vadd.f32 %v8147, %v8232
      %v8284 = vadd.f32 %v8148, %v8231
      %v8285 = vadd.f32 %v8149, %v8235
      %v8286 = vadd.f32 %v8150, %v8237
      %v8287 = vadd.f32 %v8151, %v8236
      %v8288 = vadd.f32 %v8152, %v8240
      %v8289 = vadd.f32 %v8153, %v8242
      %v8290 = vadd.f32 %v8154, %v8241
      %v8291 = vadd.f32 %v8267, %v6025
      %v8292 = vadd.f32 %v8268, %v6025
      %v8293 = vadd.f32 %v8269, %v6025
      %v8294 = vadd.f32 %v8270, %v6025
      %v8295 = vadd.f32 %v8271, %v6025
      %v8296 = vadd.f32 %v8272, %v6025
      %v8297 = vadd.f32 %v8273, %v6025
      %v8298 = vadd.f32 %v8274, %v6025
      %v8299 = vadd.f32 %v8275, %v6025
      %v8300 = vadd.f32 %v8276, %v6025
      %v8301 = vadd.f32 %v8277, %v6025
      %v8302 = vadd.f32 %v8278, %v6025
      %v8303 = vadd.f32 %v8279, %v6025
      %v8304 = vadd.f32 %v8280, %v6025
      %v8305 = vadd.f32 %v8281, %v6025
      %v8306 = vadd.f32 %v8282, %v6025
      %v8307 = vadd.f32 %v8283, %v6025
      %v8308 = vadd.f32 %v8284, %v6025
      %v8309 = vadd.f32 %v8285, %v6025
      %v8310 = vadd.f32 %v8286, %v6025
      %v8311 = vadd.f32 %v8287, %v6025
      %v8312 = vadd.f32 %v8288, %v6025
      %v8313 = vadd.f32 %v8289, %v6025
      %v8314 = vadd.f32 %v8290, %v6025
      %v8315 = vld [vmem:[%s6] sm:$0xf]
      %v8316 = vld [vmem:[%s7] sm:$0x1]
      %v8318 = vperm.slane %v8316, 0
      %v8321 = vsel %vm1298, %v6027, 0
      %v8324 = vsel %vm1298, %v6028, 0
      %v8327 = vsel %vm1298, %v6029, 0
      %v8330 = vsel %vm1298, %v6030, 0
      %v8333 = vsel %vm1298, %v6031, 0
      %v8336 = vsel %vm1298, %v6032, 0
      %v8339 = vsel %vm1298, %v6033, 0
      %v8342 = vsel %vm1298, %v6034, 0
      %v8345 = vsel %vm1298, %v6035, 0
      %v8348 = vsel %vm1298, %v6036, 0
      %v8351 = vsel %vm1298, %v6037, 0
      %v8354 = vsel %vm1298, %v6038, 0
      %v8357 = vsel %vm1298, %v6039, 0
      %v8360 = vsel %vm1298, %v6040, 0
      %v8363 = vsel %vm1298, %v6041, 0
      %v8366 = vsel %vm1298, %v6042, 0
      %v8369 = vsel %vm1335, %v8315, 0
      %8371 = vmatpush.msra.mxu0 0.0
      %8372 = vmatpush.msra.mxu0 0.0
      %8373 = vmatpush.msra.mxu0 0.0
      %8374 = vmatpush.msra.mxu0 0.0
      %8375 = vmatpush.msra.mxu0 0.0
      %8376 = vmatpush.msra.mxu0 0.0
      %8377 = vmatpush.msra.mxu0 0.0
      %8378 = vmatpush.msra.mxu0 0.0
      %8379 = vmatpush.msra.mxu0 0.0
      %8380 = vmatpush.msra.mxu0 0.0
      %8381 = vmatpush.msra.mxu0 0.0
      %8382 = vmatpush.msra.mxu0 0.0
      %8383 = vmatpush.msra.mxu0 0.0
      %8384 = vmatpush.msra.mxu0 0.0
      %8385 = vmatpush.msra.mxu0 0.0
      %8386 = vmatpush.msra.mxu0 %v8369
      %8387 = vmatmul.f32.gmra.mxu0 %v8321
      %v8388 = vpop.f32.mrf.mxu0
      %v8389 = vadd.f32 %v8318, %v8388
      %8390 = vmatmul.f32.gmra.mxu0 %v8324
      %v8391 = vpop.f32.mrf.mxu0
      %v8392 = vadd.f32 %v8318, %v8391
      %8393 = vmatmul.f32.gmra.mxu0 %v8327
      %v8394 = vpop.f32.mrf.mxu0
      %v8395 = vadd.f32 %v8318, %v8394
      %8396 = vmatmul.f32.gmra.mxu0 %v8330
      %v8397 = vpop.f32.mrf.mxu0
      %v8398 = vadd.f32 %v8318, %v8397
      %8399 = vmatmul.f32.gmra.mxu0 %v8333
      %v8400 = vpop.f32.mrf.mxu0
      %v8401 = vadd.f32 %v8318, %v8400
      %8402 = vmatmul.f32.gmra.mxu0 %v8336
      %v8403 = vpop.f32.mrf.mxu0
      %v8404 = vadd.f32 %v8318, %v8403
      %8405 = vmatmul.f32.gmra.mxu0 %v8339
      %v8406 = vpop.f32.mrf.mxu0
      %v8407 = vadd.f32 %v8318, %v8406
      %8408 = vmatmul.f32.gmra.mxu0 %v8342
      %v8409 = vpop.f32.mrf.mxu0
      %v8410 = vadd.f32 %v8318, %v8409
      %8411 = vmatmul.f32.gmra.mxu0 %v8345
      %v8412 = vpop.f32.mrf.mxu0
      %v8413 = vadd.f32 %v8318, %v8412
      %8414 = vmatmul.f32.gmra.mxu0 %v8348
      %v8415 = vpop.f32.mrf.mxu0
      %v8416 = vadd.f32 %v8318, %v8415
      %8417 = vmatmul.f32.gmra.mxu0 %v8351
      %v8418 = vpop.f32.mrf.mxu0
      %v8419 = vadd.f32 %v8318, %v8418
      %8420 = vmatmul.f32.gmra.mxu0 %v8354
      %v8421 = vpop.f32.mrf.mxu0
      %v8422 = vadd.f32 %v8318, %v8421
      %8423 = vmatmul.f32.gmra.mxu0 %v8357
      %v8424 = vpop.f32.mrf.mxu0
      %v8425 = vadd.f32 %v8318, %v8424
      %8426 = vmatmul.f32.gmra.mxu0 %v8360
      %v8427 = vpop.f32.mrf.mxu0
      %v8428 = vadd.f32 %v8318, %v8427
      %8429 = vmatmul.f32.gmra.mxu0 %v8363
      %v8430 = vpop.f32.mrf.mxu0
      %v8431 = vadd.f32 %v8318, %v8430
      %8432 = vmatmul.f32.gmra.mxu0 %v8366
      %v8433 = vpop.f32.mrf.mxu0
      %v8434 = vadd.f32 %v8318, %v8433
      %8435 = vdwg.mxu0
      %v8436 = vsel %vm1298, %v8389, 0.0
      %v8437 = vsel %vm1298, %v8392, 0.0
      %v8438 = vadd.f32 %v8436, %v8437
      %v8439 = vsel %vm1298, %v8395, 0.0
      %v8440 = vadd.f32 %v8438, %v8439
      %v8441 = vsel %vm1298, %v8398, 0.0
      %v8442 = vadd.f32 %v8440, %v8441
      %v8443 = vsel %vm1298, %v8401, 0.0
      %v8444 = vadd.f32 %v8442, %v8443
      %v8445 = vsel %vm1298, %v8404, 0.0
      %v8446 = vadd.f32 %v8444, %v8445
      %v8447 = vsel %vm1298, %v8407, 0.0
      %v8448 = vadd.f32 %v8446, %v8447
      %v8449 = vsel %vm1298, %v8410, 0.0
      %v8450 = vadd.f32 %v8448, %v8449
      %v8451 = vsel %vm1298, %v8413, 0.0
      %v8452 = vadd.f32 %v8450, %v8451
      %v8453 = vsel %vm1298, %v8416, 0.0
      %v8454 = vadd.f32 %v8452, %v8453
      %v8455 = vsel %vm1298, %v8419, 0.0
      %v8456 = vadd.f32 %v8454, %v8455
      %v8457 = vsel %vm1298, %v8422, 0.0
      %v8458 = vadd.f32 %v8456, %v8457
      %v8459 = vsel %vm1298, %v8425, 0.0
      %v8460 = vadd.f32 %v8458, %v8459
      %v8461 = vsel %vm1298, %v8428, 0.0
      %v8462 = vadd.f32 %v8460, %v8461
      %v8463 = vsel %vm1298, %v8431, 0.0
      %v8464 = vadd.f32 %v8462, %v8463
      %v8465 = vsel %vm1298, %v8434, 0.0
      %v8466 = vadd.f32 %v8464, %v8465
      %v8467 = vrot.slane %v8466, 4
      %v8468 = vadd.f32 %v8466, %v8467
      %v8469 = vrot.slane %v8468, 2
      %v8470 = vadd.f32 %v8468, %v8469
      %v8471 = vrot.slane %v8470, 1
      %v8472 = vadd.f32 %v8470, %v8471
      %v8473 = vadd.f32 %v8472, 0.0
      %v8498 = vrot.slane %v6739, 1
      %v8499 = vrot.slane %v6740, 1
      %v8500 = vsel %vm5280, %v8498, %v8499
      %v8501 = vrot.slane %v6741, 1
      %v8502 = vsel %vm5280, %v8499, %v8501
      %v8503 = vrot.slane %v6742, 1
      %v8504 = vrot.slane %v6743, 1
      %v8505 = vsel %vm5280, %v8503, %v8504
      %v8506 = vrot.slane %v6744, 1
      %v8507 = vsel %vm5280, %v8504, %v8506
      %v8508 = vrot.slane %v6745, 1
      %v8509 = vrot.slane %v6746, 1
      %v8510 = vsel %vm5280, %v8508, %v8509
      %v8511 = vrot.slane %v6747, 1
      %v8512 = vsel %vm5280, %v8509, %v8511
      %v8513 = vrot.slane %v6748, 1
      %v8514 = vrot.slane %v6749, 1
      %v8515 = vsel %vm5280, %v8513, %v8514
      %v8516 = vrot.slane %v6750, 1
      %v8517 = vsel %vm5280, %v8514, %v8516
      %v8518 = vrot.slane %v6751, 1
      %v8519 = vrot.slane %v6752, 1
      %v8520 = vsel %vm5280, %v8518, %v8519
      %v8521 = vrot.slane %v6753, 1
      %v8522 = vsel %vm5280, %v8519, %v8521
      %v8523 = vrot.slane %v6754, 1
      %v8524 = vrot.slane %v6755, 1
      %v8525 = vsel %vm5280, %v8523, %v8524
      %v8526 = vrot.slane %v6756, 1
      %v8527 = vsel %vm5280, %v8524, %v8526
      %v8528 = vrot.slane %v6757, 1
      %v8529 = vrot.slane %v6758, 1
      %v8530 = vsel %vm5280, %v8528, %v8529
      %v8531 = vrot.slane %v6759, 1
      %v8532 = vsel %vm5280, %v8529, %v8531
      %v8533 = vrot.slane %v6760, 1
      %v8534 = vrot.slane %v6761, 1
      %v8535 = vsel %vm5280, %v8533, %v8534
      %v8536 = vrot.slane %v6762, 1
      %v8537 = vsel %vm5280, %v8534, %v8536
      %v8538 = vsel %vm1298, %v8500, 0
      %v8540 = vsel %vm1298, %v8502, 0
      %v8542 = vsel %vm1298, %v8505, 0
      %v8544 = vsel %vm1298, %v8507, 0
      %v8546 = vsel %vm1298, %v8510, 0
      %v8548 = vsel %vm1298, %v8512, 0
      %v8550 = vsel %vm1298, %v8515, 0
      %v8552 = vsel %vm1298, %v8517, 0
      %v8554 = vsel %vm1298, %v8520, 0
      %v8556 = vsel %vm1298, %v8522, 0
      %v8558 = vsel %vm1298, %v8525, 0
      %v8560 = vsel %vm1298, %v8527, 0
      %v8562 = vsel %vm1298, %v8530, 0
      %v8564 = vsel %vm1298, %v8532, 0
      %v8566 = vsel %vm1298, %v8535, 0
      %v8568 = vsel %vm1298, %v8537, 0
      %8570 = vmatpush.msra.mxu0 0.0
      %8571 = vmatpush.msra.mxu0 0.0
      %8572 = vmatpush.msra.mxu0 0.0
      %8573 = vmatpush.msra.mxu0 0.0
      %8574 = vmatpush.msra.mxu0 0.0
      %8575 = vmatpush.msra.mxu0 0.0
      %8576 = vmatpush.msra.mxu0 0.0
      %8577 = vmatpush.msra.mxu0 0.0
      %8578 = vmatpush.msra.mxu0 0.0
      %8579 = vmatpush.msra.mxu0 0.0
      %8580 = vmatpush.msra.mxu0 0.0
      %8581 = vmatpush.msra.mxu0 0.0
      %8582 = vmatpush.msra.mxu0 0.0
      %8583 = vmatpush.msra.mxu0 0.0
      %8584 = vmatpush.msra.mxu0 0.0
      %8585 = vmatpush.msra.mxu0 %v8369
      %8586 = vmatmul.f32.gmra.mxu0 %v8538
      %v8587 = vpop.f32.mrf.mxu0
      %v8588 = vadd.f32 %v8318, %v8587
      %8589 = vmatmul.f32.gmra.mxu0 %v8540
      %v8590 = vpop.f32.mrf.mxu0
      %v8591 = vadd.f32 %v8318, %v8590
      %8592 = vmatmul.f32.gmra.mxu0 %v8542
      %v8593 = vpop.f32.mrf.mxu0
      %v8594 = vadd.f32 %v8318, %v8593
      %8595 = vmatmul.f32.gmra.mxu0 %v8544
      %v8596 = vpop.f32.mrf.mxu0
      %v8597 = vadd.f32 %v8318, %v8596
      %8598 = vmatmul.f32.gmra.mxu0 %v8546
      %v8599 = vpop.f32.mrf.mxu0
      %v8600 = vadd.f32 %v8318, %v8599
      %8601 = vmatmul.f32.gmra.mxu0 %v8548
      %v8602 = vpop.f32.mrf.mxu0
      %v8603 = vadd.f32 %v8318, %v8602
      %8604 = vmatmul.f32.gmra.mxu0 %v8550
      %v8605 = vpop.f32.mrf.mxu0
      %v8606 = vadd.f32 %v8318, %v8605
      %8607 = vmatmul.f32.gmra.mxu0 %v8552
      %v8608 = vpop.f32.mrf.mxu0
      %v8609 = vadd.f32 %v8318, %v8608
      %8610 = vmatmul.f32.gmra.mxu0 %v8554
      %v8611 = vpop.f32.mrf.mxu0
      %v8612 = vadd.f32 %v8318, %v8611
      %8613 = vmatmul.f32.gmra.mxu0 %v8556
      %v8614 = vpop.f32.mrf.mxu0
      %v8615 = vadd.f32 %v8318, %v8614
      %8616 = vmatmul.f32.gmra.mxu0 %v8558
      %v8617 = vpop.f32.mrf.mxu0
      %v8618 = vadd.f32 %v8318, %v8617
      %8619 = vmatmul.f32.gmra.mxu0 %v8560
      %v8620 = vpop.f32.mrf.mxu0
      %v8621 = vadd.f32 %v8318, %v8620
      %8622 = vmatmul.f32.gmra.mxu0 %v8562
      %v8623 = vpop.f32.mrf.mxu0
      %v8624 = vadd.f32 %v8318, %v8623
      %8625 = vmatmul.f32.gmra.mxu0 %v8564
      %v8626 = vpop.f32.mrf.mxu0
      %v8627 = vadd.f32 %v8318, %v8626
      %8628 = vmatmul.f32.gmra.mxu0 %v8566
      %v8629 = vpop.f32.mrf.mxu0
      %v8630 = vadd.f32 %v8318, %v8629
      %8631 = vmatmul.f32.gmra.mxu0 %v8568
      %v8632 = vpop.f32.mrf.mxu0
      %v8633 = vadd.f32 %v8318, %v8632
      %8634 = vdwg.mxu0
      %v8635 = vsel %vm1298, %v8588, 0.0
      %v8636 = vsel %vm1298, %v8591, 0.0
      %v8637 = vadd.f32 %v8635, %v8636
      %v8638 = vsel %vm1298, %v8594, 0.0
      %v8639 = vadd.f32 %v8637, %v8638
      %v8640 = vsel %vm1298, %v8597, 0.0
      %v8641 = vadd.f32 %v8639, %v8640
      %v8642 = vsel %vm1298, %v8600, 0.0
      %v8643 = vadd.f32 %v8641, %v8642
      %v8644 = vsel %vm1298, %v8603, 0.0
      %v8645 = vadd.f32 %v8643, %v8644
      %v8646 = vsel %vm1298, %v8606, 0.0
      %v8647 = vadd.f32 %v8645, %v8646
      %v8648 = vsel %vm1298, %v8609, 0.0
      %v8649 = vadd.f32 %v8647, %v8648
      %v8650 = vsel %vm1298, %v8612, 0.0
      %v8651 = vadd.f32 %v8649, %v8650
      %v8652 = vsel %vm1298, %v8615, 0.0
      %v8653 = vadd.f32 %v8651, %v8652
      %v8654 = vsel %vm1298, %v8618, 0.0
      %v8655 = vadd.f32 %v8653, %v8654
      %v8656 = vsel %vm1298, %v8621, 0.0
      %v8657 = vadd.f32 %v8655, %v8656
      %v8658 = vsel %vm1298, %v8624, 0.0
      %v8659 = vadd.f32 %v8657, %v8658
      %v8660 = vsel %vm1298, %v8627, 0.0
      %v8661 = vadd.f32 %v8659, %v8660
      %v8662 = vsel %vm1298, %v8630, 0.0
      %v8663 = vadd.f32 %v8661, %v8662
      %v8664 = vsel %vm1298, %v8633, 0.0
      %v8665 = vadd.f32 %v8663, %v8664
      %v8666 = vrot.slane %v8665, 4
      %v8667 = vadd.f32 %v8665, %v8666
      %v8668 = vrot.slane %v8667, 2
      %v8669 = vadd.f32 %v8667, %v8668
      %v8670 = vrot.slane %v8669, 1
      %v8671 = vadd.f32 %v8669, %v8670
      %v8672 = vadd.f32 %v8473, %v8671
      %v8674 = vsel %vm1298, %v7579, 0
      %v8677 = vsel %vm1298, %v7580, 0
      %v8680 = vsel %vm1298, %v7581, 0
      %v8683 = vsel %vm1298, %v7582, 0
      %v8686 = vsel %vm1298, %v7583, 0
      %v8689 = vsel %vm1298, %v7584, 0
      %v8692 = vsel %vm1298, %v7585, 0
      %v8695 = vsel %vm1298, %v7586, 0
      %v8698 = vsel %vm1298, %v7587, 0
      %v8701 = vsel %vm1298, %v7588, 0
      %v8704 = vsel %vm1298, %v7589, 0
      %v8707 = vsel %vm1298, %v7590, 0
      %v8710 = vsel %vm1298, %v7591, 0
      %v8713 = vsel %vm1298, %v7592, 0
      %v8716 = vsel %vm1298, %v7593, 0
      %v8719 = vsel %vm1298, %v7594, 0
      %8721 = vmatpush.msra.mxu0 0.0
      %8722 = vmatpush.msra.mxu0 0.0
      %8723 = vmatpush.msra.mxu0 0.0
      %8724 = vmatpush.msra.mxu0 0.0
      %8725 = vmatpush.msra.mxu0 0.0
      %8726 = vmatpush.msra.mxu0 0.0
      %8727 = vmatpush.msra.mxu0 0.0
      %8728 = vmatpush.msra.mxu0 0.0
      %8729 = vmatpush.msra.mxu0 0.0
      %8730 = vmatpush.msra.mxu0 0.0
      %8731 = vmatpush.msra.mxu0 0.0
      %8732 = vmatpush.msra.mxu0 0.0
      %8733 = vmatpush.msra.mxu0 0.0
      %8734 = vmatpush.msra.mxu0 0.0
      %8735 = vmatpush.msra.mxu0 0.0
      %8736 = vmatpush.msra.mxu0 %v8369
      %8737 = vmatmul.f32.gmra.mxu0 %v8674
      %v8738 = vpop.f32.mrf.mxu0
      %v8739 = vadd.f32 %v8318, %v8738
      %8740 = vmatmul.f32.gmra.mxu0 %v8677
      %v8741 = vpop.f32.mrf.mxu0
      %v8742 = vadd.f32 %v8318, %v8741
      %8743 = vmatmul.f32.gmra.mxu0 %v8680
      %v8744 = vpop.f32.mrf.mxu0
      %v8745 = vadd.f32 %v8318, %v8744
      %8746 = vmatmul.f32.gmra.mxu0 %v8683
      %v8747 = vpop.f32.mrf.mxu0
      %v8748 = vadd.f32 %v8318, %v8747
      %8749 = vmatmul.f32.gmra.mxu0 %v8686
      %v8750 = vpop.f32.mrf.mxu0
      %v8751 = vadd.f32 %v8318, %v8750
      %8752 = vmatmul.f32.gmra.mxu0 %v8689
      %v8753 = vpop.f32.mrf.mxu0
      %v8754 = vadd.f32 %v8318, %v8753
      %8755 = vmatmul.f32.gmra.mxu0 %v8692
      %v8756 = vpop.f32.mrf.mxu0
      %v8757 = vadd.f32 %v8318, %v8756
      %8758 = vmatmul.f32.gmra.mxu0 %v8695
      %v8759 = vpop.f32.mrf.mxu0
      %v8760 = vadd.f32 %v8318, %v8759
      %8761 = vmatmul.f32.gmra.mxu0 %v8698
      %v8762 = vpop.f32.mrf.mxu0
      %v8763 = vadd.f32 %v8318, %v8762
      %8764 = vmatmul.f32.gmra.mxu0 %v8701
      %v8765 = vpop.f32.mrf.mxu0
      %v8766 = vadd.f32 %v8318, %v8765
      %8767 = vmatmul.f32.gmra.mxu0 %v8704
      %v8768 = vpop.f32.mrf.mxu0
      %v8769 = vadd.f32 %v8318, %v8768
      %8770 = vmatmul.f32.gmra.mxu0 %v8707
      %v8771 = vpop.f32.mrf.mxu0
      %v8772 = vadd.f32 %v8318, %v8771
      %8773 = vmatmul.f32.gmra.mxu0 %v8710
      %v8774 = vpop.f32.mrf.mxu0
      %v8775 = vadd.f32 %v8318, %v8774
      %8776 = vmatmul.f32.gmra.mxu0 %v8713
      %v8777 = vpop.f32.mrf.mxu0
      %v8778 = vadd.f32 %v8318, %v8777
      %8779 = vmatmul.f32.gmra.mxu0 %v8716
      %v8780 = vpop.f32.mrf.mxu0
      %v8781 = vadd.f32 %v8318, %v8780
      %8782 = vmatmul.f32.gmra.mxu0 %v8719
      %v8783 = vpop.f32.mrf.mxu0
      %v8784 = vadd.f32 %v8318, %v8783
      %8785 = vdwg.mxu0
      %v8786 = vsel %vm1298, %v8739, 0.0
      %v8787 = vsel %vm1298, %v8742, 0.0
      %v8788 = vadd.f32 %v8786, %v8787
      %v8789 = vsel %vm1298, %v8745, 0.0
      %v8790 = vadd.f32 %v8788, %v8789
      %v8791 = vsel %vm1298, %v8748, 0.0
      %v8792 = vadd.f32 %v8790, %v8791
      %v8793 = vsel %vm1298, %v8751, 0.0
      %v8794 = vadd.f32 %v8792, %v8793
      %v8795 = vsel %vm1298, %v8754, 0.0
      %v8796 = vadd.f32 %v8794, %v8795
      %v8797 = vsel %vm1298, %v8757, 0.0
      %v8798 = vadd.f32 %v8796, %v8797
      %v8799 = vsel %vm1298, %v8760, 0.0
      %v8800 = vadd.f32 %v8798, %v8799
      %v8801 = vsel %vm1298, %v8763, 0.0
      %v8802 = vadd.f32 %v8800, %v8801
      %v8803 = vsel %vm1298, %v8766, 0.0
      %v8804 = vadd.f32 %v8802, %v8803
      %v8805 = vsel %vm1298, %v8769, 0.0
      %v8806 = vadd.f32 %v8804, %v8805
      %v8807 = vsel %vm1298, %v8772, 0.0
      %v8808 = vadd.f32 %v8806, %v8807
      %v8809 = vsel %vm1298, %v8775, 0.0
      %v8810 = vadd.f32 %v8808, %v8809
      %v8811 = vsel %vm1298, %v8778, 0.0
      %v8812 = vadd.f32 %v8810, %v8811
      %v8813 = vsel %vm1298, %v8781, 0.0
      %v8814 = vadd.f32 %v8812, %v8813
      %v8815 = vsel %vm1298, %v8784, 0.0
      %v8816 = vadd.f32 %v8814, %v8815
      %v8817 = vrot.slane %v8816, 4
      %v8818 = vadd.f32 %v8816, %v8817
      %v8819 = vrot.slane %v8818, 2
      %v8820 = vadd.f32 %v8818, %v8819
      %v8821 = vrot.slane %v8820, 1
      %v8822 = vadd.f32 %v8820, %v8821
      %v8823 = vadd.f32 %v8672, %v8822
      %v8848 = vrot.slane %v8291, 1
      %v8849 = vrot.slane %v8292, 1
      %v8850 = vsel %vm5280, %v8848, %v8849
      %v8851 = vrot.slane %v8293, 1
      %v8852 = vsel %vm5280, %v8849, %v8851
      %v8853 = vrot.slane %v8294, 1
      %v8854 = vrot.slane %v8295, 1
      %v8855 = vsel %vm5280, %v8853, %v8854
      %v8856 = vrot.slane %v8296, 1
      %v8857 = vsel %vm5280, %v8854, %v8856
      %v8858 = vrot.slane %v8297, 1
      %v8859 = vrot.slane %v8298, 1
      %v8860 = vsel %vm5280, %v8858, %v8859
      %v8861 = vrot.slane %v8299, 1
      %v8862 = vsel %vm5280, %v8859, %v8861
      %v8863 = vrot.slane %v8300, 1
      %v8864 = vrot.slane %v8301, 1
      %v8865 = vsel %vm5280, %v8863, %v8864
      %v8866 = vrot.slane %v8302, 1
      %v8867 = vsel %vm5280, %v8864, %v8866
      %v8868 = vrot.slane %v8303, 1
      %v8869 = vrot.slane %v8304, 1
      %v8870 = vsel %vm5280, %v8868, %v8869
      %v8871 = vrot.slane %v8305, 1
      %v8872 = vsel %vm5280, %v8869, %v8871
      %v8873 = vrot.slane %v8306, 1
      %v8874 = vrot.slane %v8307, 1
      %v8875 = vsel %vm5280, %v8873, %v8874
      %v8876 = vrot.slane %v8308, 1
      %v8877 = vsel %vm5280, %v8874, %v8876
      %v8878 = vrot.slane %v8309, 1
      %v8879 = vrot.slane %v8310, 1
      %v8880 = vsel %vm5280, %v8878, %v8879
      %v8881 = vrot.slane %v8311, 1
      %v8882 = vsel %vm5280, %v8879, %v8881
      %v8883 = vrot.slane %v8312, 1
      %v8884 = vrot.slane %v8313, 1
      %v8885 = vsel %vm5280, %v8883, %v8884
      %v8886 = vrot.slane %v8314, 1
      %v8887 = vsel %vm5280, %v8884, %v8886
      %v8888 = vsel %vm1298, %v8850, 0
      %v8890 = vsel %vm1298, %v8852, 0
      %v8892 = vsel %vm1298, %v8855, 0
      %v8894 = vsel %vm1298, %v8857, 0
      %v8896 = vsel %vm1298, %v8860, 0
      %v8898 = vsel %vm1298, %v8862, 0
      %v8900 = vsel %vm1298, %v8865, 0
      %v8902 = vsel %vm1298, %v8867, 0
      %v8904 = vsel %vm1298, %v8870, 0
      %v8906 = vsel %vm1298, %v8872, 0
      %v8908 = vsel %vm1298, %v8875, 0
      %v8910 = vsel %vm1298, %v8877, 0
      %v8912 = vsel %vm1298, %v8880, 0
      %v8914 = vsel %vm1298, %v8882, 0
      %v8916 = vsel %vm1298, %v8885, 0
      %v8918 = vsel %vm1298, %v8887, 0
      %8920 = vmatpush.msra.mxu0 0.0
      %8921 = vmatpush.msra.mxu0 0.0
      %8922 = vmatpush.msra.mxu0 0.0
      %8923 = vmatpush.msra.mxu0 0.0
      %8924 = vmatpush.msra.mxu0 0.0
      %8925 = vmatpush.msra.mxu0 0.0
      %8926 = vmatpush.msra.mxu0 0.0
      %8927 = vmatpush.msra.mxu0 0.0
      %8928 = vmatpush.msra.mxu0 0.0
      %8929 = vmatpush.msra.mxu0 0.0
      %8930 = vmatpush.msra.mxu0 0.0
      %8931 = vmatpush.msra.mxu0 0.0
      %8932 = vmatpush.msra.mxu0 0.0
      %8933 = vmatpush.msra.mxu0 0.0
      %8934 = vmatpush.msra.mxu0 0.0
      %8935 = vmatpush.msra.mxu0 %v8369
      %8936 = vmatmul.f32.gmra.mxu0 %v8888
      %v8937 = vpop.f32.mrf.mxu0
      %v8938 = vadd.f32 %v8318, %v8937
      %8939 = vmatmul.f32.gmra.mxu0 %v8890
      %v8940 = vpop.f32.mrf.mxu0
      %v8941 = vadd.f32 %v8318, %v8940
      %8942 = vmatmul.f32.gmra.mxu0 %v8892
      %v8943 = vpop.f32.mrf.mxu0
      %v8944 = vadd.f32 %v8318, %v8943
      %8945 = vmatmul.f32.gmra.mxu0 %v8894
      %v8946 = vpop.f32.mrf.mxu0
      %v8947 = vadd.f32 %v8318, %v8946
      %8948 = vmatmul.f32.gmra.mxu0 %v8896
      %v8949 = vpop.f32.mrf.mxu0
      %v8950 = vadd.f32 %v8318, %v8949
      %8951 = vmatmul.f32.gmra.mxu0 %v8898
      %v8952 = vpop.f32.mrf.mxu0
      %v8953 = vadd.f32 %v8318, %v8952
      %8954 = vmatmul.f32.gmra.mxu0 %v8900
      %v8955 = vpop.f32.mrf.mxu0
      %v8956 = vadd.f32 %v8318, %v8955
      %8957 = vmatmul.f32.gmra.mxu0 %v8902
      %v8958 = vpop.f32.mrf.mxu0
      %v8959 = vadd.f32 %v8318, %v8958
      %8960 = vmatmul.f32.gmra.mxu0 %v8904
      %v8961 = vpop.f32.mrf.mxu0
      %v8962 = vadd.f32 %v8318, %v8961
      %8963 = vmatmul.f32.gmra.mxu0 %v8906
      %v8964 = vpop.f32.mrf.mxu0
      %v8965 = vadd.f32 %v8318, %v8964
      %8966 = vmatmul.f32.gmra.mxu0 %v8908
      %v8967 = vpop.f32.mrf.mxu0
      %v8968 = vadd.f32 %v8318, %v8967
      %8969 = vmatmul.f32.gmra.mxu0 %v8910
      %v8970 = vpop.f32.mrf.mxu0
      %v8971 = vadd.f32 %v8318, %v8970
      %8972 = vmatmul.f32.gmra.mxu0 %v8912
      %v8973 = vpop.f32.mrf.mxu0
      %v8974 = vadd.f32 %v8318, %v8973
      %8975 = vmatmul.f32.gmra.mxu0 %v8914
      %v8976 = vpop.f32.mrf.mxu0
      %v8977 = vadd.f32 %v8318, %v8976
      %8978 = vmatmul.f32.gmra.mxu0 %v8916
      %v8979 = vpop.f32.mrf.mxu0
      %v8980 = vadd.f32 %v8318, %v8979
      %8981 = vmatmul.f32.gmra.mxu0 %v8918
      %v8982 = vpop.f32.mrf.mxu0
      %v8983 = vadd.f32 %v8318, %v8982
      %8984 = vdwg.mxu0
      %v8985 = vsel %vm1298, %v8938, 0.0
      %v8986 = vsel %vm1298, %v8941, 0.0
      %v8987 = vadd.f32 %v8985, %v8986
      %v8988 = vsel %vm1298, %v8944, 0.0
      %v8989 = vadd.f32 %v8987, %v8988
      %v8990 = vsel %vm1298, %v8947, 0.0
      %v8991 = vadd.f32 %v8989, %v8990
      %v8992 = vsel %vm1298, %v8950, 0.0
      %v8993 = vadd.f32 %v8991, %v8992
      %v8994 = vsel %vm1298, %v8953, 0.0
      %v8995 = vadd.f32 %v8993, %v8994
      %v8996 = vsel %vm1298, %v8956, 0.0
      %v8997 = vadd.f32 %v8995, %v8996
      %v8998 = vsel %vm1298, %v8959, 0.0
      %v8999 = vadd.f32 %v8997, %v8998
      %v9000 = vsel %vm1298, %v8962, 0.0
      %v9001 = vadd.f32 %v8999, %v9000
      %v9002 = vsel %vm1298, %v8965, 0.0
      %v9003 = vadd.f32 %v9001, %v9002
      %v9004 = vsel %vm1298, %v8968, 0.0
      %v9005 = vadd.f32 %v9003, %v9004
      %v9006 = vsel %vm1298, %v8971, 0.0
      %v9007 = vadd.f32 %v9005, %v9006
      %v9008 = vsel %vm1298, %v8974, 0.0
      %v9009 = vadd.f32 %v9007, %v9008
      %v9010 = vsel %vm1298, %v8977, 0.0
      %v9011 = vadd.f32 %v9009, %v9010
      %v9012 = vsel %vm1298, %v8980, 0.0
      %v9013 = vadd.f32 %v9011, %v9012
      %v9014 = vsel %vm1298, %v8983, 0.0
      %v9015 = vadd.f32 %v9013, %v9014
      %v9016 = vrot.slane %v9015, 4
      %v9017 = vadd.f32 %v9015, %v9016
      %v9018 = vrot.slane %v9017, 2
      %v9019 = vadd.f32 %v9017, %v9018
      %v9020 = vrot.slane %v9019, 1
      %v9021 = vadd.f32 %v9019, %v9020
      %v9022 = vadd.f32 %v8823, %v9021
      %v9023 = vmul.f32 %v9022, 0.001953125
      %v9024 = vsub.f32 %v8389, %v9023
      %v9025 = vsub.f32 %v8392, %v9023
      %v9026 = vsub.f32 %v8395, %v9023
      %v9027 = vsub.f32 %v8398, %v9023
      %v9028 = vsub.f32 %v8401, %v9023
      %v9029 = vsub.f32 %v8404, %v9023
      %v9030 = vsub.f32 %v8407, %v9023
      %v9031 = vsub.f32 %v8410, %v9023
      %v9032 = vsub.f32 %v8413, %v9023
      %v9033 = vsub.f32 %v8416, %v9023
      %v9034 = vsub.f32 %v8419, %v9023
      %v9035 = vsub.f32 %v8422, %v9023
      %v9036 = vsub.f32 %v8425, %v9023
      %v9037 = vsub.f32 %v8428, %v9023
      %v9038 = vsub.f32 %v8431, %v9023
      %v9039 = vsub.f32 %v8434, %v9023
      %v9040 = vmul.f32 %v9024, %v9024
      %v9041 = vmul.f32 %v9025, %v9025
      %v9042 = vmul.f32 %v9026, %v9026
      %v9043 = vmul.f32 %v9027, %v9027
      %v9044 = vmul.f32 %v9028, %v9028
      %v9045 = vmul.f32 %v9029, %v9029
      %v9046 = vmul.f32 %v9030, %v9030
      %v9047 = vmul.f32 %v9031, %v9031
      %v9048 = vmul.f32 %v9032, %v9032
      %v9049 = vmul.f32 %v9033, %v9033
      %v9050 = vmul.f32 %v9034, %v9034
      %v9051 = vmul.f32 %v9035, %v9035
      %v9052 = vmul.f32 %v9036, %v9036
      %v9053 = vmul.f32 %v9037, %v9037
      %v9054 = vmul.f32 %v9038, %v9038
      %v9055 = vmul.f32 %v9039, %v9039
      %v9056 = vsel %vm1298, %v9040, 0.0
      %v9057 = vsel %vm1298, %v9041, 0.0
      %v9058 = vadd.f32 %v9056, %v9057
      %v9059 = vsel %vm1298, %v9042, 0.0
      %v9060 = vadd.f32 %v9058, %v9059
      %v9061 = vsel %vm1298, %v9043, 0.0
      %v9062 = vadd.f32 %v9060, %v9061
      %v9063 = vsel %vm1298, %v9044, 0.0
      %v9064 = vadd.f32 %v9062, %v9063
      %v9065 = vsel %vm1298, %v9045, 0.0
      %v9066 = vadd.f32 %v9064, %v9065
      %v9067 = vsel %vm1298, %v9046, 0.0
      %v9068 = vadd.f32 %v9066, %v9067
      %v9069 = vsel %vm1298, %v9047, 0.0
      %v9070 = vadd.f32 %v9068, %v9069
      %v9071 = vsel %vm1298, %v9048, 0.0
      %v9072 = vadd.f32 %v9070, %v9071
      %v9073 = vsel %vm1298, %v9049, 0.0
      %v9074 = vadd.f32 %v9072, %v9073
      %v9075 = vsel %vm1298, %v9050, 0.0
      %v9076 = vadd.f32 %v9074, %v9075
      %v9077 = vsel %vm1298, %v9051, 0.0
      %v9078 = vadd.f32 %v9076, %v9077
      %v9079 = vsel %vm1298, %v9052, 0.0
      %v9080 = vadd.f32 %v9078, %v9079
      %v9081 = vsel %vm1298, %v9053, 0.0
      %v9082 = vadd.f32 %v9080, %v9081
      %v9083 = vsel %vm1298, %v9054, 0.0
      %v9084 = vadd.f32 %v9082, %v9083
      %v9085 = vsel %vm1298, %v9055, 0.0
      %v9086 = vadd.f32 %v9084, %v9085
      %v9087 = vrot.slane %v9086, 4
      %v9088 = vadd.f32 %v9086, %v9087
      %v9089 = vrot.slane %v9088, 2
      %v9090 = vadd.f32 %v9088, %v9089
      %v9091 = vrot.slane %v9090, 1
      %v9092 = vadd.f32 %v9090, %v9091
      %v9093 = vadd.f32 %v9092, 0.0
      %9094 = vst.msk [vmem:[%s381] sm:$0xff] %vm1298, %v8389
      %9095 = vst.msk [vmem:[%s381 + $0x8] sm:$0xff] %vm1298, %v8392
      %9096 = vst.msk [vmem:[%s381 + $0x10] sm:$0xff] %vm1298, %v8395
      %9097 = vst.msk [vmem:[%s381 + $0x18] sm:$0xff] %vm1298, %v8398
      %9098 = vst.msk [vmem:[%s381 + $0x20] sm:$0xff] %vm1298, %v8401
      %9099 = vst.msk [vmem:[%s381 + $0x28] sm:$0xff] %vm1298, %v8404
      %9100 = vst.msk [vmem:[%s381 + $0x30] sm:$0xff] %vm1298, %v8407
      %9101 = vst.msk [vmem:[%s381 + $0x38] sm:$0xff] %vm1298, %v8410
      %9102 = vst.msk [vmem:[%s381 + $0x40] sm:$0xff] %vm1298, %v8413
      %9103 = vst.msk [vmem:[%s381 + $0x48] sm:$0xff] %vm1298, %v8416
      %9104 = vst.msk [vmem:[%s381 + $0x50] sm:$0xff] %vm1298, %v8419
      %9105 = vst.msk [vmem:[%s381 + $0x58] sm:$0xff] %vm1298, %v8422
      %9106 = vst.msk [vmem:[%s381 + $0x60] sm:$0xff] %vm1298, %v8425
      %9107 = vst.msk [vmem:[%s381 + $0x68] sm:$0xff] %vm1298, %v8428
      %9108 = vst.msk [vmem:[%s381 + $0x70] sm:$0xff] %vm1298, %v8431
      %9109 = vst.msk [vmem:[%s381 + $0x78] sm:$0xff] %vm1298, %v8434
      %v9110 = vsub.f32 %v8588, %v9023
      %v9111 = vsub.f32 %v8591, %v9023
      %v9112 = vsub.f32 %v8594, %v9023
      %v9113 = vsub.f32 %v8597, %v9023
      %v9114 = vsub.f32 %v8600, %v9023
      %v9115 = vsub.f32 %v8603, %v9023
      %v9116 = vsub.f32 %v8606, %v9023
      %v9117 = vsub.f32 %v8609, %v9023
      %v9118 = vsub.f32 %v8612, %v9023
      %v9119 = vsub.f32 %v8615, %v9023
      %v9120 = vsub.f32 %v8618, %v9023
      %v9121 = vsub.f32 %v8621, %v9023
      %v9122 = vsub.f32 %v8624, %v9023
      %v9123 = vsub.f32 %v8627, %v9023
      %v9124 = vsub.f32 %v8630, %v9023
      %v9125 = vsub.f32 %v8633, %v9023
      %v9126 = vmul.f32 %v9110, %v9110
      %v9127 = vmul.f32 %v9111, %v9111
      %v9128 = vmul.f32 %v9112, %v9112
      %v9129 = vmul.f32 %v9113, %v9113
      %v9130 = vmul.f32 %v9114, %v9114
      %v9131 = vmul.f32 %v9115, %v9115
      %v9132 = vmul.f32 %v9116, %v9116
      %v9133 = vmul.f32 %v9117, %v9117
      %v9134 = vmul.f32 %v9118, %v9118
      %v9135 = vmul.f32 %v9119, %v9119
      %v9136 = vmul.f32 %v9120, %v9120
      %v9137 = vmul.f32 %v9121, %v9121
      %v9138 = vmul.f32 %v9122, %v9122
      %v9139 = vmul.f32 %v9123, %v9123
      %v9140 = vmul.f32 %v9124, %v9124
      %v9141 = vmul.f32 %v9125, %v9125
      %v9142 = vsel %vm1298, %v9126, 0.0
      %v9143 = vsel %vm1298, %v9127, 0.0
      %v9144 = vadd.f32 %v9142, %v9143
      %v9145 = vsel %vm1298, %v9128, 0.0
      %v9146 = vadd.f32 %v9144, %v9145
      %v9147 = vsel %vm1298, %v9129, 0.0
      %v9148 = vadd.f32 %v9146, %v9147
      %v9149 = vsel %vm1298, %v9130, 0.0
      %v9150 = vadd.f32 %v9148, %v9149
      %v9151 = vsel %vm1298, %v9131, 0.0
      %v9152 = vadd.f32 %v9150, %v9151
      %v9153 = vsel %vm1298, %v9132, 0.0
      %v9154 = vadd.f32 %v9152, %v9153
      %v9155 = vsel %vm1298, %v9133, 0.0
      %v9156 = vadd.f32 %v9154, %v9155
      %v9157 = vsel %vm1298, %v9134, 0.0
      %v9158 = vadd.f32 %v9156, %v9157
      %v9159 = vsel %vm1298, %v9135, 0.0
      %v9160 = vadd.f32 %v9158, %v9159
      %v9161 = vsel %vm1298, %v9136, 0.0
      %v9162 = vadd.f32 %v9160, %v9161
      %v9163 = vsel %vm1298, %v9137, 0.0
      %v9164 = vadd.f32 %v9162, %v9163
      %v9165 = vsel %vm1298, %v9138, 0.0
      %v9166 = vadd.f32 %v9164, %v9165
      %v9167 = vsel %vm1298, %v9139, 0.0
      %v9168 = vadd.f32 %v9166, %v9167
      %v9169 = vsel %vm1298, %v9140, 0.0
      %v9170 = vadd.f32 %v9168, %v9169
      %v9171 = vsel %vm1298, %v9141, 0.0
      %v9172 = vadd.f32 %v9170, %v9171
      %v9173 = vrot.slane %v9172, 4
      %v9174 = vadd.f32 %v9172, %v9173
      %v9175 = vrot.slane %v9174, 2
      %v9176 = vadd.f32 %v9174, %v9175
      %v9177 = vrot.slane %v9176, 1
      %v9178 = vadd.f32 %v9176, %v9177
      %v9179 = vadd.f32 %v9093, %v9178
      %s9180 = scalar_lea.vmem %s381, 128
      %9181 = vst.msk [vmem:[%s9180] sm:$0xff] %vm1298, %v8588
      %9182 = vst.msk [vmem:[%s9180 + $0x8] sm:$0xff] %vm1298, %v8591
      %9183 = vst.msk [vmem:[%s9180 + $0x10] sm:$0xff] %vm1298, %v8594
      %9184 = vst.msk [vmem:[%s9180 + $0x18] sm:$0xff] %vm1298, %v8597
      %9185 = vst.msk [vmem:[%s9180 + $0x20] sm:$0xff] %vm1298, %v8600
      %9186 = vst.msk [vmem:[%s9180 + $0x28] sm:$0xff] %vm1298, %v8603
      %9187 = vst.msk [vmem:[%s9180 + $0x30] sm:$0xff] %vm1298, %v8606
      %9188 = vst.msk [vmem:[%s9180 + $0x38] sm:$0xff] %vm1298, %v8609
      %9189 = vst.msk [vmem:[%s9180 + $0x40] sm:$0xff] %vm1298, %v8612
      %9190 = vst.msk [vmem:[%s9180 + $0x48] sm:$0xff] %vm1298, %v8615
      %9191 = vst.msk [vmem:[%s9180 + $0x50] sm:$0xff] %vm1298, %v8618
      %9192 = vst.msk [vmem:[%s9180 + $0x58] sm:$0xff] %vm1298, %v8621
      %9193 = vst.msk [vmem:[%s9180 + $0x60] sm:$0xff] %vm1298, %v8624
      %9194 = vst.msk [vmem:[%s9180 + $0x68] sm:$0xff] %vm1298, %v8627
      %9195 = vst.msk [vmem:[%s9180 + $0x70] sm:$0xff] %vm1298, %v8630
      %9196 = vst.msk [vmem:[%s9180 + $0x78] sm:$0xff] %vm1298, %v8633
      %v9197 = vsub.f32 %v8739, %v9023
      %v9198 = vsub.f32 %v8742, %v9023
      %v9199 = vsub.f32 %v8745, %v9023
      %v9200 = vsub.f32 %v8748, %v9023
      %v9201 = vsub.f32 %v8751, %v9023
      %v9202 = vsub.f32 %v8754, %v9023
      %v9203 = vsub.f32 %v8757, %v9023
      %v9204 = vsub.f32 %v8760, %v9023
      %v9205 = vsub.f32 %v8763, %v9023
      %v9206 = vsub.f32 %v8766, %v9023
      %v9207 = vsub.f32 %v8769, %v9023
      %v9208 = vsub.f32 %v8772, %v9023
      %v9209 = vsub.f32 %v8775, %v9023
      %v9210 = vsub.f32 %v8778, %v9023
      %v9211 = vsub.f32 %v8781, %v9023
      %v9212 = vsub.f32 %v8784, %v9023
      %v9213 = vmul.f32 %v9197, %v9197
      %v9214 = vmul.f32 %v9198, %v9198
      %v9215 = vmul.f32 %v9199, %v9199
      %v9216 = vmul.f32 %v9200, %v9200
      %v9217 = vmul.f32 %v9201, %v9201
      %v9218 = vmul.f32 %v9202, %v9202
      %v9219 = vmul.f32 %v9203, %v9203
      %v9220 = vmul.f32 %v9204, %v9204
      %v9221 = vmul.f32 %v9205, %v9205
      %v9222 = vmul.f32 %v9206, %v9206
      %v9223 = vmul.f32 %v9207, %v9207
      %v9224 = vmul.f32 %v9208, %v9208
      %v9225 = vmul.f32 %v9209, %v9209
      %v9226 = vmul.f32 %v9210, %v9210
      %v9227 = vmul.f32 %v9211, %v9211
      %v9228 = vmul.f32 %v9212, %v9212
      %v9229 = vsel %vm1298, %v9213, 0.0
      %v9230 = vsel %vm1298, %v9214, 0.0
      %v9231 = vadd.f32 %v9229, %v9230
      %v9232 = vsel %vm1298, %v9215, 0.0
      %v9233 = vadd.f32 %v9231, %v9232
      %v9234 = vsel %vm1298, %v9216, 0.0
      %v9235 = vadd.f32 %v9233, %v9234
      %v9236 = vsel %vm1298, %v9217, 0.0
      %v9237 = vadd.f32 %v9235, %v9236
      %v9238 = vsel %vm1298, %v9218, 0.0
      %v9239 = vadd.f32 %v9237, %v9238
      %v9240 = vsel %vm1298, %v9219, 0.0
      %v9241 = vadd.f32 %v9239, %v9240
      %v9242 = vsel %vm1298, %v9220, 0.0
      %v9243 = vadd.f32 %v9241, %v9242
      %v9244 = vsel %vm1298, %v9221, 0.0
      %v9245 = vadd.f32 %v9243, %v9244
      %v9246 = vsel %vm1298, %v9222, 0.0
      %v9247 = vadd.f32 %v9245, %v9246
      %v9248 = vsel %vm1298, %v9223, 0.0
      %v9249 = vadd.f32 %v9247, %v9248
      %v9250 = vsel %vm1298, %v9224, 0.0
      %v9251 = vadd.f32 %v9249, %v9250
      %v9252 = vsel %vm1298, %v9225, 0.0
      %v9253 = vadd.f32 %v9251, %v9252
      %v9254 = vsel %vm1298, %v9226, 0.0
      %v9255 = vadd.f32 %v9253, %v9254
      %v9256 = vsel %vm1298, %v9227, 0.0
      %v9257 = vadd.f32 %v9255, %v9256
      %v9258 = vsel %vm1298, %v9228, 0.0
      %v9259 = vadd.f32 %v9257, %v9258
      %v9260 = vrot.slane %v9259, 4
      %v9261 = vadd.f32 %v9259, %v9260
      %v9262 = vrot.slane %v9261, 2
      %v9263 = vadd.f32 %v9261, %v9262
      %v9264 = vrot.slane %v9263, 1
      %v9265 = vadd.f32 %v9263, %v9264
      %v9266 = vadd.f32 %v9179, %v9265
      %s9267 = scalar_lea.vmem %s381, 256
      %9268 = vst.msk [vmem:[%s9267] sm:$0xff] %vm1298, %v8739
      %9269 = vst.msk [vmem:[%s9267 + $0x8] sm:$0xff] %vm1298, %v8742
      %9270 = vst.msk [vmem:[%s9267 + $0x10] sm:$0xff] %vm1298, %v8745
      %9271 = vst.msk [vmem:[%s9267 + $0x18] sm:$0xff] %vm1298, %v8748
      %9272 = vst.msk [vmem:[%s9267 + $0x20] sm:$0xff] %vm1298, %v8751
      %9273 = vst.msk [vmem:[%s9267 + $0x28] sm:$0xff] %vm1298, %v8754
      %9274 = vst.msk [vmem:[%s9267 + $0x30] sm:$0xff] %vm1298, %v8757
      %9275 = vst.msk [vmem:[%s9267 + $0x38] sm:$0xff] %vm1298, %v8760
      %9276 = vst.msk [vmem:[%s9267 + $0x40] sm:$0xff] %vm1298, %v8763
      %9277 = vst.msk [vmem:[%s9267 + $0x48] sm:$0xff] %vm1298, %v8766
      %9278 = vst.msk [vmem:[%s9267 + $0x50] sm:$0xff] %vm1298, %v8769
      %9279 = vst.msk [vmem:[%s9267 + $0x58] sm:$0xff] %vm1298, %v8772
      %9280 = vst.msk [vmem:[%s9267 + $0x60] sm:$0xff] %vm1298, %v8775
      %9281 = vst.msk [vmem:[%s9267 + $0x68] sm:$0xff] %vm1298, %v8778
      %9282 = vst.msk [vmem:[%s9267 + $0x70] sm:$0xff] %vm1298, %v8781
      %9283 = vst.msk [vmem:[%s9267 + $0x78] sm:$0xff] %vm1298, %v8784
      %v9284 = vsub.f32 %v8938, %v9023
      %v9285 = vsub.f32 %v8941, %v9023
      %v9286 = vsub.f32 %v8944, %v9023
      %v9287 = vsub.f32 %v8947, %v9023
      %v9288 = vsub.f32 %v8950, %v9023
      %v9289 = vsub.f32 %v8953, %v9023
      %v9290 = vsub.f32 %v8956, %v9023
      %v9291 = vsub.f32 %v8959, %v9023
      %v9292 = vsub.f32 %v8962, %v9023
      %v9293 = vsub.f32 %v8965, %v9023
      %v9294 = vsub.f32 %v8968, %v9023
      %v9295 = vsub.f32 %v8971, %v9023
      %v9296 = vsub.f32 %v8974, %v9023
      %v9297 = vsub.f32 %v8977, %v9023
      %v9298 = vsub.f32 %v8980, %v9023
      %v9299 = vsub.f32 %v8983, %v9023
      %v9300 = vmul.f32 %v9284, %v9284
      %v9301 = vmul.f32 %v9285, %v9285
      %v9302 = vmul.f32 %v9286, %v9286
      %v9303 = vmul.f32 %v9287, %v9287
      %v9304 = vmul.f32 %v9288, %v9288
      %v9305 = vmul.f32 %v9289, %v9289
      %v9306 = vmul.f32 %v9290, %v9290
      %v9307 = vmul.f32 %v9291, %v9291
      %v9308 = vmul.f32 %v9292, %v9292
      %v9309 = vmul.f32 %v9293, %v9293
      %v9310 = vmul.f32 %v9294, %v9294
      %v9311 = vmul.f32 %v9295, %v9295
      %v9312 = vmul.f32 %v9296, %v9296
      %v9313 = vmul.f32 %v9297, %v9297
      %v9314 = vmul.f32 %v9298, %v9298
      %v9315 = vmul.f32 %v9299, %v9299
      %v9316 = vsel %vm1298, %v9300, 0.0
      %v9317 = vsel %vm1298, %v9301, 0.0
      %v9318 = vadd.f32 %v9316, %v9317
      %v9319 = vsel %vm1298, %v9302, 0.0
      %v9320 = vadd.f32 %v9318, %v9319
      %v9321 = vsel %vm1298, %v9303, 0.0
      %v9322 = vadd.f32 %v9320, %v9321
      %v9323 = vsel %vm1298, %v9304, 0.0
      %v9324 = vadd.f32 %v9322, %v9323
      %v9325 = vsel %vm1298, %v9305, 0.0
      %v9326 = vadd.f32 %v9324, %v9325
      %v9327 = vsel %vm1298, %v9306, 0.0
      %v9328 = vadd.f32 %v9326, %v9327
      %v9329 = vsel %vm1298, %v9307, 0.0
      %v9330 = vadd.f32 %v9328, %v9329
      %v9331 = vsel %vm1298, %v9308, 0.0
      %v9332 = vadd.f32 %v9330, %v9331
      %v9333 = vsel %vm1298, %v9309, 0.0
      %v9334 = vadd.f32 %v9332, %v9333
      %v9335 = vsel %vm1298, %v9310, 0.0
      %v9336 = vadd.f32 %v9334, %v9335
      %v9337 = vsel %vm1298, %v9311, 0.0
      %v9338 = vadd.f32 %v9336, %v9337
      %v9339 = vsel %vm1298, %v9312, 0.0
      %v9340 = vadd.f32 %v9338, %v9339
      %v9341 = vsel %vm1298, %v9313, 0.0
      %v9342 = vadd.f32 %v9340, %v9341
      %v9343 = vsel %vm1298, %v9314, 0.0
      %v9344 = vadd.f32 %v9342, %v9343
      %v9345 = vsel %vm1298, %v9315, 0.0
      %v9346 = vadd.f32 %v9344, %v9345
      %v9347 = vrot.slane %v9346, 4
      %v9348 = vadd.f32 %v9346, %v9347
      %v9349 = vrot.slane %v9348, 2
      %v9350 = vadd.f32 %v9348, %v9349
      %v9351 = vrot.slane %v9350, 1
      %v9352 = vadd.f32 %v9350, %v9351
      %v9353 = vadd.f32 %v9266, %v9352
      %s9354 = scalar_lea.vmem %s381, 384
      %9355 = vst.msk [vmem:[%s9354] sm:$0xff] %vm1298, %v8938
      %9356 = vst.msk [vmem:[%s9354 + $0x8] sm:$0xff] %vm1298, %v8941
      %9357 = vst.msk [vmem:[%s9354 + $0x10] sm:$0xff] %vm1298, %v8944
      %9358 = vst.msk [vmem:[%s9354 + $0x18] sm:$0xff] %vm1298, %v8947
      %9359 = vst.msk [vmem:[%s9354 + $0x20] sm:$0xff] %vm1298, %v8950
      %9360 = vst.msk [vmem:[%s9354 + $0x28] sm:$0xff] %vm1298, %v8953
      %9361 = vst.msk [vmem:[%s9354 + $0x30] sm:$0xff] %vm1298, %v8956
      %9362 = vst.msk [vmem:[%s9354 + $0x38] sm:$0xff] %vm1298, %v8959
      %9363 = vst.msk [vmem:[%s9354 + $0x40] sm:$0xff] %vm1298, %v8962
      %9364 = vst.msk [vmem:[%s9354 + $0x48] sm:$0xff] %vm1298, %v8965
      %9365 = vst.msk [vmem:[%s9354 + $0x50] sm:$0xff] %vm1298, %v8968
      %9366 = vst.msk [vmem:[%s9354 + $0x58] sm:$0xff] %vm1298, %v8971
      %9367 = vst.msk [vmem:[%s9354 + $0x60] sm:$0xff] %vm1298, %v8974
      %9368 = vst.msk [vmem:[%s9354 + $0x68] sm:$0xff] %vm1298, %v8977
      %9369 = vst.msk [vmem:[%s9354 + $0x70] sm:$0xff] %vm1298, %v8980
      %9370 = vst.msk [vmem:[%s9354 + $0x78] sm:$0xff] %vm1298, %v8983
      %v9371 = vsel %vm680, %v9022, %v9353
      %vm9372 = vcmask 25600
      %9373 = vst.msk [vmem:[%s389] sm:$0x3] %vm9372, %v9371
      %p9374 = scmp.lt.s32.totalorder %s25, 1
      %s9375 = scalar_select %p9374, %s25, 1
      %p9376 = scmp.lt.s32.totalorder %s26, 1
      %s9377 = scalar_select %p9376, %s26, 1
      %s9378 = smul.addr %s9377, 64
      %s9379 = smul.addr %s9375, 128
      %s9380 = sadd.s32 %s9378, %s9379
      %s9381 = smul.addr %s9380, 8
      %s9382 = scalar_lea.vmem %s8, %s9381
      %p9383 = scmp.lt.s32.totalorder %s25, 1
      %s9384 = scalar_select %p9383, %s25, 1
      %p9385 = scmp.lt.s32.totalorder %s26, 1
      %s9386 = scalar_select %p9385, %s26, 1
      %s9387 = smul.addr %s9384, 2
      %s9388 = sadd.s32 %s9386, %s9387
      %s9389 = smul.addr %s9388, 2
      %s9390 = scalar_lea.vmem %s9, %s9389
      // Predicated region
      $region53: #{upscale_block_pallas.2} parent=51 // pred_check
        %p9391 = pneg %p228
      $region54: #{upscale_block_pallas.2} parent=51 // pred_check_branch
        %9393 = sbr.rel (%p9391) target = $region56
      $region55: #{upscale_block_pallas.2} parent=51 // pred_region
        _
      $region56: #{upscale_block_pallas.2} parent=51 // pred_fallthru
        _
      // Predicated region
      $region57: #{upscale_block_pallas.2} parent=51 // pred_check
        %p9394 = pneg %p256
      $region58: #{upscale_block_pallas.2} parent=51 // pred_check_branch
        %9396 = sbr.rel (%p9394) target = $region60
      $region59: #{upscale_block_pallas.2} parent=51 // pred_region
        _
      $region60: #{upscale_block_pallas.2} parent=51 // pred_fallthru
        _
    $region52: #{upscale_block_pallas.2} parent=5 // pred_fallthru
      _
    %p9397 = scmp.le.s32.totalorder 2, %s16
    // Predicated region
    $region61: #{upscale_block_pallas.2} parent=5 // pred_check
      %p9398 = pneg %p9397
    $region62: #{upscale_block_pallas.2} parent=5 // pred_check_branch
      %9400 = sbr.rel (%p9398) target = $region64
    $region63: #{upscale_block_pallas.2} parent=5 // pred_region
      %s9401 = ssub.s32 %s16, 2
      // Predicated region
      $region65: #{upscale_block_pallas.2} parent=63 // pred_check
        %p9402 = pneg %p234
      $region66: #{upscale_block_pallas.2} parent=63 // pred_check_branch
        %9404 = sbr.rel (%p9402) target = $region68
      $region67: #{upscale_block_pallas.2} parent=63 // pred_region
        %p9405 = scmp.lt.s32.totalorder %s27, 1
        %s9406 = scalar_select %p9405, %s27, 1
        %p9407 = scmp.lt.s32.totalorder %s28, 1
        %s9408 = scalar_select %p9407, %s28, 1
        %s9409 = smul.addr %s9408, 64
        %s9410 = smul.addr %s9406, 128
        %s9411 = sadd.s32 %s9409, %s9410
        %s9412 = smul.addr %s9411, 8
        %s9413 = scalar_lea.vmem %s8, %s9412
      $region68: #{upscale_block_pallas.2} parent=63 // pred_fallthru
        _
      // Predicated region
      $region69: #{upscale_block_pallas.2} parent=63 // pred_check
        %p9414 = pneg %p262
      $region70: #{upscale_block_pallas.2} parent=63 // pred_check_branch
        %9416 = sbr.rel (%p9414) target = $region72
      $region71: #{upscale_block_pallas.2} parent=63 // pred_region
        %p9417 = scmp.lt.s32.totalorder %s27, 1
        %s9418 = scalar_select %p9417, %s27, 1
        %p9419 = scmp.lt.s32.totalorder %s28, 1
        %s9420 = scalar_select %p9419, %s28, 1
        %s9421 = smul.addr %s9418, 2
        %s9422 = sadd.s32 %s9420, %s9421
        %s9423 = smul.addr %s9422, 2
        %s9424 = scalar_lea.vmem %s9, %s9423
      $region72: #{upscale_block_pallas.2} parent=63 // pred_fallthru
        _
    $region64: #{upscale_block_pallas.2} parent=5 // pred_fallthru
      _
  $region6: #{upscale_block_pallas.2} parent=0 // loop_footer
    %s20 = sadd.s32 1, %s16
  $region7: #{upscale_block_pallas.2} parent=0 // loop_footer_branch
    %15 = sbr.rel target = $region3
  $region8: #{upscale_block_pallas.2} parent=0 // loop_exit
    _

</llo_original>
